<compile_context>
chip_gen: v7x
topology: tpu7x:2x2x1
jax: 0.10.0
libtpu: 0.0.40
codegen_flags: <defaults>
</compile_context>

<pallas_src>
import functools
import math

import jax
import jax.numpy as jnp
import numpy as np
from jax.experimental import pallas as pl
from jax.experimental.pallas import tpu as pltpu


# ----------------------------------------------------------------------------
# Fused Pallas kernel
# ----------------------------------------------------------------------------
def _fused_kernel(branch_ref, trunk_ref,
                  conv_w_ref, conv_b_ref,
                  trunk_w_ref, trunk_b_ref,
                  w1a_ref, w1b_ref, b1_ref,
                  mix_w_ref, mix_b_ref,
                  mix_wl_ref, mix_bl_ref,
                  out_ref, pad_ref,
                  *, n_conv, n_trunk, n_mix_mid, H, W):
    """Whole DeepONet_Conv forward; activations never leave VMEM.

    branch_ref : (H, W, cin_pad) bf16   (input channels zero-padded)
    trunk_ref  : (P, dpad)       bf16   (input features zero-padded)
    conv_w_ref : (n_conv*9, cin_pad, units) bf16   per-tap weight slabs
    conv_b_ref : (n_conv, 1, units) f32  (last conv's scalar bias replicated)
    trunk_w/b  : (n_trunk, dpad, dpad) bf16 / (n_trunk, 1, dpad) f32
    w1a_ref    : (H*W, u_mix) bf16 ; w1b_ref: (dpad, u_mix) bf16 ; b1: (1,u_mix)
    mix_w/b    : (n_mix_mid, u_mix, u_mix) bf16 / (n_mix_mid, 1, u_mix) f32
    mix_wl/bl  : (u_mix, out_dim) bf16 / (1, out_dim) f32
    pad_ref    : (H+2, W+2, cin_pad) bf16 scratch (zero border for SAME conv)
    """
    f32 = jnp.float32
    bf16 = jnp.bfloat16
    HW = H * W
    cin_pad = pad_ref.shape[-1]
    units = conv_b_ref.shape[-1]

    # ---------------- branch CNN: 3x3 SAME convs, ReLU on all but last -------
    # Zero the padded scratch once; only the interior is rewritten per layer so
    # the 1-pixel zero border persists.  Stale channels >= units are harmless
    # because the corresponding packed weight rows are zero.
    pad_ref[...] = jnp.zeros_like(pad_ref)
    pad_ref[1:H + 1, 1:W + 1, :] = branch_ref[...]

    bflat_rep = None
    for li in range(n_conv):
        # 9 accumulated MXU dots (one per tap) instead of a lane-axis im2col
        # concat: bf16 operands, f32 accumulation.
        acc = jnp.zeros((HW, units), f32)
        for t in range(9):
            dy, dx = t // 3, t % 3
            tap = pad_ref[dy:dy + H, dx:dx + W, :].reshape(HW, cin_pad)
            acc = acc + jnp.dot(tap, conv_w_ref[li * 9 + t],
                                preferred_element_type=f32)
        acc = acc + conv_b_ref[li]                       # f32 bias on accumulator
        if li < n_conv - 1:
            acc = jnp.maximum(acc, 0.0)
            pad_ref[1:H + 1, 1:W + 1, :units] = (
                acc.reshape(H, W, units).astype(bf16))   # only writeback is cast
        else:
            # Last conv's single output column was replicated across `units`
            # lanes in the wrapper -> every lane of acc already holds
            # ravel(branch_output); no lane broadcast needed later.
            bflat_rep = acc.astype(bf16)                 # (H*W, units)

    # ---------------- trunk MLP: Linear x n_trunk, ReLU on all but last ------
    h = trunk_ref[...]                                   # (P, dpad) bf16
    for li in range(n_trunk):
        a = jnp.dot(h, trunk_w_ref[li], preferred_element_type=f32) + trunk_b_ref[li]
        if li < n_trunk - 1:
            a = jnp.maximum(a, 0.0)
        h = a.astype(bf16)
    trunk_q = h                                          # (P, dpad) bf16

    # ---------------- mix MLP ------------------------------------------------
    # cat([branch.repeat, trunk]) @ W1 == bflat @ W1a + trunk @ W1b.
    # Branch term: lane-replicated bflat * W1a, reduced over the sublane axis.
    u_mix = w1a_ref.shape[-1]
    if u_mix == bflat_rep.shape[-1]:
        brep = bflat_rep
    else:  # only if mix width != conv width (not the case for this module)
        brep = jnp.broadcast_to(bflat_rep[:, :1], (HW, u_mix))
    bcontrib = jnp.sum(brep.astype(f32) * w1a_ref[...].astype(f32),
                       axis=0, keepdims=True)            # (1, u_mix)
    m = (bcontrib
         + jnp.dot(trunk_q, w1b_ref[...], preferred_element_type=f32)
         + b1_ref[...])
    m = jnp.maximum(m, 0.0)
    for li in range(n_mix_mid):
        m = jnp.dot(m.astype(bf16), mix_w_ref[li],
                    preferred_element_type=f32) + mix_b_ref[li]
        m = jnp.maximum(m, 0.0)
    out = jnp.dot(m.astype(bf16), mix_wl_ref[...],
                  preferred_element_type=f32) + mix_bl_ref[...]
    out_ref[...] = out


# ----------------------------------------------------------------------------
# Wrapper: parameter packing + single pallas_call
# ----------------------------------------------------------------------------
def _vmem():
    return pl.BlockSpec(memory_space=pltpu.MemorySpace.VMEM)


def deeponet_conv_forward(branch_input, trunk_input, params):
    """branch_input: (H, W, 18) HWC; trunk_input: (P, 3). Returns (P, 3)."""
    bf16, f32 = jnp.bfloat16, jnp.float32
    conv_params = params["branch"]
    trunk_params = params["trunk"]
    mix_params = params["mix"]

    H, W, c_in0 = branch_input.shape
    n2 = H * W
    P = trunk_input.shape[0]
    units = conv_params[0][0].shape[-1]
    out_dim = mix_params[-1][0].shape[-1]
    num_mid = trunk_params[-1][0].shape[-1]
    cin_pad = max(c_in0, units)                       # covers every Cin & Cout
    dpad = max(trunk_input.shape[1], units, num_mid)  # uniform trunk width

    # --- conv weights -> per-tap slabs (n_conv*9, cin_pad, units) bf16 -------
    conv_w_list, conv_b_list = [], []
    for (w, b) in conv_params:                        # HWIO
        kh, kw, ci, co = w.shape
        wt = w.reshape(kh * kw, ci, co)
        bb = b.reshape(1, co)
        if co != units:                               # last conv (co == 1)
            wt = jnp.broadcast_to(wt[:, :, :1], (kh * kw, ci, units))
            bb = jnp.broadcast_to(bb[:, :1], (1, units))
        wt = jnp.pad(wt, ((0, 0), (0, cin_pad - ci), (0, 0)))  # zero Cin rows
        conv_w_list.append(wt)
        conv_b_list.append(bb)
    conv_w = jnp.concatenate(conv_w_list, axis=0).astype(bf16)
    conv_b = jnp.stack(conv_b_list, axis=0).astype(f32)

    # --- trunk weights -> (n_trunk, dpad, dpad) bf16 / (n_trunk, 1, dpad) f32 -
    tw, tb = [], []
    for (w, b) in trunk_params:
        di, do = w.shape
        tw.append(jnp.pad(w, ((0, dpad - di), (0, dpad - do))))
        tb.append(jnp.pad(b.reshape(1, do), ((0, 0), (0, dpad - do))))
    trunk_w = jnp.stack(tw, axis=0).astype(bf16)
    trunk_b = jnp.stack(tb, axis=0).astype(f32)

    # --- mix: split W1 into branch/trunk halves; pack the 3 middle layers -----
    (w1, b1) = mix_params[0]
    u_mix = w1.shape[1]
    w1a = w1[:n2].astype(bf16)                                        # (n2, u_mix)
    w1b = jnp.pad(w1[n2:], ((0, dpad - num_mid), (0, 0))).astype(bf16)  # (dpad, u_mix)
    b1p = b1.reshape(1, u_mix).astype(f32)
    mix_mid = mix_params[1:-1]
    mix_w = jnp.stack([w for w, _ in mix_mid], axis=0).astype(bf16)
    mix_b = jnp.stack([b.reshape(1, -1) for _, b in mix_mid], axis=0).astype(f32)
    w_last, b_last = mix_params[-1]
    mix_wl = w_last.astype(bf16)
    mix_bl = b_last.reshape(1, out_dim).astype(f32)

    # --- inputs: bf16, channel/lane zero-padded to the uniform widths ---------
    branch_in = jnp.pad(branch_input,
                        ((0, 0), (0, 0), (0, cin_pad - c_in0))).astype(bf16)
    trunk_in = jnp.pad(trunk_input,
                       ((0, 0), (0, dpad - trunk_input.shape[1]))).astype(bf16)

    kernel = functools.partial(
        _fused_kernel, n_conv=len(conv_params), n_trunk=len(trunk_params),
        n_mix_mid=len(mix_mid), H=H, W=W)

    return pl.pallas_call(
        kernel,
        out_shape=jax.ShapeDtypeStruct((P, out_dim), f32),
        in_specs=[_vmem() for _ in range(13)],
        out_specs=_vmem(),
        scratch_shapes=[pltpu.VMEM((H + 2, W + 2, cin_pad), bf16)],
    )(branch_in, trunk_in, conv_w, conv_b, trunk_w, trunk_b,
      w1a, w1b, b1p, mix_w, mix_b, mix_wl, mix_bl)


# ----------------------------------------------------------------------------
# Deterministic parameter init (PyTorch-default-like uniform(-1/sqrt(fan_in)))
# ----------------------------------------------------------------------------
def init_params(key, units, num_mid, n):
    keys = iter(jax.random.split(key, 64))

    def lin(in_dim, out_dim):
        bound = 1.0 / math.sqrt(in_dim)
        w = jax.random.uniform(next(keys), (in_dim, out_dim), jnp.float32, -bound, bound)
        b = jax.random.uniform(next(keys), (1, out_dim), jnp.float32, -bound, bound)
        return w, b

    def conv(in_ch, out_ch):
        bound = 1.0 / math.sqrt(in_ch * 9)
        w = jax.random.uniform(next(keys), (3, 3, in_ch, out_ch), jnp.float32, -bound, bound)
        b = jax.random.uniform(next(keys), (1, out_ch), jnp.float32, -bound, bound)
        return w, b

    branch = ([conv(18, units)] + [conv(units, units) for _ in range(4)]
              + [conv(units, 1)])
    trunk = ([lin(3, units)] + [lin(units, units) for _ in range(6)]
             + [lin(units, num_mid)])
    mix = ([lin(n * n + num_mid, units)] + [lin(units, units) for _ in range(3)]
           + [lin(units, 3)])
    return {"branch": branch, "trunk": trunk, "mix": mix}


# ----------------------------------------------------------------------------
# Pure-JAX reference.  Matmul operands are quantized to bf16 at the same points
# as the kernel (f32 accumulation), so the comparison validates structure
# (SAME padding, tap order, concat/split-W1, ReLU placement, ravel order).
# ----------------------------------------------------------------------------
def reference_forward(branch_input, trunk_input, params):
    bf = jnp.bfloat16
    x = branch_input[None]                              # (1, H, W, C)
    conv_params = params["branch"]
    for i, (w, b) in enumerate(conv_params):
        x = jax.lax.conv_general_dilated(
            x.astype(bf), w.astype(bf), window_strides=(1, 1), padding="SAME",
            dimension_numbers=("NHWC", "HWIO", "NHWC"),
            preferred_element_type=jnp.float32)
        x = x + b.reshape(1, 1, 1, -1)
        if i < len(conv_params) - 1:
            x = jnp.maximum(x, 0.0)
    bflat = x.reshape(-1)

    t = trunk_input
    tp = params["trunk"]
    for i, (w, b) in enumerate(tp):
        t = jnp.dot(t.astype(bf), w.astype(bf),
                    preferred_element_type=jnp.float32) + b
        if i < len(tp) - 1:
            t = jnp.maximum(t, 0.0)

    comb = jnp.concatenate([jnp.tile(bflat[None, :], (t.shape[0], 1)), t], axis=1)
    h = comb
    mp = params["mix"]
    for i, (w, b) in enumerate(mp):
        h = jnp.dot(h.astype(bf), w.astype(bf),
                    preferred_element_type=jnp.float32) + b
        if i < len(mp) - 1:
            h = jnp.maximum(h, 0.0)
    return h


if __name__ == "__main__":
    units, num_mid, n, n_points = 32, 16, 8, 8

    key = jax.random.PRNGKey(0)
    kp, kb, kt = jax.random.split(key, 3)
    params = init_params(kp, units, num_mid, n)

    # branch_input: (H=n, W=n, C=18) HWC;  trunk_input: (n_points, 3)
    branch_input = jax.random.normal(kb, (n, n, 18), dtype=jnp.float32)
    trunk_input = jax.random.normal(kt, (n_points, 3), dtype=jnp.float32)

    fwd = jax.jit(deeponet_conv_forward)
    out = jax.block_until_ready(fwd(branch_input, trunk_input, params))
    assert out.shape == (n_points, 3)

    ref = reference_forward(branch_input, trunk_input, params)
    np.testing.assert_allclose(np.asarray(out), np.asarray(ref),
                               rtol=1e-2, atol=1e-2)

    print("KERNEL_OK")
</pallas_src>

<mosaic_0001>
module attributes {stable_mosaic.version = 11 : i64} {
  func.func @_fused_kernel(%arg0: memref<8x8x32xbf16, #tpu.memory_space<vmem>>, %arg1: memref<8x32xbf16, #tpu.memory_space<vmem>>, %arg2: memref<54x32x32xbf16, #tpu.memory_space<vmem>>, %arg3: memref<6x1x32xf32, #tpu.memory_space<vmem>>, %arg4: memref<8x32x32xbf16, #tpu.memory_space<vmem>>, %arg5: memref<8x1x32xf32, #tpu.memory_space<vmem>>, %arg6: memref<64x32xbf16, #tpu.memory_space<vmem>>, %arg7: memref<32x32xbf16, #tpu.memory_space<vmem>>, %arg8: memref<1x32xf32, #tpu.memory_space<vmem>>, %arg9: memref<3x32x32xbf16, #tpu.memory_space<vmem>>, %arg10: memref<3x1x32xf32, #tpu.memory_space<vmem>>, %arg11: memref<32x3xbf16, #tpu.memory_space<vmem>>, %arg12: memref<1x3xf32, #tpu.memory_space<vmem>>, %arg13: memref<8x3xf32, #tpu.memory_space<vmem>>, %arg14: memref<10x10x32xbf16, #tpu.memory_space<vmem>>) attributes {dimension_semantics = [], scalar_prefetch = 0 : i64, scratch_operands = 1 : i64, tpu.core_type = #tpu.core_type<tc>} {
    %cst = arith.constant 0.000000e+00 : bf16
    %0 = vector.broadcast %cst : bf16 to vector<10x10x32xbf16>
    %c0 = arith.constant 0 : index
    %c0_0 = arith.constant 0 : index
    %c0_1 = arith.constant 0 : index
    %1 = vector.load %arg14[%c0, %c0_0, %c0_1] : memref<10x10x32xbf16, #tpu.memory_space<vmem>>, vector<10x10x32xbf16>
    tpu.vector_store %arg14[%c0, %c0_0, %c0_1], %0 {strides = array<i32>} : memref<10x10x32xbf16, #tpu.memory_space<vmem>>, vector<10x10x32xbf16>,
    %c0_2 = arith.constant 0 : index
    %c0_3 = arith.constant 0 : index
    %c0_4 = arith.constant 0 : index
    %2 = vector.load %arg0[%c0_2, %c0_3, %c0_4] : memref<8x8x32xbf16, #tpu.memory_space<vmem>>, vector<8x8x32xbf16>
    %c1 = arith.constant 1 : index
    %c1_5 = arith.constant 1 : index
    %c0_6 = arith.constant 0 : index
    %3 = vector.load %arg14[%c1, %c1_5, %c0_6] : memref<10x10x32xbf16, #tpu.memory_space<vmem>>, vector<8x8x32xbf16>
    tpu.vector_store %arg14[%c1, %c1_5, %c0_6], %2 {strides = array<i32>} : memref<10x10x32xbf16, #tpu.memory_space<vmem>>, vector<8x8x32xbf16>,
    %cst_7 = arith.constant 0.000000e+00 : f32
    %4 = vector.broadcast %cst_7 : f32 to vector<64x32xf32>
    %c0_8 = arith.constant 0 : index
    %c0_9 = arith.constant 0 : index
    %c0_10 = arith.constant 0 : index
    %5 = vector.load %arg14[%c0_8, %c0_9, %c0_10] : memref<10x10x32xbf16, #tpu.memory_space<vmem>>, vector<8x8x32xbf16>
    %6 = vector.shape_cast %5 : vector<8x8x32xbf16> to vector<64x32xbf16>
    %c0_11 = arith.constant 0 : index
    %c0_12 = arith.constant 0 : index
    %c0_13 = arith.constant 0 : index
    %7 = vector.load %arg2[%c0_11, %c0_12, %c0_13] : memref<54x32x32xbf16, #tpu.memory_space<vmem>>, vector<1x32x32xbf16>
    %8 = vector.shape_cast %7 : vector<1x32x32xbf16> to vector<32x32xbf16>
    %cst_14 = arith.constant dense<0.000000e+00> : vector<64x32xf32>
    %9 = tpu.matmul %6, %8, %cst_14 {dimension_numbers = #tpu.dot_dimension_numbers<[1], [0], [0], [1], [0, 0, 1, 1], [], []>} : vector<64x32xbf16>, vector<32x32xbf16>, vector<64x32xf32> -> vector<64x32xf32>
    %10 = arith.addf %4, %9 : vector<64x32xf32>
    %c0_15 = arith.constant 0 : index
    %c1_16 = arith.constant 1 : index
    %c0_17 = arith.constant 0 : index
    %11 = vector.load %arg14[%c0_15, %c1_16, %c0_17] : memref<10x10x32xbf16, #tpu.memory_space<vmem>>, vector<8x8x32xbf16>
    %12 = vector.shape_cast %11 : vector<8x8x32xbf16> to vector<64x32xbf16>
    %c1_18 = arith.constant 1 : index
    %c0_19 = arith.constant 0 : index
    %c0_20 = arith.constant 0 : index
    %13 = vector.load %arg2[%c1_18, %c0_19, %c0_20] : memref<54x32x32xbf16, #tpu.memory_space<vmem>>, vector<1x32x32xbf16>
    %14 = vector.shape_cast %13 : vector<1x32x32xbf16> to vector<32x32xbf16>
    %cst_21 = arith.constant dense<0.000000e+00> : vector<64x32xf32>
    %15 = tpu.matmul %12, %14, %cst_21 {dimension_numbers = #tpu.dot_dimension_numbers<[1], [0], [0], [1], [0, 0, 1, 1], [], []>} : vector<64x32xbf16>, vector<32x32xbf16>, vector<64x32xf32> -> vector<64x32xf32>
    %16 = arith.addf %10, %15 : vector<64x32xf32>
    %c0_22 = arith.constant 0 : index
    %c2 = arith.constant 2 : index
    %c0_23 = arith.constant 0 : index
    %17 = vector.load %arg14[%c0_22, %c2, %c0_23] : memref<10x10x32xbf16, #tpu.memory_space<vmem>>, vector<8x8x32xbf16>
    %18 = vector.shape_cast %17 : vector<8x8x32xbf16> to vector<64x32xbf16>
    %c2_24 = arith.constant 2 : index
    %c0_25 = arith.constant 0 : index
    %c0_26 = arith.constant 0 : index
    %19 = vector.load %arg2[%c2_24, %c0_25, %c0_26] : memref<54x32x32xbf16, #tpu.memory_space<vmem>>, vector<1x32x32xbf16>
    %20 = vector.shape_cast %19 : vector<1x32x32xbf16> to vector<32x32xbf16>
    %cst_27 = arith.constant dense<0.000000e+00> : vector<64x32xf32>
    %21 = tpu.matmul %18, %20, %cst_27 {dimension_numbers = #tpu.dot_dimension_numbers<[1], [0], [0], [1], [0, 0, 1, 1], [], []>} : vector<64x32xbf16>, vector<32x32xbf16>, vector<64x32xf32> -> vector<64x32xf32>
    %22 = arith.addf %16, %21 : vector<64x32xf32>
    %c1_28 = arith.constant 1 : index
    %c0_29 = arith.constant 0 : index
    %c0_30 = arith.constant 0 : index
    %23 = vector.load %arg14[%c1_28, %c0_29, %c0_30] : memref<10x10x32xbf16, #tpu.memory_space<vmem>>, vector<8x8x32xbf16>
    %24 = vector.shape_cast %23 : vector<8x8x32xbf16> to vector<64x32xbf16>
    %c3 = arith.constant 3 : index
    %c0_31 = arith.constant 0 : index
    %c0_32 = arith.constant 0 : index
    %25 = vector.load %arg2[%c3, %c0_31, %c0_32] : memref<54x32x32xbf16, #tpu.memory_space<vmem>>, vector<1x32x32xbf16>
    %26 = vector.shape_cast %25 : vector<1x32x32xbf16> to vector<32x32xbf16>
    %cst_33 = arith.constant dense<0.000000e+00> : vector<64x32xf32>
    %27 = tpu.matmul %24, %26, %cst_33 {dimension_numbers = #tpu.dot_dimension_numbers<[1], [0], [0], [1], [0, 0, 1, 1], [], []>} : vector<64x32xbf16>, vector<32x32xbf16>, vector<64x32xf32> -> vector<64x32xf32>
    %28 = arith.addf %22, %27 : vector<64x32xf32>
    %c1_34 = arith.constant 1 : index
    %c1_35 = arith.constant 1 : index
    %c0_36 = arith.constant 0 : index
    %29 = vector.load %arg14[%c1_34, %c1_35, %c0_36] : memref<10x10x32xbf16, #tpu.memory_space<vmem>>, vector<8x8x32xbf16>
    %30 = vector.shape_cast %29 : vector<8x8x32xbf16> to vector<64x32xbf16>
    %c4 = arith.constant 4 : index
    %c0_37 = arith.constant 0 : index
    %c0_38 = arith.constant 0 : index
    %31 = vector.load %arg2[%c4, %c0_37, %c0_38] : memref<54x32x32xbf16, #tpu.memory_space<vmem>>, vector<1x32x32xbf16>
    %32 = vector.shape_cast %31 : vector<1x32x32xbf16> to vector<32x32xbf16>
    %cst_39 = arith.constant dense<0.000000e+00> : vector<64x32xf32>
    %33 = tpu.matmul %30, %32, %cst_39 {dimension_numbers = #tpu.dot_dimension_numbers<[1], [0], [0], [1], [0, 0, 1, 1], [], []>} : vector<64x32xbf16>, vector<32x32xbf16>, vector<64x32xf32> -> vector<64x32xf32>
    %34 = arith.addf %28, %33 : vector<64x32xf32>
    %c1_40 = arith.constant 1 : index
    %c2_41 = arith.constant 2 : index
    %c0_42 = arith.constant 0 : index
    %35 = vector.load %arg14[%c1_40, %c2_41, %c0_42] : memref<10x10x32xbf16, #tpu.memory_space<vmem>>, vector<8x8x32xbf16>
    %36 = vector.shape_cast %35 : vector<8x8x32xbf16> to vector<64x32xbf16>
    %c5 = arith.constant 5 : index
    %c0_43 = arith.constant 0 : index
    %c0_44 = arith.constant 0 : index
    %37 = vector.load %arg2[%c5, %c0_43, %c0_44] : memref<54x32x32xbf16, #tpu.memory_space<vmem>>, vector<1x32x32xbf16>
    %38 = vector.shape_cast %37 : vector<1x32x32xbf16> to vector<32x32xbf16>
    %cst_45 = arith.constant dense<0.000000e+00> : vector<64x32xf32>
    %39 = tpu.matmul %36, %38, %cst_45 {dimension_numbers = #tpu.dot_dimension_numbers<[1], [0], [0], [1], [0, 0, 1, 1], [], []>} : vector<64x32xbf16>, vector<32x32xbf16>, vector<64x32xf32> -> vector<64x32xf32>
    %40 = arith.addf %34, %39 : vector<64x32xf32>
    %c2_46 = arith.constant 2 : index
    %c0_47 = arith.constant 0 : index
    %c0_48 = arith.constant 0 : index
    %41 = vector.load %arg14[%c2_46, %c0_47, %c0_48] : memref<10x10x32xbf16, #tpu.memory_space<vmem>>, vector<8x8x32xbf16>
    %42 = vector.shape_cast %41 : vector<8x8x32xbf16> to vector<64x32xbf16>
    %c6 = arith.constant 6 : index
    %c0_49 = arith.constant 0 : index
    %c0_50 = arith.constant 0 : index
    %43 = vector.load %arg2[%c6, %c0_49, %c0_50] : memref<54x32x32xbf16, #tpu.memory_space<vmem>>, vector<1x32x32xbf16>
    %44 = vector.shape_cast %43 : vector<1x32x32xbf16> to vector<32x32xbf16>
    %cst_51 = arith.constant dense<0.000000e+00> : vector<64x32xf32>
    %45 = tpu.matmul %42, %44, %cst_51 {dimension_numbers = #tpu.dot_dimension_numbers<[1], [0], [0], [1], [0, 0, 1, 1], [], []>} : vector<64x32xbf16>, vector<32x32xbf16>, vector<64x32xf32> -> vector<64x32xf32>
    %46 = arith.addf %40, %45 : vector<64x32xf32>
    %c2_52 = arith.constant 2 : index
    %c1_53 = arith.constant 1 : index
    %c0_54 = arith.constant 0 : index
    %47 = vector.load %arg14[%c2_52, %c1_53, %c0_54] : memref<10x10x32xbf16, #tpu.memory_space<vmem>>, vector<8x8x32xbf16>
    %48 = vector.shape_cast %47 : vector<8x8x32xbf16> to vector<64x32xbf16>
    %c7 = arith.constant 7 : index
    %c0_55 = arith.constant 0 : index
    %c0_56 = arith.constant 0 : index
    %49 = vector.load %arg2[%c7, %c0_55, %c0_56] : memref<54x32x32xbf16, #tpu.memory_space<vmem>>, vector<1x32x32xbf16>
    %50 = vector.shape_cast %49 : vector<1x32x32xbf16> to vector<32x32xbf16>
    %cst_57 = arith.constant dense<0.000000e+00> : vector<64x32xf32>
    %51 = tpu.matmul %48, %50, %cst_57 {dimension_numbers = #tpu.dot_dimension_numbers<[1], [0], [0], [1], [0, 0, 1, 1], [], []>} : vector<64x32xbf16>, vector<32x32xbf16>, vector<64x32xf32> -> vector<64x32xf32>
    %52 = arith.addf %46, %51 : vector<64x32xf32>
    %c2_58 = arith.constant 2 : index
    %c2_59 = arith.constant 2 : index
    %c0_60 = arith.constant 0 : index
    %53 = vector.load %arg14[%c2_58, %c2_59, %c0_60] : memref<10x10x32xbf16, #tpu.memory_space<vmem>>, vector<8x8x32xbf16>
    %54 = vector.shape_cast %53 : vector<8x8x32xbf16> to vector<64x32xbf16>
    %c8 = arith.constant 8 : index
    %c0_61 = arith.constant 0 : index
    %c0_62 = arith.constant 0 : index
    %55 = vector.load %arg2[%c8, %c0_61, %c0_62] : memref<54x32x32xbf16, #tpu.memory_space<vmem>>, vector<1x32x32xbf16>
    %56 = vector.shape_cast %55 : vector<1x32x32xbf16> to vector<32x32xbf16>
    %cst_63 = arith.constant dense<0.000000e+00> : vector<64x32xf32>
    %57 = tpu.matmul %54, %56, %cst_63 {dimension_numbers = #tpu.dot_dimension_numbers<[1], [0], [0], [1], [0, 0, 1, 1], [], []>} : vector<64x32xbf16>, vector<32x32xbf16>, vector<64x32xf32> -> vector<64x32xf32>
    %58 = arith.addf %52, %57 : vector<64x32xf32>
    %c0_64 = arith.constant 0 : index
    %c0_65 = arith.constant 0 : index
    %c0_66 = arith.constant 0 : index
    %59 = vector.load %arg3[%c0_64, %c0_65, %c0_66] : memref<6x1x32xf32, #tpu.memory_space<vmem>>, vector<1x1x32xf32>
    %60 = vector.shape_cast %59 : vector<1x1x32xf32> to vector<1x32xf32>
    %61 = vector.broadcast %60 : vector<1x32xf32> to vector<64x32xf32>
    %62 = arith.addf %58, %61 : vector<64x32xf32>
    %cst_67 = arith.constant 0.000000e+00 : f32
    %63 = vector.broadcast %cst_67 : f32 to vector<64x32xf32>
    %64 = arith.maximumf %62, %63 : vector<64x32xf32>
    %65 = vector.shape_cast %64 : vector<64x32xf32> to vector<8x8x32xf32>
    %66 = arith.truncf %65 : vector<8x8x32xf32> to vector<8x8x32xbf16>
    %c1_68 = arith.constant 1 : index
    %c1_69 = arith.constant 1 : index
    %c0_70 = arith.constant 0 : index
    %67 = vector.load %arg14[%c1_68, %c1_69, %c0_70] : memref<10x10x32xbf16, #tpu.memory_space<vmem>>, vector<8x8x32xbf16>
    tpu.vector_store %arg14[%c1_68, %c1_69, %c0_70], %66 {strides = array<i32>} : memref<10x10x32xbf16, #tpu.memory_space<vmem>>, vector<8x8x32xbf16>,
    %cst_71 = arith.constant 0.000000e+00 : f32
    %68 = vector.broadcast %cst_71 : f32 to vector<64x32xf32>
    %c0_72 = arith.constant 0 : index
    %c0_73 = arith.constant 0 : index
    %c0_74 = arith.constant 0 : index
    %69 = vector.load %arg14[%c0_72, %c0_73, %c0_74] : memref<10x10x32xbf16, #tpu.memory_space<vmem>>, vector<8x8x32xbf16>
    %70 = vector.shape_cast %69 : vector<8x8x32xbf16> to vector<64x32xbf16>
    %c9 = arith.constant 9 : index
    %c0_75 = arith.constant 0 : index
    %c0_76 = arith.constant 0 : index
    %71 = vector.load %arg2[%c9, %c0_75, %c0_76] : memref<54x32x32xbf16, #tpu.memory_space<vmem>>, vector<1x32x32xbf16>
    %72 = vector.shape_cast %71 : vector<1x32x32xbf16> to vector<32x32xbf16>
    %cst_77 = arith.constant dense<0.000000e+00> : vector<64x32xf32>
    %73 = tpu.matmul %70, %72, %cst_77 {dimension_numbers = #tpu.dot_dimension_numbers<[1], [0], [0], [1], [0, 0, 1, 1], [], []>} : vector<64x32xbf16>, vector<32x32xbf16>, vector<64x32xf32> -> vector<64x32xf32>
    %74 = arith.addf %68, %73 : vector<64x32xf32>
    %c0_78 = arith.constant 0 : index
    %c1_79 = arith.constant 1 : index
    %c0_80 = arith.constant 0 : index
    %75 = vector.load %arg14[%c0_78, %c1_79, %c0_80] : memref<10x10x32xbf16, #tpu.memory_space<vmem>>, vector<8x8x32xbf16>
    %76 = vector.shape_cast %75 : vector<8x8x32xbf16> to vector<64x32xbf16>
    %c10 = arith.constant 10 : index
    %c0_81 = arith.constant 0 : index
    %c0_82 = arith.constant 0 : index
    %77 = vector.load %arg2[%c10, %c0_81, %c0_82] : memref<54x32x32xbf16, #tpu.memory_space<vmem>>, vector<1x32x32xbf16>
    %78 = vector.shape_cast %77 : vector<1x32x32xbf16> to vector<32x32xbf16>
    %cst_83 = arith.constant dense<0.000000e+00> : vector<64x32xf32>
    %79 = tpu.matmul %76, %78, %cst_83 {dimension_numbers = #tpu.dot_dimension_numbers<[1], [0], [0], [1], [0, 0, 1, 1], [], []>} : vector<64x32xbf16>, vector<32x32xbf16>, vector<64x32xf32> -> vector<64x32xf32>
    %80 = arith.addf %74, %79 : vector<64x32xf32>
    %c0_84 = arith.constant 0 : index
    %c2_85 = arith.constant 2 : index
    %c0_86 = arith.constant 0 : index
    %81 = vector.load %arg14[%c0_84, %c2_85, %c0_86] : memref<10x10x32xbf16, #tpu.memory_space<vmem>>, vector<8x8x32xbf16>
    %82 = vector.shape_cast %81 : vector<8x8x32xbf16> to vector<64x32xbf16>
    %c11 = arith.constant 11 : index
    %c0_87 = arith.constant 0 : index
    %c0_88 = arith.constant 0 : index
    %83 = vector.load %arg2[%c11, %c0_87, %c0_88] : memref<54x32x32xbf16, #tpu.memory_space<vmem>>, vector<1x32x32xbf16>
    %84 = vector.shape_cast %83 : vector<1x32x32xbf16> to vector<32x32xbf16>
    %cst_89 = arith.constant dense<0.000000e+00> : vector<64x32xf32>
    %85 = tpu.matmul %82, %84, %cst_89 {dimension_numbers = #tpu.dot_dimension_numbers<[1], [0], [0], [1], [0, 0, 1, 1], [], []>} : vector<64x32xbf16>, vector<32x32xbf16>, vector<64x32xf32> -> vector<64x32xf32>
    %86 = arith.addf %80, %85 : vector<64x32xf32>
    %c1_90 = arith.constant 1 : index
    %c0_91 = arith.constant 0 : index
    %c0_92 = arith.constant 0 : index
    %87 = vector.load %arg14[%c1_90, %c0_91, %c0_92] : memref<10x10x32xbf16, #tpu.memory_space<vmem>>, vector<8x8x32xbf16>
    %88 = vector.shape_cast %87 : vector<8x8x32xbf16> to vector<64x32xbf16>
    %c12 = arith.constant 12 : index
    %c0_93 = arith.constant 0 : index
    %c0_94 = arith.constant 0 : index
    %89 = vector.load %arg2[%c12, %c0_93, %c0_94] : memref<54x32x32xbf16, #tpu.memory_space<vmem>>, vector<1x32x32xbf16>
    %90 = vector.shape_cast %89 : vector<1x32x32xbf16> to vector<32x32xbf16>
    %cst_95 = arith.constant dense<0.000000e+00> : vector<64x32xf32>
    %91 = tpu.matmul %88, %90, %cst_95 {dimension_numbers = #tpu.dot_dimension_numbers<[1], [0], [0], [1], [0, 0, 1, 1], [], []>} : vector<64x32xbf16>, vector<32x32xbf16>, vector<64x32xf32> -> vector<64x32xf32>
    %92 = arith.addf %86, %91 : vector<64x32xf32>
    %c1_96 = arith.constant 1 : index
    %c1_97 = arith.constant 1 : index
    %c0_98 = arith.constant 0 : index
    %93 = vector.load %arg14[%c1_96, %c1_97, %c0_98] : memref<10x10x32xbf16, #tpu.memory_space<vmem>>, vector<8x8x32xbf16>
    %94 = vector.shape_cast %93 : vector<8x8x32xbf16> to vector<64x32xbf16>
    %c13 = arith.constant 13 : index
    %c0_99 = arith.constant 0 : index
    %c0_100 = arith.constant 0 : index
    %95 = vector.load %arg2[%c13, %c0_99, %c0_100] : memref<54x32x32xbf16, #tpu.memory_space<vmem>>, vector<1x32x32xbf16>
    %96 = vector.shape_cast %95 : vector<1x32x32xbf16> to vector<32x32xbf16>
    %cst_101 = arith.constant dense<0.000000e+00> : vector<64x32xf32>
    %97 = tpu.matmul %94, %96, %cst_101 {dimension_numbers = #tpu.dot_dimension_numbers<[1], [0], [0], [1], [0, 0, 1, 1], [], []>} : vector<64x32xbf16>, vector<32x32xbf16>, vector<64x32xf32> -> vector<64x32xf32>
    %98 = arith.addf %92, %97 : vector<64x32xf32>
    %c1_102 = arith.constant 1 : index
    %c2_103 = arith.constant 2 : index
    %c0_104 = arith.constant 0 : index
    %99 = vector.load %arg14[%c1_102, %c2_103, %c0_104] : memref<10x10x32xbf16, #tpu.memory_space<vmem>>, vector<8x8x32xbf16>
    %100 = vector.shape_cast %99 : vector<8x8x32xbf16> to vector<64x32xbf16>
    %c14 = arith.constant 14 : index
    %c0_105 = arith.constant 0 : index
    %c0_106 = arith.constant 0 : index
    %101 = vector.load %arg2[%c14, %c0_105, %c0_106] : memref<54x32x32xbf16, #tpu.memory_space<vmem>>, vector<1x32x32xbf16>
    %102 = vector.shape_cast %101 : vector<1x32x32xbf16> to vector<32x32xbf16>
    %cst_107 = arith.constant dense<0.000000e+00> : vector<64x32xf32>
    %103 = tpu.matmul %100, %102, %cst_107 {dimension_numbers = #tpu.dot_dimension_numbers<[1], [0], [0], [1], [0, 0, 1, 1], [], []>} : vector<64x32xbf16>, vector<32x32xbf16>, vector<64x32xf32> -> vector<64x32xf32>
    %104 = arith.addf %98, %103 : vector<64x32xf32>
    %c2_108 = arith.constant 2 : index
    %c0_109 = arith.constant 0 : index
    %c0_110 = arith.constant 0 : index
    %105 = vector.load %arg14[%c2_108, %c0_109, %c0_110] : memref<10x10x32xbf16, #tpu.memory_space<vmem>>, vector<8x8x32xbf16>
    %106 = vector.shape_cast %105 : vector<8x8x32xbf16> to vector<64x32xbf16>
    %c15 = arith.constant 15 : index
    %c0_111 = arith.constant 0 : index
    %c0_112 = arith.constant 0 : index
    %107 = vector.load %arg2[%c15, %c0_111, %c0_112] : memref<54x32x32xbf16, #tpu.memory_space<vmem>>, vector<1x32x32xbf16>
    %108 = vector.shape_cast %107 : vector<1x32x32xbf16> to vector<32x32xbf16>
    %cst_113 = arith.constant dense<0.000000e+00> : vector<64x32xf32>
    %109 = tpu.matmul %106, %108, %cst_113 {dimension_numbers = #tpu.dot_dimension_numbers<[1], [0], [0], [1], [0, 0, 1, 1], [], []>} : vector<64x32xbf16>, vector<32x32xbf16>, vector<64x32xf32> -> vector<64x32xf32>
    %110 = arith.addf %104, %109 : vector<64x32xf32>
    %c2_114 = arith.constant 2 : index
    %c1_115 = arith.constant 1 : index
    %c0_116 = arith.constant 0 : index
    %111 = vector.load %arg14[%c2_114, %c1_115, %c0_116] : memref<10x10x32xbf16, #tpu.memory_space<vmem>>, vector<8x8x32xbf16>
    %112 = vector.shape_cast %111 : vector<8x8x32xbf16> to vector<64x32xbf16>
    %c16 = arith.constant 16 : index
    %c0_117 = arith.constant 0 : index
    %c0_118 = arith.constant 0 : index
    %113 = vector.load %arg2[%c16, %c0_117, %c0_118] : memref<54x32x32xbf16, #tpu.memory_space<vmem>>, vector<1x32x32xbf16>
    %114 = vector.shape_cast %113 : vector<1x32x32xbf16> to vector<32x32xbf16>
    %cst_119 = arith.constant dense<0.000000e+00> : vector<64x32xf32>
    %115 = tpu.matmul %112, %114, %cst_119 {dimension_numbers = #tpu.dot_dimension_numbers<[1], [0], [0], [1], [0, 0, 1, 1], [], []>} : vector<64x32xbf16>, vector<32x32xbf16>, vector<64x32xf32> -> vector<64x32xf32>
    %116 = arith.addf %110, %115 : vector<64x32xf32>
    %c2_120 = arith.constant 2 : index
    %c2_121 = arith.constant 2 : index
    %c0_122 = arith.constant 0 : index
    %117 = vector.load %arg14[%c2_120, %c2_121, %c0_122] : memref<10x10x32xbf16, #tpu.memory_space<vmem>>, vector<8x8x32xbf16>
    %118 = vector.shape_cast %117 : vector<8x8x32xbf16> to vector<64x32xbf16>
    %c17 = arith.constant 17 : index
    %c0_123 = arith.constant 0 : index
    %c0_124 = arith.constant 0 : index
    %119 = vector.load %arg2[%c17, %c0_123, %c0_124] : memref<54x32x32xbf16, #tpu.memory_space<vmem>>, vector<1x32x32xbf16>
    %120 = vector.shape_cast %119 : vector<1x32x32xbf16> to vector<32x32xbf16>
    %cst_125 = arith.constant dense<0.000000e+00> : vector<64x32xf32>
    %121 = tpu.matmul %118, %120, %cst_125 {dimension_numbers = #tpu.dot_dimension_numbers<[1], [0], [0], [1], [0, 0, 1, 1], [], []>} : vector<64x32xbf16>, vector<32x32xbf16>, vector<64x32xf32> -> vector<64x32xf32>
    %122 = arith.addf %116, %121 : vector<64x32xf32>
    %c1_126 = arith.constant 1 : index
    %c0_127 = arith.constant 0 : index
    %c0_128 = arith.constant 0 : index
    %123 = vector.load %arg3[%c1_126, %c0_127, %c0_128] : memref<6x1x32xf32, #tpu.memory_space<vmem>>, vector<1x1x32xf32>
    %124 = vector.shape_cast %123 : vector<1x1x32xf32> to vector<1x32xf32>
    %125 = vector.broadcast %124 : vector<1x32xf32> to vector<64x32xf32>
    %126 = arith.addf %122, %125 : vector<64x32xf32>
    %cst_129 = arith.constant 0.000000e+00 : f32
    %127 = vector.broadcast %cst_129 : f32 to vector<64x32xf32>
    %128 = arith.maximumf %126, %127 : vector<64x32xf32>
    %129 = vector.shape_cast %128 : vector<64x32xf32> to vector<8x8x32xf32>
    %130 = arith.truncf %129 : vector<8x8x32xf32> to vector<8x8x32xbf16>
    %c1_130 = arith.constant 1 : index
    %c1_131 = arith.constant 1 : index
    %c0_132 = arith.constant 0 : index
    %131 = vector.load %arg14[%c1_130, %c1_131, %c0_132] : memref<10x10x32xbf16, #tpu.memory_space<vmem>>, vector<8x8x32xbf16>
    tpu.vector_store %arg14[%c1_130, %c1_131, %c0_132], %130 {strides = array<i32>} : memref<10x10x32xbf16, #tpu.memory_space<vmem>>, vector<8x8x32xbf16>,
    %cst_133 = arith.constant 0.000000e+00 : f32
    %132 = vector.broadcast %cst_133 : f32 to vector<64x32xf32>
    %c0_134 = arith.constant 0 : index
    %c0_135 = arith.constant 0 : index
    %c0_136 = arith.constant 0 : index
    %133 = vector.load %arg14[%c0_134, %c0_135, %c0_136] : memref<10x10x32xbf16, #tpu.memory_space<vmem>>, vector<8x8x32xbf16>
    %134 = vector.shape_cast %133 : vector<8x8x32xbf16> to vector<64x32xbf16>
    %c18 = arith.constant 18 : index
    %c0_137 = arith.constant 0 : index
    %c0_138 = arith.constant 0 : index
    %135 = vector.load %arg2[%c18, %c0_137, %c0_138] : memref<54x32x32xbf16, #tpu.memory_space<vmem>>, vector<1x32x32xbf16>
    %136 = vector.shape_cast %135 : vector<1x32x32xbf16> to vector<32x32xbf16>
    %cst_139 = arith.constant dense<0.000000e+00> : vector<64x32xf32>
    %137 = tpu.matmul %134, %136, %cst_139 {dimension_numbers = #tpu.dot_dimension_numbers<[1], [0], [0], [1], [0, 0, 1, 1], [], []>} : vector<64x32xbf16>, vector<32x32xbf16>, vector<64x32xf32> -> vector<64x32xf32>
    %138 = arith.addf %132, %137 : vector<64x32xf32>
    %c0_140 = arith.constant 0 : index
    %c1_141 = arith.constant 1 : index
    %c0_142 = arith.constant 0 : index
    %139 = vector.load %arg14[%c0_140, %c1_141, %c0_142] : memref<10x10x32xbf16, #tpu.memory_space<vmem>>, vector<8x8x32xbf16>
    %140 = vector.shape_cast %139 : vector<8x8x32xbf16> to vector<64x32xbf16>
    %c19 = arith.constant 19 : index
    %c0_143 = arith.constant 0 : index
    %c0_144 = arith.constant 0 : index
    %141 = vector.load %arg2[%c19, %c0_143, %c0_144] : memref<54x32x32xbf16, #tpu.memory_space<vmem>>, vector<1x32x32xbf16>
    %142 = vector.shape_cast %141 : vector<1x32x32xbf16> to vector<32x32xbf16>
    %cst_145 = arith.constant dense<0.000000e+00> : vector<64x32xf32>
    %143 = tpu.matmul %140, %142, %cst_145 {dimension_numbers = #tpu.dot_dimension_numbers<[1], [0], [0], [1], [0, 0, 1, 1], [], []>} : vector<64x32xbf16>, vector<32x32xbf16>, vector<64x32xf32> -> vector<64x32xf32>
    %144 = arith.addf %138, %143 : vector<64x32xf32>
    %c0_146 = arith.constant 0 : index
    %c2_147 = arith.constant 2 : index
    %c0_148 = arith.constant 0 : index
    %145 = vector.load %arg14[%c0_146, %c2_147, %c0_148] : memref<10x10x32xbf16, #tpu.memory_space<vmem>>, vector<8x8x32xbf16>
    %146 = vector.shape_cast %145 : vector<8x8x32xbf16> to vector<64x32xbf16>
    %c20 = arith.constant 20 : index
    %c0_149 = arith.constant 0 : index
    %c0_150 = arith.constant 0 : index
    %147 = vector.load %arg2[%c20, %c0_149, %c0_150] : memref<54x32x32xbf16, #tpu.memory_space<vmem>>, vector<1x32x32xbf16>
    %148 = vector.shape_cast %147 : vector<1x32x32xbf16> to vector<32x32xbf16>
    %cst_151 = arith.constant dense<0.000000e+00> : vector<64x32xf32>
    %149 = tpu.matmul %146, %148, %cst_151 {dimension_numbers = #tpu.dot_dimension_numbers<[1], [0], [0], [1], [0, 0, 1, 1], [], []>} : vector<64x32xbf16>, vector<32x32xbf16>, vector<64x32xf32> -> vector<64x32xf32>
    %150 = arith.addf %144, %149 : vector<64x32xf32>
    %c1_152 = arith.constant 1 : index
    %c0_153 = arith.constant 0 : index
    %c0_154 = arith.constant 0 : index
    %151 = vector.load %arg14[%c1_152, %c0_153, %c0_154] : memref<10x10x32xbf16, #tpu.memory_space<vmem>>, vector<8x8x32xbf16>
    %152 = vector.shape_cast %151 : vector<8x8x32xbf16> to vector<64x32xbf16>
    %c21 = arith.constant 21 : index
    %c0_155 = arith.constant 0 : index
    %c0_156 = arith.constant 0 : index
    %153 = vector.load %arg2[%c21, %c0_155, %c0_156] : memref<54x32x32xbf16, #tpu.memory_space<vmem>>, vector<1x32x32xbf16>
    %154 = vector.shape_cast %153 : vector<1x32x32xbf16> to vector<32x32xbf16>
    %cst_157 = arith.constant dense<0.000000e+00> : vector<64x32xf32>
    %155 = tpu.matmul %152, %154, %cst_157 {dimension_numbers = #tpu.dot_dimension_numbers<[1], [0], [0], [1], [0, 0, 1, 1], [], []>} : vector<64x32xbf16>, vector<32x32xbf16>, vector<64x32xf32> -> vector<64x32xf32>
    %156 = arith.addf %150, %155 : vector<64x32xf32>
    %c1_158 = arith.constant 1 : index
    %c1_159 = arith.constant 1 : index
    %c0_160 = arith.constant 0 : index
    %157 = vector.load %arg14[%c1_158, %c1_159, %c0_160] : memref<10x10x32xbf16, #tpu.memory_space<vmem>>, vector<8x8x32xbf16>
    %158 = vector.shape_cast %157 : vector<8x8x32xbf16> to vector<64x32xbf16>
    %c22 = arith.constant 22 : index
    %c0_161 = arith.constant 0 : index
    %c0_162 = arith.constant 0 : index
    %159 = vector.load %arg2[%c22, %c0_161, %c0_162] : memref<54x32x32xbf16, #tpu.memory_space<vmem>>, vector<1x32x32xbf16>
    %160 = vector.shape_cast %159 : vector<1x32x32xbf16> to vector<32x32xbf16>
    %cst_163 = arith.constant dense<0.000000e+00> : vector<64x32xf32>
    %161 = tpu.matmul %158, %160, %cst_163 {dimension_numbers = #tpu.dot_dimension_numbers<[1], [0], [0], [1], [0, 0, 1, 1], [], []>} : vector<64x32xbf16>, vector<32x32xbf16>, vector<64x32xf32> -> vector<64x32xf32>
    %162 = arith.addf %156, %161 : vector<64x32xf32>
    %c1_164 = arith.constant 1 : index
    %c2_165 = arith.constant 2 : index
    %c0_166 = arith.constant 0 : index
    %163 = vector.load %arg14[%c1_164, %c2_165, %c0_166] : memref<10x10x32xbf16, #tpu.memory_space<vmem>>, vector<8x8x32xbf16>
    %164 = vector.shape_cast %163 : vector<8x8x32xbf16> to vector<64x32xbf16>
    %c23 = arith.constant 23 : index
    %c0_167 = arith.constant 0 : index
    %c0_168 = arith.constant 0 : index
    %165 = vector.load %arg2[%c23, %c0_167, %c0_168] : memref<54x32x32xbf16, #tpu.memory_space<vmem>>, vector<1x32x32xbf16>
    %166 = vector.shape_cast %165 : vector<1x32x32xbf16> to vector<32x32xbf16>
    %cst_169 = arith.constant dense<0.000000e+00> : vector<64x32xf32>
    %167 = tpu.matmul %164, %166, %cst_169 {dimension_numbers = #tpu.dot_dimension_numbers<[1], [0], [0], [1], [0, 0, 1, 1], [], []>} : vector<64x32xbf16>, vector<32x32xbf16>, vector<64x32xf32> -> vector<64x32xf32>
    %168 = arith.addf %162, %167 : vector<64x32xf32>
    %c2_170 = arith.constant 2 : index
    %c0_171 = arith.constant 0 : index
    %c0_172 = arith.constant 0 : index
    %169 = vector.load %arg14[%c2_170, %c0_171, %c0_172] : memref<10x10x32xbf16, #tpu.memory_space<vmem>>, vector<8x8x32xbf16>
    %170 = vector.shape_cast %169 : vector<8x8x32xbf16> to vector<64x32xbf16>
    %c24 = arith.constant 24 : index
    %c0_173 = arith.constant 0 : index
    %c0_174 = arith.constant 0 : index
    %171 = vector.load %arg2[%c24, %c0_173, %c0_174] : memref<54x32x32xbf16, #tpu.memory_space<vmem>>, vector<1x32x32xbf16>
    %172 = vector.shape_cast %171 : vector<1x32x32xbf16> to vector<32x32xbf16>
    %cst_175 = arith.constant dense<0.000000e+00> : vector<64x32xf32>
    %173 = tpu.matmul %170, %172, %cst_175 {dimension_numbers = #tpu.dot_dimension_numbers<[1], [0], [0], [1], [0, 0, 1, 1], [], []>} : vector<64x32xbf16>, vector<32x32xbf16>, vector<64x32xf32> -> vector<64x32xf32>
    %174 = arith.addf %168, %173 : vector<64x32xf32>
    %c2_176 = arith.constant 2 : index
    %c1_177 = arith.constant 1 : index
    %c0_178 = arith.constant 0 : index
    %175 = vector.load %arg14[%c2_176, %c1_177, %c0_178] : memref<10x10x32xbf16, #tpu.memory_space<vmem>>, vector<8x8x32xbf16>
    %176 = vector.shape_cast %175 : vector<8x8x32xbf16> to vector<64x32xbf16>
    %c25 = arith.constant 25 : index
    %c0_179 = arith.constant 0 : index
    %c0_180 = arith.constant 0 : index
    %177 = vector.load %arg2[%c25, %c0_179, %c0_180] : memref<54x32x32xbf16, #tpu.memory_space<vmem>>, vector<1x32x32xbf16>
    %178 = vector.shape_cast %177 : vector<1x32x32xbf16> to vector<32x32xbf16>
    %cst_181 = arith.constant dense<0.000000e+00> : vector<64x32xf32>
    %179 = tpu.matmul %176, %178, %cst_181 {dimension_numbers = #tpu.dot_dimension_numbers<[1], [0], [0], [1], [0, 0, 1, 1], [], []>} : vector<64x32xbf16>, vector<32x32xbf16>, vector<64x32xf32> -> vector<64x32xf32>
    %180 = arith.addf %174, %179 : vector<64x32xf32>
    %c2_182 = arith.constant 2 : index
    %c2_183 = arith.constant 2 : index
    %c0_184 = arith.constant 0 : index
    %181 = vector.load %arg14[%c2_182, %c2_183, %c0_184] : memref<10x10x32xbf16, #tpu.memory_space<vmem>>, vector<8x8x32xbf16>
    %182 = vector.shape_cast %181 : vector<8x8x32xbf16> to vector<64x32xbf16>
    %c26 = arith.constant 26 : index
    %c0_185 = arith.constant 0 : index
    %c0_186 = arith.constant 0 : index
    %183 = vector.load %arg2[%c26, %c0_185, %c0_186] : memref<54x32x32xbf16, #tpu.memory_space<vmem>>, vector<1x32x32xbf16>
    %184 = vector.shape_cast %183 : vector<1x32x32xbf16> to vector<32x32xbf16>
    %cst_187 = arith.constant dense<0.000000e+00> : vector<64x32xf32>
    %185 = tpu.matmul %182, %184, %cst_187 {dimension_numbers = #tpu.dot_dimension_numbers<[1], [0], [0], [1], [0, 0, 1, 1], [], []>} : vector<64x32xbf16>, vector<32x32xbf16>, vector<64x32xf32> -> vector<64x32xf32>
    %186 = arith.addf %180, %185 : vector<64x32xf32>
    %c2_188 = arith.constant 2 : index
    %c0_189 = arith.constant 0 : index
    %c0_190 = arith.constant 0 : index
    %187 = vector.load %arg3[%c2_188, %c0_189, %c0_190] : memref<6x1x32xf32, #tpu.memory_space<vmem>>, vector<1x1x32xf32>
    %188 = vector.shape_cast %187 : vector<1x1x32xf32> to vector<1x32xf32>
    %189 = vector.broadcast %188 : vector<1x32xf32> to vector<64x32xf32>
    %190 = arith.addf %186, %189 : vector<64x32xf32>
    %cst_191 = arith.constant 0.000000e+00 : f32
    %191 = vector.broadcast %cst_191 : f32 to vector<64x32xf32>
    %192 = arith.maximumf %190, %191 : vector<64x32xf32>
    %193 = vector.shape_cast %192 : vector<64x32xf32> to vector<8x8x32xf32>
    %194 = arith.truncf %193 : vector<8x8x32xf32> to vector<8x8x32xbf16>
    %c1_192 = arith.constant 1 : index
    %c1_193 = arith.constant 1 : index
    %c0_194 = arith.constant 0 : index
    %195 = vector.load %arg14[%c1_192, %c1_193, %c0_194] : memref<10x10x32xbf16, #tpu.memory_space<vmem>>, vector<8x8x32xbf16>
    tpu.vector_store %arg14[%c1_192, %c1_193, %c0_194], %194 {strides = array<i32>} : memref<10x10x32xbf16, #tpu.memory_space<vmem>>, vector<8x8x32xbf16>,
    %cst_195 = arith.constant 0.000000e+00 : f32
    %196 = vector.broadcast %cst_195 : f32 to vector<64x32xf32>
    %c0_196 = arith.constant 0 : index
    %c0_197 = arith.constant 0 : index
    %c0_198 = arith.constant 0 : index
    %197 = vector.load %arg14[%c0_196, %c0_197, %c0_198] : memref<10x10x32xbf16, #tpu.memory_space<vmem>>, vector<8x8x32xbf16>
    %198 = vector.shape_cast %197 : vector<8x8x32xbf16> to vector<64x32xbf16>
    %c27 = arith.constant 27 : index
    %c0_199 = arith.constant 0 : index
    %c0_200 = arith.constant 0 : index
    %199 = vector.load %arg2[%c27, %c0_199, %c0_200] : memref<54x32x32xbf16, #tpu.memory_space<vmem>>, vector<1x32x32xbf16>
    %200 = vector.shape_cast %199 : vector<1x32x32xbf16> to vector<32x32xbf16>
    %cst_201 = arith.constant dense<0.000000e+00> : vector<64x32xf32>
    %201 = tpu.matmul %198, %200, %cst_201 {dimension_numbers = #tpu.dot_dimension_numbers<[1], [0], [0], [1], [0, 0, 1, 1], [], []>} : vector<64x32xbf16>, vector<32x32xbf16>, vector<64x32xf32> -> vector<64x32xf32>
    %202 = arith.addf %196, %201 : vector<64x32xf32>
    %c0_202 = arith.constant 0 : index
    %c1_203 = arith.constant 1 : index
    %c0_204 = arith.constant 0 : index
    %203 = vector.load %arg14[%c0_202, %c1_203, %c0_204] : memref<10x10x32xbf16, #tpu.memory_space<vmem>>, vector<8x8x32xbf16>
    %204 = vector.shape_cast %203 : vector<8x8x32xbf16> to vector<64x32xbf16>
    %c28 = arith.constant 28 : index
    %c0_205 = arith.constant 0 : index
    %c0_206 = arith.constant 0 : index
    %205 = vector.load %arg2[%c28, %c0_205, %c0_206] : memref<54x32x32xbf16, #tpu.memory_space<vmem>>, vector<1x32x32xbf16>
    %206 = vector.shape_cast %205 : vector<1x32x32xbf16> to vector<32x32xbf16>
    %cst_207 = arith.constant dense<0.000000e+00> : vector<64x32xf32>
    %207 = tpu.matmul %204, %206, %cst_207 {dimension_numbers = #tpu.dot_dimension_numbers<[1], [0], [0], [1], [0, 0, 1, 1], [], []>} : vector<64x32xbf16>, vector<32x32xbf16>, vector<64x32xf32> -> vector<64x32xf32>
    %208 = arith.addf %202, %207 : vector<64x32xf32>
    %c0_208 = arith.constant 0 : index
    %c2_209 = arith.constant 2 : index
    %c0_210 = arith.constant 0 : index
    %209 = vector.load %arg14[%c0_208, %c2_209, %c0_210] : memref<10x10x32xbf16, #tpu.memory_space<vmem>>, vector<8x8x32xbf16>
    %210 = vector.shape_cast %209 : vector<8x8x32xbf16> to vector<64x32xbf16>
    %c29 = arith.constant 29 : index
    %c0_211 = arith.constant 0 : index
    %c0_212 = arith.constant 0 : index
    %211 = vector.load %arg2[%c29, %c0_211, %c0_212] : memref<54x32x32xbf16, #tpu.memory_space<vmem>>, vector<1x32x32xbf16>
    %212 = vector.shape_cast %211 : vector<1x32x32xbf16> to vector<32x32xbf16>
    %cst_213 = arith.constant dense<0.000000e+00> : vector<64x32xf32>
    %213 = tpu.matmul %210, %212, %cst_213 {dimension_numbers = #tpu.dot_dimension_numbers<[1], [0], [0], [1], [0, 0, 1, 1], [], []>} : vector<64x32xbf16>, vector<32x32xbf16>, vector<64x32xf32> -> vector<64x32xf32>
    %214 = arith.addf %208, %213 : vector<64x32xf32>
    %c1_214 = arith.constant 1 : index
    %c0_215 = arith.constant 0 : index
    %c0_216 = arith.constant 0 : index
    %215 = vector.load %arg14[%c1_214, %c0_215, %c0_216] : memref<10x10x32xbf16, #tpu.memory_space<vmem>>, vector<8x8x32xbf16>
    %216 = vector.shape_cast %215 : vector<8x8x32xbf16> to vector<64x32xbf16>
    %c30 = arith.constant 30 : index
    %c0_217 = arith.constant 0 : index
    %c0_218 = arith.constant 0 : index
    %217 = vector.load %arg2[%c30, %c0_217, %c0_218] : memref<54x32x32xbf16, #tpu.memory_space<vmem>>, vector<1x32x32xbf16>
    %218 = vector.shape_cast %217 : vector<1x32x32xbf16> to vector<32x32xbf16>
    %cst_219 = arith.constant dense<0.000000e+00> : vector<64x32xf32>
    %219 = tpu.matmul %216, %218, %cst_219 {dimension_numbers = #tpu.dot_dimension_numbers<[1], [0], [0], [1], [0, 0, 1, 1], [], []>} : vector<64x32xbf16>, vector<32x32xbf16>, vector<64x32xf32> -> vector<64x32xf32>
    %220 = arith.addf %214, %219 : vector<64x32xf32>
    %c1_220 = arith.constant 1 : index
    %c1_221 = arith.constant 1 : index
    %c0_222 = arith.constant 0 : index
    %221 = vector.load %arg14[%c1_220, %c1_221, %c0_222] : memref<10x10x32xbf16, #tpu.memory_space<vmem>>, vector<8x8x32xbf16>
    %222 = vector.shape_cast %221 : vector<8x8x32xbf16> to vector<64x32xbf16>
    %c31 = arith.constant 31 : index
    %c0_223 = arith.constant 0 : index
    %c0_224 = arith.constant 0 : index
    %223 = vector.load %arg2[%c31, %c0_223, %c0_224] : memref<54x32x32xbf16, #tpu.memory_space<vmem>>, vector<1x32x32xbf16>
    %224 = vector.shape_cast %223 : vector<1x32x32xbf16> to vector<32x32xbf16>
    %cst_225 = arith.constant dense<0.000000e+00> : vector<64x32xf32>
    %225 = tpu.matmul %222, %224, %cst_225 {dimension_numbers = #tpu.dot_dimension_numbers<[1], [0], [0], [1], [0, 0, 1, 1], [], []>} : vector<64x32xbf16>, vector<32x32xbf16>, vector<64x32xf32> -> vector<64x32xf32>
    %226 = arith.addf %220, %225 : vector<64x32xf32>
    %c1_226 = arith.constant 1 : index
    %c2_227 = arith.constant 2 : index
    %c0_228 = arith.constant 0 : index
    %227 = vector.load %arg14[%c1_226, %c2_227, %c0_228] : memref<10x10x32xbf16, #tpu.memory_space<vmem>>, vector<8x8x32xbf16>
    %228 = vector.shape_cast %227 : vector<8x8x32xbf16> to vector<64x32xbf16>
    %c32 = arith.constant 32 : index
    %c0_229 = arith.constant 0 : index
    %c0_230 = arith.constant 0 : index
    %229 = vector.load %arg2[%c32, %c0_229, %c0_230] : memref<54x32x32xbf16, #tpu.memory_space<vmem>>, vector<1x32x32xbf16>
    %230 = vector.shape_cast %229 : vector<1x32x32xbf16> to vector<32x32xbf16>
    %cst_231 = arith.constant dense<0.000000e+00> : vector<64x32xf32>
    %231 = tpu.matmul %228, %230, %cst_231 {dimension_numbers = #tpu.dot_dimension_numbers<[1], [0], [0], [1], [0, 0, 1, 1], [], []>} : vector<64x32xbf16>, vector<32x32xbf16>, vector<64x32xf32> -> vector<64x32xf32>
    %232 = arith.addf %226, %231 : vector<64x32xf32>
    %c2_232 = arith.constant 2 : index
    %c0_233 = arith.constant 0 : index
    %c0_234 = arith.constant 0 : index
    %233 = vector.load %arg14[%c2_232, %c0_233, %c0_234] : memref<10x10x32xbf16, #tpu.memory_space<vmem>>, vector<8x8x32xbf16>
    %234 = vector.shape_cast %233 : vector<8x8x32xbf16> to vector<64x32xbf16>
    %c33 = arith.constant 33 : index
    %c0_235 = arith.constant 0 : index
    %c0_236 = arith.constant 0 : index
    %235 = vector.load %arg2[%c33, %c0_235, %c0_236] : memref<54x32x32xbf16, #tpu.memory_space<vmem>>, vector<1x32x32xbf16>
    %236 = vector.shape_cast %235 : vector<1x32x32xbf16> to vector<32x32xbf16>
    %cst_237 = arith.constant dense<0.000000e+00> : vector<64x32xf32>
    %237 = tpu.matmul %234, %236, %cst_237 {dimension_numbers = #tpu.dot_dimension_numbers<[1], [0], [0], [1], [0, 0, 1, 1], [], []>} : vector<64x32xbf16>, vector<32x32xbf16>, vector<64x32xf32> -> vector<64x32xf32>
    %238 = arith.addf %232, %237 : vector<64x32xf32>
    %c2_238 = arith.constant 2 : index
    %c1_239 = arith.constant 1 : index
    %c0_240 = arith.constant 0 : index
    %239 = vector.load %arg14[%c2_238, %c1_239, %c0_240] : memref<10x10x32xbf16, #tpu.memory_space<vmem>>, vector<8x8x32xbf16>
    %240 = vector.shape_cast %239 : vector<8x8x32xbf16> to vector<64x32xbf16>
    %c34 = arith.constant 34 : index
    %c0_241 = arith.constant 0 : index
    %c0_242 = arith.constant 0 : index
    %241 = vector.load %arg2[%c34, %c0_241, %c0_242] : memref<54x32x32xbf16, #tpu.memory_space<vmem>>, vector<1x32x32xbf16>
    %242 = vector.shape_cast %241 : vector<1x32x32xbf16> to vector<32x32xbf16>
    %cst_243 = arith.constant dense<0.000000e+00> : vector<64x32xf32>
    %243 = tpu.matmul %240, %242, %cst_243 {dimension_numbers = #tpu.dot_dimension_numbers<[1], [0], [0], [1], [0, 0, 1, 1], [], []>} : vector<64x32xbf16>, vector<32x32xbf16>, vector<64x32xf32> -> vector<64x32xf32>
    %244 = arith.addf %238, %243 : vector<64x32xf32>
    %c2_244 = arith.constant 2 : index
    %c2_245 = arith.constant 2 : index
    %c0_246 = arith.constant 0 : index
    %245 = vector.load %arg14[%c2_244, %c2_245, %c0_246] : memref<10x10x32xbf16, #tpu.memory_space<vmem>>, vector<8x8x32xbf16>
    %246 = vector.shape_cast %245 : vector<8x8x32xbf16> to vector<64x32xbf16>
    %c35 = arith.constant 35 : index
    %c0_247 = arith.constant 0 : index
    %c0_248 = arith.constant 0 : index
    %247 = vector.load %arg2[%c35, %c0_247, %c0_248] : memref<54x32x32xbf16, #tpu.memory_space<vmem>>, vector<1x32x32xbf16>
    %248 = vector.shape_cast %247 : vector<1x32x32xbf16> to vector<32x32xbf16>
    %cst_249 = arith.constant dense<0.000000e+00> : vector<64x32xf32>
    %249 = tpu.matmul %246, %248, %cst_249 {dimension_numbers = #tpu.dot_dimension_numbers<[1], [0], [0], [1], [0, 0, 1, 1], [], []>} : vector<64x32xbf16>, vector<32x32xbf16>, vector<64x32xf32> -> vector<64x32xf32>
    %250 = arith.addf %244, %249 : vector<64x32xf32>
    %c3_250 = arith.constant 3 : index
    %c0_251 = arith.constant 0 : index
    %c0_252 = arith.constant 0 : index
    %251 = vector.load %arg3[%c3_250, %c0_251, %c0_252] : memref<6x1x32xf32, #tpu.memory_space<vmem>>, vector<1x1x32xf32>
    %252 = vector.shape_cast %251 : vector<1x1x32xf32> to vector<1x32xf32>
    %253 = vector.broadcast %252 : vector<1x32xf32> to vector<64x32xf32>
    %254 = arith.addf %250, %253 : vector<64x32xf32>
    %cst_253 = arith.constant 0.000000e+00 : f32
    %255 = vector.broadcast %cst_253 : f32 to vector<64x32xf32>
    %256 = arith.maximumf %254, %255 : vector<64x32xf32>
    %257 = vector.shape_cast %256 : vector<64x32xf32> to vector<8x8x32xf32>
    %258 = arith.truncf %257 : vector<8x8x32xf32> to vector<8x8x32xbf16>
    %c1_254 = arith.constant 1 : index
    %c1_255 = arith.constant 1 : index
    %c0_256 = arith.constant 0 : index
    %259 = vector.load %arg14[%c1_254, %c1_255, %c0_256] : memref<10x10x32xbf16, #tpu.memory_space<vmem>>, vector<8x8x32xbf16>
    tpu.vector_store %arg14[%c1_254, %c1_255, %c0_256], %258 {strides = array<i32>} : memref<10x10x32xbf16, #tpu.memory_space<vmem>>, vector<8x8x32xbf16>,
    %cst_257 = arith.constant 0.000000e+00 : f32
    %260 = vector.broadcast %cst_257 : f32 to vector<64x32xf32>
    %c0_258 = arith.constant 0 : index
    %c0_259 = arith.constant 0 : index
    %c0_260 = arith.constant 0 : index
    %261 = vector.load %arg14[%c0_258, %c0_259, %c0_260] : memref<10x10x32xbf16, #tpu.memory_space<vmem>>, vector<8x8x32xbf16>
    %262 = vector.shape_cast %261 : vector<8x8x32xbf16> to vector<64x32xbf16>
    %c36 = arith.constant 36 : index
    %c0_261 = arith.constant 0 : index
    %c0_262 = arith.constant 0 : index
    %263 = vector.load %arg2[%c36, %c0_261, %c0_262] : memref<54x32x32xbf16, #tpu.memory_space<vmem>>, vector<1x32x32xbf16>
    %264 = vector.shape_cast %263 : vector<1x32x32xbf16> to vector<32x32xbf16>
    %cst_263 = arith.constant dense<0.000000e+00> : vector<64x32xf32>
    %265 = tpu.matmul %262, %264, %cst_263 {dimension_numbers = #tpu.dot_dimension_numbers<[1], [0], [0], [1], [0, 0, 1, 1], [], []>} : vector<64x32xbf16>, vector<32x32xbf16>, vector<64x32xf32> -> vector<64x32xf32>
    %266 = arith.addf %260, %265 : vector<64x32xf32>
    %c0_264 = arith.constant 0 : index
    %c1_265 = arith.constant 1 : index
    %c0_266 = arith.constant 0 : index
    %267 = vector.load %arg14[%c0_264, %c1_265, %c0_266] : memref<10x10x32xbf16, #tpu.memory_space<vmem>>, vector<8x8x32xbf16>
    %268 = vector.shape_cast %267 : vector<8x8x32xbf16> to vector<64x32xbf16>
    %c37 = arith.constant 37 : index
    %c0_267 = arith.constant 0 : index
    %c0_268 = arith.constant 0 : index
    %269 = vector.load %arg2[%c37, %c0_267, %c0_268] : memref<54x32x32xbf16, #tpu.memory_space<vmem>>, vector<1x32x32xbf16>
    %270 = vector.shape_cast %269 : vector<1x32x32xbf16> to vector<32x32xbf16>
    %cst_269 = arith.constant dense<0.000000e+00> : vector<64x32xf32>
    %271 = tpu.matmul %268, %270, %cst_269 {dimension_numbers = #tpu.dot_dimension_numbers<[1], [0], [0], [1], [0, 0, 1, 1], [], []>} : vector<64x32xbf16>, vector<32x32xbf16>, vector<64x32xf32> -> vector<64x32xf32>
    %272 = arith.addf %266, %271 : vector<64x32xf32>
    %c0_270 = arith.constant 0 : index
    %c2_271 = arith.constant 2 : index
    %c0_272 = arith.constant 0 : index
    %273 = vector.load %arg14[%c0_270, %c2_271, %c0_272] : memref<10x10x32xbf16, #tpu.memory_space<vmem>>, vector<8x8x32xbf16>
    %274 = vector.shape_cast %273 : vector<8x8x32xbf16> to vector<64x32xbf16>
    %c38 = arith.constant 38 : index
    %c0_273 = arith.constant 0 : index
    %c0_274 = arith.constant 0 : index
    %275 = vector.load %arg2[%c38, %c0_273, %c0_274] : memref<54x32x32xbf16, #tpu.memory_space<vmem>>, vector<1x32x32xbf16>
    %276 = vector.shape_cast %275 : vector<1x32x32xbf16> to vector<32x32xbf16>
    %cst_275 = arith.constant dense<0.000000e+00> : vector<64x32xf32>
    %277 = tpu.matmul %274, %276, %cst_275 {dimension_numbers = #tpu.dot_dimension_numbers<[1], [0], [0], [1], [0, 0, 1, 1], [], []>} : vector<64x32xbf16>, vector<32x32xbf16>, vector<64x32xf32> -> vector<64x32xf32>
    %278 = arith.addf %272, %277 : vector<64x32xf32>
    %c1_276 = arith.constant 1 : index
    %c0_277 = arith.constant 0 : index
    %c0_278 = arith.constant 0 : index
    %279 = vector.load %arg14[%c1_276, %c0_277, %c0_278] : memref<10x10x32xbf16, #tpu.memory_space<vmem>>, vector<8x8x32xbf16>
    %280 = vector.shape_cast %279 : vector<8x8x32xbf16> to vector<64x32xbf16>
    %c39 = arith.constant 39 : index
    %c0_279 = arith.constant 0 : index
    %c0_280 = arith.constant 0 : index
    %281 = vector.load %arg2[%c39, %c0_279, %c0_280] : memref<54x32x32xbf16, #tpu.memory_space<vmem>>, vector<1x32x32xbf16>
    %282 = vector.shape_cast %281 : vector<1x32x32xbf16> to vector<32x32xbf16>
    %cst_281 = arith.constant dense<0.000000e+00> : vector<64x32xf32>
    %283 = tpu.matmul %280, %282, %cst_281 {dimension_numbers = #tpu.dot_dimension_numbers<[1], [0], [0], [1], [0, 0, 1, 1], [], []>} : vector<64x32xbf16>, vector<32x32xbf16>, vector<64x32xf32> -> vector<64x32xf32>
    %284 = arith.addf %278, %283 : vector<64x32xf32>
    %c1_282 = arith.constant 1 : index
    %c1_283 = arith.constant 1 : index
    %c0_284 = arith.constant 0 : index
    %285 = vector.load %arg14[%c1_282, %c1_283, %c0_284] : memref<10x10x32xbf16, #tpu.memory_space<vmem>>, vector<8x8x32xbf16>
    %286 = vector.shape_cast %285 : vector<8x8x32xbf16> to vector<64x32xbf16>
    %c40 = arith.constant 40 : index
    %c0_285 = arith.constant 0 : index
    %c0_286 = arith.constant 0 : index
    %287 = vector.load %arg2[%c40, %c0_285, %c0_286] : memref<54x32x32xbf16, #tpu.memory_space<vmem>>, vector<1x32x32xbf16>
    %288 = vector.shape_cast %287 : vector<1x32x32xbf16> to vector<32x32xbf16>
    %cst_287 = arith.constant dense<0.000000e+00> : vector<64x32xf32>
    %289 = tpu.matmul %286, %288, %cst_287 {dimension_numbers = #tpu.dot_dimension_numbers<[1], [0], [0], [1], [0, 0, 1, 1], [], []>} : vector<64x32xbf16>, vector<32x32xbf16>, vector<64x32xf32> -> vector<64x32xf32>
    %290 = arith.addf %284, %289 : vector<64x32xf32>
    %c1_288 = arith.constant 1 : index
    %c2_289 = arith.constant 2 : index
    %c0_290 = arith.constant 0 : index
    %291 = vector.load %arg14[%c1_288, %c2_289, %c0_290] : memref<10x10x32xbf16, #tpu.memory_space<vmem>>, vector<8x8x32xbf16>
    %292 = vector.shape_cast %291 : vector<8x8x32xbf16> to vector<64x32xbf16>
    %c41 = arith.constant 41 : index
    %c0_291 = arith.constant 0 : index
    %c0_292 = arith.constant 0 : index
    %293 = vector.load %arg2[%c41, %c0_291, %c0_292] : memref<54x32x32xbf16, #tpu.memory_space<vmem>>, vector<1x32x32xbf16>
    %294 = vector.shape_cast %293 : vector<1x32x32xbf16> to vector<32x32xbf16>
    %cst_293 = arith.constant dense<0.000000e+00> : vector<64x32xf32>
    %295 = tpu.matmul %292, %294, %cst_293 {dimension_numbers = #tpu.dot_dimension_numbers<[1], [0], [0], [1], [0, 0, 1, 1], [], []>} : vector<64x32xbf16>, vector<32x32xbf16>, vector<64x32xf32> -> vector<64x32xf32>
    %296 = arith.addf %290, %295 : vector<64x32xf32>
    %c2_294 = arith.constant 2 : index
    %c0_295 = arith.constant 0 : index
    %c0_296 = arith.constant 0 : index
    %297 = vector.load %arg14[%c2_294, %c0_295, %c0_296] : memref<10x10x32xbf16, #tpu.memory_space<vmem>>, vector<8x8x32xbf16>
    %298 = vector.shape_cast %297 : vector<8x8x32xbf16> to vector<64x32xbf16>
    %c42 = arith.constant 42 : index
    %c0_297 = arith.constant 0 : index
    %c0_298 = arith.constant 0 : index
    %299 = vector.load %arg2[%c42, %c0_297, %c0_298] : memref<54x32x32xbf16, #tpu.memory_space<vmem>>, vector<1x32x32xbf16>
    %300 = vector.shape_cast %299 : vector<1x32x32xbf16> to vector<32x32xbf16>
    %cst_299 = arith.constant dense<0.000000e+00> : vector<64x32xf32>
    %301 = tpu.matmul %298, %300, %cst_299 {dimension_numbers = #tpu.dot_dimension_numbers<[1], [0], [0], [1], [0, 0, 1, 1], [], []>} : vector<64x32xbf16>, vector<32x32xbf16>, vector<64x32xf32> -> vector<64x32xf32>
    %302 = arith.addf %296, %301 : vector<64x32xf32>
    %c2_300 = arith.constant 2 : index
    %c1_301 = arith.constant 1 : index
    %c0_302 = arith.constant 0 : index
    %303 = vector.load %arg14[%c2_300, %c1_301, %c0_302] : memref<10x10x32xbf16, #tpu.memory_space<vmem>>, vector<8x8x32xbf16>
    %304 = vector.shape_cast %303 : vector<8x8x32xbf16> to vector<64x32xbf16>
    %c43 = arith.constant 43 : index
    %c0_303 = arith.constant 0 : index
    %c0_304 = arith.constant 0 : index
    %305 = vector.load %arg2[%c43, %c0_303, %c0_304] : memref<54x32x32xbf16, #tpu.memory_space<vmem>>, vector<1x32x32xbf16>
    %306 = vector.shape_cast %305 : vector<1x32x32xbf16> to vector<32x32xbf16>
    %cst_305 = arith.constant dense<0.000000e+00> : vector<64x32xf32>
    %307 = tpu.matmul %304, %306, %cst_305 {dimension_numbers = #tpu.dot_dimension_numbers<[1], [0], [0], [1], [0, 0, 1, 1], [], []>} : vector<64x32xbf16>, vector<32x32xbf16>, vector<64x32xf32> -> vector<64x32xf32>
    %308 = arith.addf %302, %307 : vector<64x32xf32>
    %c2_306 = arith.constant 2 : index
    %c2_307 = arith.constant 2 : index
    %c0_308 = arith.constant 0 : index
    %309 = vector.load %arg14[%c2_306, %c2_307, %c0_308] : memref<10x10x32xbf16, #tpu.memory_space<vmem>>, vector<8x8x32xbf16>
    %310 = vector.shape_cast %309 : vector<8x8x32xbf16> to vector<64x32xbf16>
    %c44 = arith.constant 44 : index
    %c0_309 = arith.constant 0 : index
    %c0_310 = arith.constant 0 : index
    %311 = vector.load %arg2[%c44, %c0_309, %c0_310] : memref<54x32x32xbf16, #tpu.memory_space<vmem>>, vector<1x32x32xbf16>
    %312 = vector.shape_cast %311 : vector<1x32x32xbf16> to vector<32x32xbf16>
    %cst_311 = arith.constant dense<0.000000e+00> : vector<64x32xf32>
    %313 = tpu.matmul %310, %312, %cst_311 {dimension_numbers = #tpu.dot_dimension_numbers<[1], [0], [0], [1], [0, 0, 1, 1], [], []>} : vector<64x32xbf16>, vector<32x32xbf16>, vector<64x32xf32> -> vector<64x32xf32>
    %314 = arith.addf %308, %313 : vector<64x32xf32>
    %c4_312 = arith.constant 4 : index
    %c0_313 = arith.constant 0 : index
    %c0_314 = arith.constant 0 : index
    %315 = vector.load %arg3[%c4_312, %c0_313, %c0_314] : memref<6x1x32xf32, #tpu.memory_space<vmem>>, vector<1x1x32xf32>
    %316 = vector.shape_cast %315 : vector<1x1x32xf32> to vector<1x32xf32>
    %317 = vector.broadcast %316 : vector<1x32xf32> to vector<64x32xf32>
    %318 = arith.addf %314, %317 : vector<64x32xf32>
    %cst_315 = arith.constant 0.000000e+00 : f32
    %319 = vector.broadcast %cst_315 : f32 to vector<64x32xf32>
    %320 = arith.maximumf %318, %319 : vector<64x32xf32>
    %321 = vector.shape_cast %320 : vector<64x32xf32> to vector<8x8x32xf32>
    %322 = arith.truncf %321 : vector<8x8x32xf32> to vector<8x8x32xbf16>
    %c1_316 = arith.constant 1 : index
    %c1_317 = arith.constant 1 : index
    %c0_318 = arith.constant 0 : index
    %323 = vector.load %arg14[%c1_316, %c1_317, %c0_318] : memref<10x10x32xbf16, #tpu.memory_space<vmem>>, vector<8x8x32xbf16>
    tpu.vector_store %arg14[%c1_316, %c1_317, %c0_318], %322 {strides = array<i32>} : memref<10x10x32xbf16, #tpu.memory_space<vmem>>, vector<8x8x32xbf16>,
    %cst_319 = arith.constant 0.000000e+00 : f32
    %324 = vector.broadcast %cst_319 : f32 to vector<64x32xf32>
    %c0_320 = arith.constant 0 : index
    %c0_321 = arith.constant 0 : index
    %c0_322 = arith.constant 0 : index
    %325 = vector.load %arg14[%c0_320, %c0_321, %c0_322] : memref<10x10x32xbf16, #tpu.memory_space<vmem>>, vector<8x8x32xbf16>
    %326 = vector.shape_cast %325 : vector<8x8x32xbf16> to vector<64x32xbf16>
    %c45 = arith.constant 45 : index
    %c0_323 = arith.constant 0 : index
    %c0_324 = arith.constant 0 : index
    %327 = vector.load %arg2[%c45, %c0_323, %c0_324] : memref<54x32x32xbf16, #tpu.memory_space<vmem>>, vector<1x32x32xbf16>
    %328 = vector.shape_cast %327 : vector<1x32x32xbf16> to vector<32x32xbf16>
    %cst_325 = arith.constant dense<0.000000e+00> : vector<64x32xf32>
    %329 = tpu.matmul %326, %328, %cst_325 {dimension_numbers = #tpu.dot_dimension_numbers<[1], [0], [0], [1], [0, 0, 1, 1], [], []>} : vector<64x32xbf16>, vector<32x32xbf16>, vector<64x32xf32> -> vector<64x32xf32>
    %330 = arith.addf %324, %329 : vector<64x32xf32>
    %c0_326 = arith.constant 0 : index
    %c1_327 = arith.constant 1 : index
    %c0_328 = arith.constant 0 : index
    %331 = vector.load %arg14[%c0_326, %c1_327, %c0_328] : memref<10x10x32xbf16, #tpu.memory_space<vmem>>, vector<8x8x32xbf16>
    %332 = vector.shape_cast %331 : vector<8x8x32xbf16> to vector<64x32xbf16>
    %c46 = arith.constant 46 : index
    %c0_329 = arith.constant 0 : index
    %c0_330 = arith.constant 0 : index
    %333 = vector.load %arg2[%c46, %c0_329, %c0_330] : memref<54x32x32xbf16, #tpu.memory_space<vmem>>, vector<1x32x32xbf16>
    %334 = vector.shape_cast %333 : vector<1x32x32xbf16> to vector<32x32xbf16>
    %cst_331 = arith.constant dense<0.000000e+00> : vector<64x32xf32>
    %335 = tpu.matmul %332, %334, %cst_331 {dimension_numbers = #tpu.dot_dimension_numbers<[1], [0], [0], [1], [0, 0, 1, 1], [], []>} : vector<64x32xbf16>, vector<32x32xbf16>, vector<64x32xf32> -> vector<64x32xf32>
    %336 = arith.addf %330, %335 : vector<64x32xf32>
    %c0_332 = arith.constant 0 : index
    %c2_333 = arith.constant 2 : index
    %c0_334 = arith.constant 0 : index
    %337 = vector.load %arg14[%c0_332, %c2_333, %c0_334] : memref<10x10x32xbf16, #tpu.memory_space<vmem>>, vector<8x8x32xbf16>
    %338 = vector.shape_cast %337 : vector<8x8x32xbf16> to vector<64x32xbf16>
    %c47 = arith.constant 47 : index
    %c0_335 = arith.constant 0 : index
    %c0_336 = arith.constant 0 : index
    %339 = vector.load %arg2[%c47, %c0_335, %c0_336] : memref<54x32x32xbf16, #tpu.memory_space<vmem>>, vector<1x32x32xbf16>
    %340 = vector.shape_cast %339 : vector<1x32x32xbf16> to vector<32x32xbf16>
    %cst_337 = arith.constant dense<0.000000e+00> : vector<64x32xf32>
    %341 = tpu.matmul %338, %340, %cst_337 {dimension_numbers = #tpu.dot_dimension_numbers<[1], [0], [0], [1], [0, 0, 1, 1], [], []>} : vector<64x32xbf16>, vector<32x32xbf16>, vector<64x32xf32> -> vector<64x32xf32>
    %342 = arith.addf %336, %341 : vector<64x32xf32>
    %c1_338 = arith.constant 1 : index
    %c0_339 = arith.constant 0 : index
    %c0_340 = arith.constant 0 : index
    %343 = vector.load %arg14[%c1_338, %c0_339, %c0_340] : memref<10x10x32xbf16, #tpu.memory_space<vmem>>, vector<8x8x32xbf16>
    %344 = vector.shape_cast %343 : vector<8x8x32xbf16> to vector<64x32xbf16>
    %c48 = arith.constant 48 : index
    %c0_341 = arith.constant 0 : index
    %c0_342 = arith.constant 0 : index
    %345 = vector.load %arg2[%c48, %c0_341, %c0_342] : memref<54x32x32xbf16, #tpu.memory_space<vmem>>, vector<1x32x32xbf16>
    %346 = vector.shape_cast %345 : vector<1x32x32xbf16> to vector<32x32xbf16>
    %cst_343 = arith.constant dense<0.000000e+00> : vector<64x32xf32>
    %347 = tpu.matmul %344, %346, %cst_343 {dimension_numbers = #tpu.dot_dimension_numbers<[1], [0], [0], [1], [0, 0, 1, 1], [], []>} : vector<64x32xbf16>, vector<32x32xbf16>, vector<64x32xf32> -> vector<64x32xf32>
    %348 = arith.addf %342, %347 : vector<64x32xf32>
    %c1_344 = arith.constant 1 : index
    %c1_345 = arith.constant 1 : index
    %c0_346 = arith.constant 0 : index
    %349 = vector.load %arg14[%c1_344, %c1_345, %c0_346] : memref<10x10x32xbf16, #tpu.memory_space<vmem>>, vector<8x8x32xbf16>
    %350 = vector.shape_cast %349 : vector<8x8x32xbf16> to vector<64x32xbf16>
    %c49 = arith.constant 49 : index
    %c0_347 = arith.constant 0 : index
    %c0_348 = arith.constant 0 : index
    %351 = vector.load %arg2[%c49, %c0_347, %c0_348] : memref<54x32x32xbf16, #tpu.memory_space<vmem>>, vector<1x32x32xbf16>
    %352 = vector.shape_cast %351 : vector<1x32x32xbf16> to vector<32x32xbf16>
    %cst_349 = arith.constant dense<0.000000e+00> : vector<64x32xf32>
    %353 = tpu.matmul %350, %352, %cst_349 {dimension_numbers = #tpu.dot_dimension_numbers<[1], [0], [0], [1], [0, 0, 1, 1], [], []>} : vector<64x32xbf16>, vector<32x32xbf16>, vector<64x32xf32> -> vector<64x32xf32>
    %354 = arith.addf %348, %353 : vector<64x32xf32>
    %c1_350 = arith.constant 1 : index
    %c2_351 = arith.constant 2 : index
    %c0_352 = arith.constant 0 : index
    %355 = vector.load %arg14[%c1_350, %c2_351, %c0_352] : memref<10x10x32xbf16, #tpu.memory_space<vmem>>, vector<8x8x32xbf16>
    %356 = vector.shape_cast %355 : vector<8x8x32xbf16> to vector<64x32xbf16>
    %c50 = arith.constant 50 : index
    %c0_353 = arith.constant 0 : index
    %c0_354 = arith.constant 0 : index
    %357 = vector.load %arg2[%c50, %c0_353, %c0_354] : memref<54x32x32xbf16, #tpu.memory_space<vmem>>, vector<1x32x32xbf16>
    %358 = vector.shape_cast %357 : vector<1x32x32xbf16> to vector<32x32xbf16>
    %cst_355 = arith.constant dense<0.000000e+00> : vector<64x32xf32>
    %359 = tpu.matmul %356, %358, %cst_355 {dimension_numbers = #tpu.dot_dimension_numbers<[1], [0], [0], [1], [0, 0, 1, 1], [], []>} : vector<64x32xbf16>, vector<32x32xbf16>, vector<64x32xf32> -> vector<64x32xf32>
    %360 = arith.addf %354, %359 : vector<64x32xf32>
    %c2_356 = arith.constant 2 : index
    %c0_357 = arith.constant 0 : index
    %c0_358 = arith.constant 0 : index
    %361 = vector.load %arg14[%c2_356, %c0_357, %c0_358] : memref<10x10x32xbf16, #tpu.memory_space<vmem>>, vector<8x8x32xbf16>
    %362 = vector.shape_cast %361 : vector<8x8x32xbf16> to vector<64x32xbf16>
    %c51 = arith.constant 51 : index
    %c0_359 = arith.constant 0 : index
    %c0_360 = arith.constant 0 : index
    %363 = vector.load %arg2[%c51, %c0_359, %c0_360] : memref<54x32x32xbf16, #tpu.memory_space<vmem>>, vector<1x32x32xbf16>
    %364 = vector.shape_cast %363 : vector<1x32x32xbf16> to vector<32x32xbf16>
    %cst_361 = arith.constant dense<0.000000e+00> : vector<64x32xf32>
    %365 = tpu.matmul %362, %364, %cst_361 {dimension_numbers = #tpu.dot_dimension_numbers<[1], [0], [0], [1], [0, 0, 1, 1], [], []>} : vector<64x32xbf16>, vector<32x32xbf16>, vector<64x32xf32> -> vector<64x32xf32>
    %366 = arith.addf %360, %365 : vector<64x32xf32>
    %c2_362 = arith.constant 2 : index
    %c1_363 = arith.constant 1 : index
    %c0_364 = arith.constant 0 : index
    %367 = vector.load %arg14[%c2_362, %c1_363, %c0_364] : memref<10x10x32xbf16, #tpu.memory_space<vmem>>, vector<8x8x32xbf16>
    %368 = vector.shape_cast %367 : vector<8x8x32xbf16> to vector<64x32xbf16>
    %c52 = arith.constant 52 : index
    %c0_365 = arith.constant 0 : index
    %c0_366 = arith.constant 0 : index
    %369 = vector.load %arg2[%c52, %c0_365, %c0_366] : memref<54x32x32xbf16, #tpu.memory_space<vmem>>, vector<1x32x32xbf16>
    %370 = vector.shape_cast %369 : vector<1x32x32xbf16> to vector<32x32xbf16>
    %cst_367 = arith.constant dense<0.000000e+00> : vector<64x32xf32>
    %371 = tpu.matmul %368, %370, %cst_367 {dimension_numbers = #tpu.dot_dimension_numbers<[1], [0], [0], [1], [0, 0, 1, 1], [], []>} : vector<64x32xbf16>, vector<32x32xbf16>, vector<64x32xf32> -> vector<64x32xf32>
    %372 = arith.addf %366, %371 : vector<64x32xf32>
    %c2_368 = arith.constant 2 : index
    %c2_369 = arith.constant 2 : index
    %c0_370 = arith.constant 0 : index
    %373 = vector.load %arg14[%c2_368, %c2_369, %c0_370] : memref<10x10x32xbf16, #tpu.memory_space<vmem>>, vector<8x8x32xbf16>
    %374 = vector.shape_cast %373 : vector<8x8x32xbf16> to vector<64x32xbf16>
    %c53 = arith.constant 53 : index
    %c0_371 = arith.constant 0 : index
    %c0_372 = arith.constant 0 : index
    %375 = vector.load %arg2[%c53, %c0_371, %c0_372] : memref<54x32x32xbf16, #tpu.memory_space<vmem>>, vector<1x32x32xbf16>
    %376 = vector.shape_cast %375 : vector<1x32x32xbf16> to vector<32x32xbf16>
    %cst_373 = arith.constant dense<0.000000e+00> : vector<64x32xf32>
    %377 = tpu.matmul %374, %376, %cst_373 {dimension_numbers = #tpu.dot_dimension_numbers<[1], [0], [0], [1], [0, 0, 1, 1], [], []>} : vector<64x32xbf16>, vector<32x32xbf16>, vector<64x32xf32> -> vector<64x32xf32>
    %378 = arith.addf %372, %377 : vector<64x32xf32>
    %c5_374 = arith.constant 5 : index
    %c0_375 = arith.constant 0 : index
    %c0_376 = arith.constant 0 : index
    %379 = vector.load %arg3[%c5_374, %c0_375, %c0_376] : memref<6x1x32xf32, #tpu.memory_space<vmem>>, vector<1x1x32xf32>
    %380 = vector.shape_cast %379 : vector<1x1x32xf32> to vector<1x32xf32>
    %381 = vector.broadcast %380 : vector<1x32xf32> to vector<64x32xf32>
    %382 = arith.addf %378, %381 : vector<64x32xf32>
    %383 = arith.truncf %382 : vector<64x32xf32> to vector<64x32xbf16>
    %c0_377 = arith.constant 0 : index
    %c0_378 = arith.constant 0 : index
    %384 = vector.load %arg1[%c0_377, %c0_378] : memref<8x32xbf16, #tpu.memory_space<vmem>>, vector<8x32xbf16>
    %c0_379 = arith.constant 0 : index
    %c0_380 = arith.constant 0 : index
    %c0_381 = arith.constant 0 : index
    %385 = vector.load %arg4[%c0_379, %c0_380, %c0_381] : memref<8x32x32xbf16, #tpu.memory_space<vmem>>, vector<1x32x32xbf16>
    %386 = vector.shape_cast %385 : vector<1x32x32xbf16> to vector<32x32xbf16>
    %cst_382 = arith.constant dense<0.000000e+00> : vector<8x32xf32>
    %387 = tpu.matmul %384, %386, %cst_382 {dimension_numbers = #tpu.dot_dimension_numbers<[1], [0], [0], [1], [0, 0, 1, 1], [], []>} : vector<8x32xbf16>, vector<32x32xbf16>, vector<8x32xf32> -> vector<8x32xf32>
    %c0_383 = arith.constant 0 : index
    %c0_384 = arith.constant 0 : index
    %c0_385 = arith.constant 0 : index
    %388 = vector.load %arg5[%c0_383, %c0_384, %c0_385] : memref<8x1x32xf32, #tpu.memory_space<vmem>>, vector<1x1x32xf32>
    %389 = vector.shape_cast %388 : vector<1x1x32xf32> to vector<1x32xf32>
    %390 = vector.broadcast %389 : vector<1x32xf32> to vector<8x32xf32>
    %391 = arith.addf %387, %390 : vector<8x32xf32>
    %cst_386 = arith.constant 0.000000e+00 : f32
    %392 = vector.broadcast %cst_386 : f32 to vector<8x32xf32>
    %393 = arith.maximumf %391, %392 : vector<8x32xf32>
    %394 = arith.truncf %393 : vector<8x32xf32> to vector<8x32xbf16>
    %c1_387 = arith.constant 1 : index
    %c0_388 = arith.constant 0 : index
    %c0_389 = arith.constant 0 : index
    %395 = vector.load %arg4[%c1_387, %c0_388, %c0_389] : memref<8x32x32xbf16, #tpu.memory_space<vmem>>, vector<1x32x32xbf16>
    %396 = vector.shape_cast %395 : vector<1x32x32xbf16> to vector<32x32xbf16>
    %cst_390 = arith.constant dense<0.000000e+00> : vector<8x32xf32>
    %397 = tpu.matmul %394, %396, %cst_390 {dimension_numbers = #tpu.dot_dimension_numbers<[1], [0], [0], [1], [0, 0, 1, 1], [], []>} : vector<8x32xbf16>, vector<32x32xbf16>, vector<8x32xf32> -> vector<8x32xf32>
    %c1_391 = arith.constant 1 : index
    %c0_392 = arith.constant 0 : index
    %c0_393 = arith.constant 0 : index
    %398 = vector.load %arg5[%c1_391, %c0_392, %c0_393] : memref<8x1x32xf32, #tpu.memory_space<vmem>>, vector<1x1x32xf32>
    %399 = vector.shape_cast %398 : vector<1x1x32xf32> to vector<1x32xf32>
    %400 = vector.broadcast %399 : vector<1x32xf32> to vector<8x32xf32>
    %401 = arith.addf %397, %400 : vector<8x32xf32>
    %cst_394 = arith.constant 0.000000e+00 : f32
    %402 = vector.broadcast %cst_394 : f32 to vector<8x32xf32>
    %403 = arith.maximumf %401, %402 : vector<8x32xf32>
    %404 = arith.truncf %403 : vector<8x32xf32> to vector<8x32xbf16>
    %c2_395 = arith.constant 2 : index
    %c0_396 = arith.constant 0 : index
    %c0_397 = arith.constant 0 : index
    %405 = vector.load %arg4[%c2_395, %c0_396, %c0_397] : memref<8x32x32xbf16, #tpu.memory_space<vmem>>, vector<1x32x32xbf16>
    %406 = vector.shape_cast %405 : vector<1x32x32xbf16> to vector<32x32xbf16>
    %cst_398 = arith.constant dense<0.000000e+00> : vector<8x32xf32>
    %407 = tpu.matmul %404, %406, %cst_398 {dimension_numbers = #tpu.dot_dimension_numbers<[1], [0], [0], [1], [0, 0, 1, 1], [], []>} : vector<8x32xbf16>, vector<32x32xbf16>, vector<8x32xf32> -> vector<8x32xf32>
    %c2_399 = arith.constant 2 : index
    %c0_400 = arith.constant 0 : index
    %c0_401 = arith.constant 0 : index
    %408 = vector.load %arg5[%c2_399, %c0_400, %c0_401] : memref<8x1x32xf32, #tpu.memory_space<vmem>>, vector<1x1x32xf32>
    %409 = vector.shape_cast %408 : vector<1x1x32xf32> to vector<1x32xf32>
    %410 = vector.broadcast %409 : vector<1x32xf32> to vector<8x32xf32>
    %411 = arith.addf %407, %410 : vector<8x32xf32>
    %cst_402 = arith.constant 0.000000e+00 : f32
    %412 = vector.broadcast %cst_402 : f32 to vector<8x32xf32>
    %413 = arith.maximumf %411, %412 : vector<8x32xf32>
    %414 = arith.truncf %413 : vector<8x32xf32> to vector<8x32xbf16>
    %c3_403 = arith.constant 3 : index
    %c0_404 = arith.constant 0 : index
    %c0_405 = arith.constant 0 : index
    %415 = vector.load %arg4[%c3_403, %c0_404, %c0_405] : memref<8x32x32xbf16, #tpu.memory_space<vmem>>, vector<1x32x32xbf16>
    %416 = vector.shape_cast %415 : vector<1x32x32xbf16> to vector<32x32xbf16>
    %cst_406 = arith.constant dense<0.000000e+00> : vector<8x32xf32>
    %417 = tpu.matmul %414, %416, %cst_406 {dimension_numbers = #tpu.dot_dimension_numbers<[1], [0], [0], [1], [0, 0, 1, 1], [], []>} : vector<8x32xbf16>, vector<32x32xbf16>, vector<8x32xf32> -> vector<8x32xf32>
    %c3_407 = arith.constant 3 : index
    %c0_408 = arith.constant 0 : index
    %c0_409 = arith.constant 0 : index
    %418 = vector.load %arg5[%c3_407, %c0_408, %c0_409] : memref<8x1x32xf32, #tpu.memory_space<vmem>>, vector<1x1x32xf32>
    %419 = vector.shape_cast %418 : vector<1x1x32xf32> to vector<1x32xf32>
    %420 = vector.broadcast %419 : vector<1x32xf32> to vector<8x32xf32>
    %421 = arith.addf %417, %420 : vector<8x32xf32>
    %cst_410 = arith.constant 0.000000e+00 : f32
    %422 = vector.broadcast %cst_410 : f32 to vector<8x32xf32>
    %423 = arith.maximumf %421, %422 : vector<8x32xf32>
    %424 = arith.truncf %423 : vector<8x32xf32> to vector<8x32xbf16>
    %c4_411 = arith.constant 4 : index
    %c0_412 = arith.constant 0 : index
    %c0_413 = arith.constant 0 : index
    %425 = vector.load %arg4[%c4_411, %c0_412, %c0_413] : memref<8x32x32xbf16, #tpu.memory_space<vmem>>, vector<1x32x32xbf16>
    %426 = vector.shape_cast %425 : vector<1x32x32xbf16> to vector<32x32xbf16>
    %cst_414 = arith.constant dense<0.000000e+00> : vector<8x32xf32>
    %427 = tpu.matmul %424, %426, %cst_414 {dimension_numbers = #tpu.dot_dimension_numbers<[1], [0], [0], [1], [0, 0, 1, 1], [], []>} : vector<8x32xbf16>, vector<32x32xbf16>, vector<8x32xf32> -> vector<8x32xf32>
    %c4_415 = arith.constant 4 : index
    %c0_416 = arith.constant 0 : index
    %c0_417 = arith.constant 0 : index
    %428 = vector.load %arg5[%c4_415, %c0_416, %c0_417] : memref<8x1x32xf32, #tpu.memory_space<vmem>>, vector<1x1x32xf32>
    %429 = vector.shape_cast %428 : vector<1x1x32xf32> to vector<1x32xf32>
    %430 = vector.broadcast %429 : vector<1x32xf32> to vector<8x32xf32>
    %431 = arith.addf %427, %430 : vector<8x32xf32>
    %cst_418 = arith.constant 0.000000e+00 : f32
    %432 = vector.broadcast %cst_418 : f32 to vector<8x32xf32>
    %433 = arith.maximumf %431, %432 : vector<8x32xf32>
    %434 = arith.truncf %433 : vector<8x32xf32> to vector<8x32xbf16>
    %c5_419 = arith.constant 5 : index
    %c0_420 = arith.constant 0 : index
    %c0_421 = arith.constant 0 : index
    %435 = vector.load %arg4[%c5_419, %c0_420, %c0_421] : memref<8x32x32xbf16, #tpu.memory_space<vmem>>, vector<1x32x32xbf16>
    %436 = vector.shape_cast %435 : vector<1x32x32xbf16> to vector<32x32xbf16>
    %cst_422 = arith.constant dense<0.000000e+00> : vector<8x32xf32>
    %437 = tpu.matmul %434, %436, %cst_422 {dimension_numbers = #tpu.dot_dimension_numbers<[1], [0], [0], [1], [0, 0, 1, 1], [], []>} : vector<8x32xbf16>, vector<32x32xbf16>, vector<8x32xf32> -> vector<8x32xf32>
    %c5_423 = arith.constant 5 : index
    %c0_424 = arith.constant 0 : index
    %c0_425 = arith.constant 0 : index
    %438 = vector.load %arg5[%c5_423, %c0_424, %c0_425] : memref<8x1x32xf32, #tpu.memory_space<vmem>>, vector<1x1x32xf32>
    %439 = vector.shape_cast %438 : vector<1x1x32xf32> to vector<1x32xf32>
    %440 = vector.broadcast %439 : vector<1x32xf32> to vector<8x32xf32>
    %441 = arith.addf %437, %440 : vector<8x32xf32>
    %cst_426 = arith.constant 0.000000e+00 : f32
    %442 = vector.broadcast %cst_426 : f32 to vector<8x32xf32>
    %443 = arith.maximumf %441, %442 : vector<8x32xf32>
    %444 = arith.truncf %443 : vector<8x32xf32> to vector<8x32xbf16>
    %c6_427 = arith.constant 6 : index
    %c0_428 = arith.constant 0 : index
    %c0_429 = arith.constant 0 : index
    %445 = vector.load %arg4[%c6_427, %c0_428, %c0_429] : memref<8x32x32xbf16, #tpu.memory_space<vmem>>, vector<1x32x32xbf16>
    %446 = vector.shape_cast %445 : vector<1x32x32xbf16> to vector<32x32xbf16>
    %cst_430 = arith.constant dense<0.000000e+00> : vector<8x32xf32>
    %447 = tpu.matmul %444, %446, %cst_430 {dimension_numbers = #tpu.dot_dimension_numbers<[1], [0], [0], [1], [0, 0, 1, 1], [], []>} : vector<8x32xbf16>, vector<32x32xbf16>, vector<8x32xf32> -> vector<8x32xf32>
    %c6_431 = arith.constant 6 : index
    %c0_432 = arith.constant 0 : index
    %c0_433 = arith.constant 0 : index
    %448 = vector.load %arg5[%c6_431, %c0_432, %c0_433] : memref<8x1x32xf32, #tpu.memory_space<vmem>>, vector<1x1x32xf32>
    %449 = vector.shape_cast %448 : vector<1x1x32xf32> to vector<1x32xf32>
    %450 = vector.broadcast %449 : vector<1x32xf32> to vector<8x32xf32>
    %451 = arith.addf %447, %450 : vector<8x32xf32>
    %cst_434 = arith.constant 0.000000e+00 : f32
    %452 = vector.broadcast %cst_434 : f32 to vector<8x32xf32>
    %453 = arith.maximumf %451, %452 : vector<8x32xf32>
    %454 = arith.truncf %453 : vector<8x32xf32> to vector<8x32xbf16>
    %c7_435 = arith.constant 7 : index
    %c0_436 = arith.constant 0 : index
    %c0_437 = arith.constant 0 : index
    %455 = vector.load %arg4[%c7_435, %c0_436, %c0_437] : memref<8x32x32xbf16, #tpu.memory_space<vmem>>, vector<1x32x32xbf16>
    %456 = vector.shape_cast %455 : vector<1x32x32xbf16> to vector<32x32xbf16>
    %cst_438 = arith.constant dense<0.000000e+00> : vector<8x32xf32>
    %457 = tpu.matmul %454, %456, %cst_438 {dimension_numbers = #tpu.dot_dimension_numbers<[1], [0], [0], [1], [0, 0, 1, 1], [], []>} : vector<8x32xbf16>, vector<32x32xbf16>, vector<8x32xf32> -> vector<8x32xf32>
    %c7_439 = arith.constant 7 : index
    %c0_440 = arith.constant 0 : index
    %c0_441 = arith.constant 0 : index
    %458 = vector.load %arg5[%c7_439, %c0_440, %c0_441] : memref<8x1x32xf32, #tpu.memory_space<vmem>>, vector<1x1x32xf32>
    %459 = vector.shape_cast %458 : vector<1x1x32xf32> to vector<1x32xf32>
    %460 = vector.broadcast %459 : vector<1x32xf32> to vector<8x32xf32>
    %461 = arith.addf %457, %460 : vector<8x32xf32>
    %462 = arith.truncf %461 : vector<8x32xf32> to vector<8x32xbf16>
    %463 = arith.extf %383 : vector<64x32xbf16> to vector<64x32xf32>
    %c0_442 = arith.constant 0 : index
    %c0_443 = arith.constant 0 : index
    %464 = vector.load %arg6[%c0_442, %c0_443] : memref<64x32xbf16, #tpu.memory_space<vmem>>, vector<64x32xbf16>
    %465 = arith.extf %464 : vector<64x32xbf16> to vector<64x32xf32>
    %466 = arith.mulf %463, %465 : vector<64x32xf32>
    %cst_444 = arith.constant dense<0.000000e+00> : vector<32xf32>
    %467 = vector.multi_reduction <add>, %466, %cst_444 [0] : vector<64x32xf32> to vector<32xf32>
    %468 = vector.shape_cast %467 : vector<32xf32> to vector<1x32xf32>
    %c0_445 = arith.constant 0 : index
    %c0_446 = arith.constant 0 : index
    %469 = vector.load %arg7[%c0_445, %c0_446] : memref<32x32xbf16, #tpu.memory_space<vmem>>, vector<32x32xbf16>
    %cst_447 = arith.constant dense<0.000000e+00> : vector<8x32xf32>
    %470 = tpu.matmul %462, %469, %cst_447 {dimension_numbers = #tpu.dot_dimension_numbers<[1], [0], [0], [1], [0, 0, 1, 1], [], []>} : vector<8x32xbf16>, vector<32x32xbf16>, vector<8x32xf32> -> vector<8x32xf32>
    %471 = vector.broadcast %468 : vector<1x32xf32> to vector<8x32xf32>
    %472 = arith.addf %471, %470 : vector<8x32xf32>
    %c0_448 = arith.constant 0 : index
    %c0_449 = arith.constant 0 : index
    %473 = vector.load %arg8[%c0_448, %c0_449] : memref<1x32xf32, #tpu.memory_space<vmem>>, vector<1x32xf32>
    %474 = vector.broadcast %473 : vector<1x32xf32> to vector<8x32xf32>
    %475 = arith.addf %472, %474 : vector<8x32xf32>
    %cst_450 = arith.constant 0.000000e+00 : f32
    %476 = vector.broadcast %cst_450 : f32 to vector<8x32xf32>
    %477 = arith.maximumf %475, %476 : vector<8x32xf32>
    %478 = arith.truncf %477 : vector<8x32xf32> to vector<8x32xbf16>
    %c0_451 = arith.constant 0 : index
    %c0_452 = arith.constant 0 : index
    %c0_453 = arith.constant 0 : index
    %479 = vector.load %arg9[%c0_451, %c0_452, %c0_453] : memref<3x32x32xbf16, #tpu.memory_space<vmem>>, vector<1x32x32xbf16>
    %480 = vector.shape_cast %479 : vector<1x32x32xbf16> to vector<32x32xbf16>
    %cst_454 = arith.constant dense<0.000000e+00> : vector<8x32xf32>
    %481 = tpu.matmul %478, %480, %cst_454 {dimension_numbers = #tpu.dot_dimension_numbers<[1], [0], [0], [1], [0, 0, 1, 1], [], []>} : vector<8x32xbf16>, vector<32x32xbf16>, vector<8x32xf32> -> vector<8x32xf32>
    %c0_455 = arith.constant 0 : index
    %c0_456 = arith.constant 0 : index
    %c0_457 = arith.constant 0 : index
    %482 = vector.load %arg10[%c0_455, %c0_456, %c0_457] : memref<3x1x32xf32, #tpu.memory_space<vmem>>, vector<1x1x32xf32>
    %483 = vector.shape_cast %482 : vector<1x1x32xf32> to vector<1x32xf32>
    %484 = vector.broadcast %483 : vector<1x32xf32> to vector<8x32xf32>
    %485 = arith.addf %481, %484 : vector<8x32xf32>
    %cst_458 = arith.constant 0.000000e+00 : f32
    %486 = vector.broadcast %cst_458 : f32 to vector<8x32xf32>
    %487 = arith.maximumf %485, %486 : vector<8x32xf32>
    %488 = arith.truncf %487 : vector<8x32xf32> to vector<8x32xbf16>
    %c1_459 = arith.constant 1 : index
    %c0_460 = arith.constant 0 : index
    %c0_461 = arith.constant 0 : index
    %489 = vector.load %arg9[%c1_459, %c0_460, %c0_461] : memref<3x32x32xbf16, #tpu.memory_space<vmem>>, vector<1x32x32xbf16>
    %490 = vector.shape_cast %489 : vector<1x32x32xbf16> to vector<32x32xbf16>
    %cst_462 = arith.constant dense<0.000000e+00> : vector<8x32xf32>
    %491 = tpu.matmul %488, %490, %cst_462 {dimension_numbers = #tpu.dot_dimension_numbers<[1], [0], [0], [1], [0, 0, 1, 1], [], []>} : vector<8x32xbf16>, vector<32x32xbf16>, vector<8x32xf32> -> vector<8x32xf32>
    %c1_463 = arith.constant 1 : index
    %c0_464 = arith.constant 0 : index
    %c0_465 = arith.constant 0 : index
    %492 = vector.load %arg10[%c1_463, %c0_464, %c0_465] : memref<3x1x32xf32, #tpu.memory_space<vmem>>, vector<1x1x32xf32>
    %493 = vector.shape_cast %492 : vector<1x1x32xf32> to vector<1x32xf32>
    %494 = vector.broadcast %493 : vector<1x32xf32> to vector<8x32xf32>
    %495 = arith.addf %491, %494 : vector<8x32xf32>
    %cst_466 = arith.constant 0.000000e+00 : f32
    %496 = vector.broadcast %cst_466 : f32 to vector<8x32xf32>
    %497 = arith.maximumf %495, %496 : vector<8x32xf32>
    %498 = arith.truncf %497 : vector<8x32xf32> to vector<8x32xbf16>
    %c2_467 = arith.constant 2 : index
    %c0_468 = arith.constant 0 : index
    %c0_469 = arith.constant 0 : index
    %499 = vector.load %arg9[%c2_467, %c0_468, %c0_469] : memref<3x32x32xbf16, #tpu.memory_space<vmem>>, vector<1x32x32xbf16>
    %500 = vector.shape_cast %499 : vector<1x32x32xbf16> to vector<32x32xbf16>
    %cst_470 = arith.constant dense<0.000000e+00> : vector<8x32xf32>
    %501 = tpu.matmul %498, %500, %cst_470 {dimension_numbers = #tpu.dot_dimension_numbers<[1], [0], [0], [1], [0, 0, 1, 1], [], []>} : vector<8x32xbf16>, vector<32x32xbf16>, vector<8x32xf32> -> vector<8x32xf32>
    %c2_471 = arith.constant 2 : index
    %c0_472 = arith.constant 0 : index
    %c0_473 = arith.constant 0 : index
    %502 = vector.load %arg10[%c2_471, %c0_472, %c0_473] : memref<3x1x32xf32, #tpu.memory_space<vmem>>, vector<1x1x32xf32>
    %503 = vector.shape_cast %502 : vector<1x1x32xf32> to vector<1x32xf32>
    %504 = vector.broadcast %503 : vector<1x32xf32> to vector<8x32xf32>
    %505 = arith.addf %501, %504 : vector<8x32xf32>
    %cst_474 = arith.constant 0.000000e+00 : f32
    %506 = vector.broadcast %cst_474 : f32 to vector<8x32xf32>
    %507 = arith.maximumf %505, %506 : vector<8x32xf32>
    %508 = arith.truncf %507 : vector<8x32xf32> to vector<8x32xbf16>
    %c0_475 = arith.constant 0 : index
    %c0_476 = arith.constant 0 : index
    %509 = vector.load %arg11[%c0_475, %c0_476] : memref<32x3xbf16, #tpu.memory_space<vmem>>, vector<32x3xbf16>
    %cst_477 = arith.constant dense<0.000000e+00> : vector<8x3xf32>
    %510 = tpu.matmul %508, %509, %cst_477 {dimension_numbers = #tpu.dot_dimension_numbers<[1], [0], [0], [1], [0, 0, 1, 1], [], []>} : vector<8x32xbf16>, vector<32x3xbf16>, vector<8x3xf32> -> vector<8x3xf32>
    %c0_478 = arith.constant 0 : index
    %c0_479 = arith.constant 0 : index
    %511 = vector.load %arg12[%c0_478, %c0_479] : memref<1x3xf32, #tpu.memory_space<vmem>>, vector<1x3xf32>
    %512 = vector.broadcast %511 : vector<1x3xf32> to vector<8x3xf32>
    %513 = arith.addf %510, %512 : vector<8x3xf32>
    %c0_480 = arith.constant 0 : index
    %c0_481 = arith.constant 0 : index
    %514 = vector.load %arg13[%c0_480, %c0_481] : memref<8x3xf32, #tpu.memory_space<vmem>>, vector<8x3xf32>
    tpu.vector_store %arg13[%c0_480, %c0_481], %513 {strides = array<i32>} : memref<8x3xf32, #tpu.memory_space<vmem>>, vector<8x3xf32>,
    return
  }
}

</mosaic_0001>

<llo_original>
// kernel: deeponet_conv_forward.1
$region0: #{deeponet_conv_forward.1}
  #allocation0 [shape = 'u32[]', space=smem, size = 0x4, offset = 0x4, fixed_abs, tag = 'smem constant byte address 0x4 - core index']
  #allocation1 [shape = 'u32[144,128]{1,0:T(1,128)}', space=vmem, size = 0x12000, scoped, tag = 'internal scratch']
  #allocation2 [shape = 'bf16[10,10,32]{2,1,0:T(8,128)(2,1)}', space=vmem, size = 0xa000, scoped, tag = 'scratch operand']
  %s0 = inlined_call_operand.vmem [shape: bf16[8,8,32], index: 0, kind: input, shape index: {}]
  %s1 = inlined_call_operand.vmem [shape: bf16[8,32], index: 1, kind: input, shape index: {}]
  %s2 = inlined_call_operand.vmem [shape: bf16[54,32,32], index: 2, kind: input, shape index: {}]
  %s3 = inlined_call_operand.vmem [shape: f32[6,1,32], index: 3, kind: input, shape index: {}]
  %s4 = inlined_call_operand.vmem [shape: bf16[8,32,32], index: 4, kind: input, shape index: {}]
  %s5 = inlined_call_operand.vmem [shape: f32[8,1,32], index: 5, kind: input, shape index: {}]
  %s6 = inlined_call_operand.vmem [shape: bf16[64,32], index: 6, kind: input, shape index: {}]
  %s7 = inlined_call_operand.vmem [shape: bf16[32,32], index: 7, kind: input, shape index: {}]
  %s8 = inlined_call_operand.vmem [shape: f32[1,32], index: 8, kind: input, shape index: {}]
  %s9 = inlined_call_operand.vmem [shape: bf16[3,32,32], index: 9, kind: input, shape index: {}]
  %s10 = inlined_call_operand.vmem [shape: f32[3,1,32], index: 10, kind: input, shape index: {}]
  %s11 = inlined_call_operand.vmem [shape: bf16[32,3], index: 11, kind: input, shape index: {}]
  %s12 = inlined_call_operand.vmem [shape: f32[1,3], index: 12, kind: input, shape index: {}]
  %s13 = inlined_call_operand.vmem [shape: f32[8,3], index: 13, kind: output, shape index: {}]
  %s14 = sld [smem:[#allocation0]]
  $region62: #{deeponet_conv_forward.1} parent=0
    _
  %s16 = ssub.s32 1, %s14
  %s17 = scalar_select 0, %s16, %s14
  // Predicated region
  $region2: #{deeponet_conv_forward.1} parent=0 // pred_check
    _
  $region3: #{deeponet_conv_forward.1} parent=0 // pred_check_branch
    %19 = sbr.rel (0) target = $region5
  $region4: #{deeponet_conv_forward.1} parent=0 // pred_region
    _
  $region5: #{deeponet_conv_forward.1} parent=0 // pred_fallthru
    _
  // Predicated region
  $region6: #{deeponet_conv_forward.1} parent=0 // pred_check
    _
  $region7: #{deeponet_conv_forward.1} parent=0 // pred_check_branch
    %21 = sbr.rel (0) target = $region9
  $region8: #{deeponet_conv_forward.1} parent=0 // pred_region
    _
  $region9: #{deeponet_conv_forward.1} parent=0 // pred_fallthru
    _
  // Predicated region
  $region10: #{deeponet_conv_forward.1} parent=0 // pred_check
    _
  $region11: #{deeponet_conv_forward.1} parent=0 // pred_check_branch
    %23 = sbr.rel (0) target = $region13
  $region12: #{deeponet_conv_forward.1} parent=0 // pred_region
    _
  $region13: #{deeponet_conv_forward.1} parent=0 // pred_fallthru
    _
  // Predicated region
  $region14: #{deeponet_conv_forward.1} parent=0 // pred_check
    _
  $region15: #{deeponet_conv_forward.1} parent=0 // pred_check_branch
    %25 = sbr.rel (0) target = $region17
  $region16: #{deeponet_conv_forward.1} parent=0 // pred_region
    _
  $region17: #{deeponet_conv_forward.1} parent=0 // pred_fallthru
    _
  // Predicated region
  $region18: #{deeponet_conv_forward.1} parent=0 // pred_check
    _
  $region19: #{deeponet_conv_forward.1} parent=0 // pred_check_branch
    %27 = sbr.rel (0) target = $region21
  $region20: #{deeponet_conv_forward.1} parent=0 // pred_region
    _
  $region21: #{deeponet_conv_forward.1} parent=0 // pred_fallthru
    _
  // Predicated region
  $region22: #{deeponet_conv_forward.1} parent=0 // pred_check
    _
  $region23: #{deeponet_conv_forward.1} parent=0 // pred_check_branch
    %29 = sbr.rel (0) target = $region25
  $region24: #{deeponet_conv_forward.1} parent=0 // pred_region
    _
  $region25: #{deeponet_conv_forward.1} parent=0 // pred_fallthru
    _
  // Predicated region
  $region26: #{deeponet_conv_forward.1} parent=0 // pred_check
    _
  $region27: #{deeponet_conv_forward.1} parent=0 // pred_check_branch
    %31 = sbr.rel (0) target = $region29
  $region28: #{deeponet_conv_forward.1} parent=0 // pred_region
    _
  $region29: #{deeponet_conv_forward.1} parent=0 // pred_fallthru
    _
  // Predicated region
  $region30: #{deeponet_conv_forward.1} parent=0 // pred_check
    _
  $region31: #{deeponet_conv_forward.1} parent=0 // pred_check_branch
    %33 = sbr.rel (0) target = $region33
  $region32: #{deeponet_conv_forward.1} parent=0 // pred_region
    _
  $region33: #{deeponet_conv_forward.1} parent=0 // pred_fallthru
    _
  // Predicated region
  $region34: #{deeponet_conv_forward.1} parent=0 // pred_check
    _
  $region35: #{deeponet_conv_forward.1} parent=0 // pred_check_branch
    %35 = sbr.rel (0) target = $region37
  $region36: #{deeponet_conv_forward.1} parent=0 // pred_region
    _
  $region37: #{deeponet_conv_forward.1} parent=0 // pred_fallthru
    _
  // Predicated region
  $region38: #{deeponet_conv_forward.1} parent=0 // pred_check
    _
  $region39: #{deeponet_conv_forward.1} parent=0 // pred_check_branch
    %37 = sbr.rel (0) target = $region41
  $region40: #{deeponet_conv_forward.1} parent=0 // pred_region
    _
  $region41: #{deeponet_conv_forward.1} parent=0 // pred_fallthru
    _
  // Predicated region
  $region42: #{deeponet_conv_forward.1} parent=0 // pred_check
    _
  $region43: #{deeponet_conv_forward.1} parent=0 // pred_check_branch
    %39 = sbr.rel (0) target = $region45
  $region44: #{deeponet_conv_forward.1} parent=0 // pred_region
    _
  $region45: #{deeponet_conv_forward.1} parent=0 // pred_fallthru
    _
  // Predicated region
  $region46: #{deeponet_conv_forward.1} parent=0 // pred_check
    _
  $region47: #{deeponet_conv_forward.1} parent=0 // pred_check_branch
    %41 = sbr.rel (0) target = $region49
  $region48: #{deeponet_conv_forward.1} parent=0 // pred_region
    _
  $region49: #{deeponet_conv_forward.1} parent=0 // pred_fallthru
    _
  // Predicated region
  $region50: #{deeponet_conv_forward.1} parent=0 // pred_check
    _
  $region51: #{deeponet_conv_forward.1} parent=0 // pred_check_branch
    %43 = sbr.rel (0) target = $region53
  $region52: #{deeponet_conv_forward.1} parent=0 // pred_region
    _
  $region53: #{deeponet_conv_forward.1} parent=0 // pred_fallthru
    _
  %vm45 = vcmask 257024
  %46 = vst.msk [vmem:[#allocation2] sm:$0xf] %vm45, 0
  %vm47 = vcmask 253952
  %48 = vst.msk [vmem:[#allocation2 + $0x4] sm:$0x1] %vm47, 0
  %49 = vst.msk [vmem:[#allocation2 + $0x8] sm:$0xf] %vm45, 0
  %50 = vst.msk [vmem:[#allocation2 + $0xc] sm:$0x1] %vm47, 0
  %51 = vst.msk [vmem:[#allocation2 + $0x10] sm:$0xf] %vm45, 0
  %52 = vst.msk [vmem:[#allocation2 + $0x14] sm:$0x1] %vm47, 0
  %53 = vst.msk [vmem:[#allocation2 + $0x18] sm:$0xf] %vm45, 0
  %54 = vst.msk [vmem:[#allocation2 + $0x1c] sm:$0x1] %vm47, 0
  %55 = vst.msk [vmem:[#allocation2 + $0x20] sm:$0xf] %vm45, 0
  %56 = vst.msk [vmem:[#allocation2 + $0x24] sm:$0x1] %vm47, 0
  %57 = vst.msk [vmem:[#allocation2 + $0x28] sm:$0xf] %vm45, 0
  %58 = vst.msk [vmem:[#allocation2 + $0x2c] sm:$0x1] %vm47, 0
  %59 = vst.msk [vmem:[#allocation2 + $0x30] sm:$0xf] %vm45, 0
  %60 = vst.msk [vmem:[#allocation2 + $0x34] sm:$0x1] %vm47, 0
  %61 = vst.msk [vmem:[#allocation2 + $0x38] sm:$0xf] %vm45, 0
  %62 = vst.msk [vmem:[#allocation2 + $0x3c] sm:$0x1] %vm47, 0
  %63 = vst.msk [vmem:[#allocation2 + $0x40] sm:$0xf] %vm45, 0
  %64 = vst.msk [vmem:[#allocation2 + $0x44] sm:$0x1] %vm47, 0
  %65 = vst.msk [vmem:[#allocation2 + $0x48] sm:$0xf] %vm45, 0
  %66 = vst.msk [vmem:[#allocation2 + $0x4c] sm:$0x1] %vm47, 0
  %v67 = vld [vmem:[%s0] sm:$0xf]
  %v68 = vld [vmem:[%s0 + $0x4] sm:$0xf]
  %v69 = vld [vmem:[%s0 + $0x8] sm:$0xf]
  %v70 = vld [vmem:[%s0 + $0xc] sm:$0xf]
  %v71 = vld [vmem:[%s0 + $0x10] sm:$0xf]
  %v72 = vld [vmem:[%s0 + $0x14] sm:$0xf]
  %v73 = vld [vmem:[%s0 + $0x18] sm:$0xf]
  %v74 = vld [vmem:[%s0 + $0x1c] sm:$0xf]
  %v76 = vshrl.u32 %v67, 16
  %v78 = vrot.slane %v76, 7
  %v79 = vshll.u32 %v67, 16
  %v81 = vor.u32 %v78, %v79
  %v82 = vrot.slane %v78, 4
  %v84 = vshrl.u32 %v68, 16
  %v86 = vrot.slane %v84, 7
  %v87 = vshll.u32 %v68, 16
  %v89 = vor.u32 %v86, %v87
  %v90 = vrot.slane %v86, 4
  %v92 = vshrl.u32 %v69, 16
  %v94 = vrot.slane %v92, 7
  %v95 = vshll.u32 %v69, 16
  %v97 = vor.u32 %v94, %v95
  %v98 = vrot.slane %v94, 4
  %v100 = vshrl.u32 %v70, 16
  %v102 = vrot.slane %v100, 7
  %v103 = vshll.u32 %v70, 16
  %v105 = vor.u32 %v102, %v103
  %v106 = vrot.slane %v102, 4
  %v108 = vshrl.u32 %v71, 16
  %v110 = vrot.slane %v108, 7
  %v111 = vshll.u32 %v71, 16
  %v113 = vor.u32 %v110, %v111
  %v114 = vrot.slane %v110, 4
  %v116 = vshrl.u32 %v72, 16
  %v118 = vrot.slane %v116, 7
  %v119 = vshll.u32 %v72, 16
  %v121 = vor.u32 %v118, %v119
  %v122 = vrot.slane %v118, 4
  %v124 = vshrl.u32 %v73, 16
  %v126 = vrot.slane %v124, 7
  %v127 = vshll.u32 %v73, 16
  %v129 = vor.u32 %v126, %v127
  %v130 = vrot.slane %v126, 4
  %v132 = vshrl.u32 %v74, 16
  %v134 = vrot.slane %v132, 7
  %v135 = vshll.u32 %v74, 16
  %v137 = vor.u32 %v134, %v135
  %v138 = vrot.slane %v134, 4
  %s155 = scalar_lea.vmem [#allocation2], 8
  %vm156 = vcmask 257024
  %vm157 = vsmask.f32 7938
  %vm158 = vmand %vm156, %vm157
  %v159 = vld [vmem:[%s155] sm:$0xf]
  %v160 = vsel %vm158, %v81, %v159
  %161 = vst [vmem:[%s155] sm:$0xf] %v160
  %vm162 = vcmask 253952
  %vm163 = vsmask.f32 256
  %vm164 = vmand %vm162, %vm163
  %v165 = vld [vmem:[%s155 + $0x4] sm:$0x1]
  %v166 = vsel %vm164, %v82, %v165
  %167 = vst [vmem:[%s155 + $0x4] sm:$0x1] %v166
  %v168 = vld [vmem:[%s155 + $0x8] sm:$0xf]
  %v169 = vsel %vm158, %v89, %v168
  %170 = vst [vmem:[%s155 + $0x8] sm:$0xf] %v169
  %v171 = vld [vmem:[%s155 + $0xc] sm:$0x1]
  %v172 = vsel %vm164, %v90, %v171
  %173 = vst [vmem:[%s155 + $0xc] sm:$0x1] %v172
  %v174 = vld [vmem:[%s155 + $0x10] sm:$0xf]
  %v175 = vsel %vm158, %v97, %v174
  %176 = vst [vmem:[%s155 + $0x10] sm:$0xf] %v175
  %v177 = vld [vmem:[%s155 + $0x14] sm:$0x1]
  %v178 = vsel %vm164, %v98, %v177
  %179 = vst [vmem:[%s155 + $0x14] sm:$0x1] %v178
  %v180 = vld [vmem:[%s155 + $0x18] sm:$0xf]
  %v181 = vsel %vm158, %v105, %v180
  %182 = vst [vmem:[%s155 + $0x18] sm:$0xf] %v181
  %v183 = vld [vmem:[%s155 + $0x1c] sm:$0x1]
  %v184 = vsel %vm164, %v106, %v183
  %185 = vst [vmem:[%s155 + $0x1c] sm:$0x1] %v184
  %v186 = vld [vmem:[%s155 + $0x20] sm:$0xf]
  %v187 = vsel %vm158, %v113, %v186
  %188 = vst [vmem:[%s155 + $0x20] sm:$0xf] %v187
  %v189 = vld [vmem:[%s155 + $0x24] sm:$0x1]
  %v190 = vsel %vm164, %v114, %v189
  %191 = vst [vmem:[%s155 + $0x24] sm:$0x1] %v190
  %v192 = vld [vmem:[%s155 + $0x28] sm:$0xf]
  %v193 = vsel %vm158, %v121, %v192
  %194 = vst [vmem:[%s155 + $0x28] sm:$0xf] %v193
  %v195 = vld [vmem:[%s155 + $0x2c] sm:$0x1]
  %v196 = vsel %vm164, %v122, %v195
  %197 = vst [vmem:[%s155 + $0x2c] sm:$0x1] %v196
  %v198 = vld [vmem:[%s155 + $0x30] sm:$0xf]
  %v199 = vsel %vm158, %v129, %v198
  %200 = vst [vmem:[%s155 + $0x30] sm:$0xf] %v199
  %v201 = vld [vmem:[%s155 + $0x34] sm:$0x1]
  %v202 = vsel %vm164, %v130, %v201
  %203 = vst [vmem:[%s155 + $0x34] sm:$0x1] %v202
  %v204 = vld [vmem:[%s155 + $0x38] sm:$0xf]
  %v205 = vsel %vm158, %v137, %v204
  %206 = vst [vmem:[%s155 + $0x38] sm:$0xf] %v205
  %v207 = vld [vmem:[%s155 + $0x3c] sm:$0x1]
  %v208 = vsel %vm164, %v138, %v207
  %209 = vst [vmem:[%s155 + $0x3c] sm:$0x1] %v208
  %v210 = vld [vmem:[#allocation2] sm:$0xf]
  %v211 = vld [vmem:[#allocation2 + $0x8] sm:$0xf]
  %v212 = vld [vmem:[#allocation2 + $0x10] sm:$0xf]
  %v213 = vld [vmem:[#allocation2 + $0x18] sm:$0xf]
  %v214 = vld [vmem:[#allocation2 + $0x20] sm:$0xf]
  %v215 = vld [vmem:[#allocation2 + $0x28] sm:$0xf]
  %v216 = vld [vmem:[#allocation2 + $0x30] sm:$0xf]
  %v217 = vld [vmem:[#allocation2 + $0x38] sm:$0xf]
  %v218 = vld [vmem:[%s2] sm:$0xf]
  %v219 = vld [vmem:[%s2 + $0x4] sm:$0xf]
  %v220 = vld [vmem:[%s2 + $0x8] sm:$0xf]
  %v221 = vld [vmem:[%s2 + $0xc] sm:$0xf]
  %v222 = vld [vmem:[#allocation2 + $0x4] sm:$0x1]
  %v223 = vld [vmem:[#allocation2 + $0xc] sm:$0x1]
  %v224 = vld [vmem:[#allocation2 + $0x14] sm:$0x1]
  %v225 = vld [vmem:[#allocation2 + $0x1c] sm:$0x1]
  %v226 = vld [vmem:[#allocation2 + $0x24] sm:$0x1]
  %v227 = vld [vmem:[#allocation2 + $0x2c] sm:$0x1]
  %v228 = vld [vmem:[#allocation2 + $0x34] sm:$0x1]
  %v229 = vld [vmem:[#allocation2 + $0x3c] sm:$0x1]
  %vm230 = vsmask.f32 3328
  %vm231 = vsmask.f32 7440
  %vm232 = vmor %vm230, %vm231
  %v234 = vshrl.u32 %v210, 16
  %v236 = vrot.slane %v234, 4
  %v237 = vshll.u32 %v210, 16
  %v239 = vrot.slane %v237, 5
  %v240 = vor.u32 %v236, %v239
  %v241 = vrot.slane %v240, 4
  %v243 = vshll.u32 %v222, 16
  %v245 = vrot.slane %v243, 5
  %v246 = vsel %vm232, %v241, %v245
  %v248 = vshrl.u32 %v211, 16
  %v250 = vrot.slane %v248, 4
  %v251 = vshll.u32 %v211, 16
  %v253 = vrot.slane %v251, 5
  %v254 = vor.u32 %v250, %v253
  %v255 = vrot.slane %v254, 4
  %v257 = vshll.u32 %v223, 16
  %v259 = vrot.slane %v257, 5
  %v260 = vsel %vm232, %v255, %v259
  %v262 = vshrl.u32 %v212, 16
  %v264 = vrot.slane %v262, 4
  %v265 = vshll.u32 %v212, 16
  %v267 = vrot.slane %v265, 5
  %v268 = vor.u32 %v264, %v267
  %v269 = vrot.slane %v268, 4
  %v271 = vshll.u32 %v224, 16
  %v273 = vrot.slane %v271, 5
  %v274 = vsel %vm232, %v269, %v273
  %v276 = vshrl.u32 %v213, 16
  %v278 = vrot.slane %v276, 4
  %v279 = vshll.u32 %v213, 16
  %v281 = vrot.slane %v279, 5
  %v282 = vor.u32 %v278, %v281
  %v283 = vrot.slane %v282, 4
  %v285 = vshll.u32 %v225, 16
  %v287 = vrot.slane %v285, 5
  %v288 = vsel %vm232, %v283, %v287
  %v290 = vshrl.u32 %v214, 16
  %v292 = vrot.slane %v290, 4
  %v293 = vshll.u32 %v214, 16
  %v295 = vrot.slane %v293, 5
  %v296 = vor.u32 %v292, %v295
  %v297 = vrot.slane %v296, 4
  %v299 = vshll.u32 %v226, 16
  %v301 = vrot.slane %v299, 5
  %v302 = vsel %vm232, %v297, %v301
  %v304 = vshrl.u32 %v215, 16
  %v306 = vrot.slane %v304, 4
  %v307 = vshll.u32 %v215, 16
  %v309 = vrot.slane %v307, 5
  %v310 = vor.u32 %v306, %v309
  %v311 = vrot.slane %v310, 4
  %v313 = vshll.u32 %v227, 16
  %v315 = vrot.slane %v313, 5
  %v316 = vsel %vm232, %v311, %v315
  %v318 = vshrl.u32 %v216, 16
  %v320 = vrot.slane %v318, 4
  %v321 = vshll.u32 %v216, 16
  %v323 = vrot.slane %v321, 5
  %v324 = vor.u32 %v320, %v323
  %v325 = vrot.slane %v324, 4
  %v327 = vshll.u32 %v228, 16
  %v329 = vrot.slane %v327, 5
  %v330 = vsel %vm232, %v325, %v329
  %v332 = vshrl.u32 %v217, 16
  %v334 = vrot.slane %v332, 4
  %v335 = vshll.u32 %v217, 16
  %v337 = vrot.slane %v335, 5
  %v338 = vor.u32 %v334, %v337
  %v339 = vrot.slane %v338, 4
  %v341 = vshll.u32 %v229, 16
  %v343 = vrot.slane %v341, 5
  %v344 = vsel %vm232, %v339, %v343
  %s345 = scalar_lea.vmem %s2, 16
  %v346 = vld [vmem:[%s345] sm:$0xf]
  %v347 = vld [vmem:[%s345 + $0x4] sm:$0xf]
  %v348 = vld [vmem:[%s345 + $0x8] sm:$0xf]
  %v349 = vld [vmem:[%s345 + $0xc] sm:$0xf]
  %v350 = vunpack.c.l.b16 %v246
  %v351 = vunpack.c.l.b16 %v260
  %v352 = vunpack.c.l.b16 %v274
  %v353 = vunpack.c.l.b16 %v288
  %v354 = vunpack.c.l.b16 %v302
  %v355 = vunpack.c.l.b16 %v316
  %v356 = vunpack.c.l.b16 %v330
  %v357 = vunpack.c.l.b16 %v344
  %v358 = vpack.c.b16 %v351, %v350
  %v359 = vpack.c.b16 %v353, %v352
  %v360 = vpack.c.b16 %v355, %v354
  %v361 = vpack.c.b16 %v357, %v356
  %v366 = vunpack.c.l.b16 %v346
  %v367 = vunpack.c.l.b16 %v347
  %v368 = vunpack.c.l.b16 %v348
  %v369 = vunpack.c.l.b16 %v349
  %v370 = vpack.c.b16 %v367, %v366
  %v371 = vpack.c.b16 %v369, %v368
  %vm374 = vcmask 261120
  %v376 = vsel %vm374, %v358, 0
  %v379 = vsel %vm374, %v359, 0
  %v382 = vsel %vm374, %v360, 0
  %v385 = vsel %vm374, %v361, 0
  %387 = vmatprep.subr.bf16.mxu0 0
  %388 = vmatpush1.bf16.msra.mxu0 %v370
  %389 = vmatprep.subr.bf16.mxu0 0
  %390 = vmatpush1.bf16.msra.mxu0 %v371
  %391 = vmatprep.subr.bf16.mxu0 0
  %392 = vmatpush1.bf16.msra.mxu0 0
  %393 = vmatprep.subr.bf16.mxu0 0
  %394 = vmatpush1.bf16.msra.mxu0 0
  %395 = vmatprep.subr.bf16.mxu0 0
  %396 = vmatpush1.bf16.msra.mxu0 0
  %397 = vmatprep.subr.bf16.mxu0 0
  %398 = vmatpush1.bf16.msra.mxu0 0
  %399 = vmatprep.subr.bf16.mxu0 0
  %400 = vmatpush1.bf16.msra.mxu0 0
  %401 = vmatprep.subr.bf16.mxu0 0
  %402 = vmatpush1.bf16.msra.mxu0 0
  %403 = vmatprep.subr.bf16.mxu0 0
  %404 = vmatpush1.bf16.msra.mxu0 0
  %405 = vmatprep.subr.bf16.mxu0 0
  %406 = vmatpush1.bf16.msra.mxu0 0
  %407 = vmatprep.subr.bf16.mxu0 0
  %408 = vmatpush1.bf16.msra.mxu0 0
  %409 = vmatprep.subr.bf16.mxu0 0
  %410 = vmatpush1.bf16.msra.mxu0 0
  %411 = vmatprep.subr.bf16.mxu0 0
  %412 = vmatpush1.bf16.msra.mxu0 0
  %413 = vmatprep.subr.bf16.mxu0 0
  %414 = vmatpush1.bf16.msra.mxu0 0
  %415 = vmatprep.subr.bf16.mxu0 0
  %416 = vmatpush1.bf16.msra.mxu0 0
  %417 = vmatprep.subr.bf16.mxu0 0
  %418 = vmatpush1.bf16.msra.mxu0 0
  %419 = vmatprep.mubr.bf16.mxu0 0
  %420 = vmatmul.mubr.bf16.gmra.mrb[0].mxu0 %v376
  %v421 = vpop.f32.mrb[0].mxu0
  %v422 = vadd.f32 0.0, %v421
  %v423 = vpop.f32.mrb[0].mxu0
  %v424 = vpop.f32.mrb[0].mxu0
  %v425 = vadd.f32 0.0, %v424
  %v426 = vpop.f32.mrb[0].mxu0
  %427 = vmatprep.mubr.bf16.mxu0 0
  %428 = vmatmul.mubr.bf16.gmra.mrb[0].mxu0 %v379
  %v429 = vpop.f32.mrb[0].mxu0
  %v430 = vadd.f32 0.0, %v429
  %v431 = vpop.f32.mrb[0].mxu0
  %v432 = vpop.f32.mrb[0].mxu0
  %v433 = vadd.f32 0.0, %v432
  %v434 = vpop.f32.mrb[0].mxu0
  %435 = vmatprep.mubr.bf16.mxu0 0
  %436 = vmatmul.mubr.bf16.gmra.mrb[0].mxu0 %v382
  %v437 = vpop.f32.mrb[0].mxu0
  %v438 = vadd.f32 0.0, %v437
  %v439 = vpop.f32.mrb[0].mxu0
  %v440 = vpop.f32.mrb[0].mxu0
  %v441 = vadd.f32 0.0, %v440
  %v442 = vpop.f32.mrb[0].mxu0
  %443 = vmatprep.mubr.bf16.mxu0 0
  %444 = vmatmul.mubr.bf16.gmra.mrb[0].mxu0 %v385
  %v445 = vpop.f32.mrb[0].mxu0
  %v446 = vadd.f32 0.0, %v445
  %v447 = vpop.f32.mrb[0].mxu0
  %v448 = vpop.f32.mrb[0].mxu0
  %v449 = vadd.f32 0.0, %v448
  %v450 = vpop.f32.mrb[0].mxu0
  %451 = vdwg.mxu0
  %v460 = vunpack.c.l.b16 %v210
  %v461 = vunpack.c.l.b16 %v211
  %v462 = vunpack.c.l.b16 %v212
  %v463 = vunpack.c.l.b16 %v213
  %v464 = vunpack.c.l.b16 %v214
  %v465 = vunpack.c.l.b16 %v215
  %v466 = vunpack.c.l.b16 %v216
  %v467 = vunpack.c.l.b16 %v217
  %v468 = vpack.c.b16 %v461, %v460
  %v469 = vpack.c.b16 %v463, %v462
  %v470 = vpack.c.b16 %v465, %v464
  %v471 = vpack.c.b16 %v467, %v466
  %v476 = vunpack.c.l.b16 %v218
  %v477 = vunpack.c.l.b16 %v219
  %v478 = vunpack.c.l.b16 %v220
  %v479 = vunpack.c.l.b16 %v221
  %v480 = vpack.c.b16 %v477, %v476
  %v481 = vpack.c.b16 %v479, %v478
  %v485 = vsel %vm374, %v468, 0
  %v488 = vsel %vm374, %v469, 0
  %v491 = vsel %vm374, %v470, 0
  %v494 = vsel %vm374, %v471, 0
  %496 = vmatprep.subr.bf16.mxu0 0
  %497 = vmatpush1.bf16.msra.mxu0 %v480
  %498 = vmatprep.subr.bf16.mxu0 0
  %499 = vmatpush1.bf16.msra.mxu0 %v481
  %500 = vmatprep.subr.bf16.mxu0 0
  %501 = vmatpush1.bf16.msra.mxu0 0
  %502 = vmatprep.subr.bf16.mxu0 0
  %503 = vmatpush1.bf16.msra.mxu0 0
  %504 = vmatprep.subr.bf16.mxu0 0
  %505 = vmatpush1.bf16.msra.mxu0 0
  %506 = vmatprep.subr.bf16.mxu0 0
  %507 = vmatpush1.bf16.msra.mxu0 0
  %508 = vmatprep.subr.bf16.mxu0 0
  %509 = vmatpush1.bf16.msra.mxu0 0
  %510 = vmatprep.subr.bf16.mxu0 0
  %511 = vmatpush1.bf16.msra.mxu0 0
  %512 = vmatprep.subr.bf16.mxu0 0
  %513 = vmatpush1.bf16.msra.mxu0 0
  %514 = vmatprep.subr.bf16.mxu0 0
  %515 = vmatpush1.bf16.msra.mxu0 0
  %516 = vmatprep.subr.bf16.mxu0 0
  %517 = vmatpush1.bf16.msra.mxu0 0
  %518 = vmatprep.subr.bf16.mxu0 0
  %519 = vmatpush1.bf16.msra.mxu0 0
  %520 = vmatprep.subr.bf16.mxu0 0
  %521 = vmatpush1.bf16.msra.mxu0 0
  %522 = vmatprep.subr.bf16.mxu0 0
  %523 = vmatpush1.bf16.msra.mxu0 0
  %524 = vmatprep.subr.bf16.mxu0 0
  %525 = vmatpush1.bf16.msra.mxu0 0
  %526 = vmatprep.subr.bf16.mxu0 0
  %527 = vmatpush1.bf16.msra.mxu0 0
  %528 = vmatprep.mubr.bf16.mxu0 0
  %529 = vmatmul.mubr.bf16.gmra.mrb[0].mxu0 %v485
  %v530 = vpop.f32.mrb[0].mxu0
  %v531 = vadd.f32 %v422, %v530
  %v532 = vpop.f32.mrb[0].mxu0
  %v533 = vpop.f32.mrb[0].mxu0
  %v534 = vadd.f32 %v425, %v533
  %v535 = vpop.f32.mrb[0].mxu0
  %536 = vmatprep.mubr.bf16.mxu0 0
  %537 = vmatmul.mubr.bf16.gmra.mrb[0].mxu0 %v488
  %v538 = vpop.f32.mrb[0].mxu0
  %v539 = vadd.f32 %v430, %v538
  %v540 = vpop.f32.mrb[0].mxu0
  %v541 = vpop.f32.mrb[0].mxu0
  %v542 = vadd.f32 %v433, %v541
  %v543 = vpop.f32.mrb[0].mxu0
  %544 = vmatprep.mubr.bf16.mxu0 0
  %545 = vmatmul.mubr.bf16.gmra.mrb[0].mxu0 %v491
  %v546 = vpop.f32.mrb[0].mxu0
  %v547 = vadd.f32 %v438, %v546
  %v548 = vpop.f32.mrb[0].mxu0
  %v549 = vpop.f32.mrb[0].mxu0
  %v550 = vadd.f32 %v441, %v549
  %v551 = vpop.f32.mrb[0].mxu0
  %552 = vmatprep.mubr.bf16.mxu0 0
  %553 = vmatmul.mubr.bf16.gmra.mrb[0].mxu0 %v494
  %v554 = vpop.f32.mrb[0].mxu0
  %v555 = vadd.f32 %v446, %v554
  %v556 = vpop.f32.mrb[0].mxu0
  %v557 = vpop.f32.mrb[0].mxu0
  %v558 = vadd.f32 %v449, %v557
  %v559 = vpop.f32.mrb[0].mxu0
  %560 = vdwg.mxu0
  %v561 = vld [vmem:[#allocation2] sm:$0xe]
  %v562 = vld [vmem:[#allocation2 + $0x8] sm:$0xe]
  %v563 = vld [vmem:[#allocation2 + $0x10] sm:$0xe]
  %v564 = vld [vmem:[#allocation2 + $0x18] sm:$0xe]
  %v565 = vld [vmem:[#allocation2 + $0x20] sm:$0xe]
  %v566 = vld [vmem:[#allocation2 + $0x28] sm:$0xe]
  %v567 = vld [vmem:[#allocation2 + $0x30] sm:$0xe]
  %v568 = vld [vmem:[#allocation2 + $0x38] sm:$0xe]
  %vm585 = vcmask 1042432
  %vm586 = vcmask 1046532
  %vm587 = vmor %vm585, %vm586
  %v588 = vrot.slane %v561, 5
  %v589 = vrot.slane %v588, 4
  %v590 = vrot.slane %v222, 5
  %v591 = vsel %vm587, %v589, %v590
  %v592 = vrot.slane %v562, 5
  %v593 = vrot.slane %v592, 4
  %v594 = vrot.slane %v223, 5
  %v595 = vsel %vm587, %v593, %v594
  %v596 = vrot.slane %v563, 5
  %v597 = vrot.slane %v596, 4
  %v598 = vrot.slane %v224, 5
  %v599 = vsel %vm587, %v597, %v598
  %v600 = vrot.slane %v564, 5
  %v601 = vrot.slane %v600, 4
  %v602 = vrot.slane %v225, 5
  %v603 = vsel %vm587, %v601, %v602
  %v604 = vrot.slane %v565, 5
  %v605 = vrot.slane %v604, 4
  %v606 = vrot.slane %v226, 5
  %v607 = vsel %vm587, %v605, %v606
  %v608 = vrot.slane %v566, 5
  %v609 = vrot.slane %v608, 4
  %v610 = vrot.slane %v227, 5
  %v611 = vsel %vm587, %v609, %v610
  %v612 = vrot.slane %v567, 5
  %v613 = vrot.slane %v612, 4
  %v614 = vrot.slane %v228, 5
  %v615 = vsel %vm587, %v613, %v614
  %v616 = vrot.slane %v568, 5
  %v617 = vrot.slane %v616, 4
  %v618 = vrot.slane %v229, 5
  %v619 = vsel %vm587, %v617, %v618
  %s620 = scalar_lea.vmem %s2, 32
  %v621 = vld [vmem:[%s620] sm:$0xf]
  %v622 = vld [vmem:[%s620 + $0x4] sm:$0xf]
  %v623 = vld [vmem:[%s620 + $0x8] sm:$0xf]
  %v624 = vld [vmem:[%s620 + $0xc] sm:$0xf]
  %v625 = vunpack.c.l.b16 %v591
  %v626 = vunpack.c.l.b16 %v595
  %v627 = vunpack.c.l.b16 %v599
  %v628 = vunpack.c.l.b16 %v603
  %v629 = vunpack.c.l.b16 %v607
  %v630 = vunpack.c.l.b16 %v611
  %v631 = vunpack.c.l.b16 %v615
  %v632 = vunpack.c.l.b16 %v619
  %v633 = vpack.c.b16 %v626, %v625
  %v634 = vpack.c.b16 %v628, %v627
  %v635 = vpack.c.b16 %v630, %v629
  %v636 = vpack.c.b16 %v632, %v631
  %v641 = vunpack.c.l.b16 %v621
  %v642 = vunpack.c.l.b16 %v622
  %v643 = vunpack.c.l.b16 %v623
  %v644 = vunpack.c.l.b16 %v624
  %v645 = vpack.c.b16 %v642, %v641
  %v646 = vpack.c.b16 %v644, %v643
  %v650 = vsel %vm374, %v633, 0
  %v653 = vsel %vm374, %v634, 0
  %v656 = vsel %vm374, %v635, 0
  %v659 = vsel %vm374, %v636, 0
  %661 = vmatprep.subr.bf16.mxu0 0
  %662 = vmatpush1.bf16.msra.mxu0 %v645
  %663 = vmatprep.subr.bf16.mxu0 0
  %664 = vmatpush1.bf16.msra.mxu0 %v646
  %665 = vmatprep.subr.bf16.mxu0 0
  %666 = vmatpush1.bf16.msra.mxu0 0
  %667 = vmatprep.subr.bf16.mxu0 0
  %668 = vmatpush1.bf16.msra.mxu0 0
  %669 = vmatprep.subr.bf16.mxu0 0
  %670 = vmatpush1.bf16.msra.mxu0 0
  %671 = vmatprep.subr.bf16.mxu0 0
  %672 = vmatpush1.bf16.msra.mxu0 0
  %673 = vmatprep.subr.bf16.mxu0 0
  %674 = vmatpush1.bf16.msra.mxu0 0
  %675 = vmatprep.subr.bf16.mxu0 0
  %676 = vmatpush1.bf16.msra.mxu0 0
  %677 = vmatprep.subr.bf16.mxu0 0
  %678 = vmatpush1.bf16.msra.mxu0 0
  %679 = vmatprep.subr.bf16.mxu0 0
  %680 = vmatpush1.bf16.msra.mxu0 0
  %681 = vmatprep.subr.bf16.mxu0 0
  %682 = vmatpush1.bf16.msra.mxu0 0
  %683 = vmatprep.subr.bf16.mxu0 0
  %684 = vmatpush1.bf16.msra.mxu0 0
  %685 = vmatprep.subr.bf16.mxu0 0
  %686 = vmatpush1.bf16.msra.mxu0 0
  %687 = vmatprep.subr.bf16.mxu0 0
  %688 = vmatpush1.bf16.msra.mxu0 0
  %689 = vmatprep.subr.bf16.mxu0 0
  %690 = vmatpush1.bf16.msra.mxu0 0
  %691 = vmatprep.subr.bf16.mxu0 0
  %692 = vmatpush1.bf16.msra.mxu0 0
  %693 = vmatprep.mubr.bf16.mxu0 0
  %694 = vmatmul.mubr.bf16.gmra.mrb[0].mxu0 %v650
  %v695 = vpop.f32.mrb[0].mxu0
  %v696 = vadd.f32 0.0, %v695
  %v697 = vpop.f32.mrb[0].mxu0
  %v698 = vpop.f32.mrb[0].mxu0
  %v699 = vadd.f32 0.0, %v698
  %v700 = vpop.f32.mrb[0].mxu0
  %701 = vmatprep.mubr.bf16.mxu0 0
  %702 = vmatmul.mubr.bf16.gmra.mrb[0].mxu0 %v653
  %v703 = vpop.f32.mrb[0].mxu0
  %v704 = vadd.f32 0.0, %v703
  %v705 = vpop.f32.mrb[0].mxu0
  %v706 = vpop.f32.mrb[0].mxu0
  %v707 = vadd.f32 0.0, %v706
  %v708 = vpop.f32.mrb[0].mxu0
  %709 = vmatprep.mubr.bf16.mxu0 0
  %710 = vmatmul.mubr.bf16.gmra.mrb[0].mxu0 %v656
  %v711 = vpop.f32.mrb[0].mxu0
  %v712 = vadd.f32 0.0, %v711
  %v713 = vpop.f32.mrb[0].mxu0
  %v714 = vpop.f32.mrb[0].mxu0
  %v715 = vadd.f32 0.0, %v714
  %v716 = vpop.f32.mrb[0].mxu0
  %717 = vmatprep.mubr.bf16.mxu0 0
  %718 = vmatmul.mubr.bf16.gmra.mrb[0].mxu0 %v659
  %v719 = vpop.f32.mrb[0].mxu0
  %v720 = vadd.f32 0.0, %v719
  %v721 = vpop.f32.mrb[0].mxu0
  %v722 = vpop.f32.mrb[0].mxu0
  %v723 = vadd.f32 0.0, %v722
  %v724 = vpop.f32.mrb[0].mxu0
  %725 = vdwg.mxu0
  %v726 = vadd.f32 %v531, %v696
  %v727 = vadd.f32 %v534, %v699
  %v728 = vadd.f32 %v539, %v704
  %v729 = vadd.f32 %v542, %v707
  %v730 = vadd.f32 %v547, %v712
  %v731 = vadd.f32 %v550, %v715
  %v732 = vadd.f32 %v555, %v720
  %v733 = vadd.f32 %v558, %v723
  %v734 = vld [vmem:[%s155] sm:$0xf]
  %v735 = vld [vmem:[%s155 + $0x8] sm:$0xf]
  %v736 = vld [vmem:[%s155 + $0x10] sm:$0xf]
  %v737 = vld [vmem:[%s155 + $0x18] sm:$0xf]
  %v738 = vld [vmem:[%s155 + $0x20] sm:$0xf]
  %v739 = vld [vmem:[%s155 + $0x28] sm:$0xf]
  %v740 = vld [vmem:[%s155 + $0x30] sm:$0xf]
  %v741 = vld [vmem:[%s155 + $0x38] sm:$0xf]
  %s742 = scalar_lea.vmem %s2, 48
  %v743 = vld [vmem:[%s742] sm:$0xf]
  %v744 = vld [vmem:[%s742 + $0x4] sm:$0xf]
  %v745 = vld [vmem:[%s742 + $0x8] sm:$0xf]
  %v746 = vld [vmem:[%s742 + $0xc] sm:$0xf]
  %v755 = vunpack.c.l.b16 %v734
  %v756 = vunpack.c.l.b16 %v735
  %v757 = vunpack.c.l.b16 %v736
  %v758 = vunpack.c.l.b16 %v737
  %v759 = vunpack.c.l.b16 %v738
  %v760 = vunpack.c.l.b16 %v739
  %v761 = vunpack.c.l.b16 %v740
  %v762 = vunpack.c.l.b16 %v741
  %v763 = vpack.c.b16 %v756, %v755
  %v764 = vpack.c.b16 %v758, %v757
  %v765 = vpack.c.b16 %v760, %v759
  %v766 = vpack.c.b16 %v762, %v761
  %v771 = vunpack.c.l.b16 %v743
  %v772 = vunpack.c.l.b16 %v744
  %v773 = vunpack.c.l.b16 %v745
  %v774 = vunpack.c.l.b16 %v746
  %v775 = vpack.c.b16 %v772, %v771
  %v776 = vpack.c.b16 %v774, %v773
  %v780 = vsel %vm374, %v763, 0
  %v783 = vsel %vm374, %v764, 0
  %v786 = vsel %vm374, %v765, 0
  %v789 = vsel %vm374, %v766, 0
  %791 = vmatprep.subr.bf16.mxu0 0
  %792 = vmatpush1.bf16.msra.mxu0 %v775
  %793 = vmatprep.subr.bf16.mxu0 0
  %794 = vmatpush1.bf16.msra.mxu0 %v776
  %795 = vmatprep.subr.bf16.mxu0 0
  %796 = vmatpush1.bf16.msra.mxu0 0
  %797 = vmatprep.subr.bf16.mxu0 0
  %798 = vmatpush1.bf16.msra.mxu0 0
  %799 = vmatprep.subr.bf16.mxu0 0
  %800 = vmatpush1.bf16.msra.mxu0 0
  %801 = vmatprep.subr.bf16.mxu0 0
  %802 = vmatpush1.bf16.msra.mxu0 0
  %803 = vmatprep.subr.bf16.mxu0 0
  %804 = vmatpush1.bf16.msra.mxu0 0
  %805 = vmatprep.subr.bf16.mxu0 0
  %806 = vmatpush1.bf16.msra.mxu0 0
  %807 = vmatprep.subr.bf16.mxu0 0
  %808 = vmatpush1.bf16.msra.mxu0 0
  %809 = vmatprep.subr.bf16.mxu0 0
  %810 = vmatpush1.bf16.msra.mxu0 0
  %811 = vmatprep.subr.bf16.mxu0 0
  %812 = vmatpush1.bf16.msra.mxu0 0
  %813 = vmatprep.subr.bf16.mxu0 0
  %814 = vmatpush1.bf16.msra.mxu0 0
  %815 = vmatprep.subr.bf16.mxu0 0
  %816 = vmatpush1.bf16.msra.mxu0 0
  %817 = vmatprep.subr.bf16.mxu0 0
  %818 = vmatpush1.bf16.msra.mxu0 0
  %819 = vmatprep.subr.bf16.mxu0 0
  %820 = vmatpush1.bf16.msra.mxu0 0
  %821 = vmatprep.subr.bf16.mxu0 0
  %822 = vmatpush1.bf16.msra.mxu0 0
  %823 = vmatprep.mubr.bf16.mxu0 0
  %824 = vmatmul.mubr.bf16.gmra.mrb[0].mxu0 %v780
  %v825 = vpop.f32.mrb[0].mxu0
  %v826 = vadd.f32 0.0, %v825
  %v827 = vpop.f32.mrb[0].mxu0
  %v828 = vpop.f32.mrb[0].mxu0
  %v829 = vadd.f32 0.0, %v828
  %v830 = vpop.f32.mrb[0].mxu0
  %831 = vmatprep.mubr.bf16.mxu0 0
  %832 = vmatmul.mubr.bf16.gmra.mrb[0].mxu0 %v783
  %v833 = vpop.f32.mrb[0].mxu0
  %v834 = vadd.f32 0.0, %v833
  %v835 = vpop.f32.mrb[0].mxu0
  %v836 = vpop.f32.mrb[0].mxu0
  %v837 = vadd.f32 0.0, %v836
  %v838 = vpop.f32.mrb[0].mxu0
  %839 = vmatprep.mubr.bf16.mxu0 0
  %840 = vmatmul.mubr.bf16.gmra.mrb[0].mxu0 %v786
  %v841 = vpop.f32.mrb[0].mxu0
  %v842 = vadd.f32 0.0, %v841
  %v843 = vpop.f32.mrb[0].mxu0
  %v844 = vpop.f32.mrb[0].mxu0
  %v845 = vadd.f32 0.0, %v844
  %v846 = vpop.f32.mrb[0].mxu0
  %847 = vmatprep.mubr.bf16.mxu0 0
  %848 = vmatmul.mubr.bf16.gmra.mrb[0].mxu0 %v789
  %v849 = vpop.f32.mrb[0].mxu0
  %v850 = vadd.f32 0.0, %v849
  %v851 = vpop.f32.mrb[0].mxu0
  %v852 = vpop.f32.mrb[0].mxu0
  %v853 = vadd.f32 0.0, %v852
  %v854 = vpop.f32.mrb[0].mxu0
  %855 = vdwg.mxu0
  %v856 = vadd.f32 %v726, %v826
  %v857 = vadd.f32 %v727, %v829
  %v858 = vadd.f32 %v728, %v834
  %v859 = vadd.f32 %v729, %v837
  %v860 = vadd.f32 %v730, %v842
  %v861 = vadd.f32 %v731, %v845
  %v862 = vadd.f32 %v732, %v850
  %v863 = vadd.f32 %v733, %v853
  %v864 = vld [vmem:[%s155] sm:$0xf]
  %v865 = vld [vmem:[%s155 + $0x4] sm:$0x1]
  %v866 = vld [vmem:[%s155 + $0x8] sm:$0xf]
  %v867 = vld [vmem:[%s155 + $0xc] sm:$0x1]
  %v868 = vld [vmem:[%s155 + $0x10] sm:$0xf]
  %v869 = vld [vmem:[%s155 + $0x14] sm:$0x1]
  %v870 = vld [vmem:[%s155 + $0x18] sm:$0xf]
  %v871 = vld [vmem:[%s155 + $0x1c] sm:$0x1]
  %v872 = vld [vmem:[%s155 + $0x20] sm:$0xf]
  %v873 = vld [vmem:[%s155 + $0x24] sm:$0x1]
  %v874 = vld [vmem:[%s155 + $0x28] sm:$0xf]
  %v875 = vld [vmem:[%s155 + $0x2c] sm:$0x1]
  %v876 = vld [vmem:[%s155 + $0x30] sm:$0xf]
  %v877 = vld [vmem:[%s155 + $0x34] sm:$0x1]
  %v878 = vld [vmem:[%s155 + $0x38] sm:$0xf]
  %v879 = vld [vmem:[%s155 + $0x3c] sm:$0x1]
  %v881 = vshrl.u32 %v864, 16
  %v883 = vrot.slane %v881, 4
  %v884 = vshll.u32 %v864, 16
  %v886 = vrot.slane %v884, 5
  %v887 = vor.u32 %v883, %v886
  %v888 = vrot.slane %v887, 4
  %v890 = vshll.u32 %v865, 16
  %v892 = vrot.slane %v890, 5
  %v893 = vsel %vm232, %v888, %v892
  %v895 = vshrl.u32 %v866, 16
  %v897 = vrot.slane %v895, 4
  %v898 = vshll.u32 %v866, 16
  %v900 = vrot.slane %v898, 5
  %v901 = vor.u32 %v897, %v900
  %v902 = vrot.slane %v901, 4
  %v904 = vshll.u32 %v867, 16
  %v906 = vrot.slane %v904, 5
  %v907 = vsel %vm232, %v902, %v906
  %v909 = vshrl.u32 %v868, 16
  %v911 = vrot.slane %v909, 4
  %v912 = vshll.u32 %v868, 16
  %v914 = vrot.slane %v912, 5
  %v915 = vor.u32 %v911, %v914
  %v916 = vrot.slane %v915, 4
  %v918 = vshll.u32 %v869, 16
  %v920 = vrot.slane %v918, 5
  %v921 = vsel %vm232, %v916, %v920
  %v923 = vshrl.u32 %v870, 16
  %v925 = vrot.slane %v923, 4
  %v926 = vshll.u32 %v870, 16
  %v928 = vrot.slane %v926, 5
  %v929 = vor.u32 %v925, %v928
  %v930 = vrot.slane %v929, 4
  %v932 = vshll.u32 %v871, 16
  %v934 = vrot.slane %v932, 5
  %v935 = vsel %vm232, %v930, %v934
  %v937 = vshrl.u32 %v872, 16
  %v939 = vrot.slane %v937, 4
  %v940 = vshll.u32 %v872, 16
  %v942 = vrot.slane %v940, 5
  %v943 = vor.u32 %v939, %v942
  %v944 = vrot.slane %v943, 4
  %v946 = vshll.u32 %v873, 16
  %v948 = vrot.slane %v946, 5
  %v949 = vsel %vm232, %v944, %v948
  %v951 = vshrl.u32 %v874, 16
  %v953 = vrot.slane %v951, 4
  %v954 = vshll.u32 %v874, 16
  %v956 = vrot.slane %v954, 5
  %v957 = vor.u32 %v953, %v956
  %v958 = vrot.slane %v957, 4
  %v960 = vshll.u32 %v875, 16
  %v962 = vrot.slane %v960, 5
  %v963 = vsel %vm232, %v958, %v962
  %v965 = vshrl.u32 %v876, 16
  %v967 = vrot.slane %v965, 4
  %v968 = vshll.u32 %v876, 16
  %v970 = vrot.slane %v968, 5
  %v971 = vor.u32 %v967, %v970
  %v972 = vrot.slane %v971, 4
  %v974 = vshll.u32 %v877, 16
  %v976 = vrot.slane %v974, 5
  %v977 = vsel %vm232, %v972, %v976
  %v979 = vshrl.u32 %v878, 16
  %v981 = vrot.slane %v979, 4
  %v982 = vshll.u32 %v878, 16
  %v984 = vrot.slane %v982, 5
  %v985 = vor.u32 %v981, %v984
  %v986 = vrot.slane %v985, 4
  %v988 = vshll.u32 %v879, 16
  %v990 = vrot.slane %v988, 5
  %v991 = vsel %vm232, %v986, %v990
  %s992 = scalar_lea.vmem %s2, 64
  %v993 = vld [vmem:[%s992] sm:$0xf]
  %v994 = vld [vmem:[%s992 + $0x4] sm:$0xf]
  %v995 = vld [vmem:[%s992 + $0x8] sm:$0xf]
  %v996 = vld [vmem:[%s992 + $0xc] sm:$0xf]
  %v997 = vunpack.c.l.b16 %v893
  %v998 = vunpack.c.l.b16 %v907
  %v999 = vunpack.c.l.b16 %v921
  %v1000 = vunpack.c.l.b16 %v935
  %v1001 = vunpack.c.l.b16 %v949
  %v1002 = vunpack.c.l.b16 %v963
  %v1003 = vunpack.c.l.b16 %v977
  %v1004 = vunpack.c.l.b16 %v991
  %v1005 = vpack.c.b16 %v998, %v997
  %v1006 = vpack.c.b16 %v1000, %v999
  %v1007 = vpack.c.b16 %v1002, %v1001
  %v1008 = vpack.c.b16 %v1004, %v1003
  %v1013 = vunpack.c.l.b16 %v993
  %v1014 = vunpack.c.l.b16 %v994
  %v1015 = vunpack.c.l.b16 %v995
  %v1016 = vunpack.c.l.b16 %v996
  %v1017 = vpack.c.b16 %v1014, %v1013
  %v1018 = vpack.c.b16 %v1016, %v1015
  %v1022 = vsel %vm374, %v1005, 0
  %v1025 = vsel %vm374, %v1006, 0
  %v1028 = vsel %vm374, %v1007, 0
  %v1031 = vsel %vm374, %v1008, 0
  %1033 = vmatprep.subr.bf16.mxu0 0
  %1034 = vmatpush1.bf16.msra.mxu0 %v1017
  %1035 = vmatprep.subr.bf16.mxu0 0
  %1036 = vmatpush1.bf16.msra.mxu0 %v1018
  %1037 = vmatprep.subr.bf16.mxu0 0
  %1038 = vmatpush1.bf16.msra.mxu0 0
  %1039 = vmatprep.subr.bf16.mxu0 0
  %1040 = vmatpush1.bf16.msra.mxu0 0
  %1041 = vmatprep.subr.bf16.mxu0 0
  %1042 = vmatpush1.bf16.msra.mxu0 0
  %1043 = vmatprep.subr.bf16.mxu0 0
  %1044 = vmatpush1.bf16.msra.mxu0 0
  %1045 = vmatprep.subr.bf16.mxu0 0
  %1046 = vmatpush1.bf16.msra.mxu0 0
  %1047 = vmatprep.subr.bf16.mxu0 0
  %1048 = vmatpush1.bf16.msra.mxu0 0
  %1049 = vmatprep.subr.bf16.mxu0 0
  %1050 = vmatpush1.bf16.msra.mxu0 0
  %1051 = vmatprep.subr.bf16.mxu0 0
  %1052 = vmatpush1.bf16.msra.mxu0 0
  %1053 = vmatprep.subr.bf16.mxu0 0
  %1054 = vmatpush1.bf16.msra.mxu0 0
  %1055 = vmatprep.subr.bf16.mxu0 0
  %1056 = vmatpush1.bf16.msra.mxu0 0
  %1057 = vmatprep.subr.bf16.mxu0 0
  %1058 = vmatpush1.bf16.msra.mxu0 0
  %1059 = vmatprep.subr.bf16.mxu0 0
  %1060 = vmatpush1.bf16.msra.mxu0 0
  %1061 = vmatprep.subr.bf16.mxu0 0
  %1062 = vmatpush1.bf16.msra.mxu0 0
  %1063 = vmatprep.subr.bf16.mxu0 0
  %1064 = vmatpush1.bf16.msra.mxu0 0
  %1065 = vmatprep.mubr.bf16.mxu0 0
  %1066 = vmatmul.mubr.bf16.gmra.mrb[0].mxu0 %v1022
  %v1067 = vpop.f32.mrb[0].mxu0
  %v1068 = vadd.f32 0.0, %v1067
  %v1069 = vpop.f32.mrb[0].mxu0
  %v1070 = vpop.f32.mrb[0].mxu0
  %v1071 = vadd.f32 0.0, %v1070
  %v1072 = vpop.f32.mrb[0].mxu0
  %1073 = vmatprep.mubr.bf16.mxu0 0
  %1074 = vmatmul.mubr.bf16.gmra.mrb[0].mxu0 %v1025
  %v1075 = vpop.f32.mrb[0].mxu0
  %v1076 = vadd.f32 0.0, %v1075
  %v1077 = vpop.f32.mrb[0].mxu0
  %v1078 = vpop.f32.mrb[0].mxu0
  %v1079 = vadd.f32 0.0, %v1078
  %v1080 = vpop.f32.mrb[0].mxu0
  %1081 = vmatprep.mubr.bf16.mxu0 0
  %1082 = vmatmul.mubr.bf16.gmra.mrb[0].mxu0 %v1028
  %v1083 = vpop.f32.mrb[0].mxu0
  %v1084 = vadd.f32 0.0, %v1083
  %v1085 = vpop.f32.mrb[0].mxu0
  %v1086 = vpop.f32.mrb[0].mxu0
  %v1087 = vadd.f32 0.0, %v1086
  %v1088 = vpop.f32.mrb[0].mxu0
  %1089 = vmatprep.mubr.bf16.mxu0 0
  %1090 = vmatmul.mubr.bf16.gmra.mrb[0].mxu0 %v1031
  %v1091 = vpop.f32.mrb[0].mxu0
  %v1092 = vadd.f32 0.0, %v1091
  %v1093 = vpop.f32.mrb[0].mxu0
  %v1094 = vpop.f32.mrb[0].mxu0
  %v1095 = vadd.f32 0.0, %v1094
  %v1096 = vpop.f32.mrb[0].mxu0
  %1097 = vdwg.mxu0
  %v1098 = vadd.f32 %v856, %v1068
  %v1099 = vadd.f32 %v857, %v1071
  %v1100 = vadd.f32 %v858, %v1076
  %v1101 = vadd.f32 %v859, %v1079
  %v1102 = vadd.f32 %v860, %v1084
  %v1103 = vadd.f32 %v861, %v1087
  %v1104 = vadd.f32 %v862, %v1092
  %v1105 = vadd.f32 %v863, %v1095
  %v1106 = vld [vmem:[%s155] sm:$0xe]
  %v1107 = vld [vmem:[%s155 + $0x8] sm:$0xe]
  %v1108 = vld [vmem:[%s155 + $0x10] sm:$0xe]
  %v1109 = vld [vmem:[%s155 + $0x18] sm:$0xe]
  %v1110 = vld [vmem:[%s155 + $0x20] sm:$0xe]
  %v1111 = vld [vmem:[%s155 + $0x28] sm:$0xe]
  %v1112 = vld [vmem:[%s155 + $0x30] sm:$0xe]
  %v1113 = vld [vmem:[%s155 + $0x38] sm:$0xe]
  %v1130 = vrot.slane %v1106, 5
  %v1131 = vrot.slane %v1130, 4
  %v1132 = vrot.slane %v865, 5
  %v1133 = vsel %vm587, %v1131, %v1132
  %v1134 = vrot.slane %v1107, 5
  %v1135 = vrot.slane %v1134, 4
  %v1136 = vrot.slane %v867, 5
  %v1137 = vsel %vm587, %v1135, %v1136
  %v1138 = vrot.slane %v1108, 5
  %v1139 = vrot.slane %v1138, 4
  %v1140 = vrot.slane %v869, 5
  %v1141 = vsel %vm587, %v1139, %v1140
  %v1142 = vrot.slane %v1109, 5
  %v1143 = vrot.slane %v1142, 4
  %v1144 = vrot.slane %v871, 5
  %v1145 = vsel %vm587, %v1143, %v1144
  %v1146 = vrot.slane %v1110, 5
  %v1147 = vrot.slane %v1146, 4
  %v1148 = vrot.slane %v873, 5
  %v1149 = vsel %vm587, %v1147, %v1148
  %v1150 = vrot.slane %v1111, 5
  %v1151 = vrot.slane %v1150, 4
  %v1152 = vrot.slane %v875, 5
  %v1153 = vsel %vm587, %v1151, %v1152
  %v1154 = vrot.slane %v1112, 5
  %v1155 = vrot.slane %v1154, 4
  %v1156 = vrot.slane %v877, 5
  %v1157 = vsel %vm587, %v1155, %v1156
  %v1158 = vrot.slane %v1113, 5
  %v1159 = vrot.slane %v1158, 4
  %v1160 = vrot.slane %v879, 5
  %v1161 = vsel %vm587, %v1159, %v1160
  %s1162 = scalar_lea.vmem %s2, 80
  %v1163 = vld [vmem:[%s1162] sm:$0xf]
  %v1164 = vld [vmem:[%s1162 + $0x4] sm:$0xf]
  %v1165 = vld [vmem:[%s1162 + $0x8] sm:$0xf]
  %v1166 = vld [vmem:[%s1162 + $0xc] sm:$0xf]
  %v1167 = vunpack.c.l.b16 %v1133
  %v1168 = vunpack.c.l.b16 %v1137
  %v1169 = vunpack.c.l.b16 %v1141
  %v1170 = vunpack.c.l.b16 %v1145
  %v1171 = vunpack.c.l.b16 %v1149
  %v1172 = vunpack.c.l.b16 %v1153
  %v1173 = vunpack.c.l.b16 %v1157
  %v1174 = vunpack.c.l.b16 %v1161
  %v1175 = vpack.c.b16 %v1168, %v1167
  %v1176 = vpack.c.b16 %v1170, %v1169
  %v1177 = vpack.c.b16 %v1172, %v1171
  %v1178 = vpack.c.b16 %v1174, %v1173
  %v1183 = vunpack.c.l.b16 %v1163
  %v1184 = vunpack.c.l.b16 %v1164
  %v1185 = vunpack.c.l.b16 %v1165
  %v1186 = vunpack.c.l.b16 %v1166
  %v1187 = vpack.c.b16 %v1184, %v1183
  %v1188 = vpack.c.b16 %v1186, %v1185
  %v1192 = vsel %vm374, %v1175, 0
  %v1195 = vsel %vm374, %v1176, 0
  %v1198 = vsel %vm374, %v1177, 0
  %v1201 = vsel %vm374, %v1178, 0
  %1203 = vmatprep.subr.bf16.mxu0 0
  %1204 = vmatpush1.bf16.msra.mxu0 %v1187
  %1205 = vmatprep.subr.bf16.mxu0 0
  %1206 = vmatpush1.bf16.msra.mxu0 %v1188
  %1207 = vmatprep.subr.bf16.mxu0 0
  %1208 = vmatpush1.bf16.msra.mxu0 0
  %1209 = vmatprep.subr.bf16.mxu0 0
  %1210 = vmatpush1.bf16.msra.mxu0 0
  %1211 = vmatprep.subr.bf16.mxu0 0
  %1212 = vmatpush1.bf16.msra.mxu0 0
  %1213 = vmatprep.subr.bf16.mxu0 0
  %1214 = vmatpush1.bf16.msra.mxu0 0
  %1215 = vmatprep.subr.bf16.mxu0 0
  %1216 = vmatpush1.bf16.msra.mxu0 0
  %1217 = vmatprep.subr.bf16.mxu0 0
  %1218 = vmatpush1.bf16.msra.mxu0 0
  %1219 = vmatprep.subr.bf16.mxu0 0
  %1220 = vmatpush1.bf16.msra.mxu0 0
  %1221 = vmatprep.subr.bf16.mxu0 0
  %1222 = vmatpush1.bf16.msra.mxu0 0
  %1223 = vmatprep.subr.bf16.mxu0 0
  %1224 = vmatpush1.bf16.msra.mxu0 0
  %1225 = vmatprep.subr.bf16.mxu0 0
  %1226 = vmatpush1.bf16.msra.mxu0 0
  %1227 = vmatprep.subr.bf16.mxu0 0
  %1228 = vmatpush1.bf16.msra.mxu0 0
  %1229 = vmatprep.subr.bf16.mxu0 0
  %1230 = vmatpush1.bf16.msra.mxu0 0
  %1231 = vmatprep.subr.bf16.mxu0 0
  %1232 = vmatpush1.bf16.msra.mxu0 0
  %1233 = vmatprep.subr.bf16.mxu0 0
  %1234 = vmatpush1.bf16.msra.mxu0 0
  %1235 = vmatprep.mubr.bf16.mxu0 0
  %1236 = vmatmul.mubr.bf16.gmra.mrb[0].mxu0 %v1192
  %v1237 = vpop.f32.mrb[0].mxu0
  %v1238 = vadd.f32 0.0, %v1237
  %v1239 = vpop.f32.mrb[0].mxu0
  %v1240 = vpop.f32.mrb[0].mxu0
  %v1241 = vadd.f32 0.0, %v1240
  %v1242 = vpop.f32.mrb[0].mxu0
  %1243 = vmatprep.mubr.bf16.mxu0 0
  %1244 = vmatmul.mubr.bf16.gmra.mrb[0].mxu0 %v1195
  %v1245 = vpop.f32.mrb[0].mxu0
  %v1246 = vadd.f32 0.0, %v1245
  %v1247 = vpop.f32.mrb[0].mxu0
  %v1248 = vpop.f32.mrb[0].mxu0
  %v1249 = vadd.f32 0.0, %v1248
  %v1250 = vpop.f32.mrb[0].mxu0
  %1251 = vmatprep.mubr.bf16.mxu0 0
  %1252 = vmatmul.mubr.bf16.gmra.mrb[0].mxu0 %v1198
  %v1253 = vpop.f32.mrb[0].mxu0
  %v1254 = vadd.f32 0.0, %v1253
  %v1255 = vpop.f32.mrb[0].mxu0
  %v1256 = vpop.f32.mrb[0].mxu0
  %v1257 = vadd.f32 0.0, %v1256
  %v1258 = vpop.f32.mrb[0].mxu0
  %1259 = vmatprep.mubr.bf16.mxu0 0
  %1260 = vmatmul.mubr.bf16.gmra.mrb[0].mxu0 %v1201
  %v1261 = vpop.f32.mrb[0].mxu0
  %v1262 = vadd.f32 0.0, %v1261
  %v1263 = vpop.f32.mrb[0].mxu0
  %v1264 = vpop.f32.mrb[0].mxu0
  %v1265 = vadd.f32 0.0, %v1264
  %v1266 = vpop.f32.mrb[0].mxu0
  %1267 = vdwg.mxu0
  %v1268 = vadd.f32 %v1098, %v1238
  %v1269 = vadd.f32 %v1099, %v1241
  %v1270 = vadd.f32 %v1100, %v1246
  %v1271 = vadd.f32 %v1101, %v1249
  %v1272 = vadd.f32 %v1102, %v1254
  %v1273 = vadd.f32 %v1103, %v1257
  %v1274 = vadd.f32 %v1104, %v1262
  %v1275 = vadd.f32 %v1105, %v1265
  %s1276 = scalar_lea.vmem [#allocation2], 16
  %v1277 = vld [vmem:[%s1276] sm:$0xf]
  %v1278 = vld [vmem:[%s1276 + $0x8] sm:$0xf]
  %v1279 = vld [vmem:[%s1276 + $0x10] sm:$0xf]
  %v1280 = vld [vmem:[%s1276 + $0x18] sm:$0xf]
  %v1281 = vld [vmem:[%s1276 + $0x20] sm:$0xf]
  %v1282 = vld [vmem:[%s1276 + $0x28] sm:$0xf]
  %v1283 = vld [vmem:[%s1276 + $0x30] sm:$0xf]
  %v1284 = vld [vmem:[%s1276 + $0x38] sm:$0xf]
  %s1285 = scalar_lea.vmem %s2, 96
  %v1286 = vld [vmem:[%s1285] sm:$0xf]
  %v1287 = vld [vmem:[%s1285 + $0x4] sm:$0xf]
  %v1288 = vld [vmem:[%s1285 + $0x8] sm:$0xf]
  %v1289 = vld [vmem:[%s1285 + $0xc] sm:$0xf]
  %v1298 = vunpack.c.l.b16 %v1277
  %v1299 = vunpack.c.l.b16 %v1278
  %v1300 = vunpack.c.l.b16 %v1279
  %v1301 = vunpack.c.l.b16 %v1280
  %v1302 = vunpack.c.l.b16 %v1281
  %v1303 = vunpack.c.l.b16 %v1282
  %v1304 = vunpack.c.l.b16 %v1283
  %v1305 = vunpack.c.l.b16 %v1284
  %v1306 = vpack.c.b16 %v1299, %v1298
  %v1307 = vpack.c.b16 %v1301, %v1300
  %v1308 = vpack.c.b16 %v1303, %v1302
  %v1309 = vpack.c.b16 %v1305, %v1304
  %v1314 = vunpack.c.l.b16 %v1286
  %v1315 = vunpack.c.l.b16 %v1287
  %v1316 = vunpack.c.l.b16 %v1288
  %v1317 = vunpack.c.l.b16 %v1289
  %v1318 = vpack.c.b16 %v1315, %v1314
  %v1319 = vpack.c.b16 %v1317, %v1316
  %v1323 = vsel %vm374, %v1306, 0
  %v1326 = vsel %vm374, %v1307, 0
  %v1329 = vsel %vm374, %v1308, 0
  %v1332 = vsel %vm374, %v1309, 0
  %1334 = vmatprep.subr.bf16.mxu0 0
  %1335 = vmatpush1.bf16.msra.mxu0 %v1318
  %1336 = vmatprep.subr.bf16.mxu0 0
  %1337 = vmatpush1.bf16.msra.mxu0 %v1319
  %1338 = vmatprep.subr.bf16.mxu0 0
  %1339 = vmatpush1.bf16.msra.mxu0 0
  %1340 = vmatprep.subr.bf16.mxu0 0
  %1341 = vmatpush1.bf16.msra.mxu0 0
  %1342 = vmatprep.subr.bf16.mxu0 0
  %1343 = vmatpush1.bf16.msra.mxu0 0
  %1344 = vmatprep.subr.bf16.mxu0 0
  %1345 = vmatpush1.bf16.msra.mxu0 0
  %1346 = vmatprep.subr.bf16.mxu0 0
  %1347 = vmatpush1.bf16.msra.mxu0 0
  %1348 = vmatprep.subr.bf16.mxu0 0
  %1349 = vmatpush1.bf16.msra.mxu0 0
  %1350 = vmatprep.subr.bf16.mxu0 0
  %1351 = vmatpush1.bf16.msra.mxu0 0
  %1352 = vmatprep.subr.bf16.mxu0 0
  %1353 = vmatpush1.bf16.msra.mxu0 0
  %1354 = vmatprep.subr.bf16.mxu0 0
  %1355 = vmatpush1.bf16.msra.mxu0 0
  %1356 = vmatprep.subr.bf16.mxu0 0
  %1357 = vmatpush1.bf16.msra.mxu0 0
  %1358 = vmatprep.subr.bf16.mxu0 0
  %1359 = vmatpush1.bf16.msra.mxu0 0
  %1360 = vmatprep.subr.bf16.mxu0 0
  %1361 = vmatpush1.bf16.msra.mxu0 0
  %1362 = vmatprep.subr.bf16.mxu0 0
  %1363 = vmatpush1.bf16.msra.mxu0 0
  %1364 = vmatprep.subr.bf16.mxu0 0
  %1365 = vmatpush1.bf16.msra.mxu0 0
  %1366 = vmatprep.mubr.bf16.mxu0 0
  %1367 = vmatmul.mubr.bf16.gmra.mrb[0].mxu0 %v1323
  %v1368 = vpop.f32.mrb[0].mxu0
  %v1369 = vadd.f32 0.0, %v1368
  %v1370 = vpop.f32.mrb[0].mxu0
  %v1371 = vpop.f32.mrb[0].mxu0
  %v1372 = vadd.f32 0.0, %v1371
  %v1373 = vpop.f32.mrb[0].mxu0
  %1374 = vmatprep.mubr.bf16.mxu0 0
  %1375 = vmatmul.mubr.bf16.gmra.mrb[0].mxu0 %v1326
  %v1376 = vpop.f32.mrb[0].mxu0
  %v1377 = vadd.f32 0.0, %v1376
  %v1378 = vpop.f32.mrb[0].mxu0
  %v1379 = vpop.f32.mrb[0].mxu0
  %v1380 = vadd.f32 0.0, %v1379
  %v1381 = vpop.f32.mrb[0].mxu0
  %1382 = vmatprep.mubr.bf16.mxu0 0
  %1383 = vmatmul.mubr.bf16.gmra.mrb[0].mxu0 %v1329
  %v1384 = vpop.f32.mrb[0].mxu0
  %v1385 = vadd.f32 0.0, %v1384
  %v1386 = vpop.f32.mrb[0].mxu0
  %v1387 = vpop.f32.mrb[0].mxu0
  %v1388 = vadd.f32 0.0, %v1387
  %v1389 = vpop.f32.mrb[0].mxu0
  %1390 = vmatprep.mubr.bf16.mxu0 0
  %1391 = vmatmul.mubr.bf16.gmra.mrb[0].mxu0 %v1332
  %v1392 = vpop.f32.mrb[0].mxu0
  %v1393 = vadd.f32 0.0, %v1392
  %v1394 = vpop.f32.mrb[0].mxu0
  %v1395 = vpop.f32.mrb[0].mxu0
  %v1396 = vadd.f32 0.0, %v1395
  %v1397 = vpop.f32.mrb[0].mxu0
  %1398 = vdwg.mxu0
  %v1399 = vadd.f32 %v1268, %v1369
  %v1400 = vadd.f32 %v1269, %v1372
  %v1401 = vadd.f32 %v1270, %v1377
  %v1402 = vadd.f32 %v1271, %v1380
  %v1403 = vadd.f32 %v1272, %v1385
  %v1404 = vadd.f32 %v1273, %v1388
  %v1405 = vadd.f32 %v1274, %v1393
  %v1406 = vadd.f32 %v1275, %v1396
  %v1407 = vld [vmem:[%s1276] sm:$0xf]
  %v1408 = vld [vmem:[%s1276 + $0x4] sm:$0x1]
  %v1409 = vld [vmem:[%s1276 + $0x8] sm:$0xf]
  %v1410 = vld [vmem:[%s1276 + $0xc] sm:$0x1]
  %v1411 = vld [vmem:[%s1276 + $0x10] sm:$0xf]
  %v1412 = vld [vmem:[%s1276 + $0x14] sm:$0x1]
  %v1413 = vld [vmem:[%s1276 + $0x18] sm:$0xf]
  %v1414 = vld [vmem:[%s1276 + $0x1c] sm:$0x1]
  %v1415 = vld [vmem:[%s1276 + $0x20] sm:$0xf]
  %v1416 = vld [vmem:[%s1276 + $0x24] sm:$0x1]
  %v1417 = vld [vmem:[%s1276 + $0x28] sm:$0xf]
  %v1418 = vld [vmem:[%s1276 + $0x2c] sm:$0x1]
  %v1419 = vld [vmem:[%s1276 + $0x30] sm:$0xf]
  %v1420 = vld [vmem:[%s1276 + $0x34] sm:$0x1]
  %v1421 = vld [vmem:[%s1276 + $0x38] sm:$0xf]
  %v1422 = vld [vmem:[%s1276 + $0x3c] sm:$0x1]
  %v1424 = vshrl.u32 %v1407, 16
  %v1426 = vrot.slane %v1424, 4
  %v1427 = vshll.u32 %v1407, 16
  %v1429 = vrot.slane %v1427, 5
  %v1430 = vor.u32 %v1426, %v1429
  %v1431 = vrot.slane %v1430, 4
  %v1433 = vshll.u32 %v1408, 16
  %v1435 = vrot.slane %v1433, 5
  %v1436 = vsel %vm232, %v1431, %v1435
  %v1438 = vshrl.u32 %v1409, 16
  %v1440 = vrot.slane %v1438, 4
  %v1441 = vshll.u32 %v1409, 16
  %v1443 = vrot.slane %v1441, 5
  %v1444 = vor.u32 %v1440, %v1443
  %v1445 = vrot.slane %v1444, 4
  %v1447 = vshll.u32 %v1410, 16
  %v1449 = vrot.slane %v1447, 5
  %v1450 = vsel %vm232, %v1445, %v1449
  %v1452 = vshrl.u32 %v1411, 16
  %v1454 = vrot.slane %v1452, 4
  %v1455 = vshll.u32 %v1411, 16
  %v1457 = vrot.slane %v1455, 5
  %v1458 = vor.u32 %v1454, %v1457
  %v1459 = vrot.slane %v1458, 4
  %v1461 = vshll.u32 %v1412, 16
  %v1463 = vrot.slane %v1461, 5
  %v1464 = vsel %vm232, %v1459, %v1463
  %v1466 = vshrl.u32 %v1413, 16
  %v1468 = vrot.slane %v1466, 4
  %v1469 = vshll.u32 %v1413, 16
  %v1471 = vrot.slane %v1469, 5
  %v1472 = vor.u32 %v1468, %v1471
  %v1473 = vrot.slane %v1472, 4
  %v1475 = vshll.u32 %v1414, 16
  %v1477 = vrot.slane %v1475, 5
  %v1478 = vsel %vm232, %v1473, %v1477
  %v1480 = vshrl.u32 %v1415, 16
  %v1482 = vrot.slane %v1480, 4
  %v1483 = vshll.u32 %v1415, 16
  %v1485 = vrot.slane %v1483, 5
  %v1486 = vor.u32 %v1482, %v1485
  %v1487 = vrot.slane %v1486, 4
  %v1489 = vshll.u32 %v1416, 16
  %v1491 = vrot.slane %v1489, 5
  %v1492 = vsel %vm232, %v1487, %v1491
  %v1494 = vshrl.u32 %v1417, 16
  %v1496 = vrot.slane %v1494, 4
  %v1497 = vshll.u32 %v1417, 16
  %v1499 = vrot.slane %v1497, 5
  %v1500 = vor.u32 %v1496, %v1499
  %v1501 = vrot.slane %v1500, 4
  %v1503 = vshll.u32 %v1418, 16
  %v1505 = vrot.slane %v1503, 5
  %v1506 = vsel %vm232, %v1501, %v1505
  %v1508 = vshrl.u32 %v1419, 16
  %v1510 = vrot.slane %v1508, 4
  %v1511 = vshll.u32 %v1419, 16
  %v1513 = vrot.slane %v1511, 5
  %v1514 = vor.u32 %v1510, %v1513
  %v1515 = vrot.slane %v1514, 4
  %v1517 = vshll.u32 %v1420, 16
  %v1519 = vrot.slane %v1517, 5
  %v1520 = vsel %vm232, %v1515, %v1519
  %v1522 = vshrl.u32 %v1421, 16
  %v1524 = vrot.slane %v1522, 4
  %v1525 = vshll.u32 %v1421, 16
  %v1527 = vrot.slane %v1525, 5
  %v1528 = vor.u32 %v1524, %v1527
  %v1529 = vrot.slane %v1528, 4
  %v1531 = vshll.u32 %v1422, 16
  %v1533 = vrot.slane %v1531, 5
  %v1534 = vsel %vm232, %v1529, %v1533
  %s1535 = scalar_lea.vmem %s2, 112
  %v1536 = vld [vmem:[%s1535] sm:$0xf]
  %v1537 = vld [vmem:[%s1535 + $0x4] sm:$0xf]
  %v1538 = vld [vmem:[%s1535 + $0x8] sm:$0xf]
  %v1539 = vld [vmem:[%s1535 + $0xc] sm:$0xf]
  %v1540 = vunpack.c.l.b16 %v1436
  %v1541 = vunpack.c.l.b16 %v1450
  %v1542 = vunpack.c.l.b16 %v1464
  %v1543 = vunpack.c.l.b16 %v1478
  %v1544 = vunpack.c.l.b16 %v1492
  %v1545 = vunpack.c.l.b16 %v1506
  %v1546 = vunpack.c.l.b16 %v1520
  %v1547 = vunpack.c.l.b16 %v1534
  %v1548 = vpack.c.b16 %v1541, %v1540
  %v1549 = vpack.c.b16 %v1543, %v1542
  %v1550 = vpack.c.b16 %v1545, %v1544
  %v1551 = vpack.c.b16 %v1547, %v1546
  %v1556 = vunpack.c.l.b16 %v1536
  %v1557 = vunpack.c.l.b16 %v1537
  %v1558 = vunpack.c.l.b16 %v1538
  %v1559 = vunpack.c.l.b16 %v1539
  %v1560 = vpack.c.b16 %v1557, %v1556
  %v1561 = vpack.c.b16 %v1559, %v1558
  %v1565 = vsel %vm374, %v1548, 0
  %v1568 = vsel %vm374, %v1549, 0
  %v1571 = vsel %vm374, %v1550, 0
  %v1574 = vsel %vm374, %v1551, 0
  %1576 = vmatprep.subr.bf16.mxu0 0
  %1577 = vmatpush1.bf16.msra.mxu0 %v1560
  %1578 = vmatprep.subr.bf16.mxu0 0
  %1579 = vmatpush1.bf16.msra.mxu0 %v1561
  %1580 = vmatprep.subr.bf16.mxu0 0
  %1581 = vmatpush1.bf16.msra.mxu0 0
  %1582 = vmatprep.subr.bf16.mxu0 0
  %1583 = vmatpush1.bf16.msra.mxu0 0
  %1584 = vmatprep.subr.bf16.mxu0 0
  %1585 = vmatpush1.bf16.msra.mxu0 0
  %1586 = vmatprep.subr.bf16.mxu0 0
  %1587 = vmatpush1.bf16.msra.mxu0 0
  %1588 = vmatprep.subr.bf16.mxu0 0
  %1589 = vmatpush1.bf16.msra.mxu0 0
  %1590 = vmatprep.subr.bf16.mxu0 0
  %1591 = vmatpush1.bf16.msra.mxu0 0
  %1592 = vmatprep.subr.bf16.mxu0 0
  %1593 = vmatpush1.bf16.msra.mxu0 0
  %1594 = vmatprep.subr.bf16.mxu0 0
  %1595 = vmatpush1.bf16.msra.mxu0 0
  %1596 = vmatprep.subr.bf16.mxu0 0
  %1597 = vmatpush1.bf16.msra.mxu0 0
  %1598 = vmatprep.subr.bf16.mxu0 0
  %1599 = vmatpush1.bf16.msra.mxu0 0
  %1600 = vmatprep.subr.bf16.mxu0 0
  %1601 = vmatpush1.bf16.msra.mxu0 0
  %1602 = vmatprep.subr.bf16.mxu0 0
  %1603 = vmatpush1.bf16.msra.mxu0 0
  %1604 = vmatprep.subr.bf16.mxu0 0
  %1605 = vmatpush1.bf16.msra.mxu0 0
  %1606 = vmatprep.subr.bf16.mxu0 0
  %1607 = vmatpush1.bf16.msra.mxu0 0
  %1608 = vmatprep.mubr.bf16.mxu0 0
  %1609 = vmatmul.mubr.bf16.gmra.mrb[0].mxu0 %v1565
  %v1610 = vpop.f32.mrb[0].mxu0
  %v1611 = vadd.f32 0.0, %v1610
  %v1612 = vpop.f32.mrb[0].mxu0
  %v1613 = vpop.f32.mrb[0].mxu0
  %v1614 = vadd.f32 0.0, %v1613
  %v1615 = vpop.f32.mrb[0].mxu0
  %1616 = vmatprep.mubr.bf16.mxu0 0
  %1617 = vmatmul.mubr.bf16.gmra.mrb[0].mxu0 %v1568
  %v1618 = vpop.f32.mrb[0].mxu0
  %v1619 = vadd.f32 0.0, %v1618
  %v1620 = vpop.f32.mrb[0].mxu0
  %v1621 = vpop.f32.mrb[0].mxu0
  %v1622 = vadd.f32 0.0, %v1621
  %v1623 = vpop.f32.mrb[0].mxu0
  %1624 = vmatprep.mubr.bf16.mxu0 0
  %1625 = vmatmul.mubr.bf16.gmra.mrb[0].mxu0 %v1571
  %v1626 = vpop.f32.mrb[0].mxu0
  %v1627 = vadd.f32 0.0, %v1626
  %v1628 = vpop.f32.mrb[0].mxu0
  %v1629 = vpop.f32.mrb[0].mxu0
  %v1630 = vadd.f32 0.0, %v1629
  %v1631 = vpop.f32.mrb[0].mxu0
  %1632 = vmatprep.mubr.bf16.mxu0 0
  %1633 = vmatmul.mubr.bf16.gmra.mrb[0].mxu0 %v1574
  %v1634 = vpop.f32.mrb[0].mxu0
  %v1635 = vadd.f32 0.0, %v1634
  %v1636 = vpop.f32.mrb[0].mxu0
  %v1637 = vpop.f32.mrb[0].mxu0
  %v1638 = vadd.f32 0.0, %v1637
  %v1639 = vpop.f32.mrb[0].mxu0
  %1640 = vdwg.mxu0
  %v1641 = vadd.f32 %v1399, %v1611
  %v1642 = vadd.f32 %v1400, %v1614
  %v1643 = vadd.f32 %v1401, %v1619
  %v1644 = vadd.f32 %v1402, %v1622
  %v1645 = vadd.f32 %v1403, %v1627
  %v1646 = vadd.f32 %v1404, %v1630
  %v1647 = vadd.f32 %v1405, %v1635
  %v1648 = vadd.f32 %v1406, %v1638
  %v1649 = vld [vmem:[%s1276] sm:$0xe]
  %v1650 = vld [vmem:[%s1276 + $0x8] sm:$0xe]
  %v1651 = vld [vmem:[%s1276 + $0x10] sm:$0xe]
  %v1652 = vld [vmem:[%s1276 + $0x18] sm:$0xe]
  %v1653 = vld [vmem:[%s1276 + $0x20] sm:$0xe]
  %v1654 = vld [vmem:[%s1276 + $0x28] sm:$0xe]
  %v1655 = vld [vmem:[%s1276 + $0x30] sm:$0xe]
  %v1656 = vld [vmem:[%s1276 + $0x38] sm:$0xe]
  %v1673 = vrot.slane %v1649, 5
  %v1674 = vrot.slane %v1673, 4
  %v1675 = vrot.slane %v1408, 5
  %v1676 = vsel %vm587, %v1674, %v1675
  %v1677 = vrot.slane %v1650, 5
  %v1678 = vrot.slane %v1677, 4
  %v1679 = vrot.slane %v1410, 5
  %v1680 = vsel %vm587, %v1678, %v1679
  %v1681 = vrot.slane %v1651, 5
  %v1682 = vrot.slane %v1681, 4
  %v1683 = vrot.slane %v1412, 5
  %v1684 = vsel %vm587, %v1682, %v1683
  %v1685 = vrot.slane %v1652, 5
  %v1686 = vrot.slane %v1685, 4
  %v1687 = vrot.slane %v1414, 5
  %v1688 = vsel %vm587, %v1686, %v1687
  %v1689 = vrot.slane %v1653, 5
  %v1690 = vrot.slane %v1689, 4
  %v1691 = vrot.slane %v1416, 5
  %v1692 = vsel %vm587, %v1690, %v1691
  %v1693 = vrot.slane %v1654, 5
  %v1694 = vrot.slane %v1693, 4
  %v1695 = vrot.slane %v1418, 5
  %v1696 = vsel %vm587, %v1694, %v1695
  %v1697 = vrot.slane %v1655, 5
  %v1698 = vrot.slane %v1697, 4
  %v1699 = vrot.slane %v1420, 5
  %v1700 = vsel %vm587, %v1698, %v1699
  %v1701 = vrot.slane %v1656, 5
  %v1702 = vrot.slane %v1701, 4
  %v1703 = vrot.slane %v1422, 5
  %v1704 = vsel %vm587, %v1702, %v1703
  %s1705 = scalar_lea.vmem %s2, 128
  %v1706 = vld [vmem:[%s1705] sm:$0xf]
  %v1707 = vld [vmem:[%s1705 + $0x4] sm:$0xf]
  %v1708 = vld [vmem:[%s1705 + $0x8] sm:$0xf]
  %v1709 = vld [vmem:[%s1705 + $0xc] sm:$0xf]
  %v1710 = vunpack.c.l.b16 %v1676
  %v1711 = vunpack.c.l.b16 %v1680
  %v1712 = vunpack.c.l.b16 %v1684
  %v1713 = vunpack.c.l.b16 %v1688
  %v1714 = vunpack.c.l.b16 %v1692
  %v1715 = vunpack.c.l.b16 %v1696
  %v1716 = vunpack.c.l.b16 %v1700
  %v1717 = vunpack.c.l.b16 %v1704
  %v1718 = vpack.c.b16 %v1711, %v1710
  %v1719 = vpack.c.b16 %v1713, %v1712
  %v1720 = vpack.c.b16 %v1715, %v1714
  %v1721 = vpack.c.b16 %v1717, %v1716
  %v1726 = vunpack.c.l.b16 %v1706
  %v1727 = vunpack.c.l.b16 %v1707
  %v1728 = vunpack.c.l.b16 %v1708
  %v1729 = vunpack.c.l.b16 %v1709
  %v1730 = vpack.c.b16 %v1727, %v1726
  %v1731 = vpack.c.b16 %v1729, %v1728
  %v1735 = vsel %vm374, %v1718, 0
  %v1738 = vsel %vm374, %v1719, 0
  %v1741 = vsel %vm374, %v1720, 0
  %v1744 = vsel %vm374, %v1721, 0
  %1746 = vmatprep.subr.bf16.mxu0 0
  %1747 = vmatpush1.bf16.msra.mxu0 %v1730
  %1748 = vmatprep.subr.bf16.mxu0 0
  %1749 = vmatpush1.bf16.msra.mxu0 %v1731
  %1750 = vmatprep.subr.bf16.mxu0 0
  %1751 = vmatpush1.bf16.msra.mxu0 0
  %1752 = vmatprep.subr.bf16.mxu0 0
  %1753 = vmatpush1.bf16.msra.mxu0 0
  %1754 = vmatprep.subr.bf16.mxu0 0
  %1755 = vmatpush1.bf16.msra.mxu0 0
  %1756 = vmatprep.subr.bf16.mxu0 0
  %1757 = vmatpush1.bf16.msra.mxu0 0
  %1758 = vmatprep.subr.bf16.mxu0 0
  %1759 = vmatpush1.bf16.msra.mxu0 0
  %1760 = vmatprep.subr.bf16.mxu0 0
  %1761 = vmatpush1.bf16.msra.mxu0 0
  %1762 = vmatprep.subr.bf16.mxu0 0
  %1763 = vmatpush1.bf16.msra.mxu0 0
  %1764 = vmatprep.subr.bf16.mxu0 0
  %1765 = vmatpush1.bf16.msra.mxu0 0
  %1766 = vmatprep.subr.bf16.mxu0 0
  %1767 = vmatpush1.bf16.msra.mxu0 0
  %1768 = vmatprep.subr.bf16.mxu0 0
  %1769 = vmatpush1.bf16.msra.mxu0 0
  %1770 = vmatprep.subr.bf16.mxu0 0
  %1771 = vmatpush1.bf16.msra.mxu0 0
  %1772 = vmatprep.subr.bf16.mxu0 0
  %1773 = vmatpush1.bf16.msra.mxu0 0
  %1774 = vmatprep.subr.bf16.mxu0 0
  %1775 = vmatpush1.bf16.msra.mxu0 0
  %1776 = vmatprep.subr.bf16.mxu0 0
  %1777 = vmatpush1.bf16.msra.mxu0 0
  %1778 = vmatprep.mubr.bf16.mxu0 0
  %1779 = vmatmul.mubr.bf16.gmra.mrb[0].mxu0 %v1735
  %v1780 = vpop.f32.mrb[0].mxu0
  %v1781 = vadd.f32 0.0, %v1780
  %v1782 = vpop.f32.mrb[0].mxu0
  %v1783 = vpop.f32.mrb[0].mxu0
  %v1784 = vadd.f32 0.0, %v1783
  %v1785 = vpop.f32.mrb[0].mxu0
  %1786 = vmatprep.mubr.bf16.mxu0 0
  %1787 = vmatmul.mubr.bf16.gmra.mrb[0].mxu0 %v1738
  %v1788 = vpop.f32.mrb[0].mxu0
  %v1789 = vadd.f32 0.0, %v1788
  %v1790 = vpop.f32.mrb[0].mxu0
  %v1791 = vpop.f32.mrb[0].mxu0
  %v1792 = vadd.f32 0.0, %v1791
  %v1793 = vpop.f32.mrb[0].mxu0
  %1794 = vmatprep.mubr.bf16.mxu0 0
  %1795 = vmatmul.mubr.bf16.gmra.mrb[0].mxu0 %v1741
  %v1796 = vpop.f32.mrb[0].mxu0
  %v1797 = vadd.f32 0.0, %v1796
  %v1798 = vpop.f32.mrb[0].mxu0
  %v1799 = vpop.f32.mrb[0].mxu0
  %v1800 = vadd.f32 0.0, %v1799
  %v1801 = vpop.f32.mrb[0].mxu0
  %1802 = vmatprep.mubr.bf16.mxu0 0
  %1803 = vmatmul.mubr.bf16.gmra.mrb[0].mxu0 %v1744
  %v1804 = vpop.f32.mrb[0].mxu0
  %v1805 = vadd.f32 0.0, %v1804
  %v1806 = vpop.f32.mrb[0].mxu0
  %v1807 = vpop.f32.mrb[0].mxu0
  %v1808 = vadd.f32 0.0, %v1807
  %v1809 = vpop.f32.mrb[0].mxu0
  %1810 = vdwg.mxu0
  %v1811 = vadd.f32 %v1641, %v1781
  %v1812 = vadd.f32 %v1642, %v1784
  %v1813 = vadd.f32 %v1643, %v1789
  %v1814 = vadd.f32 %v1644, %v1792
  %v1815 = vadd.f32 %v1645, %v1797
  %v1816 = vadd.f32 %v1646, %v1800
  %v1817 = vadd.f32 %v1647, %v1805
  %v1818 = vadd.f32 %v1648, %v1808
  %v1819 = vld [vmem:[%s3] sm:$0x1]
  %v1821 = vlaneseq
  %v1822 = vshrl.u32 %v1821, 7
  %v1823 = vsub.s32 0, %v1822
  %v1824 = vrot.slane %v1819, %v1823
  %v1826 = vadd.f32 %v1811, %v1824
  %v1827 = vadd.f32 %v1812, %v1824
  %v1828 = vadd.f32 %v1813, %v1824
  %v1829 = vadd.f32 %v1814, %v1824
  %v1830 = vadd.f32 %v1815, %v1824
  %v1831 = vadd.f32 %v1816, %v1824
  %v1832 = vadd.f32 %v1817, %v1824
  %v1833 = vadd.f32 %v1818, %v1824
  %v1834 = vmax.f32 %v1826, 0.0
  %v1835 = vmax.f32 %v1827, 0.0
  %v1836 = vmax.f32 %v1828, 0.0
  %v1837 = vmax.f32 %v1829, 0.0
  %v1838 = vmax.f32 %v1830, 0.0
  %v1839 = vmax.f32 %v1831, 0.0
  %v1840 = vmax.f32 %v1832, 0.0
  %v1841 = vmax.f32 %v1833, 0.0
  %v1842 = vpack.c.bf16 %v1834, %v1834
  %v1843 = vpack.c.bf16 %v1835, %v1835
  %v1844 = vpack.c.bf16 %v1836, %v1836
  %v1845 = vpack.c.bf16 %v1837, %v1837
  %v1846 = vpack.c.bf16 %v1838, %v1838
  %v1847 = vpack.c.bf16 %v1839, %v1839
  %v1848 = vpack.c.bf16 %v1840, %v1840
  %v1849 = vpack.c.bf16 %v1841, %v1841
  %v1858 = vunpack.c.l.b16 %v1842
  %v1859 = vunpack.c.l.b16 %v1843
  %v1860 = vunpack.c.l.b16 %v1844
  %v1861 = vunpack.c.l.b16 %v1845
  %v1862 = vunpack.c.l.b16 %v1846
  %v1863 = vunpack.c.l.b16 %v1847
  %v1864 = vunpack.c.l.b16 %v1848
  %v1865 = vunpack.c.l.b16 %v1849
  %v1866 = vpack.c.b16 %v1858, %v1858
  %v1867 = vpack.c.b16 %v1859, %v1859
  %v1868 = vpack.c.b16 %v1860, %v1860
  %v1869 = vpack.c.b16 %v1861, %v1861
  %v1870 = vpack.c.b16 %v1862, %v1862
  %v1871 = vpack.c.b16 %v1863, %v1863
  %v1872 = vpack.c.b16 %v1864, %v1864
  %v1873 = vpack.c.b16 %v1865, %v1865
  %v1875 = vshrl.u32 %v1866, 16
  %v1877 = vrot.slane %v1875, 7
  %v1878 = vshll.u32 %v1866, 16
  %v1880 = vor.u32 %v1877, %v1878
  %v1881 = vrot.slane %v1877, 4
  %v1883 = vshrl.u32 %v1867, 16
  %v1885 = vrot.slane %v1883, 7
  %v1886 = vshll.u32 %v1867, 16
  %v1888 = vor.u32 %v1885, %v1886
  %v1889 = vrot.slane %v1885, 4
  %v1891 = vshrl.u32 %v1868, 16
  %v1893 = vrot.slane %v1891, 7
  %v1894 = vshll.u32 %v1868, 16
  %v1896 = vor.u32 %v1893, %v1894
  %v1897 = vrot.slane %v1893, 4
  %v1899 = vshrl.u32 %v1869, 16
  %v1901 = vrot.slane %v1899, 7
  %v1902 = vshll.u32 %v1869, 16
  %v1904 = vor.u32 %v1901, %v1902
  %v1905 = vrot.slane %v1901, 4
  %v1907 = vshrl.u32 %v1870, 16
  %v1909 = vrot.slane %v1907, 7
  %v1910 = vshll.u32 %v1870, 16
  %v1912 = vor.u32 %v1909, %v1910
  %v1913 = vrot.slane %v1909, 4
  %v1915 = vshrl.u32 %v1871, 16
  %v1917 = vrot.slane %v1915, 7
  %v1918 = vshll.u32 %v1871, 16
  %v1920 = vor.u32 %v1917, %v1918
  %v1921 = vrot.slane %v1917, 4
  %v1923 = vshrl.u32 %v1872, 16
  %v1925 = vrot.slane %v1923, 7
  %v1926 = vshll.u32 %v1872, 16
  %v1928 = vor.u32 %v1925, %v1926
  %v1929 = vrot.slane %v1925, 4
  %v1931 = vshrl.u32 %v1873, 16
  %v1933 = vrot.slane %v1931, 7
  %v1934 = vshll.u32 %v1873, 16
  %v1936 = vor.u32 %v1933, %v1934
  %v1937 = vrot.slane %v1933, 4
  %v1954 = vsel %vm158, %v1880, %v864
  %1955 = vst [vmem:[%s155] sm:$0xf] %v1954
  %v1956 = vld [vmem:[%s155 + $0x4] sm:$0x1]
  %v1957 = vsel %vm164, %v1881, %v1956
  %1958 = vst [vmem:[%s155 + $0x4] sm:$0x1] %v1957
  %v1959 = vld [vmem:[%s155 + $0x8] sm:$0xf]
  %v1960 = vsel %vm158, %v1888, %v1959
  %1961 = vst [vmem:[%s155 + $0x8] sm:$0xf] %v1960
  %v1962 = vld [vmem:[%s155 + $0xc] sm:$0x1]
  %v1963 = vsel %vm164, %v1889, %v1962
  %1964 = vst [vmem:[%s155 + $0xc] sm:$0x1] %v1963
  %v1965 = vld [vmem:[%s155 + $0x10] sm:$0xf]
  %v1966 = vsel %vm158, %v1896, %v1965
  %1967 = vst [vmem:[%s155 + $0x10] sm:$0xf] %v1966
  %v1968 = vld [vmem:[%s155 + $0x14] sm:$0x1]
  %v1969 = vsel %vm164, %v1897, %v1968
  %1970 = vst [vmem:[%s155 + $0x14] sm:$0x1] %v1969
  %v1971 = vld [vmem:[%s155 + $0x18] sm:$0xf]
  %v1972 = vsel %vm158, %v1904, %v1971
  %1973 = vst [vmem:[%s155 + $0x18] sm:$0xf] %v1972
  %v1974 = vld [vmem:[%s155 + $0x1c] sm:$0x1]
  %v1975 = vsel %vm164, %v1905, %v1974
  %1976 = vst [vmem:[%s155 + $0x1c] sm:$0x1] %v1975
  %v1977 = vld [vmem:[%s155 + $0x20] sm:$0xf]
  %v1978 = vsel %vm158, %v1912, %v1977
  %1979 = vst [vmem:[%s155 + $0x20] sm:$0xf] %v1978
  %v1980 = vld [vmem:[%s155 + $0x24] sm:$0x1]
  %v1981 = vsel %vm164, %v1913, %v1980
  %1982 = vst [vmem:[%s155 + $0x24] sm:$0x1] %v1981
  %v1983 = vld [vmem:[%s155 + $0x28] sm:$0xf]
  %v1984 = vsel %vm158, %v1920, %v1983
  %1985 = vst [vmem:[%s155 + $0x28] sm:$0xf] %v1984
  %v1986 = vld [vmem:[%s155 + $0x2c] sm:$0x1]
  %v1987 = vsel %vm164, %v1921, %v1986
  %1988 = vst [vmem:[%s155 + $0x2c] sm:$0x1] %v1987
  %v1989 = vld [vmem:[%s155 + $0x30] sm:$0xf]
  %v1990 = vsel %vm158, %v1928, %v1989
  %1991 = vst [vmem:[%s155 + $0x30] sm:$0xf] %v1990
  %v1992 = vld [vmem:[%s155 + $0x34] sm:$0x1]
  %v1993 = vsel %vm164, %v1929, %v1992
  %1994 = vst [vmem:[%s155 + $0x34] sm:$0x1] %v1993
  %v1995 = vld [vmem:[%s155 + $0x38] sm:$0xf]
  %v1996 = vsel %vm158, %v1936, %v1995
  %1997 = vst [vmem:[%s155 + $0x38] sm:$0xf] %v1996
  %v1998 = vld [vmem:[%s155 + $0x3c] sm:$0x1]
  %v1999 = vsel %vm164, %v1937, %v1998
  %2000 = vst [vmem:[%s155 + $0x3c] sm:$0x1] %v1999
  %v2001 = vld [vmem:[#allocation2] sm:$0xf]
  %v2002 = vld [vmem:[#allocation2 + $0x8] sm:$0xf]
  %v2003 = vld [vmem:[#allocation2 + $0x10] sm:$0xf]
  %v2004 = vld [vmem:[#allocation2 + $0x18] sm:$0xf]
  %v2005 = vld [vmem:[#allocation2 + $0x20] sm:$0xf]
  %v2006 = vld [vmem:[#allocation2 + $0x28] sm:$0xf]
  %v2007 = vld [vmem:[#allocation2 + $0x30] sm:$0xf]
  %v2008 = vld [vmem:[#allocation2 + $0x38] sm:$0xf]
  %s2009 = scalar_lea.vmem %s2, 144
  %v2010 = vld [vmem:[%s2009] sm:$0xf]
  %v2011 = vld [vmem:[%s2009 + $0x4] sm:$0xf]
  %v2012 = vld [vmem:[%s2009 + $0x8] sm:$0xf]
  %v2013 = vld [vmem:[%s2009 + $0xc] sm:$0xf]
  %v2014 = vld [vmem:[#allocation2 + $0x4] sm:$0x1]
  %v2015 = vld [vmem:[#allocation2 + $0xc] sm:$0x1]
  %v2016 = vld [vmem:[#allocation2 + $0x14] sm:$0x1]
  %v2017 = vld [vmem:[#allocation2 + $0x1c] sm:$0x1]
  %v2018 = vld [vmem:[#allocation2 + $0x24] sm:$0x1]
  %v2019 = vld [vmem:[#allocation2 + $0x2c] sm:$0x1]
  %v2020 = vld [vmem:[#allocation2 + $0x34] sm:$0x1]
  %v2021 = vld [vmem:[#allocation2 + $0x3c] sm:$0x1]
  %v2023 = vshrl.u32 %v2001, 16
  %v2025 = vrot.slane %v2023, 4
  %v2026 = vshll.u32 %v2001, 16
  %v2028 = vrot.slane %v2026, 5
  %v2029 = vor.u32 %v2025, %v2028
  %v2030 = vrot.slane %v2029, 4
  %v2032 = vshll.u32 %v2014, 16
  %v2034 = vrot.slane %v2032, 5
  %v2035 = vsel %vm232, %v2030, %v2034
  %v2037 = vshrl.u32 %v2002, 16
  %v2039 = vrot.slane %v2037, 4
  %v2040 = vshll.u32 %v2002, 16
  %v2042 = vrot.slane %v2040, 5
  %v2043 = vor.u32 %v2039, %v2042
  %v2044 = vrot.slane %v2043, 4
  %v2046 = vshll.u32 %v2015, 16
  %v2048 = vrot.slane %v2046, 5
  %v2049 = vsel %vm232, %v2044, %v2048
  %v2051 = vshrl.u32 %v2003, 16
  %v2053 = vrot.slane %v2051, 4
  %v2054 = vshll.u32 %v2003, 16
  %v2056 = vrot.slane %v2054, 5
  %v2057 = vor.u32 %v2053, %v2056
  %v2058 = vrot.slane %v2057, 4
  %v2060 = vshll.u32 %v2016, 16
  %v2062 = vrot.slane %v2060, 5
  %v2063 = vsel %vm232, %v2058, %v2062
  %v2065 = vshrl.u32 %v2004, 16
  %v2067 = vrot.slane %v2065, 4
  %v2068 = vshll.u32 %v2004, 16
  %v2070 = vrot.slane %v2068, 5
  %v2071 = vor.u32 %v2067, %v2070
  %v2072 = vrot.slane %v2071, 4
  %v2074 = vshll.u32 %v2017, 16
  %v2076 = vrot.slane %v2074, 5
  %v2077 = vsel %vm232, %v2072, %v2076
  %v2079 = vshrl.u32 %v2005, 16
  %v2081 = vrot.slane %v2079, 4
  %v2082 = vshll.u32 %v2005, 16
  %v2084 = vrot.slane %v2082, 5
  %v2085 = vor.u32 %v2081, %v2084
  %v2086 = vrot.slane %v2085, 4
  %v2088 = vshll.u32 %v2018, 16
  %v2090 = vrot.slane %v2088, 5
  %v2091 = vsel %vm232, %v2086, %v2090
  %v2093 = vshrl.u32 %v2006, 16
  %v2095 = vrot.slane %v2093, 4
  %v2096 = vshll.u32 %v2006, 16
  %v2098 = vrot.slane %v2096, 5
  %v2099 = vor.u32 %v2095, %v2098
  %v2100 = vrot.slane %v2099, 4
  %v2102 = vshll.u32 %v2019, 16
  %v2104 = vrot.slane %v2102, 5
  %v2105 = vsel %vm232, %v2100, %v2104
  %v2107 = vshrl.u32 %v2007, 16
  %v2109 = vrot.slane %v2107, 4
  %v2110 = vshll.u32 %v2007, 16
  %v2112 = vrot.slane %v2110, 5
  %v2113 = vor.u32 %v2109, %v2112
  %v2114 = vrot.slane %v2113, 4
  %v2116 = vshll.u32 %v2020, 16
  %v2118 = vrot.slane %v2116, 5
  %v2119 = vsel %vm232, %v2114, %v2118
  %v2121 = vshrl.u32 %v2008, 16
  %v2123 = vrot.slane %v2121, 4
  %v2124 = vshll.u32 %v2008, 16
  %v2126 = vrot.slane %v2124, 5
  %v2127 = vor.u32 %v2123, %v2126
  %v2128 = vrot.slane %v2127, 4
  %v2130 = vshll.u32 %v2021, 16
  %v2132 = vrot.slane %v2130, 5
  %v2133 = vsel %vm232, %v2128, %v2132
  %s2134 = scalar_lea.vmem %s2, 160
  %v2135 = vld [vmem:[%s2134] sm:$0xf]
  %v2136 = vld [vmem:[%s2134 + $0x4] sm:$0xf]
  %v2137 = vld [vmem:[%s2134 + $0x8] sm:$0xf]
  %v2138 = vld [vmem:[%s2134 + $0xc] sm:$0xf]
  %v2139 = vunpack.c.l.b16 %v2035
  %v2140 = vunpack.c.l.b16 %v2049
  %v2141 = vunpack.c.l.b16 %v2063
  %v2142 = vunpack.c.l.b16 %v2077
  %v2143 = vunpack.c.l.b16 %v2091
  %v2144 = vunpack.c.l.b16 %v2105
  %v2145 = vunpack.c.l.b16 %v2119
  %v2146 = vunpack.c.l.b16 %v2133
  %v2147 = vpack.c.b16 %v2140, %v2139
  %v2148 = vpack.c.b16 %v2142, %v2141
  %v2149 = vpack.c.b16 %v2144, %v2143
  %v2150 = vpack.c.b16 %v2146, %v2145
  %v2155 = vunpack.c.l.b16 %v2135
  %v2156 = vunpack.c.l.b16 %v2136
  %v2157 = vunpack.c.l.b16 %v2137
  %v2158 = vunpack.c.l.b16 %v2138
  %v2159 = vpack.c.b16 %v2156, %v2155
  %v2160 = vpack.c.b16 %v2158, %v2157
  %v2164 = vsel %vm374, %v2147, 0
  %v2167 = vsel %vm374, %v2148, 0
  %v2170 = vsel %vm374, %v2149, 0
  %v2173 = vsel %vm374, %v2150, 0
  %2175 = vmatprep.subr.bf16.mxu0 0
  %2176 = vmatpush1.bf16.msra.mxu0 %v2159
  %2177 = vmatprep.subr.bf16.mxu0 0
  %2178 = vmatpush1.bf16.msra.mxu0 %v2160
  %2179 = vmatprep.subr.bf16.mxu0 0
  %2180 = vmatpush1.bf16.msra.mxu0 0
  %2181 = vmatprep.subr.bf16.mxu0 0
  %2182 = vmatpush1.bf16.msra.mxu0 0
  %2183 = vmatprep.subr.bf16.mxu0 0
  %2184 = vmatpush1.bf16.msra.mxu0 0
  %2185 = vmatprep.subr.bf16.mxu0 0
  %2186 = vmatpush1.bf16.msra.mxu0 0
  %2187 = vmatprep.subr.bf16.mxu0 0
  %2188 = vmatpush1.bf16.msra.mxu0 0
  %2189 = vmatprep.subr.bf16.mxu0 0
  %2190 = vmatpush1.bf16.msra.mxu0 0
  %2191 = vmatprep.subr.bf16.mxu0 0
  %2192 = vmatpush1.bf16.msra.mxu0 0
  %2193 = vmatprep.subr.bf16.mxu0 0
  %2194 = vmatpush1.bf16.msra.mxu0 0
  %2195 = vmatprep.subr.bf16.mxu0 0
  %2196 = vmatpush1.bf16.msra.mxu0 0
  %2197 = vmatprep.subr.bf16.mxu0 0
  %2198 = vmatpush1.bf16.msra.mxu0 0
  %2199 = vmatprep.subr.bf16.mxu0 0
  %2200 = vmatpush1.bf16.msra.mxu0 0
  %2201 = vmatprep.subr.bf16.mxu0 0
  %2202 = vmatpush1.bf16.msra.mxu0 0
  %2203 = vmatprep.subr.bf16.mxu0 0
  %2204 = vmatpush1.bf16.msra.mxu0 0
  %2205 = vmatprep.subr.bf16.mxu0 0
  %2206 = vmatpush1.bf16.msra.mxu0 0
  %2207 = vmatprep.mubr.bf16.mxu0 0
  %2208 = vmatmul.mubr.bf16.gmra.mrb[0].mxu0 %v2164
  %v2209 = vpop.f32.mrb[0].mxu0
  %v2210 = vadd.f32 0.0, %v2209
  %v2211 = vpop.f32.mrb[0].mxu0
  %v2212 = vpop.f32.mrb[0].mxu0
  %v2213 = vadd.f32 0.0, %v2212
  %v2214 = vpop.f32.mrb[0].mxu0
  %2215 = vmatprep.mubr.bf16.mxu0 0
  %2216 = vmatmul.mubr.bf16.gmra.mrb[0].mxu0 %v2167
  %v2217 = vpop.f32.mrb[0].mxu0
  %v2218 = vadd.f32 0.0, %v2217
  %v2219 = vpop.f32.mrb[0].mxu0
  %v2220 = vpop.f32.mrb[0].mxu0
  %v2221 = vadd.f32 0.0, %v2220
  %v2222 = vpop.f32.mrb[0].mxu0
  %2223 = vmatprep.mubr.bf16.mxu0 0
  %2224 = vmatmul.mubr.bf16.gmra.mrb[0].mxu0 %v2170
  %v2225 = vpop.f32.mrb[0].mxu0
  %v2226 = vadd.f32 0.0, %v2225
  %v2227 = vpop.f32.mrb[0].mxu0
  %v2228 = vpop.f32.mrb[0].mxu0
  %v2229 = vadd.f32 0.0, %v2228
  %v2230 = vpop.f32.mrb[0].mxu0
  %2231 = vmatprep.mubr.bf16.mxu0 0
  %2232 = vmatmul.mubr.bf16.gmra.mrb[0].mxu0 %v2173
  %v2233 = vpop.f32.mrb[0].mxu0
  %v2234 = vadd.f32 0.0, %v2233
  %v2235 = vpop.f32.mrb[0].mxu0
  %v2236 = vpop.f32.mrb[0].mxu0
  %v2237 = vadd.f32 0.0, %v2236
  %v2238 = vpop.f32.mrb[0].mxu0
  %2239 = vdwg.mxu0
  %v2248 = vunpack.c.l.b16 %v2001
  %v2249 = vunpack.c.l.b16 %v2002
  %v2250 = vunpack.c.l.b16 %v2003
  %v2251 = vunpack.c.l.b16 %v2004
  %v2252 = vunpack.c.l.b16 %v2005
  %v2253 = vunpack.c.l.b16 %v2006
  %v2254 = vunpack.c.l.b16 %v2007
  %v2255 = vunpack.c.l.b16 %v2008
  %v2256 = vpack.c.b16 %v2249, %v2248
  %v2257 = vpack.c.b16 %v2251, %v2250
  %v2258 = vpack.c.b16 %v2253, %v2252
  %v2259 = vpack.c.b16 %v2255, %v2254
  %v2264 = vunpack.c.l.b16 %v2010
  %v2265 = vunpack.c.l.b16 %v2011
  %v2266 = vunpack.c.l.b16 %v2012
  %v2267 = vunpack.c.l.b16 %v2013
  %v2268 = vpack.c.b16 %v2265, %v2264
  %v2269 = vpack.c.b16 %v2267, %v2266
  %v2273 = vsel %vm374, %v2256, 0
  %v2276 = vsel %vm374, %v2257, 0
  %v2279 = vsel %vm374, %v2258, 0
  %v2282 = vsel %vm374, %v2259, 0
  %2284 = vmatprep.subr.bf16.mxu0 0
  %2285 = vmatpush1.bf16.msra.mxu0 %v2268
  %2286 = vmatprep.subr.bf16.mxu0 0
  %2287 = vmatpush1.bf16.msra.mxu0 %v2269
  %2288 = vmatprep.subr.bf16.mxu0 0
  %2289 = vmatpush1.bf16.msra.mxu0 0
  %2290 = vmatprep.subr.bf16.mxu0 0
  %2291 = vmatpush1.bf16.msra.mxu0 0
  %2292 = vmatprep.subr.bf16.mxu0 0
  %2293 = vmatpush1.bf16.msra.mxu0 0
  %2294 = vmatprep.subr.bf16.mxu0 0
  %2295 = vmatpush1.bf16.msra.mxu0 0
  %2296 = vmatprep.subr.bf16.mxu0 0
  %2297 = vmatpush1.bf16.msra.mxu0 0
  %2298 = vmatprep.subr.bf16.mxu0 0
  %2299 = vmatpush1.bf16.msra.mxu0 0
  %2300 = vmatprep.subr.bf16.mxu0 0
  %2301 = vmatpush1.bf16.msra.mxu0 0
  %2302 = vmatprep.subr.bf16.mxu0 0
  %2303 = vmatpush1.bf16.msra.mxu0 0
  %2304 = vmatprep.subr.bf16.mxu0 0
  %2305 = vmatpush1.bf16.msra.mxu0 0
  %2306 = vmatprep.subr.bf16.mxu0 0
  %2307 = vmatpush1.bf16.msra.mxu0 0
  %2308 = vmatprep.subr.bf16.mxu0 0
  %2309 = vmatpush1.bf16.msra.mxu0 0
  %2310 = vmatprep.subr.bf16.mxu0 0
  %2311 = vmatpush1.bf16.msra.mxu0 0
  %2312 = vmatprep.subr.bf16.mxu0 0
  %2313 = vmatpush1.bf16.msra.mxu0 0
  %2314 = vmatprep.subr.bf16.mxu0 0
  %2315 = vmatpush1.bf16.msra.mxu0 0
  %2316 = vmatprep.mubr.bf16.mxu0 0
  %2317 = vmatmul.mubr.bf16.gmra.mrb[0].mxu0 %v2273
  %v2318 = vpop.f32.mrb[0].mxu0
  %v2319 = vadd.f32 %v2210, %v2318
  %v2320 = vpop.f32.mrb[0].mxu0
  %v2321 = vpop.f32.mrb[0].mxu0
  %v2322 = vadd.f32 %v2213, %v2321
  %v2323 = vpop.f32.mrb[0].mxu0
  %2324 = vmatprep.mubr.bf16.mxu0 0
  %2325 = vmatmul.mubr.bf16.gmra.mrb[0].mxu0 %v2276
  %v2326 = vpop.f32.mrb[0].mxu0
  %v2327 = vadd.f32 %v2218, %v2326
  %v2328 = vpop.f32.mrb[0].mxu0
  %v2329 = vpop.f32.mrb[0].mxu0
  %v2330 = vadd.f32 %v2221, %v2329
  %v2331 = vpop.f32.mrb[0].mxu0
  %2332 = vmatprep.mubr.bf16.mxu0 0
  %2333 = vmatmul.mubr.bf16.gmra.mrb[0].mxu0 %v2279
  %v2334 = vpop.f32.mrb[0].mxu0
  %v2335 = vadd.f32 %v2226, %v2334
  %v2336 = vpop.f32.mrb[0].mxu0
  %v2337 = vpop.f32.mrb[0].mxu0
  %v2338 = vadd.f32 %v2229, %v2337
  %v2339 = vpop.f32.mrb[0].mxu0
  %2340 = vmatprep.mubr.bf16.mxu0 0
  %2341 = vmatmul.mubr.bf16.gmra.mrb[0].mxu0 %v2282
  %v2342 = vpop.f32.mrb[0].mxu0
  %v2343 = vadd.f32 %v2234, %v2342
  %v2344 = vpop.f32.mrb[0].mxu0
  %v2345 = vpop.f32.mrb[0].mxu0
  %v2346 = vadd.f32 %v2237, %v2345
  %v2347 = vpop.f32.mrb[0].mxu0
  %2348 = vdwg.mxu0
  %v2349 = vld [vmem:[#allocation2] sm:$0xe]
  %v2350 = vld [vmem:[#allocation2 + $0x8] sm:$0xe]
  %v2351 = vld [vmem:[#allocation2 + $0x10] sm:$0xe]
  %v2352 = vld [vmem:[#allocation2 + $0x18] sm:$0xe]
  %v2353 = vld [vmem:[#allocation2 + $0x20] sm:$0xe]
  %v2354 = vld [vmem:[#allocation2 + $0x28] sm:$0xe]
  %v2355 = vld [vmem:[#allocation2 + $0x30] sm:$0xe]
  %v2356 = vld [vmem:[#allocation2 + $0x38] sm:$0xe]
  %v2373 = vrot.slane %v2349, 5
  %v2374 = vrot.slane %v2373, 4
  %v2375 = vrot.slane %v2014, 5
  %v2376 = vsel %vm587, %v2374, %v2375
  %v2377 = vrot.slane %v2350, 5
  %v2378 = vrot.slane %v2377, 4
  %v2379 = vrot.slane %v2015, 5
  %v2380 = vsel %vm587, %v2378, %v2379
  %v2381 = vrot.slane %v2351, 5
  %v2382 = vrot.slane %v2381, 4
  %v2383 = vrot.slane %v2016, 5
  %v2384 = vsel %vm587, %v2382, %v2383
  %v2385 = vrot.slane %v2352, 5
  %v2386 = vrot.slane %v2385, 4
  %v2387 = vrot.slane %v2017, 5
  %v2388 = vsel %vm587, %v2386, %v2387
  %v2389 = vrot.slane %v2353, 5
  %v2390 = vrot.slane %v2389, 4
  %v2391 = vrot.slane %v2018, 5
  %v2392 = vsel %vm587, %v2390, %v2391
  %v2393 = vrot.slane %v2354, 5
  %v2394 = vrot.slane %v2393, 4
  %v2395 = vrot.slane %v2019, 5
  %v2396 = vsel %vm587, %v2394, %v2395
  %v2397 = vrot.slane %v2355, 5
  %v2398 = vrot.slane %v2397, 4
  %v2399 = vrot.slane %v2020, 5
  %v2400 = vsel %vm587, %v2398, %v2399
  %v2401 = vrot.slane %v2356, 5
  %v2402 = vrot.slane %v2401, 4
  %v2403 = vrot.slane %v2021, 5
  %v2404 = vsel %vm587, %v2402, %v2403
  %s2405 = scalar_lea.vmem %s2, 176
  %v2406 = vld [vmem:[%s2405] sm:$0xf]
  %v2407 = vld [vmem:[%s2405 + $0x4] sm:$0xf]
  %v2408 = vld [vmem:[%s2405 + $0x8] sm:$0xf]
  %v2409 = vld [vmem:[%s2405 + $0xc] sm:$0xf]
  %v2410 = vunpack.c.l.b16 %v2376
  %v2411 = vunpack.c.l.b16 %v2380
  %v2412 = vunpack.c.l.b16 %v2384
  %v2413 = vunpack.c.l.b16 %v2388
  %v2414 = vunpack.c.l.b16 %v2392
  %v2415 = vunpack.c.l.b16 %v2396
  %v2416 = vunpack.c.l.b16 %v2400
  %v2417 = vunpack.c.l.b16 %v2404
  %v2418 = vpack.c.b16 %v2411, %v2410
  %v2419 = vpack.c.b16 %v2413, %v2412
  %v2420 = vpack.c.b16 %v2415, %v2414
  %v2421 = vpack.c.b16 %v2417, %v2416
  %v2426 = vunpack.c.l.b16 %v2406
  %v2427 = vunpack.c.l.b16 %v2407
  %v2428 = vunpack.c.l.b16 %v2408
  %v2429 = vunpack.c.l.b16 %v2409
  %v2430 = vpack.c.b16 %v2427, %v2426
  %v2431 = vpack.c.b16 %v2429, %v2428
  %v2435 = vsel %vm374, %v2418, 0
  %v2438 = vsel %vm374, %v2419, 0
  %v2441 = vsel %vm374, %v2420, 0
  %v2444 = vsel %vm374, %v2421, 0
  %2446 = vmatprep.subr.bf16.mxu0 0
  %2447 = vmatpush1.bf16.msra.mxu0 %v2430
  %2448 = vmatprep.subr.bf16.mxu0 0
  %2449 = vmatpush1.bf16.msra.mxu0 %v2431
  %2450 = vmatprep.subr.bf16.mxu0 0
  %2451 = vmatpush1.bf16.msra.mxu0 0
  %2452 = vmatprep.subr.bf16.mxu0 0
  %2453 = vmatpush1.bf16.msra.mxu0 0
  %2454 = vmatprep.subr.bf16.mxu0 0
  %2455 = vmatpush1.bf16.msra.mxu0 0
  %2456 = vmatprep.subr.bf16.mxu0 0
  %2457 = vmatpush1.bf16.msra.mxu0 0
  %2458 = vmatprep.subr.bf16.mxu0 0
  %2459 = vmatpush1.bf16.msra.mxu0 0
  %2460 = vmatprep.subr.bf16.mxu0 0
  %2461 = vmatpush1.bf16.msra.mxu0 0
  %2462 = vmatprep.subr.bf16.mxu0 0
  %2463 = vmatpush1.bf16.msra.mxu0 0
  %2464 = vmatprep.subr.bf16.mxu0 0
  %2465 = vmatpush1.bf16.msra.mxu0 0
  %2466 = vmatprep.subr.bf16.mxu0 0
  %2467 = vmatpush1.bf16.msra.mxu0 0
  %2468 = vmatprep.subr.bf16.mxu0 0
  %2469 = vmatpush1.bf16.msra.mxu0 0
  %2470 = vmatprep.subr.bf16.mxu0 0
  %2471 = vmatpush1.bf16.msra.mxu0 0
  %2472 = vmatprep.subr.bf16.mxu0 0
  %2473 = vmatpush1.bf16.msra.mxu0 0
  %2474 = vmatprep.subr.bf16.mxu0 0
  %2475 = vmatpush1.bf16.msra.mxu0 0
  %2476 = vmatprep.subr.bf16.mxu0 0
  %2477 = vmatpush1.bf16.msra.mxu0 0
  %2478 = vmatprep.mubr.bf16.mxu0 0
  %2479 = vmatmul.mubr.bf16.gmra.mrb[0].mxu0 %v2435
  %v2480 = vpop.f32.mrb[0].mxu0
  %v2481 = vadd.f32 0.0, %v2480
  %v2482 = vpop.f32.mrb[0].mxu0
  %v2483 = vpop.f32.mrb[0].mxu0
  %v2484 = vadd.f32 0.0, %v2483
  %v2485 = vpop.f32.mrb[0].mxu0
  %2486 = vmatprep.mubr.bf16.mxu0 0
  %2487 = vmatmul.mubr.bf16.gmra.mrb[0].mxu0 %v2438
  %v2488 = vpop.f32.mrb[0].mxu0
  %v2489 = vadd.f32 0.0, %v2488
  %v2490 = vpop.f32.mrb[0].mxu0
  %v2491 = vpop.f32.mrb[0].mxu0
  %v2492 = vadd.f32 0.0, %v2491
  %v2493 = vpop.f32.mrb[0].mxu0
  %2494 = vmatprep.mubr.bf16.mxu0 0
  %2495 = vmatmul.mubr.bf16.gmra.mrb[0].mxu0 %v2441
  %v2496 = vpop.f32.mrb[0].mxu0
  %v2497 = vadd.f32 0.0, %v2496
  %v2498 = vpop.f32.mrb[0].mxu0
  %v2499 = vpop.f32.mrb[0].mxu0
  %v2500 = vadd.f32 0.0, %v2499
  %v2501 = vpop.f32.mrb[0].mxu0
  %2502 = vmatprep.mubr.bf16.mxu0 0
  %2503 = vmatmul.mubr.bf16.gmra.mrb[0].mxu0 %v2444
  %v2504 = vpop.f32.mrb[0].mxu0
  %v2505 = vadd.f32 0.0, %v2504
  %v2506 = vpop.f32.mrb[0].mxu0
  %v2507 = vpop.f32.mrb[0].mxu0
  %v2508 = vadd.f32 0.0, %v2507
  %v2509 = vpop.f32.mrb[0].mxu0
  %2510 = vdwg.mxu0
  %v2511 = vadd.f32 %v2319, %v2481
  %v2512 = vadd.f32 %v2322, %v2484
  %v2513 = vadd.f32 %v2327, %v2489
  %v2514 = vadd.f32 %v2330, %v2492
  %v2515 = vadd.f32 %v2335, %v2497
  %v2516 = vadd.f32 %v2338, %v2500
  %v2517 = vadd.f32 %v2343, %v2505
  %v2518 = vadd.f32 %v2346, %v2508
  %v2519 = vld [vmem:[%s155] sm:$0xf]
  %v2520 = vld [vmem:[%s155 + $0x8] sm:$0xf]
  %v2521 = vld [vmem:[%s155 + $0x10] sm:$0xf]
  %v2522 = vld [vmem:[%s155 + $0x18] sm:$0xf]
  %v2523 = vld [vmem:[%s155 + $0x20] sm:$0xf]
  %v2524 = vld [vmem:[%s155 + $0x28] sm:$0xf]
  %v2525 = vld [vmem:[%s155 + $0x30] sm:$0xf]
  %v2526 = vld [vmem:[%s155 + $0x38] sm:$0xf]
  %s2527 = scalar_lea.vmem %s2, 192
  %v2528 = vld [vmem:[%s2527] sm:$0xf]
  %v2529 = vld [vmem:[%s2527 + $0x4] sm:$0xf]
  %v2530 = vld [vmem:[%s2527 + $0x8] sm:$0xf]
  %v2531 = vld [vmem:[%s2527 + $0xc] sm:$0xf]
  %v2540 = vunpack.c.l.b16 %v2519
  %v2541 = vunpack.c.l.b16 %v2520
  %v2542 = vunpack.c.l.b16 %v2521
  %v2543 = vunpack.c.l.b16 %v2522
  %v2544 = vunpack.c.l.b16 %v2523
  %v2545 = vunpack.c.l.b16 %v2524
  %v2546 = vunpack.c.l.b16 %v2525
  %v2547 = vunpack.c.l.b16 %v2526
  %v2548 = vpack.c.b16 %v2541, %v2540
  %v2549 = vpack.c.b16 %v2543, %v2542
  %v2550 = vpack.c.b16 %v2545, %v2544
  %v2551 = vpack.c.b16 %v2547, %v2546
  %v2556 = vunpack.c.l.b16 %v2528
  %v2557 = vunpack.c.l.b16 %v2529
  %v2558 = vunpack.c.l.b16 %v2530
  %v2559 = vunpack.c.l.b16 %v2531
  %v2560 = vpack.c.b16 %v2557, %v2556
  %v2561 = vpack.c.b16 %v2559, %v2558
  %v2565 = vsel %vm374, %v2548, 0
  %v2568 = vsel %vm374, %v2549, 0
  %v2571 = vsel %vm374, %v2550, 0
  %v2574 = vsel %vm374, %v2551, 0
  %2576 = vmatprep.subr.bf16.mxu0 0
  %2577 = vmatpush1.bf16.msra.mxu0 %v2560
  %2578 = vmatprep.subr.bf16.mxu0 0
  %2579 = vmatpush1.bf16.msra.mxu0 %v2561
  %2580 = vmatprep.subr.bf16.mxu0 0
  %2581 = vmatpush1.bf16.msra.mxu0 0
  %2582 = vmatprep.subr.bf16.mxu0 0
  %2583 = vmatpush1.bf16.msra.mxu0 0
  %2584 = vmatprep.subr.bf16.mxu0 0
  %2585 = vmatpush1.bf16.msra.mxu0 0
  %2586 = vmatprep.subr.bf16.mxu0 0
  %2587 = vmatpush1.bf16.msra.mxu0 0
  %2588 = vmatprep.subr.bf16.mxu0 0
  %2589 = vmatpush1.bf16.msra.mxu0 0
  %2590 = vmatprep.subr.bf16.mxu0 0
  %2591 = vmatpush1.bf16.msra.mxu0 0
  %2592 = vmatprep.subr.bf16.mxu0 0
  %2593 = vmatpush1.bf16.msra.mxu0 0
  %2594 = vmatprep.subr.bf16.mxu0 0
  %2595 = vmatpush1.bf16.msra.mxu0 0
  %2596 = vmatprep.subr.bf16.mxu0 0
  %2597 = vmatpush1.bf16.msra.mxu0 0
  %2598 = vmatprep.subr.bf16.mxu0 0
  %2599 = vmatpush1.bf16.msra.mxu0 0
  %2600 = vmatprep.subr.bf16.mxu0 0
  %2601 = vmatpush1.bf16.msra.mxu0 0
  %2602 = vmatprep.subr.bf16.mxu0 0
  %2603 = vmatpush1.bf16.msra.mxu0 0
  %2604 = vmatprep.subr.bf16.mxu0 0
  %2605 = vmatpush1.bf16.msra.mxu0 0
  %2606 = vmatprep.subr.bf16.mxu0 0
  %2607 = vmatpush1.bf16.msra.mxu0 0
  %2608 = vmatprep.mubr.bf16.mxu0 0
  %2609 = vmatmul.mubr.bf16.gmra.mrb[0].mxu0 %v2565
  %v2610 = vpop.f32.mrb[0].mxu0
  %v2611 = vadd.f32 0.0, %v2610
  %v2612 = vpop.f32.mrb[0].mxu0
  %v2613 = vpop.f32.mrb[0].mxu0
  %v2614 = vadd.f32 0.0, %v2613
  %v2615 = vpop.f32.mrb[0].mxu0
  %2616 = vmatprep.mubr.bf16.mxu0 0
  %2617 = vmatmul.mubr.bf16.gmra.mrb[0].mxu0 %v2568
  %v2618 = vpop.f32.mrb[0].mxu0
  %v2619 = vadd.f32 0.0, %v2618
  %v2620 = vpop.f32.mrb[0].mxu0
  %v2621 = vpop.f32.mrb[0].mxu0
  %v2622 = vadd.f32 0.0, %v2621
  %v2623 = vpop.f32.mrb[0].mxu0
  %2624 = vmatprep.mubr.bf16.mxu0 0
  %2625 = vmatmul.mubr.bf16.gmra.mrb[0].mxu0 %v2571
  %v2626 = vpop.f32.mrb[0].mxu0
  %v2627 = vadd.f32 0.0, %v2626
  %v2628 = vpop.f32.mrb[0].mxu0
  %v2629 = vpop.f32.mrb[0].mxu0
  %v2630 = vadd.f32 0.0, %v2629
  %v2631 = vpop.f32.mrb[0].mxu0
  %2632 = vmatprep.mubr.bf16.mxu0 0
  %2633 = vmatmul.mubr.bf16.gmra.mrb[0].mxu0 %v2574
  %v2634 = vpop.f32.mrb[0].mxu0
  %v2635 = vadd.f32 0.0, %v2634
  %v2636 = vpop.f32.mrb[0].mxu0
  %v2637 = vpop.f32.mrb[0].mxu0
  %v2638 = vadd.f32 0.0, %v2637
  %v2639 = vpop.f32.mrb[0].mxu0
  %2640 = vdwg.mxu0
  %v2641 = vadd.f32 %v2511, %v2611
  %v2642 = vadd.f32 %v2512, %v2614
  %v2643 = vadd.f32 %v2513, %v2619
  %v2644 = vadd.f32 %v2514, %v2622
  %v2645 = vadd.f32 %v2515, %v2627
  %v2646 = vadd.f32 %v2516, %v2630
  %v2647 = vadd.f32 %v2517, %v2635
  %v2648 = vadd.f32 %v2518, %v2638
  %v2649 = vld [vmem:[%s155] sm:$0xf]
  %v2650 = vld [vmem:[%s155 + $0x4] sm:$0x1]
  %v2651 = vld [vmem:[%s155 + $0x8] sm:$0xf]
  %v2652 = vld [vmem:[%s155 + $0xc] sm:$0x1]
  %v2653 = vld [vmem:[%s155 + $0x10] sm:$0xf]
  %v2654 = vld [vmem:[%s155 + $0x14] sm:$0x1]
  %v2655 = vld [vmem:[%s155 + $0x18] sm:$0xf]
  %v2656 = vld [vmem:[%s155 + $0x1c] sm:$0x1]
  %v2657 = vld [vmem:[%s155 + $0x20] sm:$0xf]
  %v2658 = vld [vmem:[%s155 + $0x24] sm:$0x1]
  %v2659 = vld [vmem:[%s155 + $0x28] sm:$0xf]
  %v2660 = vld [vmem:[%s155 + $0x2c] sm:$0x1]
  %v2661 = vld [vmem:[%s155 + $0x30] sm:$0xf]
  %v2662 = vld [vmem:[%s155 + $0x34] sm:$0x1]
  %v2663 = vld [vmem:[%s155 + $0x38] sm:$0xf]
  %v2664 = vld [vmem:[%s155 + $0x3c] sm:$0x1]
  %v2666 = vshrl.u32 %v2649, 16
  %v2668 = vrot.slane %v2666, 4
  %v2669 = vshll.u32 %v2649, 16
  %v2671 = vrot.slane %v2669, 5
  %v2672 = vor.u32 %v2668, %v2671
  %v2673 = vrot.slane %v2672, 4
  %v2675 = vshll.u32 %v2650, 16
  %v2677 = vrot.slane %v2675, 5
  %v2678 = vsel %vm232, %v2673, %v2677
  %v2680 = vshrl.u32 %v2651, 16
  %v2682 = vrot.slane %v2680, 4
  %v2683 = vshll.u32 %v2651, 16
  %v2685 = vrot.slane %v2683, 5
  %v2686 = vor.u32 %v2682, %v2685
  %v2687 = vrot.slane %v2686, 4
  %v2689 = vshll.u32 %v2652, 16
  %v2691 = vrot.slane %v2689, 5
  %v2692 = vsel %vm232, %v2687, %v2691
  %v2694 = vshrl.u32 %v2653, 16
  %v2696 = vrot.slane %v2694, 4
  %v2697 = vshll.u32 %v2653, 16
  %v2699 = vrot.slane %v2697, 5
  %v2700 = vor.u32 %v2696, %v2699
  %v2701 = vrot.slane %v2700, 4
  %v2703 = vshll.u32 %v2654, 16
  %v2705 = vrot.slane %v2703, 5
  %v2706 = vsel %vm232, %v2701, %v2705
  %v2708 = vshrl.u32 %v2655, 16
  %v2710 = vrot.slane %v2708, 4
  %v2711 = vshll.u32 %v2655, 16
  %v2713 = vrot.slane %v2711, 5
  %v2714 = vor.u32 %v2710, %v2713
  %v2715 = vrot.slane %v2714, 4
  %v2717 = vshll.u32 %v2656, 16
  %v2719 = vrot.slane %v2717, 5
  %v2720 = vsel %vm232, %v2715, %v2719
  %v2722 = vshrl.u32 %v2657, 16
  %v2724 = vrot.slane %v2722, 4
  %v2725 = vshll.u32 %v2657, 16
  %v2727 = vrot.slane %v2725, 5
  %v2728 = vor.u32 %v2724, %v2727
  %v2729 = vrot.slane %v2728, 4
  %v2731 = vshll.u32 %v2658, 16
  %v2733 = vrot.slane %v2731, 5
  %v2734 = vsel %vm232, %v2729, %v2733
  %v2736 = vshrl.u32 %v2659, 16
  %v2738 = vrot.slane %v2736, 4
  %v2739 = vshll.u32 %v2659, 16
  %v2741 = vrot.slane %v2739, 5
  %v2742 = vor.u32 %v2738, %v2741
  %v2743 = vrot.slane %v2742, 4
  %v2745 = vshll.u32 %v2660, 16
  %v2747 = vrot.slane %v2745, 5
  %v2748 = vsel %vm232, %v2743, %v2747
  %v2750 = vshrl.u32 %v2661, 16
  %v2752 = vrot.slane %v2750, 4
  %v2753 = vshll.u32 %v2661, 16
  %v2755 = vrot.slane %v2753, 5
  %v2756 = vor.u32 %v2752, %v2755
  %v2757 = vrot.slane %v2756, 4
  %v2759 = vshll.u32 %v2662, 16
  %v2761 = vrot.slane %v2759, 5
  %v2762 = vsel %vm232, %v2757, %v2761
  %v2764 = vshrl.u32 %v2663, 16
  %v2766 = vrot.slane %v2764, 4
  %v2767 = vshll.u32 %v2663, 16
  %v2769 = vrot.slane %v2767, 5
  %v2770 = vor.u32 %v2766, %v2769
  %v2771 = vrot.slane %v2770, 4
  %v2773 = vshll.u32 %v2664, 16
  %v2775 = vrot.slane %v2773, 5
  %v2776 = vsel %vm232, %v2771, %v2775
  %s2777 = scalar_lea.vmem %s2, 208
  %v2778 = vld [vmem:[%s2777] sm:$0xf]
  %v2779 = vld [vmem:[%s2777 + $0x4] sm:$0xf]
  %v2780 = vld [vmem:[%s2777 + $0x8] sm:$0xf]
  %v2781 = vld [vmem:[%s2777 + $0xc] sm:$0xf]
  %v2782 = vunpack.c.l.b16 %v2678
  %v2783 = vunpack.c.l.b16 %v2692
  %v2784 = vunpack.c.l.b16 %v2706
  %v2785 = vunpack.c.l.b16 %v2720
  %v2786 = vunpack.c.l.b16 %v2734
  %v2787 = vunpack.c.l.b16 %v2748
  %v2788 = vunpack.c.l.b16 %v2762
  %v2789 = vunpack.c.l.b16 %v2776
  %v2790 = vpack.c.b16 %v2783, %v2782
  %v2791 = vpack.c.b16 %v2785, %v2784
  %v2792 = vpack.c.b16 %v2787, %v2786
  %v2793 = vpack.c.b16 %v2789, %v2788
  %v2798 = vunpack.c.l.b16 %v2778
  %v2799 = vunpack.c.l.b16 %v2779
  %v2800 = vunpack.c.l.b16 %v2780
  %v2801 = vunpack.c.l.b16 %v2781
  %v2802 = vpack.c.b16 %v2799, %v2798
  %v2803 = vpack.c.b16 %v2801, %v2800
  %v2807 = vsel %vm374, %v2790, 0
  %v2810 = vsel %vm374, %v2791, 0
  %v2813 = vsel %vm374, %v2792, 0
  %v2816 = vsel %vm374, %v2793, 0
  %2818 = vmatprep.subr.bf16.mxu0 0
  %2819 = vmatpush1.bf16.msra.mxu0 %v2802
  %2820 = vmatprep.subr.bf16.mxu0 0
  %2821 = vmatpush1.bf16.msra.mxu0 %v2803
  %2822 = vmatprep.subr.bf16.mxu0 0
  %2823 = vmatpush1.bf16.msra.mxu0 0
  %2824 = vmatprep.subr.bf16.mxu0 0
  %2825 = vmatpush1.bf16.msra.mxu0 0
  %2826 = vmatprep.subr.bf16.mxu0 0
  %2827 = vmatpush1.bf16.msra.mxu0 0
  %2828 = vmatprep.subr.bf16.mxu0 0
  %2829 = vmatpush1.bf16.msra.mxu0 0
  %2830 = vmatprep.subr.bf16.mxu0 0
  %2831 = vmatpush1.bf16.msra.mxu0 0
  %2832 = vmatprep.subr.bf16.mxu0 0
  %2833 = vmatpush1.bf16.msra.mxu0 0
  %2834 = vmatprep.subr.bf16.mxu0 0
  %2835 = vmatpush1.bf16.msra.mxu0 0
  %2836 = vmatprep.subr.bf16.mxu0 0
  %2837 = vmatpush1.bf16.msra.mxu0 0
  %2838 = vmatprep.subr.bf16.mxu0 0
  %2839 = vmatpush1.bf16.msra.mxu0 0
  %2840 = vmatprep.subr.bf16.mxu0 0
  %2841 = vmatpush1.bf16.msra.mxu0 0
  %2842 = vmatprep.subr.bf16.mxu0 0
  %2843 = vmatpush1.bf16.msra.mxu0 0
  %2844 = vmatprep.subr.bf16.mxu0 0
  %2845 = vmatpush1.bf16.msra.mxu0 0
  %2846 = vmatprep.subr.bf16.mxu0 0
  %2847 = vmatpush1.bf16.msra.mxu0 0
  %2848 = vmatprep.subr.bf16.mxu0 0
  %2849 = vmatpush1.bf16.msra.mxu0 0
  %2850 = vmatprep.mubr.bf16.mxu0 0
  %2851 = vmatmul.mubr.bf16.gmra.mrb[0].mxu0 %v2807
  %v2852 = vpop.f32.mrb[0].mxu0
  %v2853 = vadd.f32 0.0, %v2852
  %v2854 = vpop.f32.mrb[0].mxu0
  %v2855 = vpop.f32.mrb[0].mxu0
  %v2856 = vadd.f32 0.0, %v2855
  %v2857 = vpop.f32.mrb[0].mxu0
  %2858 = vmatprep.mubr.bf16.mxu0 0
  %2859 = vmatmul.mubr.bf16.gmra.mrb[0].mxu0 %v2810
  %v2860 = vpop.f32.mrb[0].mxu0
  %v2861 = vadd.f32 0.0, %v2860
  %v2862 = vpop.f32.mrb[0].mxu0
  %v2863 = vpop.f32.mrb[0].mxu0
  %v2864 = vadd.f32 0.0, %v2863
  %v2865 = vpop.f32.mrb[0].mxu0
  %2866 = vmatprep.mubr.bf16.mxu0 0
  %2867 = vmatmul.mubr.bf16.gmra.mrb[0].mxu0 %v2813
  %v2868 = vpop.f32.mrb[0].mxu0
  %v2869 = vadd.f32 0.0, %v2868
  %v2870 = vpop.f32.mrb[0].mxu0
  %v2871 = vpop.f32.mrb[0].mxu0
  %v2872 = vadd.f32 0.0, %v2871
  %v2873 = vpop.f32.mrb[0].mxu0
  %2874 = vmatprep.mubr.bf16.mxu0 0
  %2875 = vmatmul.mubr.bf16.gmra.mrb[0].mxu0 %v2816
  %v2876 = vpop.f32.mrb[0].mxu0
  %v2877 = vadd.f32 0.0, %v2876
  %v2878 = vpop.f32.mrb[0].mxu0
  %v2879 = vpop.f32.mrb[0].mxu0
  %v2880 = vadd.f32 0.0, %v2879
  %v2881 = vpop.f32.mrb[0].mxu0
  %2882 = vdwg.mxu0
  %v2883 = vadd.f32 %v2641, %v2853
  %v2884 = vadd.f32 %v2642, %v2856
  %v2885 = vadd.f32 %v2643, %v2861
  %v2886 = vadd.f32 %v2644, %v2864
  %v2887 = vadd.f32 %v2645, %v2869
  %v2888 = vadd.f32 %v2646, %v2872
  %v2889 = vadd.f32 %v2647, %v2877
  %v2890 = vadd.f32 %v2648, %v2880
  %v2891 = vld [vmem:[%s155] sm:$0xe]
  %v2892 = vld [vmem:[%s155 + $0x8] sm:$0xe]
  %v2893 = vld [vmem:[%s155 + $0x10] sm:$0xe]
  %v2894 = vld [vmem:[%s155 + $0x18] sm:$0xe]
  %v2895 = vld [vmem:[%s155 + $0x20] sm:$0xe]
  %v2896 = vld [vmem:[%s155 + $0x28] sm:$0xe]
  %v2897 = vld [vmem:[%s155 + $0x30] sm:$0xe]
  %v2898 = vld [vmem:[%s155 + $0x38] sm:$0xe]
  %v2915 = vrot.slane %v2891, 5
  %v2916 = vrot.slane %v2915, 4
  %v2917 = vrot.slane %v2650, 5
  %v2918 = vsel %vm587, %v2916, %v2917
  %v2919 = vrot.slane %v2892, 5
  %v2920 = vrot.slane %v2919, 4
  %v2921 = vrot.slane %v2652, 5
  %v2922 = vsel %vm587, %v2920, %v2921
  %v2923 = vrot.slane %v2893, 5
  %v2924 = vrot.slane %v2923, 4
  %v2925 = vrot.slane %v2654, 5
  %v2926 = vsel %vm587, %v2924, %v2925
  %v2927 = vrot.slane %v2894, 5
  %v2928 = vrot.slane %v2927, 4
  %v2929 = vrot.slane %v2656, 5
  %v2930 = vsel %vm587, %v2928, %v2929
  %v2931 = vrot.slane %v2895, 5
  %v2932 = vrot.slane %v2931, 4
  %v2933 = vrot.slane %v2658, 5
  %v2934 = vsel %vm587, %v2932, %v2933
  %v2935 = vrot.slane %v2896, 5
  %v2936 = vrot.slane %v2935, 4
  %v2937 = vrot.slane %v2660, 5
  %v2938 = vsel %vm587, %v2936, %v2937
  %v2939 = vrot.slane %v2897, 5
  %v2940 = vrot.slane %v2939, 4
  %v2941 = vrot.slane %v2662, 5
  %v2942 = vsel %vm587, %v2940, %v2941
  %v2943 = vrot.slane %v2898, 5
  %v2944 = vrot.slane %v2943, 4
  %v2945 = vrot.slane %v2664, 5
  %v2946 = vsel %vm587, %v2944, %v2945
  %s2947 = scalar_lea.vmem %s2, 224
  %v2948 = vld [vmem:[%s2947] sm:$0xf]
  %v2949 = vld [vmem:[%s2947 + $0x4] sm:$0xf]
  %v2950 = vld [vmem:[%s2947 + $0x8] sm:$0xf]
  %v2951 = vld [vmem:[%s2947 + $0xc] sm:$0xf]
  %v2952 = vunpack.c.l.b16 %v2918
  %v2953 = vunpack.c.l.b16 %v2922
  %v2954 = vunpack.c.l.b16 %v2926
  %v2955 = vunpack.c.l.b16 %v2930
  %v2956 = vunpack.c.l.b16 %v2934
  %v2957 = vunpack.c.l.b16 %v2938
  %v2958 = vunpack.c.l.b16 %v2942
  %v2959 = vunpack.c.l.b16 %v2946
  %v2960 = vpack.c.b16 %v2953, %v2952
  %v2961 = vpack.c.b16 %v2955, %v2954
  %v2962 = vpack.c.b16 %v2957, %v2956
  %v2963 = vpack.c.b16 %v2959, %v2958
  %v2968 = vunpack.c.l.b16 %v2948
  %v2969 = vunpack.c.l.b16 %v2949
  %v2970 = vunpack.c.l.b16 %v2950
  %v2971 = vunpack.c.l.b16 %v2951
  %v2972 = vpack.c.b16 %v2969, %v2968
  %v2973 = vpack.c.b16 %v2971, %v2970
  %v2977 = vsel %vm374, %v2960, 0
  %v2980 = vsel %vm374, %v2961, 0
  %v2983 = vsel %vm374, %v2962, 0
  %v2986 = vsel %vm374, %v2963, 0
  %2988 = vmatprep.subr.bf16.mxu0 0
  %2989 = vmatpush1.bf16.msra.mxu0 %v2972
  %2990 = vmatprep.subr.bf16.mxu0 0
  %2991 = vmatpush1.bf16.msra.mxu0 %v2973
  %2992 = vmatprep.subr.bf16.mxu0 0
  %2993 = vmatpush1.bf16.msra.mxu0 0
  %2994 = vmatprep.subr.bf16.mxu0 0
  %2995 = vmatpush1.bf16.msra.mxu0 0
  %2996 = vmatprep.subr.bf16.mxu0 0
  %2997 = vmatpush1.bf16.msra.mxu0 0
  %2998 = vmatprep.subr.bf16.mxu0 0
  %2999 = vmatpush1.bf16.msra.mxu0 0
  %3000 = vmatprep.subr.bf16.mxu0 0
  %3001 = vmatpush1.bf16.msra.mxu0 0
  %3002 = vmatprep.subr.bf16.mxu0 0
  %3003 = vmatpush1.bf16.msra.mxu0 0
  %3004 = vmatprep.subr.bf16.mxu0 0
  %3005 = vmatpush1.bf16.msra.mxu0 0
  %3006 = vmatprep.subr.bf16.mxu0 0
  %3007 = vmatpush1.bf16.msra.mxu0 0
  %3008 = vmatprep.subr.bf16.mxu0 0
  %3009 = vmatpush1.bf16.msra.mxu0 0
  %3010 = vmatprep.subr.bf16.mxu0 0
  %3011 = vmatpush1.bf16.msra.mxu0 0
  %3012 = vmatprep.subr.bf16.mxu0 0
  %3013 = vmatpush1.bf16.msra.mxu0 0
  %3014 = vmatprep.subr.bf16.mxu0 0
  %3015 = vmatpush1.bf16.msra.mxu0 0
  %3016 = vmatprep.subr.bf16.mxu0 0
  %3017 = vmatpush1.bf16.msra.mxu0 0
  %3018 = vmatprep.subr.bf16.mxu0 0
  %3019 = vmatpush1.bf16.msra.mxu0 0
  %3020 = vmatprep.mubr.bf16.mxu0 0
  %3021 = vmatmul.mubr.bf16.gmra.mrb[0].mxu0 %v2977
  %v3022 = vpop.f32.mrb[0].mxu0
  %v3023 = vadd.f32 0.0, %v3022
  %v3024 = vpop.f32.mrb[0].mxu0
  %v3025 = vpop.f32.mrb[0].mxu0
  %v3026 = vadd.f32 0.0, %v3025
  %v3027 = vpop.f32.mrb[0].mxu0
  %3028 = vmatprep.mubr.bf16.mxu0 0
  %3029 = vmatmul.mubr.bf16.gmra.mrb[0].mxu0 %v2980
  %v3030 = vpop.f32.mrb[0].mxu0
  %v3031 = vadd.f32 0.0, %v3030
  %v3032 = vpop.f32.mrb[0].mxu0
  %v3033 = vpop.f32.mrb[0].mxu0
  %v3034 = vadd.f32 0.0, %v3033
  %v3035 = vpop.f32.mrb[0].mxu0
  %3036 = vmatprep.mubr.bf16.mxu0 0
  %3037 = vmatmul.mubr.bf16.gmra.mrb[0].mxu0 %v2983
  %v3038 = vpop.f32.mrb[0].mxu0
  %v3039 = vadd.f32 0.0, %v3038
  %v3040 = vpop.f32.mrb[0].mxu0
  %v3041 = vpop.f32.mrb[0].mxu0
  %v3042 = vadd.f32 0.0, %v3041
  %v3043 = vpop.f32.mrb[0].mxu0
  %3044 = vmatprep.mubr.bf16.mxu0 0
  %3045 = vmatmul.mubr.bf16.gmra.mrb[0].mxu0 %v2986
  %v3046 = vpop.f32.mrb[0].mxu0
  %v3047 = vadd.f32 0.0, %v3046
  %v3048 = vpop.f32.mrb[0].mxu0
  %v3049 = vpop.f32.mrb[0].mxu0
  %v3050 = vadd.f32 0.0, %v3049
  %v3051 = vpop.f32.mrb[0].mxu0
  %3052 = vdwg.mxu0
  %v3053 = vadd.f32 %v2883, %v3023
  %v3054 = vadd.f32 %v2884, %v3026
  %v3055 = vadd.f32 %v2885, %v3031
  %v3056 = vadd.f32 %v2886, %v3034
  %v3057 = vadd.f32 %v2887, %v3039
  %v3058 = vadd.f32 %v2888, %v3042
  %v3059 = vadd.f32 %v2889, %v3047
  %v3060 = vadd.f32 %v2890, %v3050
  %v3061 = vld [vmem:[%s1276] sm:$0xf]
  %v3062 = vld [vmem:[%s1276 + $0x8] sm:$0xf]
  %v3063 = vld [vmem:[%s1276 + $0x10] sm:$0xf]
  %v3064 = vld [vmem:[%s1276 + $0x18] sm:$0xf]
  %v3065 = vld [vmem:[%s1276 + $0x20] sm:$0xf]
  %v3066 = vld [vmem:[%s1276 + $0x28] sm:$0xf]
  %v3067 = vld [vmem:[%s1276 + $0x30] sm:$0xf]
  %v3068 = vld [vmem:[%s1276 + $0x38] sm:$0xf]
  %s3069 = scalar_lea.vmem %s2, 240
  %v3070 = vld [vmem:[%s3069] sm:$0xf]
  %v3071 = vld [vmem:[%s3069 + $0x4] sm:$0xf]
  %v3072 = vld [vmem:[%s3069 + $0x8] sm:$0xf]
  %v3073 = vld [vmem:[%s3069 + $0xc] sm:$0xf]
  %v3082 = vunpack.c.l.b16 %v3061
  %v3083 = vunpack.c.l.b16 %v3062
  %v3084 = vunpack.c.l.b16 %v3063
  %v3085 = vunpack.c.l.b16 %v3064
  %v3086 = vunpack.c.l.b16 %v3065
  %v3087 = vunpack.c.l.b16 %v3066
  %v3088 = vunpack.c.l.b16 %v3067
  %v3089 = vunpack.c.l.b16 %v3068
  %v3090 = vpack.c.b16 %v3083, %v3082
  %v3091 = vpack.c.b16 %v3085, %v3084
  %v3092 = vpack.c.b16 %v3087, %v3086
  %v3093 = vpack.c.b16 %v3089, %v3088
  %v3098 = vunpack.c.l.b16 %v3070
  %v3099 = vunpack.c.l.b16 %v3071
  %v3100 = vunpack.c.l.b16 %v3072
  %v3101 = vunpack.c.l.b16 %v3073
  %v3102 = vpack.c.b16 %v3099, %v3098
  %v3103 = vpack.c.b16 %v3101, %v3100
  %v3107 = vsel %vm374, %v3090, 0
  %v3110 = vsel %vm374, %v3091, 0
  %v3113 = vsel %vm374, %v3092, 0
  %v3116 = vsel %vm374, %v3093, 0
  %3118 = vmatprep.subr.bf16.mxu0 0
  %3119 = vmatpush1.bf16.msra.mxu0 %v3102
  %3120 = vmatprep.subr.bf16.mxu0 0
  %3121 = vmatpush1.bf16.msra.mxu0 %v3103
  %3122 = vmatprep.subr.bf16.mxu0 0
  %3123 = vmatpush1.bf16.msra.mxu0 0
  %3124 = vmatprep.subr.bf16.mxu0 0
  %3125 = vmatpush1.bf16.msra.mxu0 0
  %3126 = vmatprep.subr.bf16.mxu0 0
  %3127 = vmatpush1.bf16.msra.mxu0 0
  %3128 = vmatprep.subr.bf16.mxu0 0
  %3129 = vmatpush1.bf16.msra.mxu0 0
  %3130 = vmatprep.subr.bf16.mxu0 0
  %3131 = vmatpush1.bf16.msra.mxu0 0
  %3132 = vmatprep.subr.bf16.mxu0 0
  %3133 = vmatpush1.bf16.msra.mxu0 0
  %3134 = vmatprep.subr.bf16.mxu0 0
  %3135 = vmatpush1.bf16.msra.mxu0 0
  %3136 = vmatprep.subr.bf16.mxu0 0
  %3137 = vmatpush1.bf16.msra.mxu0 0
  %3138 = vmatprep.subr.bf16.mxu0 0
  %3139 = vmatpush1.bf16.msra.mxu0 0
  %3140 = vmatprep.subr.bf16.mxu0 0
  %3141 = vmatpush1.bf16.msra.mxu0 0
  %3142 = vmatprep.subr.bf16.mxu0 0
  %3143 = vmatpush1.bf16.msra.mxu0 0
  %3144 = vmatprep.subr.bf16.mxu0 0
  %3145 = vmatpush1.bf16.msra.mxu0 0
  %3146 = vmatprep.subr.bf16.mxu0 0
  %3147 = vmatpush1.bf16.msra.mxu0 0
  %3148 = vmatprep.subr.bf16.mxu0 0
  %3149 = vmatpush1.bf16.msra.mxu0 0
  %3150 = vmatprep.mubr.bf16.mxu0 0
  %3151 = vmatmul.mubr.bf16.gmra.mrb[0].mxu0 %v3107
  %v3152 = vpop.f32.mrb[0].mxu0
  %v3153 = vadd.f32 0.0, %v3152
  %v3154 = vpop.f32.mrb[0].mxu0
  %v3155 = vpop.f32.mrb[0].mxu0
  %v3156 = vadd.f32 0.0, %v3155
  %v3157 = vpop.f32.mrb[0].mxu0
  %3158 = vmatprep.mubr.bf16.mxu0 0
  %3159 = vmatmul.mubr.bf16.gmra.mrb[0].mxu0 %v3110
  %v3160 = vpop.f32.mrb[0].mxu0
  %v3161 = vadd.f32 0.0, %v3160
  %v3162 = vpop.f32.mrb[0].mxu0
  %v3163 = vpop.f32.mrb[0].mxu0
  %v3164 = vadd.f32 0.0, %v3163
  %v3165 = vpop.f32.mrb[0].mxu0
  %3166 = vmatprep.mubr.bf16.mxu0 0
  %3167 = vmatmul.mubr.bf16.gmra.mrb[0].mxu0 %v3113
  %v3168 = vpop.f32.mrb[0].mxu0
  %v3169 = vadd.f32 0.0, %v3168
  %v3170 = vpop.f32.mrb[0].mxu0
  %v3171 = vpop.f32.mrb[0].mxu0
  %v3172 = vadd.f32 0.0, %v3171
  %v3173 = vpop.f32.mrb[0].mxu0
  %3174 = vmatprep.mubr.bf16.mxu0 0
  %3175 = vmatmul.mubr.bf16.gmra.mrb[0].mxu0 %v3116
  %v3176 = vpop.f32.mrb[0].mxu0
  %v3177 = vadd.f32 0.0, %v3176
  %v3178 = vpop.f32.mrb[0].mxu0
  %v3179 = vpop.f32.mrb[0].mxu0
  %v3180 = vadd.f32 0.0, %v3179
  %v3181 = vpop.f32.mrb[0].mxu0
  %3182 = vdwg.mxu0
  %v3183 = vadd.f32 %v3053, %v3153
  %v3184 = vadd.f32 %v3054, %v3156
  %v3185 = vadd.f32 %v3055, %v3161
  %v3186 = vadd.f32 %v3056, %v3164
  %v3187 = vadd.f32 %v3057, %v3169
  %v3188 = vadd.f32 %v3058, %v3172
  %v3189 = vadd.f32 %v3059, %v3177
  %v3190 = vadd.f32 %v3060, %v3180
  %v3191 = vld [vmem:[%s1276] sm:$0xf]
  %v3192 = vld [vmem:[%s1276 + $0x4] sm:$0x1]
  %v3193 = vld [vmem:[%s1276 + $0x8] sm:$0xf]
  %v3194 = vld [vmem:[%s1276 + $0xc] sm:$0x1]
  %v3195 = vld [vmem:[%s1276 + $0x10] sm:$0xf]
  %v3196 = vld [vmem:[%s1276 + $0x14] sm:$0x1]
  %v3197 = vld [vmem:[%s1276 + $0x18] sm:$0xf]
  %v3198 = vld [vmem:[%s1276 + $0x1c] sm:$0x1]
  %v3199 = vld [vmem:[%s1276 + $0x20] sm:$0xf]
  %v3200 = vld [vmem:[%s1276 + $0x24] sm:$0x1]
  %v3201 = vld [vmem:[%s1276 + $0x28] sm:$0xf]
  %v3202 = vld [vmem:[%s1276 + $0x2c] sm:$0x1]
  %v3203 = vld [vmem:[%s1276 + $0x30] sm:$0xf]
  %v3204 = vld [vmem:[%s1276 + $0x34] sm:$0x1]
  %v3205 = vld [vmem:[%s1276 + $0x38] sm:$0xf]
  %v3206 = vld [vmem:[%s1276 + $0x3c] sm:$0x1]
  %v3208 = vshrl.u32 %v3191, 16
  %v3210 = vrot.slane %v3208, 4
  %v3211 = vshll.u32 %v3191, 16
  %v3213 = vrot.slane %v3211, 5
  %v3214 = vor.u32 %v3210, %v3213
  %v3215 = vrot.slane %v3214, 4
  %v3217 = vshll.u32 %v3192, 16
  %v3219 = vrot.slane %v3217, 5
  %v3220 = vsel %vm232, %v3215, %v3219
  %v3222 = vshrl.u32 %v3193, 16
  %v3224 = vrot.slane %v3222, 4
  %v3225 = vshll.u32 %v3193, 16
  %v3227 = vrot.slane %v3225, 5
  %v3228 = vor.u32 %v3224, %v3227
  %v3229 = vrot.slane %v3228, 4
  %v3231 = vshll.u32 %v3194, 16
  %v3233 = vrot.slane %v3231, 5
  %v3234 = vsel %vm232, %v3229, %v3233
  %v3236 = vshrl.u32 %v3195, 16
  %v3238 = vrot.slane %v3236, 4
  %v3239 = vshll.u32 %v3195, 16
  %v3241 = vrot.slane %v3239, 5
  %v3242 = vor.u32 %v3238, %v3241
  %v3243 = vrot.slane %v3242, 4
  %v3245 = vshll.u32 %v3196, 16
  %v3247 = vrot.slane %v3245, 5
  %v3248 = vsel %vm232, %v3243, %v3247
  %v3250 = vshrl.u32 %v3197, 16
  %v3252 = vrot.slane %v3250, 4
  %v3253 = vshll.u32 %v3197, 16
  %v3255 = vrot.slane %v3253, 5
  %v3256 = vor.u32 %v3252, %v3255
  %v3257 = vrot.slane %v3256, 4
  %v3259 = vshll.u32 %v3198, 16
  %v3261 = vrot.slane %v3259, 5
  %v3262 = vsel %vm232, %v3257, %v3261
  %v3264 = vshrl.u32 %v3199, 16
  %v3266 = vrot.slane %v3264, 4
  %v3267 = vshll.u32 %v3199, 16
  %v3269 = vrot.slane %v3267, 5
  %v3270 = vor.u32 %v3266, %v3269
  %v3271 = vrot.slane %v3270, 4
  %v3273 = vshll.u32 %v3200, 16
  %v3275 = vrot.slane %v3273, 5
  %v3276 = vsel %vm232, %v3271, %v3275
  %v3278 = vshrl.u32 %v3201, 16
  %v3280 = vrot.slane %v3278, 4
  %v3281 = vshll.u32 %v3201, 16
  %v3283 = vrot.slane %v3281, 5
  %v3284 = vor.u32 %v3280, %v3283
  %v3285 = vrot.slane %v3284, 4
  %v3287 = vshll.u32 %v3202, 16
  %v3289 = vrot.slane %v3287, 5
  %v3290 = vsel %vm232, %v3285, %v3289
  %v3292 = vshrl.u32 %v3203, 16
  %v3294 = vrot.slane %v3292, 4
  %v3295 = vshll.u32 %v3203, 16
  %v3297 = vrot.slane %v3295, 5
  %v3298 = vor.u32 %v3294, %v3297
  %v3299 = vrot.slane %v3298, 4
  %v3301 = vshll.u32 %v3204, 16
  %v3303 = vrot.slane %v3301, 5
  %v3304 = vsel %vm232, %v3299, %v3303
  %v3306 = vshrl.u32 %v3205, 16
  %v3308 = vrot.slane %v3306, 4
  %v3309 = vshll.u32 %v3205, 16
  %v3311 = vrot.slane %v3309, 5
  %v3312 = vor.u32 %v3308, %v3311
  %v3313 = vrot.slane %v3312, 4
  %v3315 = vshll.u32 %v3206, 16
  %v3317 = vrot.slane %v3315, 5
  %v3318 = vsel %vm232, %v3313, %v3317
  %s3319 = scalar_lea.vmem %s2, 256
  %v3320 = vld [vmem:[%s3319] sm:$0xf]
  %v3321 = vld [vmem:[%s3319 + $0x4] sm:$0xf]
  %v3322 = vld [vmem:[%s3319 + $0x8] sm:$0xf]
  %v3323 = vld [vmem:[%s3319 + $0xc] sm:$0xf]
  %v3324 = vunpack.c.l.b16 %v3220
  %v3325 = vunpack.c.l.b16 %v3234
  %v3326 = vunpack.c.l.b16 %v3248
  %v3327 = vunpack.c.l.b16 %v3262
  %v3328 = vunpack.c.l.b16 %v3276
  %v3329 = vunpack.c.l.b16 %v3290
  %v3330 = vunpack.c.l.b16 %v3304
  %v3331 = vunpack.c.l.b16 %v3318
  %v3332 = vpack.c.b16 %v3325, %v3324
  %v3333 = vpack.c.b16 %v3327, %v3326
  %v3334 = vpack.c.b16 %v3329, %v3328
  %v3335 = vpack.c.b16 %v3331, %v3330
  %v3340 = vunpack.c.l.b16 %v3320
  %v3341 = vunpack.c.l.b16 %v3321
  %v3342 = vunpack.c.l.b16 %v3322
  %v3343 = vunpack.c.l.b16 %v3323
  %v3344 = vpack.c.b16 %v3341, %v3340
  %v3345 = vpack.c.b16 %v3343, %v3342
  %v3349 = vsel %vm374, %v3332, 0
  %v3352 = vsel %vm374, %v3333, 0
  %v3355 = vsel %vm374, %v3334, 0
  %v3358 = vsel %vm374, %v3335, 0
  %3360 = vmatprep.subr.bf16.mxu0 0
  %3361 = vmatpush1.bf16.msra.mxu0 %v3344
  %3362 = vmatprep.subr.bf16.mxu0 0
  %3363 = vmatpush1.bf16.msra.mxu0 %v3345
  %3364 = vmatprep.subr.bf16.mxu0 0
  %3365 = vmatpush1.bf16.msra.mxu0 0
  %3366 = vmatprep.subr.bf16.mxu0 0
  %3367 = vmatpush1.bf16.msra.mxu0 0
  %3368 = vmatprep.subr.bf16.mxu0 0
  %3369 = vmatpush1.bf16.msra.mxu0 0
  %3370 = vmatprep.subr.bf16.mxu0 0
  %3371 = vmatpush1.bf16.msra.mxu0 0
  %3372 = vmatprep.subr.bf16.mxu0 0
  %3373 = vmatpush1.bf16.msra.mxu0 0
  %3374 = vmatprep.subr.bf16.mxu0 0
  %3375 = vmatpush1.bf16.msra.mxu0 0
  %3376 = vmatprep.subr.bf16.mxu0 0
  %3377 = vmatpush1.bf16.msra.mxu0 0
  %3378 = vmatprep.subr.bf16.mxu0 0
  %3379 = vmatpush1.bf16.msra.mxu0 0
  %3380 = vmatprep.subr.bf16.mxu0 0
  %3381 = vmatpush1.bf16.msra.mxu0 0
  %3382 = vmatprep.subr.bf16.mxu0 0
  %3383 = vmatpush1.bf16.msra.mxu0 0
  %3384 = vmatprep.subr.bf16.mxu0 0
  %3385 = vmatpush1.bf16.msra.mxu0 0
  %3386 = vmatprep.subr.bf16.mxu0 0
  %3387 = vmatpush1.bf16.msra.mxu0 0
  %3388 = vmatprep.subr.bf16.mxu0 0
  %3389 = vmatpush1.bf16.msra.mxu0 0
  %3390 = vmatprep.subr.bf16.mxu0 0
  %3391 = vmatpush1.bf16.msra.mxu0 0
  %3392 = vmatprep.mubr.bf16.mxu0 0
  %3393 = vmatmul.mubr.bf16.gmra.mrb[0].mxu0 %v3349
  %v3394 = vpop.f32.mrb[0].mxu0
  %v3395 = vadd.f32 0.0, %v3394
  %v3396 = vpop.f32.mrb[0].mxu0
  %v3397 = vpop.f32.mrb[0].mxu0
  %v3398 = vadd.f32 0.0, %v3397
  %v3399 = vpop.f32.mrb[0].mxu0
  %3400 = vmatprep.mubr.bf16.mxu0 0
  %3401 = vmatmul.mubr.bf16.gmra.mrb[0].mxu0 %v3352
  %v3402 = vpop.f32.mrb[0].mxu0
  %v3403 = vadd.f32 0.0, %v3402
  %v3404 = vpop.f32.mrb[0].mxu0
  %v3405 = vpop.f32.mrb[0].mxu0
  %v3406 = vadd.f32 0.0, %v3405
  %v3407 = vpop.f32.mrb[0].mxu0
  %3408 = vmatprep.mubr.bf16.mxu0 0
  %3409 = vmatmul.mubr.bf16.gmra.mrb[0].mxu0 %v3355
  %v3410 = vpop.f32.mrb[0].mxu0
  %v3411 = vadd.f32 0.0, %v3410
  %v3412 = vpop.f32.mrb[0].mxu0
  %v3413 = vpop.f32.mrb[0].mxu0
  %v3414 = vadd.f32 0.0, %v3413
  %v3415 = vpop.f32.mrb[0].mxu0
  %3416 = vmatprep.mubr.bf16.mxu0 0
  %3417 = vmatmul.mubr.bf16.gmra.mrb[0].mxu0 %v3358
  %v3418 = vpop.f32.mrb[0].mxu0
  %v3419 = vadd.f32 0.0, %v3418
  %v3420 = vpop.f32.mrb[0].mxu0
  %v3421 = vpop.f32.mrb[0].mxu0
  %v3422 = vadd.f32 0.0, %v3421
  %v3423 = vpop.f32.mrb[0].mxu0
  %3424 = vdwg.mxu0
  %v3425 = vadd.f32 %v3183, %v3395
  %v3426 = vadd.f32 %v3184, %v3398
  %v3427 = vadd.f32 %v3185, %v3403
  %v3428 = vadd.f32 %v3186, %v3406
  %v3429 = vadd.f32 %v3187, %v3411
  %v3430 = vadd.f32 %v3188, %v3414
  %v3431 = vadd.f32 %v3189, %v3419
  %v3432 = vadd.f32 %v3190, %v3422
  %v3433 = vld [vmem:[%s1276] sm:$0xe]
  %v3434 = vld [vmem:[%s1276 + $0x8] sm:$0xe]
  %v3435 = vld [vmem:[%s1276 + $0x10] sm:$0xe]
  %v3436 = vld [vmem:[%s1276 + $0x18] sm:$0xe]
  %v3437 = vld [vmem:[%s1276 + $0x20] sm:$0xe]
  %v3438 = vld [vmem:[%s1276 + $0x28] sm:$0xe]
  %v3439 = vld [vmem:[%s1276 + $0x30] sm:$0xe]
  %v3440 = vld [vmem:[%s1276 + $0x38] sm:$0xe]
  %v3457 = vrot.slane %v3433, 5
  %v3458 = vrot.slane %v3457, 4
  %v3459 = vrot.slane %v3192, 5
  %v3460 = vsel %vm587, %v3458, %v3459
  %v3461 = vrot.slane %v3434, 5
  %v3462 = vrot.slane %v3461, 4
  %v3463 = vrot.slane %v3194, 5
  %v3464 = vsel %vm587, %v3462, %v3463
  %v3465 = vrot.slane %v3435, 5
  %v3466 = vrot.slane %v3465, 4
  %v3467 = vrot.slane %v3196, 5
  %v3468 = vsel %vm587, %v3466, %v3467
  %v3469 = vrot.slane %v3436, 5
  %v3470 = vrot.slane %v3469, 4
  %v3471 = vrot.slane %v3198, 5
  %v3472 = vsel %vm587, %v3470, %v3471
  %v3473 = vrot.slane %v3437, 5
  %v3474 = vrot.slane %v3473, 4
  %v3475 = vrot.slane %v3200, 5
  %v3476 = vsel %vm587, %v3474, %v3475
  %v3477 = vrot.slane %v3438, 5
  %v3478 = vrot.slane %v3477, 4
  %v3479 = vrot.slane %v3202, 5
  %v3480 = vsel %vm587, %v3478, %v3479
  %v3481 = vrot.slane %v3439, 5
  %v3482 = vrot.slane %v3481, 4
  %v3483 = vrot.slane %v3204, 5
  %v3484 = vsel %vm587, %v3482, %v3483
  %v3485 = vrot.slane %v3440, 5
  %v3486 = vrot.slane %v3485, 4
  %v3487 = vrot.slane %v3206, 5
  %v3488 = vsel %vm587, %v3486, %v3487
  %s3489 = scalar_lea.vmem %s2, 272
  %v3490 = vld [vmem:[%s3489] sm:$0xf]
  %v3491 = vld [vmem:[%s3489 + $0x4] sm:$0xf]
  %v3492 = vld [vmem:[%s3489 + $0x8] sm:$0xf]
  %v3493 = vld [vmem:[%s3489 + $0xc] sm:$0xf]
  %v3494 = vunpack.c.l.b16 %v3460
  %v3495 = vunpack.c.l.b16 %v3464
  %v3496 = vunpack.c.l.b16 %v3468
  %v3497 = vunpack.c.l.b16 %v3472
  %v3498 = vunpack.c.l.b16 %v3476
  %v3499 = vunpack.c.l.b16 %v3480
  %v3500 = vunpack.c.l.b16 %v3484
  %v3501 = vunpack.c.l.b16 %v3488
  %v3502 = vpack.c.b16 %v3495, %v3494
  %v3503 = vpack.c.b16 %v3497, %v3496
  %v3504 = vpack.c.b16 %v3499, %v3498
  %v3505 = vpack.c.b16 %v3501, %v3500
  %v3510 = vunpack.c.l.b16 %v3490
  %v3511 = vunpack.c.l.b16 %v3491
  %v3512 = vunpack.c.l.b16 %v3492
  %v3513 = vunpack.c.l.b16 %v3493
  %v3514 = vpack.c.b16 %v3511, %v3510
  %v3515 = vpack.c.b16 %v3513, %v3512
  %v3519 = vsel %vm374, %v3502, 0
  %v3522 = vsel %vm374, %v3503, 0
  %v3525 = vsel %vm374, %v3504, 0
  %v3528 = vsel %vm374, %v3505, 0
  %3530 = vmatprep.subr.bf16.mxu0 0
  %3531 = vmatpush1.bf16.msra.mxu0 %v3514
  %3532 = vmatprep.subr.bf16.mxu0 0
  %3533 = vmatpush1.bf16.msra.mxu0 %v3515
  %3534 = vmatprep.subr.bf16.mxu0 0
  %3535 = vmatpush1.bf16.msra.mxu0 0
  %3536 = vmatprep.subr.bf16.mxu0 0
  %3537 = vmatpush1.bf16.msra.mxu0 0
  %3538 = vmatprep.subr.bf16.mxu0 0
  %3539 = vmatpush1.bf16.msra.mxu0 0
  %3540 = vmatprep.subr.bf16.mxu0 0
  %3541 = vmatpush1.bf16.msra.mxu0 0
  %3542 = vmatprep.subr.bf16.mxu0 0
  %3543 = vmatpush1.bf16.msra.mxu0 0
  %3544 = vmatprep.subr.bf16.mxu0 0
  %3545 = vmatpush1.bf16.msra.mxu0 0
  %3546 = vmatprep.subr.bf16.mxu0 0
  %3547 = vmatpush1.bf16.msra.mxu0 0
  %3548 = vmatprep.subr.bf16.mxu0 0
  %3549 = vmatpush1.bf16.msra.mxu0 0
  %3550 = vmatprep.subr.bf16.mxu0 0
  %3551 = vmatpush1.bf16.msra.mxu0 0
  %3552 = vmatprep.subr.bf16.mxu0 0
  %3553 = vmatpush1.bf16.msra.mxu0 0
  %3554 = vmatprep.subr.bf16.mxu0 0
  %3555 = vmatpush1.bf16.msra.mxu0 0
  %3556 = vmatprep.subr.bf16.mxu0 0
  %3557 = vmatpush1.bf16.msra.mxu0 0
  %3558 = vmatprep.subr.bf16.mxu0 0
  %3559 = vmatpush1.bf16.msra.mxu0 0
  %3560 = vmatprep.subr.bf16.mxu0 0
  %3561 = vmatpush1.bf16.msra.mxu0 0
  %3562 = vmatprep.mubr.bf16.mxu0 0
  %3563 = vmatmul.mubr.bf16.gmra.mrb[0].mxu0 %v3519
  %v3564 = vpop.f32.mrb[0].mxu0
  %v3565 = vadd.f32 0.0, %v3564
  %v3566 = vpop.f32.mrb[0].mxu0
  %v3567 = vpop.f32.mrb[0].mxu0
  %v3568 = vadd.f32 0.0, %v3567
  %v3569 = vpop.f32.mrb[0].mxu0
  %3570 = vmatprep.mubr.bf16.mxu0 0
  %3571 = vmatmul.mubr.bf16.gmra.mrb[0].mxu0 %v3522
  %v3572 = vpop.f32.mrb[0].mxu0
  %v3573 = vadd.f32 0.0, %v3572
  %v3574 = vpop.f32.mrb[0].mxu0
  %v3575 = vpop.f32.mrb[0].mxu0
  %v3576 = vadd.f32 0.0, %v3575
  %v3577 = vpop.f32.mrb[0].mxu0
  %3578 = vmatprep.mubr.bf16.mxu0 0
  %3579 = vmatmul.mubr.bf16.gmra.mrb[0].mxu0 %v3525
  %v3580 = vpop.f32.mrb[0].mxu0
  %v3581 = vadd.f32 0.0, %v3580
  %v3582 = vpop.f32.mrb[0].mxu0
  %v3583 = vpop.f32.mrb[0].mxu0
  %v3584 = vadd.f32 0.0, %v3583
  %v3585 = vpop.f32.mrb[0].mxu0
  %3586 = vmatprep.mubr.bf16.mxu0 0
  %3587 = vmatmul.mubr.bf16.gmra.mrb[0].mxu0 %v3528
  %v3588 = vpop.f32.mrb[0].mxu0
  %v3589 = vadd.f32 0.0, %v3588
  %v3590 = vpop.f32.mrb[0].mxu0
  %v3591 = vpop.f32.mrb[0].mxu0
  %v3592 = vadd.f32 0.0, %v3591
  %v3593 = vpop.f32.mrb[0].mxu0
  %3594 = vdwg.mxu0
  %v3595 = vadd.f32 %v3425, %v3565
  %v3596 = vadd.f32 %v3426, %v3568
  %v3597 = vadd.f32 %v3427, %v3573
  %v3598 = vadd.f32 %v3428, %v3576
  %v3599 = vadd.f32 %v3429, %v3581
  %v3600 = vadd.f32 %v3430, %v3584
  %v3601 = vadd.f32 %v3431, %v3589
  %v3602 = vadd.f32 %v3432, %v3592
  %s3603 = scalar_lea.vmem %s3, 1
  %v3604 = vld [vmem:[%s3603] sm:$0x1]
  %v3606 = vlaneseq
  %v3607 = vshrl.u32 %v3606, 7
  %v3608 = vsub.s32 0, %v3607
  %v3609 = vrot.slane %v3604, %v3608
  %v3611 = vadd.f32 %v3595, %v3609
  %v3612 = vadd.f32 %v3596, %v3609
  %v3613 = vadd.f32 %v3597, %v3609
  %v3614 = vadd.f32 %v3598, %v3609
  %v3615 = vadd.f32 %v3599, %v3609
  %v3616 = vadd.f32 %v3600, %v3609
  %v3617 = vadd.f32 %v3601, %v3609
  %v3618 = vadd.f32 %v3602, %v3609
  %v3619 = vmax.f32 %v3611, 0.0
  %v3620 = vmax.f32 %v3612, 0.0
  %v3621 = vmax.f32 %v3613, 0.0
  %v3622 = vmax.f32 %v3614, 0.0
  %v3623 = vmax.f32 %v3615, 0.0
  %v3624 = vmax.f32 %v3616, 0.0
  %v3625 = vmax.f32 %v3617, 0.0
  %v3626 = vmax.f32 %v3618, 0.0
  %v3627 = vpack.c.bf16 %v3619, %v3619
  %v3628 = vpack.c.bf16 %v3620, %v3620
  %v3629 = vpack.c.bf16 %v3621, %v3621
  %v3630 = vpack.c.bf16 %v3622, %v3622
  %v3631 = vpack.c.bf16 %v3623, %v3623
  %v3632 = vpack.c.bf16 %v3624, %v3624
  %v3633 = vpack.c.bf16 %v3625, %v3625
  %v3634 = vpack.c.bf16 %v3626, %v3626
  %v3643 = vunpack.c.l.b16 %v3627
  %v3644 = vunpack.c.l.b16 %v3628
  %v3645 = vunpack.c.l.b16 %v3629
  %v3646 = vunpack.c.l.b16 %v3630
  %v3647 = vunpack.c.l.b16 %v3631
  %v3648 = vunpack.c.l.b16 %v3632
  %v3649 = vunpack.c.l.b16 %v3633
  %v3650 = vunpack.c.l.b16 %v3634
  %v3651 = vpack.c.b16 %v3643, %v3643
  %v3652 = vpack.c.b16 %v3644, %v3644
  %v3653 = vpack.c.b16 %v3645, %v3645
  %v3654 = vpack.c.b16 %v3646, %v3646
  %v3655 = vpack.c.b16 %v3647, %v3647
  %v3656 = vpack.c.b16 %v3648, %v3648
  %v3657 = vpack.c.b16 %v3649, %v3649
  %v3658 = vpack.c.b16 %v3650, %v3650
  %v3660 = vshrl.u32 %v3651, 16
  %v3662 = vrot.slane %v3660, 7
  %v3663 = vshll.u32 %v3651, 16
  %v3665 = vor.u32 %v3662, %v3663
  %v3666 = vrot.slane %v3662, 4
  %v3668 = vshrl.u32 %v3652, 16
  %v3670 = vrot.slane %v3668, 7
  %v3671 = vshll.u32 %v3652, 16
  %v3673 = vor.u32 %v3670, %v3671
  %v3674 = vrot.slane %v3670, 4
  %v3676 = vshrl.u32 %v3653, 16
  %v3678 = vrot.slane %v3676, 7
  %v3679 = vshll.u32 %v3653, 16
  %v3681 = vor.u32 %v3678, %v3679
  %v3682 = vrot.slane %v3678, 4
  %v3684 = vshrl.u32 %v3654, 16
  %v3686 = vrot.slane %v3684, 7
  %v3687 = vshll.u32 %v3654, 16
  %v3689 = vor.u32 %v3686, %v3687
  %v3690 = vrot.slane %v3686, 4
  %v3692 = vshrl.u32 %v3655, 16
  %v3694 = vrot.slane %v3692, 7
  %v3695 = vshll.u32 %v3655, 16
  %v3697 = vor.u32 %v3694, %v3695
  %v3698 = vrot.slane %v3694, 4
  %v3700 = vshrl.u32 %v3656, 16
  %v3702 = vrot.slane %v3700, 7
  %v3703 = vshll.u32 %v3656, 16
  %v3705 = vor.u32 %v3702, %v3703
  %v3706 = vrot.slane %v3702, 4
  %v3708 = vshrl.u32 %v3657, 16
  %v3710 = vrot.slane %v3708, 7
  %v3711 = vshll.u32 %v3657, 16
  %v3713 = vor.u32 %v3710, %v3711
  %v3714 = vrot.slane %v3710, 4
  %v3716 = vshrl.u32 %v3658, 16
  %v3718 = vrot.slane %v3716, 7
  %v3719 = vshll.u32 %v3658, 16
  %v3721 = vor.u32 %v3718, %v3719
  %v3722 = vrot.slane %v3718, 4
  %v3739 = vsel %vm158, %v3665, %v2649
  %3740 = vst [vmem:[%s155] sm:$0xf] %v3739
  %v3741 = vld [vmem:[%s155 + $0x4] sm:$0x1]
  %v3742 = vsel %vm164, %v3666, %v3741
  %3743 = vst [vmem:[%s155 + $0x4] sm:$0x1] %v3742
  %v3744 = vld [vmem:[%s155 + $0x8] sm:$0xf]
  %v3745 = vsel %vm158, %v3673, %v3744
  %3746 = vst [vmem:[%s155 + $0x8] sm:$0xf] %v3745
  %v3747 = vld [vmem:[%s155 + $0xc] sm:$0x1]
  %v3748 = vsel %vm164, %v3674, %v3747
  %3749 = vst [vmem:[%s155 + $0xc] sm:$0x1] %v3748
  %v3750 = vld [vmem:[%s155 + $0x10] sm:$0xf]
  %v3751 = vsel %vm158, %v3681, %v3750
  %3752 = vst [vmem:[%s155 + $0x10] sm:$0xf] %v3751
  %v3753 = vld [vmem:[%s155 + $0x14] sm:$0x1]
  %v3754 = vsel %vm164, %v3682, %v3753
  %3755 = vst [vmem:[%s155 + $0x14] sm:$0x1] %v3754
  %v3756 = vld [vmem:[%s155 + $0x18] sm:$0xf]
  %v3757 = vsel %vm158, %v3689, %v3756
  %3758 = vst [vmem:[%s155 + $0x18] sm:$0xf] %v3757
  %v3759 = vld [vmem:[%s155 + $0x1c] sm:$0x1]
  %v3760 = vsel %vm164, %v3690, %v3759
  %3761 = vst [vmem:[%s155 + $0x1c] sm:$0x1] %v3760
  %v3762 = vld [vmem:[%s155 + $0x20] sm:$0xf]
  %v3763 = vsel %vm158, %v3697, %v3762
  %3764 = vst [vmem:[%s155 + $0x20] sm:$0xf] %v3763
  %v3765 = vld [vmem:[%s155 + $0x24] sm:$0x1]
  %v3766 = vsel %vm164, %v3698, %v3765
  %3767 = vst [vmem:[%s155 + $0x24] sm:$0x1] %v3766
  %v3768 = vld [vmem:[%s155 + $0x28] sm:$0xf]
  %v3769 = vsel %vm158, %v3705, %v3768
  %3770 = vst [vmem:[%s155 + $0x28] sm:$0xf] %v3769
  %v3771 = vld [vmem:[%s155 + $0x2c] sm:$0x1]
  %v3772 = vsel %vm164, %v3706, %v3771
  %3773 = vst [vmem:[%s155 + $0x2c] sm:$0x1] %v3772
  %v3774 = vld [vmem:[%s155 + $0x30] sm:$0xf]
  %v3775 = vsel %vm158, %v3713, %v3774
  %3776 = vst [vmem:[%s155 + $0x30] sm:$0xf] %v3775
  %v3777 = vld [vmem:[%s155 + $0x34] sm:$0x1]
  %v3778 = vsel %vm164, %v3714, %v3777
  %3779 = vst [vmem:[%s155 + $0x34] sm:$0x1] %v3778
  %v3780 = vld [vmem:[%s155 + $0x38] sm:$0xf]
  %v3781 = vsel %vm158, %v3721, %v3780
  %3782 = vst [vmem:[%s155 + $0x38] sm:$0xf] %v3781
  %v3783 = vld [vmem:[%s155 + $0x3c] sm:$0x1]
  %v3784 = vsel %vm164, %v3722, %v3783
  %3785 = vst [vmem:[%s155 + $0x3c] sm:$0x1] %v3784
  %v3786 = vld [vmem:[#allocation2] sm:$0xf]
  %v3787 = vld [vmem:[#allocation2 + $0x8] sm:$0xf]
  %v3788 = vld [vmem:[#allocation2 + $0x10] sm:$0xf]
  %v3789 = vld [vmem:[#allocation2 + $0x18] sm:$0xf]
  %v3790 = vld [vmem:[#allocation2 + $0x20] sm:$0xf]
  %v3791 = vld [vmem:[#allocation2 + $0x28] sm:$0xf]
  %v3792 = vld [vmem:[#allocation2 + $0x30] sm:$0xf]
  %v3793 = vld [vmem:[#allocation2 + $0x38] sm:$0xf]
  %s3794 = scalar_lea.vmem %s2, 288
  %v3795 = vld [vmem:[%s3794] sm:$0xf]
  %v3796 = vld [vmem:[%s3794 + $0x4] sm:$0xf]
  %v3797 = vld [vmem:[%s3794 + $0x8] sm:$0xf]
  %v3798 = vld [vmem:[%s3794 + $0xc] sm:$0xf]
  %v3799 = vld [vmem:[#allocation2 + $0x4] sm:$0x1]
  %v3800 = vld [vmem:[#allocation2 + $0xc] sm:$0x1]
  %v3801 = vld [vmem:[#allocation2 + $0x14] sm:$0x1]
  %v3802 = vld [vmem:[#allocation2 + $0x1c] sm:$0x1]
  %v3803 = vld [vmem:[#allocation2 + $0x24] sm:$0x1]
  %v3804 = vld [vmem:[#allocation2 + $0x2c] sm:$0x1]
  %v3805 = vld [vmem:[#allocation2 + $0x34] sm:$0x1]
  %v3806 = vld [vmem:[#allocation2 + $0x3c] sm:$0x1]
  %v3808 = vshrl.u32 %v3786, 16
  %v3810 = vrot.slane %v3808, 4
  %v3811 = vshll.u32 %v3786, 16
  %v3813 = vrot.slane %v3811, 5
  %v3814 = vor.u32 %v3810, %v3813
  %v3815 = vrot.slane %v3814, 4
  %v3817 = vshll.u32 %v3799, 16
  %v3819 = vrot.slane %v3817, 5
  %v3820 = vsel %vm232, %v3815, %v3819
  %v3822 = vshrl.u32 %v3787, 16
  %v3824 = vrot.slane %v3822, 4
  %v3825 = vshll.u32 %v3787, 16
  %v3827 = vrot.slane %v3825, 5
  %v3828 = vor.u32 %v3824, %v3827
  %v3829 = vrot.slane %v3828, 4
  %v3831 = vshll.u32 %v3800, 16
  %v3833 = vrot.slane %v3831, 5
  %v3834 = vsel %vm232, %v3829, %v3833
  %v3836 = vshrl.u32 %v3788, 16
  %v3838 = vrot.slane %v3836, 4
  %v3839 = vshll.u32 %v3788, 16
  %v3841 = vrot.slane %v3839, 5
  %v3842 = vor.u32 %v3838, %v3841
  %v3843 = vrot.slane %v3842, 4
  %v3845 = vshll.u32 %v3801, 16
  %v3847 = vrot.slane %v3845, 5
  %v3848 = vsel %vm232, %v3843, %v3847
  %v3850 = vshrl.u32 %v3789, 16
  %v3852 = vrot.slane %v3850, 4
  %v3853 = vshll.u32 %v3789, 16
  %v3855 = vrot.slane %v3853, 5
  %v3856 = vor.u32 %v3852, %v3855
  %v3857 = vrot.slane %v3856, 4
  %v3859 = vshll.u32 %v3802, 16
  %v3861 = vrot.slane %v3859, 5
  %v3862 = vsel %vm232, %v3857, %v3861
  %v3864 = vshrl.u32 %v3790, 16
  %v3866 = vrot.slane %v3864, 4
  %v3867 = vshll.u32 %v3790, 16
  %v3869 = vrot.slane %v3867, 5
  %v3870 = vor.u32 %v3866, %v3869
  %v3871 = vrot.slane %v3870, 4
  %v3873 = vshll.u32 %v3803, 16
  %v3875 = vrot.slane %v3873, 5
  %v3876 = vsel %vm232, %v3871, %v3875
  %v3878 = vshrl.u32 %v3791, 16
  %v3880 = vrot.slane %v3878, 4
  %v3881 = vshll.u32 %v3791, 16
  %v3883 = vrot.slane %v3881, 5
  %v3884 = vor.u32 %v3880, %v3883
  %v3885 = vrot.slane %v3884, 4
  %v3887 = vshll.u32 %v3804, 16
  %v3889 = vrot.slane %v3887, 5
  %v3890 = vsel %vm232, %v3885, %v3889
  %v3892 = vshrl.u32 %v3792, 16
  %v3894 = vrot.slane %v3892, 4
  %v3895 = vshll.u32 %v3792, 16
  %v3897 = vrot.slane %v3895, 5
  %v3898 = vor.u32 %v3894, %v3897
  %v3899 = vrot.slane %v3898, 4
  %v3901 = vshll.u32 %v3805, 16
  %v3903 = vrot.slane %v3901, 5
  %v3904 = vsel %vm232, %v3899, %v3903
  %v3906 = vshrl.u32 %v3793, 16
  %v3908 = vrot.slane %v3906, 4
  %v3909 = vshll.u32 %v3793, 16
  %v3911 = vrot.slane %v3909, 5
  %v3912 = vor.u32 %v3908, %v3911
  %v3913 = vrot.slane %v3912, 4
  %v3915 = vshll.u32 %v3806, 16
  %v3917 = vrot.slane %v3915, 5
  %v3918 = vsel %vm232, %v3913, %v3917
  %s3919 = scalar_lea.vmem %s2, 304
  %v3920 = vld [vmem:[%s3919] sm:$0xf]
  %v3921 = vld [vmem:[%s3919 + $0x4] sm:$0xf]
  %v3922 = vld [vmem:[%s3919 + $0x8] sm:$0xf]
  %v3923 = vld [vmem:[%s3919 + $0xc] sm:$0xf]
  %v3924 = vunpack.c.l.b16 %v3820
  %v3925 = vunpack.c.l.b16 %v3834
  %v3926 = vunpack.c.l.b16 %v3848
  %v3927 = vunpack.c.l.b16 %v3862
  %v3928 = vunpack.c.l.b16 %v3876
  %v3929 = vunpack.c.l.b16 %v3890
  %v3930 = vunpack.c.l.b16 %v3904
  %v3931 = vunpack.c.l.b16 %v3918
  %v3932 = vpack.c.b16 %v3925, %v3924
  %v3933 = vpack.c.b16 %v3927, %v3926
  %v3934 = vpack.c.b16 %v3929, %v3928
  %v3935 = vpack.c.b16 %v3931, %v3930
  %v3940 = vunpack.c.l.b16 %v3920
  %v3941 = vunpack.c.l.b16 %v3921
  %v3942 = vunpack.c.l.b16 %v3922
  %v3943 = vunpack.c.l.b16 %v3923
  %v3944 = vpack.c.b16 %v3941, %v3940
  %v3945 = vpack.c.b16 %v3943, %v3942
  %v3949 = vsel %vm374, %v3932, 0
  %v3952 = vsel %vm374, %v3933, 0
  %v3955 = vsel %vm374, %v3934, 0
  %v3958 = vsel %vm374, %v3935, 0
  %3960 = vmatprep.subr.bf16.mxu0 0
  %3961 = vmatpush1.bf16.msra.mxu0 %v3944
  %3962 = vmatprep.subr.bf16.mxu0 0
  %3963 = vmatpush1.bf16.msra.mxu0 %v3945
  %3964 = vmatprep.subr.bf16.mxu0 0
  %3965 = vmatpush1.bf16.msra.mxu0 0
  %3966 = vmatprep.subr.bf16.mxu0 0
  %3967 = vmatpush1.bf16.msra.mxu0 0
  %3968 = vmatprep.subr.bf16.mxu0 0
  %3969 = vmatpush1.bf16.msra.mxu0 0
  %3970 = vmatprep.subr.bf16.mxu0 0
  %3971 = vmatpush1.bf16.msra.mxu0 0
  %3972 = vmatprep.subr.bf16.mxu0 0
  %3973 = vmatpush1.bf16.msra.mxu0 0
  %3974 = vmatprep.subr.bf16.mxu0 0
  %3975 = vmatpush1.bf16.msra.mxu0 0
  %3976 = vmatprep.subr.bf16.mxu0 0
  %3977 = vmatpush1.bf16.msra.mxu0 0
  %3978 = vmatprep.subr.bf16.mxu0 0
  %3979 = vmatpush1.bf16.msra.mxu0 0
  %3980 = vmatprep.subr.bf16.mxu0 0
  %3981 = vmatpush1.bf16.msra.mxu0 0
  %3982 = vmatprep.subr.bf16.mxu0 0
  %3983 = vmatpush1.bf16.msra.mxu0 0
  %3984 = vmatprep.subr.bf16.mxu0 0
  %3985 = vmatpush1.bf16.msra.mxu0 0
  %3986 = vmatprep.subr.bf16.mxu0 0
  %3987 = vmatpush1.bf16.msra.mxu0 0
  %3988 = vmatprep.subr.bf16.mxu0 0
  %3989 = vmatpush1.bf16.msra.mxu0 0
  %3990 = vmatprep.subr.bf16.mxu0 0
  %3991 = vmatpush1.bf16.msra.mxu0 0
  %3992 = vmatprep.mubr.bf16.mxu0 0
  %3993 = vmatmul.mubr.bf16.gmra.mrb[0].mxu0 %v3949
  %v3994 = vpop.f32.mrb[0].mxu0
  %v3995 = vadd.f32 0.0, %v3994
  %v3996 = vpop.f32.mrb[0].mxu0
  %v3997 = vpop.f32.mrb[0].mxu0
  %v3998 = vadd.f32 0.0, %v3997
  %v3999 = vpop.f32.mrb[0].mxu0
  %4000 = vmatprep.mubr.bf16.mxu0 0
  %4001 = vmatmul.mubr.bf16.gmra.mrb[0].mxu0 %v3952
  %v4002 = vpop.f32.mrb[0].mxu0
  %v4003 = vadd.f32 0.0, %v4002
  %v4004 = vpop.f32.mrb[0].mxu0
  %v4005 = vpop.f32.mrb[0].mxu0
  %v4006 = vadd.f32 0.0, %v4005
  %v4007 = vpop.f32.mrb[0].mxu0
  %4008 = vmatprep.mubr.bf16.mxu0 0
  %4009 = vmatmul.mubr.bf16.gmra.mrb[0].mxu0 %v3955
  %v4010 = vpop.f32.mrb[0].mxu0
  %v4011 = vadd.f32 0.0, %v4010
  %v4012 = vpop.f32.mrb[0].mxu0
  %v4013 = vpop.f32.mrb[0].mxu0
  %v4014 = vadd.f32 0.0, %v4013
  %v4015 = vpop.f32.mrb[0].mxu0
  %4016 = vmatprep.mubr.bf16.mxu0 0
  %4017 = vmatmul.mubr.bf16.gmra.mrb[0].mxu0 %v3958
  %v4018 = vpop.f32.mrb[0].mxu0
  %v4019 = vadd.f32 0.0, %v4018
  %v4020 = vpop.f32.mrb[0].mxu0
  %v4021 = vpop.f32.mrb[0].mxu0
  %v4022 = vadd.f32 0.0, %v4021
  %v4023 = vpop.f32.mrb[0].mxu0
  %4024 = vdwg.mxu0
  %v4033 = vunpack.c.l.b16 %v3786
  %v4034 = vunpack.c.l.b16 %v3787
  %v4035 = vunpack.c.l.b16 %v3788
  %v4036 = vunpack.c.l.b16 %v3789
  %v4037 = vunpack.c.l.b16 %v3790
  %v4038 = vunpack.c.l.b16 %v3791
  %v4039 = vunpack.c.l.b16 %v3792
  %v4040 = vunpack.c.l.b16 %v3793
  %v4041 = vpack.c.b16 %v4034, %v4033
  %v4042 = vpack.c.b16 %v4036, %v4035
  %v4043 = vpack.c.b16 %v4038, %v4037
  %v4044 = vpack.c.b16 %v4040, %v4039
  %v4049 = vunpack.c.l.b16 %v3795
  %v4050 = vunpack.c.l.b16 %v3796
  %v4051 = vunpack.c.l.b16 %v3797
  %v4052 = vunpack.c.l.b16 %v3798
  %v4053 = vpack.c.b16 %v4050, %v4049
  %v4054 = vpack.c.b16 %v4052, %v4051
  %v4058 = vsel %vm374, %v4041, 0
  %v4061 = vsel %vm374, %v4042, 0
  %v4064 = vsel %vm374, %v4043, 0
  %v4067 = vsel %vm374, %v4044, 0
  %4069 = vmatprep.subr.bf16.mxu0 0
  %4070 = vmatpush1.bf16.msra.mxu0 %v4053
  %4071 = vmatprep.subr.bf16.mxu0 0
  %4072 = vmatpush1.bf16.msra.mxu0 %v4054
  %4073 = vmatprep.subr.bf16.mxu0 0
  %4074 = vmatpush1.bf16.msra.mxu0 0
  %4075 = vmatprep.subr.bf16.mxu0 0
  %4076 = vmatpush1.bf16.msra.mxu0 0
  %4077 = vmatprep.subr.bf16.mxu0 0
  %4078 = vmatpush1.bf16.msra.mxu0 0
  %4079 = vmatprep.subr.bf16.mxu0 0
  %4080 = vmatpush1.bf16.msra.mxu0 0
  %4081 = vmatprep.subr.bf16.mxu0 0
  %4082 = vmatpush1.bf16.msra.mxu0 0
  %4083 = vmatprep.subr.bf16.mxu0 0
  %4084 = vmatpush1.bf16.msra.mxu0 0
  %4085 = vmatprep.subr.bf16.mxu0 0
  %4086 = vmatpush1.bf16.msra.mxu0 0
  %4087 = vmatprep.subr.bf16.mxu0 0
  %4088 = vmatpush1.bf16.msra.mxu0 0
  %4089 = vmatprep.subr.bf16.mxu0 0
  %4090 = vmatpush1.bf16.msra.mxu0 0
  %4091 = vmatprep.subr.bf16.mxu0 0
  %4092 = vmatpush1.bf16.msra.mxu0 0
  %4093 = vmatprep.subr.bf16.mxu0 0
  %4094 = vmatpush1.bf16.msra.mxu0 0
  %4095 = vmatprep.subr.bf16.mxu0 0
  %4096 = vmatpush1.bf16.msra.mxu0 0
  %4097 = vmatprep.subr.bf16.mxu0 0
  %4098 = vmatpush1.bf16.msra.mxu0 0
  %4099 = vmatprep.subr.bf16.mxu0 0
  %4100 = vmatpush1.bf16.msra.mxu0 0
  %4101 = vmatprep.mubr.bf16.mxu0 0
  %4102 = vmatmul.mubr.bf16.gmra.mrb[0].mxu0 %v4058
  %v4103 = vpop.f32.mrb[0].mxu0
  %v4104 = vadd.f32 %v3995, %v4103
  %v4105 = vpop.f32.mrb[0].mxu0
  %v4106 = vpop.f32.mrb[0].mxu0
  %v4107 = vadd.f32 %v3998, %v4106
  %v4108 = vpop.f32.mrb[0].mxu0
  %4109 = vmatprep.mubr.bf16.mxu0 0
  %4110 = vmatmul.mubr.bf16.gmra.mrb[0].mxu0 %v4061
  %v4111 = vpop.f32.mrb[0].mxu0
  %v4112 = vadd.f32 %v4003, %v4111
  %v4113 = vpop.f32.mrb[0].mxu0
  %v4114 = vpop.f32.mrb[0].mxu0
  %v4115 = vadd.f32 %v4006, %v4114
  %v4116 = vpop.f32.mrb[0].mxu0
  %4117 = vmatprep.mubr.bf16.mxu0 0
  %4118 = vmatmul.mubr.bf16.gmra.mrb[0].mxu0 %v4064
  %v4119 = vpop.f32.mrb[0].mxu0
  %v4120 = vadd.f32 %v4011, %v4119
  %v4121 = vpop.f32.mrb[0].mxu0
  %v4122 = vpop.f32.mrb[0].mxu0
  %v4123 = vadd.f32 %v4014, %v4122
  %v4124 = vpop.f32.mrb[0].mxu0
  %4125 = vmatprep.mubr.bf16.mxu0 0
  %4126 = vmatmul.mubr.bf16.gmra.mrb[0].mxu0 %v4067
  %v4127 = vpop.f32.mrb[0].mxu0
  %v4128 = vadd.f32 %v4019, %v4127
  %v4129 = vpop.f32.mrb[0].mxu0
  %v4130 = vpop.f32.mrb[0].mxu0
  %v4131 = vadd.f32 %v4022, %v4130
  %v4132 = vpop.f32.mrb[0].mxu0
  %4133 = vdwg.mxu0
  %v4134 = vld [vmem:[#allocation2] sm:$0xe]
  %v4135 = vld [vmem:[#allocation2 + $0x8] sm:$0xe]
  %v4136 = vld [vmem:[#allocation2 + $0x10] sm:$0xe]
  %v4137 = vld [vmem:[#allocation2 + $0x18] sm:$0xe]
  %v4138 = vld [vmem:[#allocation2 + $0x20] sm:$0xe]
  %v4139 = vld [vmem:[#allocation2 + $0x28] sm:$0xe]
  %v4140 = vld [vmem:[#allocation2 + $0x30] sm:$0xe]
  %v4141 = vld [vmem:[#allocation2 + $0x38] sm:$0xe]
  %v4158 = vrot.slane %v4134, 5
  %v4159 = vrot.slane %v4158, 4
  %v4160 = vrot.slane %v3799, 5
  %v4161 = vsel %vm587, %v4159, %v4160
  %v4162 = vrot.slane %v4135, 5
  %v4163 = vrot.slane %v4162, 4
  %v4164 = vrot.slane %v3800, 5
  %v4165 = vsel %vm587, %v4163, %v4164
  %v4166 = vrot.slane %v4136, 5
  %v4167 = vrot.slane %v4166, 4
  %v4168 = vrot.slane %v3801, 5
  %v4169 = vsel %vm587, %v4167, %v4168
  %v4170 = vrot.slane %v4137, 5
  %v4171 = vrot.slane %v4170, 4
  %v4172 = vrot.slane %v3802, 5
  %v4173 = vsel %vm587, %v4171, %v4172
  %v4174 = vrot.slane %v4138, 5
  %v4175 = vrot.slane %v4174, 4
  %v4176 = vrot.slane %v3803, 5
  %v4177 = vsel %vm587, %v4175, %v4176
  %v4178 = vrot.slane %v4139, 5
  %v4179 = vrot.slane %v4178, 4
  %v4180 = vrot.slane %v3804, 5
  %v4181 = vsel %vm587, %v4179, %v4180
  %v4182 = vrot.slane %v4140, 5
  %v4183 = vrot.slane %v4182, 4
  %v4184 = vrot.slane %v3805, 5
  %v4185 = vsel %vm587, %v4183, %v4184
  %v4186 = vrot.slane %v4141, 5
  %v4187 = vrot.slane %v4186, 4
  %v4188 = vrot.slane %v3806, 5
  %v4189 = vsel %vm587, %v4187, %v4188
  %s4190 = scalar_lea.vmem %s2, 320
  %v4191 = vld [vmem:[%s4190] sm:$0xf]
  %v4192 = vld [vmem:[%s4190 + $0x4] sm:$0xf]
  %v4193 = vld [vmem:[%s4190 + $0x8] sm:$0xf]
  %v4194 = vld [vmem:[%s4190 + $0xc] sm:$0xf]
  %v4195 = vunpack.c.l.b16 %v4161
  %v4196 = vunpack.c.l.b16 %v4165
  %v4197 = vunpack.c.l.b16 %v4169
  %v4198 = vunpack.c.l.b16 %v4173
  %v4199 = vunpack.c.l.b16 %v4177
  %v4200 = vunpack.c.l.b16 %v4181
  %v4201 = vunpack.c.l.b16 %v4185
  %v4202 = vunpack.c.l.b16 %v4189
  %v4203 = vpack.c.b16 %v4196, %v4195
  %v4204 = vpack.c.b16 %v4198, %v4197
  %v4205 = vpack.c.b16 %v4200, %v4199
  %v4206 = vpack.c.b16 %v4202, %v4201
  %v4211 = vunpack.c.l.b16 %v4191
  %v4212 = vunpack.c.l.b16 %v4192
  %v4213 = vunpack.c.l.b16 %v4193
  %v4214 = vunpack.c.l.b16 %v4194
  %v4215 = vpack.c.b16 %v4212, %v4211
  %v4216 = vpack.c.b16 %v4214, %v4213
  %v4220 = vsel %vm374, %v4203, 0
  %v4223 = vsel %vm374, %v4204, 0
  %v4226 = vsel %vm374, %v4205, 0
  %v4229 = vsel %vm374, %v4206, 0
  %4231 = vmatprep.subr.bf16.mxu0 0
  %4232 = vmatpush1.bf16.msra.mxu0 %v4215
  %4233 = vmatprep.subr.bf16.mxu0 0
  %4234 = vmatpush1.bf16.msra.mxu0 %v4216
  %4235 = vmatprep.subr.bf16.mxu0 0
  %4236 = vmatpush1.bf16.msra.mxu0 0
  %4237 = vmatprep.subr.bf16.mxu0 0
  %4238 = vmatpush1.bf16.msra.mxu0 0
  %4239 = vmatprep.subr.bf16.mxu0 0
  %4240 = vmatpush1.bf16.msra.mxu0 0
  %4241 = vmatprep.subr.bf16.mxu0 0
  %4242 = vmatpush1.bf16.msra.mxu0 0
  %4243 = vmatprep.subr.bf16.mxu0 0
  %4244 = vmatpush1.bf16.msra.mxu0 0
  %4245 = vmatprep.subr.bf16.mxu0 0
  %4246 = vmatpush1.bf16.msra.mxu0 0
  %4247 = vmatprep.subr.bf16.mxu0 0
  %4248 = vmatpush1.bf16.msra.mxu0 0
  %4249 = vmatprep.subr.bf16.mxu0 0
  %4250 = vmatpush1.bf16.msra.mxu0 0
  %4251 = vmatprep.subr.bf16.mxu0 0
  %4252 = vmatpush1.bf16.msra.mxu0 0
  %4253 = vmatprep.subr.bf16.mxu0 0
  %4254 = vmatpush1.bf16.msra.mxu0 0
  %4255 = vmatprep.subr.bf16.mxu0 0
  %4256 = vmatpush1.bf16.msra.mxu0 0
  %4257 = vmatprep.subr.bf16.mxu0 0
  %4258 = vmatpush1.bf16.msra.mxu0 0
  %4259 = vmatprep.subr.bf16.mxu0 0
  %4260 = vmatpush1.bf16.msra.mxu0 0
  %4261 = vmatprep.subr.bf16.mxu0 0
  %4262 = vmatpush1.bf16.msra.mxu0 0
  %4263 = vmatprep.mubr.bf16.mxu0 0
  %4264 = vmatmul.mubr.bf16.gmra.mrb[0].mxu0 %v4220
  %v4265 = vpop.f32.mrb[0].mxu0
  %v4266 = vadd.f32 0.0, %v4265
  %v4267 = vpop.f32.mrb[0].mxu0
  %v4268 = vpop.f32.mrb[0].mxu0
  %v4269 = vadd.f32 0.0, %v4268
  %v4270 = vpop.f32.mrb[0].mxu0
  %4271 = vmatprep.mubr.bf16.mxu0 0
  %4272 = vmatmul.mubr.bf16.gmra.mrb[0].mxu0 %v4223
  %v4273 = vpop.f32.mrb[0].mxu0
  %v4274 = vadd.f32 0.0, %v4273
  %v4275 = vpop.f32.mrb[0].mxu0
  %v4276 = vpop.f32.mrb[0].mxu0
  %v4277 = vadd.f32 0.0, %v4276
  %v4278 = vpop.f32.mrb[0].mxu0
  %4279 = vmatprep.mubr.bf16.mxu0 0
  %4280 = vmatmul.mubr.bf16.gmra.mrb[0].mxu0 %v4226
  %v4281 = vpop.f32.mrb[0].mxu0
  %v4282 = vadd.f32 0.0, %v4281
  %v4283 = vpop.f32.mrb[0].mxu0
  %v4284 = vpop.f32.mrb[0].mxu0
  %v4285 = vadd.f32 0.0, %v4284
  %v4286 = vpop.f32.mrb[0].mxu0
  %4287 = vmatprep.mubr.bf16.mxu0 0
  %4288 = vmatmul.mubr.bf16.gmra.mrb[0].mxu0 %v4229
  %v4289 = vpop.f32.mrb[0].mxu0
  %v4290 = vadd.f32 0.0, %v4289
  %v4291 = vpop.f32.mrb[0].mxu0
  %v4292 = vpop.f32.mrb[0].mxu0
  %v4293 = vadd.f32 0.0, %v4292
  %v4294 = vpop.f32.mrb[0].mxu0
  %4295 = vdwg.mxu0
  %v4296 = vadd.f32 %v4104, %v4266
  %v4297 = vadd.f32 %v4107, %v4269
  %v4298 = vadd.f32 %v4112, %v4274
  %v4299 = vadd.f32 %v4115, %v4277
  %v4300 = vadd.f32 %v4120, %v4282
  %v4301 = vadd.f32 %v4123, %v4285
  %v4302 = vadd.f32 %v4128, %v4290
  %v4303 = vadd.f32 %v4131, %v4293
  %v4304 = vld [vmem:[%s155] sm:$0xf]
  %v4305 = vld [vmem:[%s155 + $0x8] sm:$0xf]
  %v4306 = vld [vmem:[%s155 + $0x10] sm:$0xf]
  %v4307 = vld [vmem:[%s155 + $0x18] sm:$0xf]
  %v4308 = vld [vmem:[%s155 + $0x20] sm:$0xf]
  %v4309 = vld [vmem:[%s155 + $0x28] sm:$0xf]
  %v4310 = vld [vmem:[%s155 + $0x30] sm:$0xf]
  %v4311 = vld [vmem:[%s155 + $0x38] sm:$0xf]
  %s4312 = scalar_lea.vmem %s2, 336
  %v4313 = vld [vmem:[%s4312] sm:$0xf]
  %v4314 = vld [vmem:[%s4312 + $0x4] sm:$0xf]
  %v4315 = vld [vmem:[%s4312 + $0x8] sm:$0xf]
  %v4316 = vld [vmem:[%s4312 + $0xc] sm:$0xf]
  %v4325 = vunpack.c.l.b16 %v4304
  %v4326 = vunpack.c.l.b16 %v4305
  %v4327 = vunpack.c.l.b16 %v4306
  %v4328 = vunpack.c.l.b16 %v4307
  %v4329 = vunpack.c.l.b16 %v4308
  %v4330 = vunpack.c.l.b16 %v4309
  %v4331 = vunpack.c.l.b16 %v4310
  %v4332 = vunpack.c.l.b16 %v4311
  %v4333 = vpack.c.b16 %v4326, %v4325
  %v4334 = vpack.c.b16 %v4328, %v4327
  %v4335 = vpack.c.b16 %v4330, %v4329
  %v4336 = vpack.c.b16 %v4332, %v4331
  %v4341 = vunpack.c.l.b16 %v4313
  %v4342 = vunpack.c.l.b16 %v4314
  %v4343 = vunpack.c.l.b16 %v4315
  %v4344 = vunpack.c.l.b16 %v4316
  %v4345 = vpack.c.b16 %v4342, %v4341
  %v4346 = vpack.c.b16 %v4344, %v4343
  %v4350 = vsel %vm374, %v4333, 0
  %v4353 = vsel %vm374, %v4334, 0
  %v4356 = vsel %vm374, %v4335, 0
  %v4359 = vsel %vm374, %v4336, 0
  %4361 = vmatprep.subr.bf16.mxu0 0
  %4362 = vmatpush1.bf16.msra.mxu0 %v4345
  %4363 = vmatprep.subr.bf16.mxu0 0
  %4364 = vmatpush1.bf16.msra.mxu0 %v4346
  %4365 = vmatprep.subr.bf16.mxu0 0
  %4366 = vmatpush1.bf16.msra.mxu0 0
  %4367 = vmatprep.subr.bf16.mxu0 0
  %4368 = vmatpush1.bf16.msra.mxu0 0
  %4369 = vmatprep.subr.bf16.mxu0 0
  %4370 = vmatpush1.bf16.msra.mxu0 0
  %4371 = vmatprep.subr.bf16.mxu0 0
  %4372 = vmatpush1.bf16.msra.mxu0 0
  %4373 = vmatprep.subr.bf16.mxu0 0
  %4374 = vmatpush1.bf16.msra.mxu0 0
  %4375 = vmatprep.subr.bf16.mxu0 0
  %4376 = vmatpush1.bf16.msra.mxu0 0
  %4377 = vmatprep.subr.bf16.mxu0 0
  %4378 = vmatpush1.bf16.msra.mxu0 0
  %4379 = vmatprep.subr.bf16.mxu0 0
  %4380 = vmatpush1.bf16.msra.mxu0 0
  %4381 = vmatprep.subr.bf16.mxu0 0
  %4382 = vmatpush1.bf16.msra.mxu0 0
  %4383 = vmatprep.subr.bf16.mxu0 0
  %4384 = vmatpush1.bf16.msra.mxu0 0
  %4385 = vmatprep.subr.bf16.mxu0 0
  %4386 = vmatpush1.bf16.msra.mxu0 0
  %4387 = vmatprep.subr.bf16.mxu0 0
  %4388 = vmatpush1.bf16.msra.mxu0 0
  %4389 = vmatprep.subr.bf16.mxu0 0
  %4390 = vmatpush1.bf16.msra.mxu0 0
  %4391 = vmatprep.subr.bf16.mxu0 0
  %4392 = vmatpush1.bf16.msra.mxu0 0
  %4393 = vmatprep.mubr.bf16.mxu0 0
  %4394 = vmatmul.mubr.bf16.gmra.mrb[0].mxu0 %v4350
  %v4395 = vpop.f32.mrb[0].mxu0
  %v4396 = vadd.f32 0.0, %v4395
  %v4397 = vpop.f32.mrb[0].mxu0
  %v4398 = vpop.f32.mrb[0].mxu0
  %v4399 = vadd.f32 0.0, %v4398
  %v4400 = vpop.f32.mrb[0].mxu0
  %4401 = vmatprep.mubr.bf16.mxu0 0
  %4402 = vmatmul.mubr.bf16.gmra.mrb[0].mxu0 %v4353
  %v4403 = vpop.f32.mrb[0].mxu0
  %v4404 = vadd.f32 0.0, %v4403
  %v4405 = vpop.f32.mrb[0].mxu0
  %v4406 = vpop.f32.mrb[0].mxu0
  %v4407 = vadd.f32 0.0, %v4406
  %v4408 = vpop.f32.mrb[0].mxu0
  %4409 = vmatprep.mubr.bf16.mxu0 0
  %4410 = vmatmul.mubr.bf16.gmra.mrb[0].mxu0 %v4356
  %v4411 = vpop.f32.mrb[0].mxu0
  %v4412 = vadd.f32 0.0, %v4411
  %v4413 = vpop.f32.mrb[0].mxu0
  %v4414 = vpop.f32.mrb[0].mxu0
  %v4415 = vadd.f32 0.0, %v4414
  %v4416 = vpop.f32.mrb[0].mxu0
  %4417 = vmatprep.mubr.bf16.mxu0 0
  %4418 = vmatmul.mubr.bf16.gmra.mrb[0].mxu0 %v4359
  %v4419 = vpop.f32.mrb[0].mxu0
  %v4420 = vadd.f32 0.0, %v4419
  %v4421 = vpop.f32.mrb[0].mxu0
  %v4422 = vpop.f32.mrb[0].mxu0
  %v4423 = vadd.f32 0.0, %v4422
  %v4424 = vpop.f32.mrb[0].mxu0
  %4425 = vdwg.mxu0
  %v4426 = vadd.f32 %v4296, %v4396
  %v4427 = vadd.f32 %v4297, %v4399
  %v4428 = vadd.f32 %v4298, %v4404
  %v4429 = vadd.f32 %v4299, %v4407
  %v4430 = vadd.f32 %v4300, %v4412
  %v4431 = vadd.f32 %v4301, %v4415
  %v4432 = vadd.f32 %v4302, %v4420
  %v4433 = vadd.f32 %v4303, %v4423
  %v4434 = vld [vmem:[%s155] sm:$0xf]
  %v4435 = vld [vmem:[%s155 + $0x4] sm:$0x1]
  %v4436 = vld [vmem:[%s155 + $0x8] sm:$0xf]
  %v4437 = vld [vmem:[%s155 + $0xc] sm:$0x1]
  %v4438 = vld [vmem:[%s155 + $0x10] sm:$0xf]
  %v4439 = vld [vmem:[%s155 + $0x14] sm:$0x1]
  %v4440 = vld [vmem:[%s155 + $0x18] sm:$0xf]
  %v4441 = vld [vmem:[%s155 + $0x1c] sm:$0x1]
  %v4442 = vld [vmem:[%s155 + $0x20] sm:$0xf]
  %v4443 = vld [vmem:[%s155 + $0x24] sm:$0x1]
  %v4444 = vld [vmem:[%s155 + $0x28] sm:$0xf]
  %v4445 = vld [vmem:[%s155 + $0x2c] sm:$0x1]
  %v4446 = vld [vmem:[%s155 + $0x30] sm:$0xf]
  %v4447 = vld [vmem:[%s155 + $0x34] sm:$0x1]
  %v4448 = vld [vmem:[%s155 + $0x38] sm:$0xf]
  %v4449 = vld [vmem:[%s155 + $0x3c] sm:$0x1]
  %v4451 = vshrl.u32 %v4434, 16
  %v4453 = vrot.slane %v4451, 4
  %v4454 = vshll.u32 %v4434, 16
  %v4456 = vrot.slane %v4454, 5
  %v4457 = vor.u32 %v4453, %v4456
  %v4458 = vrot.slane %v4457, 4
  %v4460 = vshll.u32 %v4435, 16
  %v4462 = vrot.slane %v4460, 5
  %v4463 = vsel %vm232, %v4458, %v4462
  %v4465 = vshrl.u32 %v4436, 16
  %v4467 = vrot.slane %v4465, 4
  %v4468 = vshll.u32 %v4436, 16
  %v4470 = vrot.slane %v4468, 5
  %v4471 = vor.u32 %v4467, %v4470
  %v4472 = vrot.slane %v4471, 4
  %v4474 = vshll.u32 %v4437, 16
  %v4476 = vrot.slane %v4474, 5
  %v4477 = vsel %vm232, %v4472, %v4476
  %v4479 = vshrl.u32 %v4438, 16
  %v4481 = vrot.slane %v4479, 4
  %v4482 = vshll.u32 %v4438, 16
  %v4484 = vrot.slane %v4482, 5
  %v4485 = vor.u32 %v4481, %v4484
  %v4486 = vrot.slane %v4485, 4
  %v4488 = vshll.u32 %v4439, 16
  %v4490 = vrot.slane %v4488, 5
  %v4491 = vsel %vm232, %v4486, %v4490
  %v4493 = vshrl.u32 %v4440, 16
  %v4495 = vrot.slane %v4493, 4
  %v4496 = vshll.u32 %v4440, 16
  %v4498 = vrot.slane %v4496, 5
  %v4499 = vor.u32 %v4495, %v4498
  %v4500 = vrot.slane %v4499, 4
  %v4502 = vshll.u32 %v4441, 16
  %v4504 = vrot.slane %v4502, 5
  %v4505 = vsel %vm232, %v4500, %v4504
  %v4507 = vshrl.u32 %v4442, 16
  %v4509 = vrot.slane %v4507, 4
  %v4510 = vshll.u32 %v4442, 16
  %v4512 = vrot.slane %v4510, 5
  %v4513 = vor.u32 %v4509, %v4512
  %v4514 = vrot.slane %v4513, 4
  %v4516 = vshll.u32 %v4443, 16
  %v4518 = vrot.slane %v4516, 5
  %v4519 = vsel %vm232, %v4514, %v4518
  %v4521 = vshrl.u32 %v4444, 16
  %v4523 = vrot.slane %v4521, 4
  %v4524 = vshll.u32 %v4444, 16
  %v4526 = vrot.slane %v4524, 5
  %v4527 = vor.u32 %v4523, %v4526
  %v4528 = vrot.slane %v4527, 4
  %v4530 = vshll.u32 %v4445, 16
  %v4532 = vrot.slane %v4530, 5
  %v4533 = vsel %vm232, %v4528, %v4532
  %v4535 = vshrl.u32 %v4446, 16
  %v4537 = vrot.slane %v4535, 4
  %v4538 = vshll.u32 %v4446, 16
  %v4540 = vrot.slane %v4538, 5
  %v4541 = vor.u32 %v4537, %v4540
  %v4542 = vrot.slane %v4541, 4
  %v4544 = vshll.u32 %v4447, 16
  %v4546 = vrot.slane %v4544, 5
  %v4547 = vsel %vm232, %v4542, %v4546
  %v4549 = vshrl.u32 %v4448, 16
  %v4551 = vrot.slane %v4549, 4
  %v4552 = vshll.u32 %v4448, 16
  %v4554 = vrot.slane %v4552, 5
  %v4555 = vor.u32 %v4551, %v4554
  %v4556 = vrot.slane %v4555, 4
  %v4558 = vshll.u32 %v4449, 16
  %v4560 = vrot.slane %v4558, 5
  %v4561 = vsel %vm232, %v4556, %v4560
  %s4562 = scalar_lea.vmem %s2, 352
  %v4563 = vld [vmem:[%s4562] sm:$0xf]
  %v4564 = vld [vmem:[%s4562 + $0x4] sm:$0xf]
  %v4565 = vld [vmem:[%s4562 + $0x8] sm:$0xf]
  %v4566 = vld [vmem:[%s4562 + $0xc] sm:$0xf]
  %v4567 = vunpack.c.l.b16 %v4463
  %v4568 = vunpack.c.l.b16 %v4477
  %v4569 = vunpack.c.l.b16 %v4491
  %v4570 = vunpack.c.l.b16 %v4505
  %v4571 = vunpack.c.l.b16 %v4519
  %v4572 = vunpack.c.l.b16 %v4533
  %v4573 = vunpack.c.l.b16 %v4547
  %v4574 = vunpack.c.l.b16 %v4561
  %v4575 = vpack.c.b16 %v4568, %v4567
  %v4576 = vpack.c.b16 %v4570, %v4569
  %v4577 = vpack.c.b16 %v4572, %v4571
  %v4578 = vpack.c.b16 %v4574, %v4573
  %v4583 = vunpack.c.l.b16 %v4563
  %v4584 = vunpack.c.l.b16 %v4564
  %v4585 = vunpack.c.l.b16 %v4565
  %v4586 = vunpack.c.l.b16 %v4566
  %v4587 = vpack.c.b16 %v4584, %v4583
  %v4588 = vpack.c.b16 %v4586, %v4585
  %v4592 = vsel %vm374, %v4575, 0
  %v4595 = vsel %vm374, %v4576, 0
  %v4598 = vsel %vm374, %v4577, 0
  %v4601 = vsel %vm374, %v4578, 0
  %4603 = vmatprep.subr.bf16.mxu0 0
  %4604 = vmatpush1.bf16.msra.mxu0 %v4587
  %4605 = vmatprep.subr.bf16.mxu0 0
  %4606 = vmatpush1.bf16.msra.mxu0 %v4588
  %4607 = vmatprep.subr.bf16.mxu0 0
  %4608 = vmatpush1.bf16.msra.mxu0 0
  %4609 = vmatprep.subr.bf16.mxu0 0
  %4610 = vmatpush1.bf16.msra.mxu0 0
  %4611 = vmatprep.subr.bf16.mxu0 0
  %4612 = vmatpush1.bf16.msra.mxu0 0
  %4613 = vmatprep.subr.bf16.mxu0 0
  %4614 = vmatpush1.bf16.msra.mxu0 0
  %4615 = vmatprep.subr.bf16.mxu0 0
  %4616 = vmatpush1.bf16.msra.mxu0 0
  %4617 = vmatprep.subr.bf16.mxu0 0
  %4618 = vmatpush1.bf16.msra.mxu0 0
  %4619 = vmatprep.subr.bf16.mxu0 0
  %4620 = vmatpush1.bf16.msra.mxu0 0
  %4621 = vmatprep.subr.bf16.mxu0 0
  %4622 = vmatpush1.bf16.msra.mxu0 0
  %4623 = vmatprep.subr.bf16.mxu0 0
  %4624 = vmatpush1.bf16.msra.mxu0 0
  %4625 = vmatprep.subr.bf16.mxu0 0
  %4626 = vmatpush1.bf16.msra.mxu0 0
  %4627 = vmatprep.subr.bf16.mxu0 0
  %4628 = vmatpush1.bf16.msra.mxu0 0
  %4629 = vmatprep.subr.bf16.mxu0 0
  %4630 = vmatpush1.bf16.msra.mxu0 0
  %4631 = vmatprep.subr.bf16.mxu0 0
  %4632 = vmatpush1.bf16.msra.mxu0 0
  %4633 = vmatprep.subr.bf16.mxu0 0
  %4634 = vmatpush1.bf16.msra.mxu0 0
  %4635 = vmatprep.mubr.bf16.mxu0 0
  %4636 = vmatmul.mubr.bf16.gmra.mrb[0].mxu0 %v4592
  %v4637 = vpop.f32.mrb[0].mxu0
  %v4638 = vadd.f32 0.0, %v4637
  %v4639 = vpop.f32.mrb[0].mxu0
  %v4640 = vpop.f32.mrb[0].mxu0
  %v4641 = vadd.f32 0.0, %v4640
  %v4642 = vpop.f32.mrb[0].mxu0
  %4643 = vmatprep.mubr.bf16.mxu0 0
  %4644 = vmatmul.mubr.bf16.gmra.mrb[0].mxu0 %v4595
  %v4645 = vpop.f32.mrb[0].mxu0
  %v4646 = vadd.f32 0.0, %v4645
  %v4647 = vpop.f32.mrb[0].mxu0
  %v4648 = vpop.f32.mrb[0].mxu0
  %v4649 = vadd.f32 0.0, %v4648
  %v4650 = vpop.f32.mrb[0].mxu0
  %4651 = vmatprep.mubr.bf16.mxu0 0
  %4652 = vmatmul.mubr.bf16.gmra.mrb[0].mxu0 %v4598
  %v4653 = vpop.f32.mrb[0].mxu0
  %v4654 = vadd.f32 0.0, %v4653
  %v4655 = vpop.f32.mrb[0].mxu0
  %v4656 = vpop.f32.mrb[0].mxu0
  %v4657 = vadd.f32 0.0, %v4656
  %v4658 = vpop.f32.mrb[0].mxu0
  %4659 = vmatprep.mubr.bf16.mxu0 0
  %4660 = vmatmul.mubr.bf16.gmra.mrb[0].mxu0 %v4601
  %v4661 = vpop.f32.mrb[0].mxu0
  %v4662 = vadd.f32 0.0, %v4661
  %v4663 = vpop.f32.mrb[0].mxu0
  %v4664 = vpop.f32.mrb[0].mxu0
  %v4665 = vadd.f32 0.0, %v4664
  %v4666 = vpop.f32.mrb[0].mxu0
  %4667 = vdwg.mxu0
  %v4668 = vadd.f32 %v4426, %v4638
  %v4669 = vadd.f32 %v4427, %v4641
  %v4670 = vadd.f32 %v4428, %v4646
  %v4671 = vadd.f32 %v4429, %v4649
  %v4672 = vadd.f32 %v4430, %v4654
  %v4673 = vadd.f32 %v4431, %v4657
  %v4674 = vadd.f32 %v4432, %v4662
  %v4675 = vadd.f32 %v4433, %v4665
  %v4676 = vld [vmem:[%s155] sm:$0xe]
  %v4677 = vld [vmem:[%s155 + $0x8] sm:$0xe]
  %v4678 = vld [vmem:[%s155 + $0x10] sm:$0xe]
  %v4679 = vld [vmem:[%s155 + $0x18] sm:$0xe]
  %v4680 = vld [vmem:[%s155 + $0x20] sm:$0xe]
  %v4681 = vld [vmem:[%s155 + $0x28] sm:$0xe]
  %v4682 = vld [vmem:[%s155 + $0x30] sm:$0xe]
  %v4683 = vld [vmem:[%s155 + $0x38] sm:$0xe]
  %v4700 = vrot.slane %v4676, 5
  %v4701 = vrot.slane %v4700, 4
  %v4702 = vrot.slane %v4435, 5
  %v4703 = vsel %vm587, %v4701, %v4702
  %v4704 = vrot.slane %v4677, 5
  %v4705 = vrot.slane %v4704, 4
  %v4706 = vrot.slane %v4437, 5
  %v4707 = vsel %vm587, %v4705, %v4706
  %v4708 = vrot.slane %v4678, 5
  %v4709 = vrot.slane %v4708, 4
  %v4710 = vrot.slane %v4439, 5
  %v4711 = vsel %vm587, %v4709, %v4710
  %v4712 = vrot.slane %v4679, 5
  %v4713 = vrot.slane %v4712, 4
  %v4714 = vrot.slane %v4441, 5
  %v4715 = vsel %vm587, %v4713, %v4714
  %v4716 = vrot.slane %v4680, 5
  %v4717 = vrot.slane %v4716, 4
  %v4718 = vrot.slane %v4443, 5
  %v4719 = vsel %vm587, %v4717, %v4718
  %v4720 = vrot.slane %v4681, 5
  %v4721 = vrot.slane %v4720, 4
  %v4722 = vrot.slane %v4445, 5
  %v4723 = vsel %vm587, %v4721, %v4722
  %v4724 = vrot.slane %v4682, 5
  %v4725 = vrot.slane %v4724, 4
  %v4726 = vrot.slane %v4447, 5
  %v4727 = vsel %vm587, %v4725, %v4726
  %v4728 = vrot.slane %v4683, 5
  %v4729 = vrot.slane %v4728, 4
  %v4730 = vrot.slane %v4449, 5
  %v4731 = vsel %vm587, %v4729, %v4730
  %s4732 = scalar_lea.vmem %s2, 368
  %v4733 = vld [vmem:[%s4732] sm:$0xf]
  %v4734 = vld [vmem:[%s4732 + $0x4] sm:$0xf]
  %v4735 = vld [vmem:[%s4732 + $0x8] sm:$0xf]
  %v4736 = vld [vmem:[%s4732 + $0xc] sm:$0xf]
  %v4737 = vunpack.c.l.b16 %v4703
  %v4738 = vunpack.c.l.b16 %v4707
  %v4739 = vunpack.c.l.b16 %v4711
  %v4740 = vunpack.c.l.b16 %v4715
  %v4741 = vunpack.c.l.b16 %v4719
  %v4742 = vunpack.c.l.b16 %v4723
  %v4743 = vunpack.c.l.b16 %v4727
  %v4744 = vunpack.c.l.b16 %v4731
  %v4745 = vpack.c.b16 %v4738, %v4737
  %v4746 = vpack.c.b16 %v4740, %v4739
  %v4747 = vpack.c.b16 %v4742, %v4741
  %v4748 = vpack.c.b16 %v4744, %v4743
  %v4753 = vunpack.c.l.b16 %v4733
  %v4754 = vunpack.c.l.b16 %v4734
  %v4755 = vunpack.c.l.b16 %v4735
  %v4756 = vunpack.c.l.b16 %v4736
  %v4757 = vpack.c.b16 %v4754, %v4753
  %v4758 = vpack.c.b16 %v4756, %v4755
  %v4762 = vsel %vm374, %v4745, 0
  %v4765 = vsel %vm374, %v4746, 0
  %v4768 = vsel %vm374, %v4747, 0
  %v4771 = vsel %vm374, %v4748, 0
  %4773 = vmatprep.subr.bf16.mxu0 0
  %4774 = vmatpush1.bf16.msra.mxu0 %v4757
  %4775 = vmatprep.subr.bf16.mxu0 0
  %4776 = vmatpush1.bf16.msra.mxu0 %v4758
  %4777 = vmatprep.subr.bf16.mxu0 0
  %4778 = vmatpush1.bf16.msra.mxu0 0
  %4779 = vmatprep.subr.bf16.mxu0 0
  %4780 = vmatpush1.bf16.msra.mxu0 0
  %4781 = vmatprep.subr.bf16.mxu0 0
  %4782 = vmatpush1.bf16.msra.mxu0 0
  %4783 = vmatprep.subr.bf16.mxu0 0
  %4784 = vmatpush1.bf16.msra.mxu0 0
  %4785 = vmatprep.subr.bf16.mxu0 0
  %4786 = vmatpush1.bf16.msra.mxu0 0
  %4787 = vmatprep.subr.bf16.mxu0 0
  %4788 = vmatpush1.bf16.msra.mxu0 0
  %4789 = vmatprep.subr.bf16.mxu0 0
  %4790 = vmatpush1.bf16.msra.mxu0 0
  %4791 = vmatprep.subr.bf16.mxu0 0
  %4792 = vmatpush1.bf16.msra.mxu0 0
  %4793 = vmatprep.subr.bf16.mxu0 0
  %4794 = vmatpush1.bf16.msra.mxu0 0
  %4795 = vmatprep.subr.bf16.mxu0 0
  %4796 = vmatpush1.bf16.msra.mxu0 0
  %4797 = vmatprep.subr.bf16.mxu0 0
  %4798 = vmatpush1.bf16.msra.mxu0 0
  %4799 = vmatprep.subr.bf16.mxu0 0
  %4800 = vmatpush1.bf16.msra.mxu0 0
  %4801 = vmatprep.subr.bf16.mxu0 0
  %4802 = vmatpush1.bf16.msra.mxu0 0
  %4803 = vmatprep.subr.bf16.mxu0 0
  %4804 = vmatpush1.bf16.msra.mxu0 0
  %4805 = vmatprep.mubr.bf16.mxu0 0
  %4806 = vmatmul.mubr.bf16.gmra.mrb[0].mxu0 %v4762
  %v4807 = vpop.f32.mrb[0].mxu0
  %v4808 = vadd.f32 0.0, %v4807
  %v4809 = vpop.f32.mrb[0].mxu0
  %v4810 = vpop.f32.mrb[0].mxu0
  %v4811 = vadd.f32 0.0, %v4810
  %v4812 = vpop.f32.mrb[0].mxu0
  %4813 = vmatprep.mubr.bf16.mxu0 0
  %4814 = vmatmul.mubr.bf16.gmra.mrb[0].mxu0 %v4765
  %v4815 = vpop.f32.mrb[0].mxu0
  %v4816 = vadd.f32 0.0, %v4815
  %v4817 = vpop.f32.mrb[0].mxu0
  %v4818 = vpop.f32.mrb[0].mxu0
  %v4819 = vadd.f32 0.0, %v4818
  %v4820 = vpop.f32.mrb[0].mxu0
  %4821 = vmatprep.mubr.bf16.mxu0 0
  %4822 = vmatmul.mubr.bf16.gmra.mrb[0].mxu0 %v4768
  %v4823 = vpop.f32.mrb[0].mxu0
  %v4824 = vadd.f32 0.0, %v4823
  %v4825 = vpop.f32.mrb[0].mxu0
  %v4826 = vpop.f32.mrb[0].mxu0
  %v4827 = vadd.f32 0.0, %v4826
  %v4828 = vpop.f32.mrb[0].mxu0
  %4829 = vmatprep.mubr.bf16.mxu0 0
  %4830 = vmatmul.mubr.bf16.gmra.mrb[0].mxu0 %v4771
  %v4831 = vpop.f32.mrb[0].mxu0
  %v4832 = vadd.f32 0.0, %v4831
  %v4833 = vpop.f32.mrb[0].mxu0
  %v4834 = vpop.f32.mrb[0].mxu0
  %v4835 = vadd.f32 0.0, %v4834
  %v4836 = vpop.f32.mrb[0].mxu0
  %4837 = vdwg.mxu0
  %v4838 = vadd.f32 %v4668, %v4808
  %v4839 = vadd.f32 %v4669, %v4811
  %v4840 = vadd.f32 %v4670, %v4816
  %v4841 = vadd.f32 %v4671, %v4819
  %v4842 = vadd.f32 %v4672, %v4824
  %v4843 = vadd.f32 %v4673, %v4827
  %v4844 = vadd.f32 %v4674, %v4832
  %v4845 = vadd.f32 %v4675, %v4835
  %v4846 = vld [vmem:[%s1276] sm:$0xf]
  %v4847 = vld [vmem:[%s1276 + $0x8] sm:$0xf]
  %v4848 = vld [vmem:[%s1276 + $0x10] sm:$0xf]
  %v4849 = vld [vmem:[%s1276 + $0x18] sm:$0xf]
  %v4850 = vld [vmem:[%s1276 + $0x20] sm:$0xf]
  %v4851 = vld [vmem:[%s1276 + $0x28] sm:$0xf]
  %v4852 = vld [vmem:[%s1276 + $0x30] sm:$0xf]
  %v4853 = vld [vmem:[%s1276 + $0x38] sm:$0xf]
  %s4854 = scalar_lea.vmem %s2, 384
  %v4855 = vld [vmem:[%s4854] sm:$0xf]
  %v4856 = vld [vmem:[%s4854 + $0x4] sm:$0xf]
  %v4857 = vld [vmem:[%s4854 + $0x8] sm:$0xf]
  %v4858 = vld [vmem:[%s4854 + $0xc] sm:$0xf]
  %v4867 = vunpack.c.l.b16 %v4846
  %v4868 = vunpack.c.l.b16 %v4847
  %v4869 = vunpack.c.l.b16 %v4848
  %v4870 = vunpack.c.l.b16 %v4849
  %v4871 = vunpack.c.l.b16 %v4850
  %v4872 = vunpack.c.l.b16 %v4851
  %v4873 = vunpack.c.l.b16 %v4852
  %v4874 = vunpack.c.l.b16 %v4853
  %v4875 = vpack.c.b16 %v4868, %v4867
  %v4876 = vpack.c.b16 %v4870, %v4869
  %v4877 = vpack.c.b16 %v4872, %v4871
  %v4878 = vpack.c.b16 %v4874, %v4873
  %v4883 = vunpack.c.l.b16 %v4855
  %v4884 = vunpack.c.l.b16 %v4856
  %v4885 = vunpack.c.l.b16 %v4857
  %v4886 = vunpack.c.l.b16 %v4858
  %v4887 = vpack.c.b16 %v4884, %v4883
  %v4888 = vpack.c.b16 %v4886, %v4885
  %v4892 = vsel %vm374, %v4875, 0
  %v4895 = vsel %vm374, %v4876, 0
  %v4898 = vsel %vm374, %v4877, 0
  %v4901 = vsel %vm374, %v4878, 0
  %4903 = vmatprep.subr.bf16.mxu0 0
  %4904 = vmatpush1.bf16.msra.mxu0 %v4887
  %4905 = vmatprep.subr.bf16.mxu0 0
  %4906 = vmatpush1.bf16.msra.mxu0 %v4888
  %4907 = vmatprep.subr.bf16.mxu0 0
  %4908 = vmatpush1.bf16.msra.mxu0 0
  %4909 = vmatprep.subr.bf16.mxu0 0
  %4910 = vmatpush1.bf16.msra.mxu0 0
  %4911 = vmatprep.subr.bf16.mxu0 0
  %4912 = vmatpush1.bf16.msra.mxu0 0
  %4913 = vmatprep.subr.bf16.mxu0 0
  %4914 = vmatpush1.bf16.msra.mxu0 0
  %4915 = vmatprep.subr.bf16.mxu0 0
  %4916 = vmatpush1.bf16.msra.mxu0 0
  %4917 = vmatprep.subr.bf16.mxu0 0
  %4918 = vmatpush1.bf16.msra.mxu0 0
  %4919 = vmatprep.subr.bf16.mxu0 0
  %4920 = vmatpush1.bf16.msra.mxu0 0
  %4921 = vmatprep.subr.bf16.mxu0 0
  %4922 = vmatpush1.bf16.msra.mxu0 0
  %4923 = vmatprep.subr.bf16.mxu0 0
  %4924 = vmatpush1.bf16.msra.mxu0 0
  %4925 = vmatprep.subr.bf16.mxu0 0
  %4926 = vmatpush1.bf16.msra.mxu0 0
  %4927 = vmatprep.subr.bf16.mxu0 0
  %4928 = vmatpush1.bf16.msra.mxu0 0
  %4929 = vmatprep.subr.bf16.mxu0 0
  %4930 = vmatpush1.bf16.msra.mxu0 0
  %4931 = vmatprep.subr.bf16.mxu0 0
  %4932 = vmatpush1.bf16.msra.mxu0 0
  %4933 = vmatprep.subr.bf16.mxu0 0
  %4934 = vmatpush1.bf16.msra.mxu0 0
  %4935 = vmatprep.mubr.bf16.mxu0 0
  %4936 = vmatmul.mubr.bf16.gmra.mrb[0].mxu0 %v4892
  %v4937 = vpop.f32.mrb[0].mxu0
  %v4938 = vadd.f32 0.0, %v4937
  %v4939 = vpop.f32.mrb[0].mxu0
  %v4940 = vpop.f32.mrb[0].mxu0
  %v4941 = vadd.f32 0.0, %v4940
  %v4942 = vpop.f32.mrb[0].mxu0
  %4943 = vmatprep.mubr.bf16.mxu0 0
  %4944 = vmatmul.mubr.bf16.gmra.mrb[0].mxu0 %v4895
  %v4945 = vpop.f32.mrb[0].mxu0
  %v4946 = vadd.f32 0.0, %v4945
  %v4947 = vpop.f32.mrb[0].mxu0
  %v4948 = vpop.f32.mrb[0].mxu0
  %v4949 = vadd.f32 0.0, %v4948
  %v4950 = vpop.f32.mrb[0].mxu0
  %4951 = vmatprep.mubr.bf16.mxu0 0
  %4952 = vmatmul.mubr.bf16.gmra.mrb[0].mxu0 %v4898
  %v4953 = vpop.f32.mrb[0].mxu0
  %v4954 = vadd.f32 0.0, %v4953
  %v4955 = vpop.f32.mrb[0].mxu0
  %v4956 = vpop.f32.mrb[0].mxu0
  %v4957 = vadd.f32 0.0, %v4956
  %v4958 = vpop.f32.mrb[0].mxu0
  %4959 = vmatprep.mubr.bf16.mxu0 0
  %4960 = vmatmul.mubr.bf16.gmra.mrb[0].mxu0 %v4901
  %v4961 = vpop.f32.mrb[0].mxu0
  %v4962 = vadd.f32 0.0, %v4961
  %v4963 = vpop.f32.mrb[0].mxu0
  %v4964 = vpop.f32.mrb[0].mxu0
  %v4965 = vadd.f32 0.0, %v4964
  %v4966 = vpop.f32.mrb[0].mxu0
  %4967 = vdwg.mxu0
  %v4968 = vadd.f32 %v4838, %v4938
  %v4969 = vadd.f32 %v4839, %v4941
  %v4970 = vadd.f32 %v4840, %v4946
  %v4971 = vadd.f32 %v4841, %v4949
  %v4972 = vadd.f32 %v4842, %v4954
  %v4973 = vadd.f32 %v4843, %v4957
  %v4974 = vadd.f32 %v4844, %v4962
  %v4975 = vadd.f32 %v4845, %v4965
  %v4976 = vld [vmem:[%s1276] sm:$0xf]
  %v4977 = vld [vmem:[%s1276 + $0x4] sm:$0x1]
  %v4978 = vld [vmem:[%s1276 + $0x8] sm:$0xf]
  %v4979 = vld [vmem:[%s1276 + $0xc] sm:$0x1]
  %v4980 = vld [vmem:[%s1276 + $0x10] sm:$0xf]
  %v4981 = vld [vmem:[%s1276 + $0x14] sm:$0x1]
  %v4982 = vld [vmem:[%s1276 + $0x18] sm:$0xf]
  %v4983 = vld [vmem:[%s1276 + $0x1c] sm:$0x1]
  %v4984 = vld [vmem:[%s1276 + $0x20] sm:$0xf]
  %v4985 = vld [vmem:[%s1276 + $0x24] sm:$0x1]
  %v4986 = vld [vmem:[%s1276 + $0x28] sm:$0xf]
  %v4987 = vld [vmem:[%s1276 + $0x2c] sm:$0x1]
  %v4988 = vld [vmem:[%s1276 + $0x30] sm:$0xf]
  %v4989 = vld [vmem:[%s1276 + $0x34] sm:$0x1]
  %v4990 = vld [vmem:[%s1276 + $0x38] sm:$0xf]
  %v4991 = vld [vmem:[%s1276 + $0x3c] sm:$0x1]
  %v4993 = vshrl.u32 %v4976, 16
  %v4995 = vrot.slane %v4993, 4
  %v4996 = vshll.u32 %v4976, 16
  %v4998 = vrot.slane %v4996, 5
  %v4999 = vor.u32 %v4995, %v4998
  %v5000 = vrot.slane %v4999, 4
  %v5002 = vshll.u32 %v4977, 16
  %v5004 = vrot.slane %v5002, 5
  %v5005 = vsel %vm232, %v5000, %v5004
  %v5007 = vshrl.u32 %v4978, 16
  %v5009 = vrot.slane %v5007, 4
  %v5010 = vshll.u32 %v4978, 16
  %v5012 = vrot.slane %v5010, 5
  %v5013 = vor.u32 %v5009, %v5012
  %v5014 = vrot.slane %v5013, 4
  %v5016 = vshll.u32 %v4979, 16
  %v5018 = vrot.slane %v5016, 5
  %v5019 = vsel %vm232, %v5014, %v5018
  %v5021 = vshrl.u32 %v4980, 16
  %v5023 = vrot.slane %v5021, 4
  %v5024 = vshll.u32 %v4980, 16
  %v5026 = vrot.slane %v5024, 5
  %v5027 = vor.u32 %v5023, %v5026
  %v5028 = vrot.slane %v5027, 4
  %v5030 = vshll.u32 %v4981, 16
  %v5032 = vrot.slane %v5030, 5
  %v5033 = vsel %vm232, %v5028, %v5032
  %v5035 = vshrl.u32 %v4982, 16
  %v5037 = vrot.slane %v5035, 4
  %v5038 = vshll.u32 %v4982, 16
  %v5040 = vrot.slane %v5038, 5
  %v5041 = vor.u32 %v5037, %v5040
  %v5042 = vrot.slane %v5041, 4
  %v5044 = vshll.u32 %v4983, 16
  %v5046 = vrot.slane %v5044, 5
  %v5047 = vsel %vm232, %v5042, %v5046
  %v5049 = vshrl.u32 %v4984, 16
  %v5051 = vrot.slane %v5049, 4
  %v5052 = vshll.u32 %v4984, 16
  %v5054 = vrot.slane %v5052, 5
  %v5055 = vor.u32 %v5051, %v5054
  %v5056 = vrot.slane %v5055, 4
  %v5058 = vshll.u32 %v4985, 16
  %v5060 = vrot.slane %v5058, 5
  %v5061 = vsel %vm232, %v5056, %v5060
  %v5063 = vshrl.u32 %v4986, 16
  %v5065 = vrot.slane %v5063, 4
  %v5066 = vshll.u32 %v4986, 16
  %v5068 = vrot.slane %v5066, 5
  %v5069 = vor.u32 %v5065, %v5068
  %v5070 = vrot.slane %v5069, 4
  %v5072 = vshll.u32 %v4987, 16
  %v5074 = vrot.slane %v5072, 5
  %v5075 = vsel %vm232, %v5070, %v5074
  %v5077 = vshrl.u32 %v4988, 16
  %v5079 = vrot.slane %v5077, 4
  %v5080 = vshll.u32 %v4988, 16
  %v5082 = vrot.slane %v5080, 5
  %v5083 = vor.u32 %v5079, %v5082
  %v5084 = vrot.slane %v5083, 4
  %v5086 = vshll.u32 %v4989, 16
  %v5088 = vrot.slane %v5086, 5
  %v5089 = vsel %vm232, %v5084, %v5088
  %v5091 = vshrl.u32 %v4990, 16
  %v5093 = vrot.slane %v5091, 4
  %v5094 = vshll.u32 %v4990, 16
  %v5096 = vrot.slane %v5094, 5
  %v5097 = vor.u32 %v5093, %v5096
  %v5098 = vrot.slane %v5097, 4
  %v5100 = vshll.u32 %v4991, 16
  %v5102 = vrot.slane %v5100, 5
  %v5103 = vsel %vm232, %v5098, %v5102
  %s5104 = scalar_lea.vmem %s2, 400
  %v5105 = vld [vmem:[%s5104] sm:$0xf]
  %v5106 = vld [vmem:[%s5104 + $0x4] sm:$0xf]
  %v5107 = vld [vmem:[%s5104 + $0x8] sm:$0xf]
  %v5108 = vld [vmem:[%s5104 + $0xc] sm:$0xf]
  %v5109 = vunpack.c.l.b16 %v5005
  %v5110 = vunpack.c.l.b16 %v5019
  %v5111 = vunpack.c.l.b16 %v5033
  %v5112 = vunpack.c.l.b16 %v5047
  %v5113 = vunpack.c.l.b16 %v5061
  %v5114 = vunpack.c.l.b16 %v5075
  %v5115 = vunpack.c.l.b16 %v5089
  %v5116 = vunpack.c.l.b16 %v5103
  %v5117 = vpack.c.b16 %v5110, %v5109
  %v5118 = vpack.c.b16 %v5112, %v5111
  %v5119 = vpack.c.b16 %v5114, %v5113
  %v5120 = vpack.c.b16 %v5116, %v5115
  %v5125 = vunpack.c.l.b16 %v5105
  %v5126 = vunpack.c.l.b16 %v5106
  %v5127 = vunpack.c.l.b16 %v5107
  %v5128 = vunpack.c.l.b16 %v5108
  %v5129 = vpack.c.b16 %v5126, %v5125
  %v5130 = vpack.c.b16 %v5128, %v5127
  %v5134 = vsel %vm374, %v5117, 0
  %v5137 = vsel %vm374, %v5118, 0
  %v5140 = vsel %vm374, %v5119, 0
  %v5143 = vsel %vm374, %v5120, 0
  %5145 = vmatprep.subr.bf16.mxu0 0
  %5146 = vmatpush1.bf16.msra.mxu0 %v5129
  %5147 = vmatprep.subr.bf16.mxu0 0
  %5148 = vmatpush1.bf16.msra.mxu0 %v5130
  %5149 = vmatprep.subr.bf16.mxu0 0
  %5150 = vmatpush1.bf16.msra.mxu0 0
  %5151 = vmatprep.subr.bf16.mxu0 0
  %5152 = vmatpush1.bf16.msra.mxu0 0
  %5153 = vmatprep.subr.bf16.mxu0 0
  %5154 = vmatpush1.bf16.msra.mxu0 0
  %5155 = vmatprep.subr.bf16.mxu0 0
  %5156 = vmatpush1.bf16.msra.mxu0 0
  %5157 = vmatprep.subr.bf16.mxu0 0
  %5158 = vmatpush1.bf16.msra.mxu0 0
  %5159 = vmatprep.subr.bf16.mxu0 0
  %5160 = vmatpush1.bf16.msra.mxu0 0
  %5161 = vmatprep.subr.bf16.mxu0 0
  %5162 = vmatpush1.bf16.msra.mxu0 0
  %5163 = vmatprep.subr.bf16.mxu0 0
  %5164 = vmatpush1.bf16.msra.mxu0 0
  %5165 = vmatprep.subr.bf16.mxu0 0
  %5166 = vmatpush1.bf16.msra.mxu0 0
  %5167 = vmatprep.subr.bf16.mxu0 0
  %5168 = vmatpush1.bf16.msra.mxu0 0
  %5169 = vmatprep.subr.bf16.mxu0 0
  %5170 = vmatpush1.bf16.msra.mxu0 0
  %5171 = vmatprep.subr.bf16.mxu0 0
  %5172 = vmatpush1.bf16.msra.mxu0 0
  %5173 = vmatprep.subr.bf16.mxu0 0
  %5174 = vmatpush1.bf16.msra.mxu0 0
  %5175 = vmatprep.subr.bf16.mxu0 0
  %5176 = vmatpush1.bf16.msra.mxu0 0
  %5177 = vmatprep.mubr.bf16.mxu0 0
  %5178 = vmatmul.mubr.bf16.gmra.mrb[0].mxu0 %v5134
  %v5179 = vpop.f32.mrb[0].mxu0
  %v5180 = vadd.f32 0.0, %v5179
  %v5181 = vpop.f32.mrb[0].mxu0
  %v5182 = vpop.f32.mrb[0].mxu0
  %v5183 = vadd.f32 0.0, %v5182
  %v5184 = vpop.f32.mrb[0].mxu0
  %5185 = vmatprep.mubr.bf16.mxu0 0
  %5186 = vmatmul.mubr.bf16.gmra.mrb[0].mxu0 %v5137
  %v5187 = vpop.f32.mrb[0].mxu0
  %v5188 = vadd.f32 0.0, %v5187
  %v5189 = vpop.f32.mrb[0].mxu0
  %v5190 = vpop.f32.mrb[0].mxu0
  %v5191 = vadd.f32 0.0, %v5190
  %v5192 = vpop.f32.mrb[0].mxu0
  %5193 = vmatprep.mubr.bf16.mxu0 0
  %5194 = vmatmul.mubr.bf16.gmra.mrb[0].mxu0 %v5140
  %v5195 = vpop.f32.mrb[0].mxu0
  %v5196 = vadd.f32 0.0, %v5195
  %v5197 = vpop.f32.mrb[0].mxu0
  %v5198 = vpop.f32.mrb[0].mxu0
  %v5199 = vadd.f32 0.0, %v5198
  %v5200 = vpop.f32.mrb[0].mxu0
  %5201 = vmatprep.mubr.bf16.mxu0 0
  %5202 = vmatmul.mubr.bf16.gmra.mrb[0].mxu0 %v5143
  %v5203 = vpop.f32.mrb[0].mxu0
  %v5204 = vadd.f32 0.0, %v5203
  %v5205 = vpop.f32.mrb[0].mxu0
  %v5206 = vpop.f32.mrb[0].mxu0
  %v5207 = vadd.f32 0.0, %v5206
  %v5208 = vpop.f32.mrb[0].mxu0
  %5209 = vdwg.mxu0
  %v5210 = vadd.f32 %v4968, %v5180
  %v5211 = vadd.f32 %v4969, %v5183
  %v5212 = vadd.f32 %v4970, %v5188
  %v5213 = vadd.f32 %v4971, %v5191
  %v5214 = vadd.f32 %v4972, %v5196
  %v5215 = vadd.f32 %v4973, %v5199
  %v5216 = vadd.f32 %v4974, %v5204
  %v5217 = vadd.f32 %v4975, %v5207
  %v5218 = vld [vmem:[%s1276] sm:$0xe]
  %v5219 = vld [vmem:[%s1276 + $0x8] sm:$0xe]
  %v5220 = vld [vmem:[%s1276 + $0x10] sm:$0xe]
  %v5221 = vld [vmem:[%s1276 + $0x18] sm:$0xe]
  %v5222 = vld [vmem:[%s1276 + $0x20] sm:$0xe]
  %v5223 = vld [vmem:[%s1276 + $0x28] sm:$0xe]
  %v5224 = vld [vmem:[%s1276 + $0x30] sm:$0xe]
  %v5225 = vld [vmem:[%s1276 + $0x38] sm:$0xe]
  %v5242 = vrot.slane %v5218, 5
  %v5243 = vrot.slane %v5242, 4
  %v5244 = vrot.slane %v4977, 5
  %v5245 = vsel %vm587, %v5243, %v5244
  %v5246 = vrot.slane %v5219, 5
  %v5247 = vrot.slane %v5246, 4
  %v5248 = vrot.slane %v4979, 5
  %v5249 = vsel %vm587, %v5247, %v5248
  %v5250 = vrot.slane %v5220, 5
  %v5251 = vrot.slane %v5250, 4
  %v5252 = vrot.slane %v4981, 5
  %v5253 = vsel %vm587, %v5251, %v5252
  %v5254 = vrot.slane %v5221, 5
  %v5255 = vrot.slane %v5254, 4
  %v5256 = vrot.slane %v4983, 5
  %v5257 = vsel %vm587, %v5255, %v5256
  %v5258 = vrot.slane %v5222, 5
  %v5259 = vrot.slane %v5258, 4
  %v5260 = vrot.slane %v4985, 5
  %v5261 = vsel %vm587, %v5259, %v5260
  %v5262 = vrot.slane %v5223, 5
  %v5263 = vrot.slane %v5262, 4
  %v5264 = vrot.slane %v4987, 5
  %v5265 = vsel %vm587, %v5263, %v5264
  %v5266 = vrot.slane %v5224, 5
  %v5267 = vrot.slane %v5266, 4
  %v5268 = vrot.slane %v4989, 5
  %v5269 = vsel %vm587, %v5267, %v5268
  %v5270 = vrot.slane %v5225, 5
  %v5271 = vrot.slane %v5270, 4
  %v5272 = vrot.slane %v4991, 5
  %v5273 = vsel %vm587, %v5271, %v5272
  %s5274 = scalar_lea.vmem %s2, 416
  %v5275 = vld [vmem:[%s5274] sm:$0xf]
  %v5276 = vld [vmem:[%s5274 + $0x4] sm:$0xf]
  %v5277 = vld [vmem:[%s5274 + $0x8] sm:$0xf]
  %v5278 = vld [vmem:[%s5274 + $0xc] sm:$0xf]
  %v5279 = vunpack.c.l.b16 %v5245
  %v5280 = vunpack.c.l.b16 %v5249
  %v5281 = vunpack.c.l.b16 %v5253
  %v5282 = vunpack.c.l.b16 %v5257
  %v5283 = vunpack.c.l.b16 %v5261
  %v5284 = vunpack.c.l.b16 %v5265
  %v5285 = vunpack.c.l.b16 %v5269
  %v5286 = vunpack.c.l.b16 %v5273
  %v5287 = vpack.c.b16 %v5280, %v5279
  %v5288 = vpack.c.b16 %v5282, %v5281
  %v5289 = vpack.c.b16 %v5284, %v5283
  %v5290 = vpack.c.b16 %v5286, %v5285
  %v5295 = vunpack.c.l.b16 %v5275
  %v5296 = vunpack.c.l.b16 %v5276
  %v5297 = vunpack.c.l.b16 %v5277
  %v5298 = vunpack.c.l.b16 %v5278
  %v5299 = vpack.c.b16 %v5296, %v5295
  %v5300 = vpack.c.b16 %v5298, %v5297
  %v5304 = vsel %vm374, %v5287, 0
  %v5307 = vsel %vm374, %v5288, 0
  %v5310 = vsel %vm374, %v5289, 0
  %v5313 = vsel %vm374, %v5290, 0
  %5315 = vmatprep.subr.bf16.mxu0 0
  %5316 = vmatpush1.bf16.msra.mxu0 %v5299
  %5317 = vmatprep.subr.bf16.mxu0 0
  %5318 = vmatpush1.bf16.msra.mxu0 %v5300
  %5319 = vmatprep.subr.bf16.mxu0 0
  %5320 = vmatpush1.bf16.msra.mxu0 0
  %5321 = vmatprep.subr.bf16.mxu0 0
  %5322 = vmatpush1.bf16.msra.mxu0 0
  %5323 = vmatprep.subr.bf16.mxu0 0
  %5324 = vmatpush1.bf16.msra.mxu0 0
  %5325 = vmatprep.subr.bf16.mxu0 0
  %5326 = vmatpush1.bf16.msra.mxu0 0
  %5327 = vmatprep.subr.bf16.mxu0 0
  %5328 = vmatpush1.bf16.msra.mxu0 0
  %5329 = vmatprep.subr.bf16.mxu0 0
  %5330 = vmatpush1.bf16.msra.mxu0 0
  %5331 = vmatprep.subr.bf16.mxu0 0
  %5332 = vmatpush1.bf16.msra.mxu0 0
  %5333 = vmatprep.subr.bf16.mxu0 0
  %5334 = vmatpush1.bf16.msra.mxu0 0
  %5335 = vmatprep.subr.bf16.mxu0 0
  %5336 = vmatpush1.bf16.msra.mxu0 0
  %5337 = vmatprep.subr.bf16.mxu0 0
  %5338 = vmatpush1.bf16.msra.mxu0 0
  %5339 = vmatprep.subr.bf16.mxu0 0
  %5340 = vmatpush1.bf16.msra.mxu0 0
  %5341 = vmatprep.subr.bf16.mxu0 0
  %5342 = vmatpush1.bf16.msra.mxu0 0
  %5343 = vmatprep.subr.bf16.mxu0 0
  %5344 = vmatpush1.bf16.msra.mxu0 0
  %5345 = vmatprep.subr.bf16.mxu0 0
  %5346 = vmatpush1.bf16.msra.mxu0 0
  %5347 = vmatprep.mubr.bf16.mxu0 0
  %5348 = vmatmul.mubr.bf16.gmra.mrb[0].mxu0 %v5304
  %v5349 = vpop.f32.mrb[0].mxu0
  %v5350 = vadd.f32 0.0, %v5349
  %v5351 = vpop.f32.mrb[0].mxu0
  %v5352 = vpop.f32.mrb[0].mxu0
  %v5353 = vadd.f32 0.0, %v5352
  %v5354 = vpop.f32.mrb[0].mxu0
  %5355 = vmatprep.mubr.bf16.mxu0 0
  %5356 = vmatmul.mubr.bf16.gmra.mrb[0].mxu0 %v5307
  %v5357 = vpop.f32.mrb[0].mxu0
  %v5358 = vadd.f32 0.0, %v5357
  %v5359 = vpop.f32.mrb[0].mxu0
  %v5360 = vpop.f32.mrb[0].mxu0
  %v5361 = vadd.f32 0.0, %v5360
  %v5362 = vpop.f32.mrb[0].mxu0
  %5363 = vmatprep.mubr.bf16.mxu0 0
  %5364 = vmatmul.mubr.bf16.gmra.mrb[0].mxu0 %v5310
  %v5365 = vpop.f32.mrb[0].mxu0
  %v5366 = vadd.f32 0.0, %v5365
  %v5367 = vpop.f32.mrb[0].mxu0
  %v5368 = vpop.f32.mrb[0].mxu0
  %v5369 = vadd.f32 0.0, %v5368
  %v5370 = vpop.f32.mrb[0].mxu0
  %5371 = vmatprep.mubr.bf16.mxu0 0
  %5372 = vmatmul.mubr.bf16.gmra.mrb[0].mxu0 %v5313
  %v5373 = vpop.f32.mrb[0].mxu0
  %v5374 = vadd.f32 0.0, %v5373
  %v5375 = vpop.f32.mrb[0].mxu0
  %v5376 = vpop.f32.mrb[0].mxu0
  %v5377 = vadd.f32 0.0, %v5376
  %v5378 = vpop.f32.mrb[0].mxu0
  %5379 = vdwg.mxu0
  %v5380 = vadd.f32 %v5210, %v5350
  %v5381 = vadd.f32 %v5211, %v5353
  %v5382 = vadd.f32 %v5212, %v5358
  %v5383 = vadd.f32 %v5213, %v5361
  %v5384 = vadd.f32 %v5214, %v5366
  %v5385 = vadd.f32 %v5215, %v5369
  %v5386 = vadd.f32 %v5216, %v5374
  %v5387 = vadd.f32 %v5217, %v5377
  %s5388 = scalar_lea.vmem %s3, 2
  %v5389 = vld [vmem:[%s5388] sm:$0x1]
  %v5391 = vlaneseq
  %v5392 = vshrl.u32 %v5391, 7
  %v5393 = vsub.s32 0, %v5392
  %v5394 = vrot.slane %v5389, %v5393
  %v5396 = vadd.f32 %v5380, %v5394
  %v5397 = vadd.f32 %v5381, %v5394
  %v5398 = vadd.f32 %v5382, %v5394
  %v5399 = vadd.f32 %v5383, %v5394
  %v5400 = vadd.f32 %v5384, %v5394
  %v5401 = vadd.f32 %v5385, %v5394
  %v5402 = vadd.f32 %v5386, %v5394
  %v5403 = vadd.f32 %v5387, %v5394
  %v5404 = vmax.f32 %v5396, 0.0
  %v5405 = vmax.f32 %v5397, 0.0
  %v5406 = vmax.f32 %v5398, 0.0
  %v5407 = vmax.f32 %v5399, 0.0
  %v5408 = vmax.f32 %v5400, 0.0
  %v5409 = vmax.f32 %v5401, 0.0
  %v5410 = vmax.f32 %v5402, 0.0
  %v5411 = vmax.f32 %v5403, 0.0
  %v5412 = vpack.c.bf16 %v5404, %v5404
  %v5413 = vpack.c.bf16 %v5405, %v5405
  %v5414 = vpack.c.bf16 %v5406, %v5406
  %v5415 = vpack.c.bf16 %v5407, %v5407
  %v5416 = vpack.c.bf16 %v5408, %v5408
  %v5417 = vpack.c.bf16 %v5409, %v5409
  %v5418 = vpack.c.bf16 %v5410, %v5410
  %v5419 = vpack.c.bf16 %v5411, %v5411
  %v5428 = vunpack.c.l.b16 %v5412
  %v5429 = vunpack.c.l.b16 %v5413
  %v5430 = vunpack.c.l.b16 %v5414
  %v5431 = vunpack.c.l.b16 %v5415
  %v5432 = vunpack.c.l.b16 %v5416
  %v5433 = vunpack.c.l.b16 %v5417
  %v5434 = vunpack.c.l.b16 %v5418
  %v5435 = vunpack.c.l.b16 %v5419
  %v5436 = vpack.c.b16 %v5428, %v5428
  %v5437 = vpack.c.b16 %v5429, %v5429
  %v5438 = vpack.c.b16 %v5430, %v5430
  %v5439 = vpack.c.b16 %v5431, %v5431
  %v5440 = vpack.c.b16 %v5432, %v5432
  %v5441 = vpack.c.b16 %v5433, %v5433
  %v5442 = vpack.c.b16 %v5434, %v5434
  %v5443 = vpack.c.b16 %v5435, %v5435
  %v5445 = vshrl.u32 %v5436, 16
  %v5447 = vrot.slane %v5445, 7
  %v5448 = vshll.u32 %v5436, 16
  %v5450 = vor.u32 %v5447, %v5448
  %v5451 = vrot.slane %v5447, 4
  %v5453 = vshrl.u32 %v5437, 16
  %v5455 = vrot.slane %v5453, 7
  %v5456 = vshll.u32 %v5437, 16
  %v5458 = vor.u32 %v5455, %v5456
  %v5459 = vrot.slane %v5455, 4
  %v5461 = vshrl.u32 %v5438, 16
  %v5463 = vrot.slane %v5461, 7
  %v5464 = vshll.u32 %v5438, 16
  %v5466 = vor.u32 %v5463, %v5464
  %v5467 = vrot.slane %v5463, 4
  %v5469 = vshrl.u32 %v5439, 16
  %v5471 = vrot.slane %v5469, 7
  %v5472 = vshll.u32 %v5439, 16
  %v5474 = vor.u32 %v5471, %v5472
  %v5475 = vrot.slane %v5471, 4
  %v5477 = vshrl.u32 %v5440, 16
  %v5479 = vrot.slane %v5477, 7
  %v5480 = vshll.u32 %v5440, 16
  %v5482 = vor.u32 %v5479, %v5480
  %v5483 = vrot.slane %v5479, 4
  %v5485 = vshrl.u32 %v5441, 16
  %v5487 = vrot.slane %v5485, 7
  %v5488 = vshll.u32 %v5441, 16
  %v5490 = vor.u32 %v5487, %v5488
  %v5491 = vrot.slane %v5487, 4
  %v5493 = vshrl.u32 %v5442, 16
  %v5495 = vrot.slane %v5493, 7
  %v5496 = vshll.u32 %v5442, 16
  %v5498 = vor.u32 %v5495, %v5496
  %v5499 = vrot.slane %v5495, 4
  %v5501 = vshrl.u32 %v5443, 16
  %v5503 = vrot.slane %v5501, 7
  %v5504 = vshll.u32 %v5443, 16
  %v5506 = vor.u32 %v5503, %v5504
  %v5507 = vrot.slane %v5503, 4
  %v5524 = vsel %vm158, %v5450, %v4434
  %5525 = vst [vmem:[%s155] sm:$0xf] %v5524
  %v5526 = vld [vmem:[%s155 + $0x4] sm:$0x1]
  %v5527 = vsel %vm164, %v5451, %v5526
  %5528 = vst [vmem:[%s155 + $0x4] sm:$0x1] %v5527
  %v5529 = vld [vmem:[%s155 + $0x8] sm:$0xf]
  %v5530 = vsel %vm158, %v5458, %v5529
  %5531 = vst [vmem:[%s155 + $0x8] sm:$0xf] %v5530
  %v5532 = vld [vmem:[%s155 + $0xc] sm:$0x1]
  %v5533 = vsel %vm164, %v5459, %v5532
  %5534 = vst [vmem:[%s155 + $0xc] sm:$0x1] %v5533
  %v5535 = vld [vmem:[%s155 + $0x10] sm:$0xf]
  %v5536 = vsel %vm158, %v5466, %v5535
  %5537 = vst [vmem:[%s155 + $0x10] sm:$0xf] %v5536
  %v5538 = vld [vmem:[%s155 + $0x14] sm:$0x1]
  %v5539 = vsel %vm164, %v5467, %v5538
  %5540 = vst [vmem:[%s155 + $0x14] sm:$0x1] %v5539
  %v5541 = vld [vmem:[%s155 + $0x18] sm:$0xf]
  %v5542 = vsel %vm158, %v5474, %v5541
  %5543 = vst [vmem:[%s155 + $0x18] sm:$0xf] %v5542
  %v5544 = vld [vmem:[%s155 + $0x1c] sm:$0x1]
  %v5545 = vsel %vm164, %v5475, %v5544
  %5546 = vst [vmem:[%s155 + $0x1c] sm:$0x1] %v5545
  %v5547 = vld [vmem:[%s155 + $0x20] sm:$0xf]
  %v5548 = vsel %vm158, %v5482, %v5547
  %5549 = vst [vmem:[%s155 + $0x20] sm:$0xf] %v5548
  %v5550 = vld [vmem:[%s155 + $0x24] sm:$0x1]
  %v5551 = vsel %vm164, %v5483, %v5550
  %5552 = vst [vmem:[%s155 + $0x24] sm:$0x1] %v5551
  %v5553 = vld [vmem:[%s155 + $0x28] sm:$0xf]
  %v5554 = vsel %vm158, %v5490, %v5553
  %5555 = vst [vmem:[%s155 + $0x28] sm:$0xf] %v5554
  %v5556 = vld [vmem:[%s155 + $0x2c] sm:$0x1]
  %v5557 = vsel %vm164, %v5491, %v5556
  %5558 = vst [vmem:[%s155 + $0x2c] sm:$0x1] %v5557
  %v5559 = vld [vmem:[%s155 + $0x30] sm:$0xf]
  %v5560 = vsel %vm158, %v5498, %v5559
  %5561 = vst [vmem:[%s155 + $0x30] sm:$0xf] %v5560
  %v5562 = vld [vmem:[%s155 + $0x34] sm:$0x1]
  %v5563 = vsel %vm164, %v5499, %v5562
  %5564 = vst [vmem:[%s155 + $0x34] sm:$0x1] %v5563
  %v5565 = vld [vmem:[%s155 + $0x38] sm:$0xf]
  %v5566 = vsel %vm158, %v5506, %v5565
  %5567 = vst [vmem:[%s155 + $0x38] sm:$0xf] %v5566
  %v5568 = vld [vmem:[%s155 + $0x3c] sm:$0x1]
  %v5569 = vsel %vm164, %v5507, %v5568
  %5570 = vst [vmem:[%s155 + $0x3c] sm:$0x1] %v5569
  %v5571 = vld [vmem:[#allocation2] sm:$0xf]
  %v5572 = vld [vmem:[#allocation2 + $0x8] sm:$0xf]
  %v5573 = vld [vmem:[#allocation2 + $0x10] sm:$0xf]
  %v5574 = vld [vmem:[#allocation2 + $0x18] sm:$0xf]
  %v5575 = vld [vmem:[#allocation2 + $0x20] sm:$0xf]
  %v5576 = vld [vmem:[#allocation2 + $0x28] sm:$0xf]
  %v5577 = vld [vmem:[#allocation2 + $0x30] sm:$0xf]
  %v5578 = vld [vmem:[#allocation2 + $0x38] sm:$0xf]
  %s5579 = scalar_lea.vmem %s2, 432
  %v5580 = vld [vmem:[%s5579] sm:$0xf]
  %v5581 = vld [vmem:[%s5579 + $0x4] sm:$0xf]
  %v5582 = vld [vmem:[%s5579 + $0x8] sm:$0xf]
  %v5583 = vld [vmem:[%s5579 + $0xc] sm:$0xf]
  %v5584 = vld [vmem:[#allocation2 + $0x4] sm:$0x1]
  %v5585 = vld [vmem:[#allocation2 + $0xc] sm:$0x1]
  %v5586 = vld [vmem:[#allocation2 + $0x14] sm:$0x1]
  %v5587 = vld [vmem:[#allocation2 + $0x1c] sm:$0x1]
  %v5588 = vld [vmem:[#allocation2 + $0x24] sm:$0x1]
  %v5589 = vld [vmem:[#allocation2 + $0x2c] sm:$0x1]
  %v5590 = vld [vmem:[#allocation2 + $0x34] sm:$0x1]
  %v5591 = vld [vmem:[#allocation2 + $0x3c] sm:$0x1]
  %v5593 = vshrl.u32 %v5571, 16
  %v5595 = vrot.slane %v5593, 4
  %v5596 = vshll.u32 %v5571, 16
  %v5598 = vrot.slane %v5596, 5
  %v5599 = vor.u32 %v5595, %v5598
  %v5600 = vrot.slane %v5599, 4
  %v5602 = vshll.u32 %v5584, 16
  %v5604 = vrot.slane %v5602, 5
  %v5605 = vsel %vm232, %v5600, %v5604
  %v5607 = vshrl.u32 %v5572, 16
  %v5609 = vrot.slane %v5607, 4
  %v5610 = vshll.u32 %v5572, 16
  %v5612 = vrot.slane %v5610, 5
  %v5613 = vor.u32 %v5609, %v5612
  %v5614 = vrot.slane %v5613, 4
  %v5616 = vshll.u32 %v5585, 16
  %v5618 = vrot.slane %v5616, 5
  %v5619 = vsel %vm232, %v5614, %v5618
  %v5621 = vshrl.u32 %v5573, 16
  %v5623 = vrot.slane %v5621, 4
  %v5624 = vshll.u32 %v5573, 16
  %v5626 = vrot.slane %v5624, 5
  %v5627 = vor.u32 %v5623, %v5626
  %v5628 = vrot.slane %v5627, 4
  %v5630 = vshll.u32 %v5586, 16
  %v5632 = vrot.slane %v5630, 5
  %v5633 = vsel %vm232, %v5628, %v5632
  %v5635 = vshrl.u32 %v5574, 16
  %v5637 = vrot.slane %v5635, 4
  %v5638 = vshll.u32 %v5574, 16
  %v5640 = vrot.slane %v5638, 5
  %v5641 = vor.u32 %v5637, %v5640
  %v5642 = vrot.slane %v5641, 4
  %v5644 = vshll.u32 %v5587, 16
  %v5646 = vrot.slane %v5644, 5
  %v5647 = vsel %vm232, %v5642, %v5646
  %v5649 = vshrl.u32 %v5575, 16
  %v5651 = vrot.slane %v5649, 4
  %v5652 = vshll.u32 %v5575, 16
  %v5654 = vrot.slane %v5652, 5
  %v5655 = vor.u32 %v5651, %v5654
  %v5656 = vrot.slane %v5655, 4
  %v5658 = vshll.u32 %v5588, 16
  %v5660 = vrot.slane %v5658, 5
  %v5661 = vsel %vm232, %v5656, %v5660
  %v5663 = vshrl.u32 %v5576, 16
  %v5665 = vrot.slane %v5663, 4
  %v5666 = vshll.u32 %v5576, 16
  %v5668 = vrot.slane %v5666, 5
  %v5669 = vor.u32 %v5665, %v5668
  %v5670 = vrot.slane %v5669, 4
  %v5672 = vshll.u32 %v5589, 16
  %v5674 = vrot.slane %v5672, 5
  %v5675 = vsel %vm232, %v5670, %v5674
  %v5677 = vshrl.u32 %v5577, 16
  %v5679 = vrot.slane %v5677, 4
  %v5680 = vshll.u32 %v5577, 16
  %v5682 = vrot.slane %v5680, 5
  %v5683 = vor.u32 %v5679, %v5682
  %v5684 = vrot.slane %v5683, 4
  %v5686 = vshll.u32 %v5590, 16
  %v5688 = vrot.slane %v5686, 5
  %v5689 = vsel %vm232, %v5684, %v5688
  %v5691 = vshrl.u32 %v5578, 16
  %v5693 = vrot.slane %v5691, 4
  %v5694 = vshll.u32 %v5578, 16
  %v5696 = vrot.slane %v5694, 5
  %v5697 = vor.u32 %v5693, %v5696
  %v5698 = vrot.slane %v5697, 4
  %v5700 = vshll.u32 %v5591, 16
  %v5702 = vrot.slane %v5700, 5
  %v5703 = vsel %vm232, %v5698, %v5702
  %s5704 = scalar_lea.vmem %s2, 448
  %v5705 = vld [vmem:[%s5704] sm:$0xf]
  %v5706 = vld [vmem:[%s5704 + $0x4] sm:$0xf]
  %v5707 = vld [vmem:[%s5704 + $0x8] sm:$0xf]
  %v5708 = vld [vmem:[%s5704 + $0xc] sm:$0xf]
  %v5709 = vunpack.c.l.b16 %v5605
  %v5710 = vunpack.c.l.b16 %v5619
  %v5711 = vunpack.c.l.b16 %v5633
  %v5712 = vunpack.c.l.b16 %v5647
  %v5713 = vunpack.c.l.b16 %v5661
  %v5714 = vunpack.c.l.b16 %v5675
  %v5715 = vunpack.c.l.b16 %v5689
  %v5716 = vunpack.c.l.b16 %v5703
  %v5717 = vpack.c.b16 %v5710, %v5709
  %v5718 = vpack.c.b16 %v5712, %v5711
  %v5719 = vpack.c.b16 %v5714, %v5713
  %v5720 = vpack.c.b16 %v5716, %v5715
  %v5725 = vunpack.c.l.b16 %v5705
  %v5726 = vunpack.c.l.b16 %v5706
  %v5727 = vunpack.c.l.b16 %v5707
  %v5728 = vunpack.c.l.b16 %v5708
  %v5729 = vpack.c.b16 %v5726, %v5725
  %v5730 = vpack.c.b16 %v5728, %v5727
  %v5734 = vsel %vm374, %v5717, 0
  %v5737 = vsel %vm374, %v5718, 0
  %v5740 = vsel %vm374, %v5719, 0
  %v5743 = vsel %vm374, %v5720, 0
  %5745 = vmatprep.subr.bf16.mxu0 0
  %5746 = vmatpush1.bf16.msra.mxu0 %v5729
  %5747 = vmatprep.subr.bf16.mxu0 0
  %5748 = vmatpush1.bf16.msra.mxu0 %v5730
  %5749 = vmatprep.subr.bf16.mxu0 0
  %5750 = vmatpush1.bf16.msra.mxu0 0
  %5751 = vmatprep.subr.bf16.mxu0 0
  %5752 = vmatpush1.bf16.msra.mxu0 0
  %5753 = vmatprep.subr.bf16.mxu0 0
  %5754 = vmatpush1.bf16.msra.mxu0 0
  %5755 = vmatprep.subr.bf16.mxu0 0
  %5756 = vmatpush1.bf16.msra.mxu0 0
  %5757 = vmatprep.subr.bf16.mxu0 0
  %5758 = vmatpush1.bf16.msra.mxu0 0
  %5759 = vmatprep.subr.bf16.mxu0 0
  %5760 = vmatpush1.bf16.msra.mxu0 0
  %5761 = vmatprep.subr.bf16.mxu0 0
  %5762 = vmatpush1.bf16.msra.mxu0 0
  %5763 = vmatprep.subr.bf16.mxu0 0
  %5764 = vmatpush1.bf16.msra.mxu0 0
  %5765 = vmatprep.subr.bf16.mxu0 0
  %5766 = vmatpush1.bf16.msra.mxu0 0
  %5767 = vmatprep.subr.bf16.mxu0 0
  %5768 = vmatpush1.bf16.msra.mxu0 0
  %5769 = vmatprep.subr.bf16.mxu0 0
  %5770 = vmatpush1.bf16.msra.mxu0 0
  %5771 = vmatprep.subr.bf16.mxu0 0
  %5772 = vmatpush1.bf16.msra.mxu0 0
  %5773 = vmatprep.subr.bf16.mxu0 0
  %5774 = vmatpush1.bf16.msra.mxu0 0
  %5775 = vmatprep.subr.bf16.mxu0 0
  %5776 = vmatpush1.bf16.msra.mxu0 0
  %5777 = vmatprep.mubr.bf16.mxu0 0
  %5778 = vmatmul.mubr.bf16.gmra.mrb[0].mxu0 %v5734
  %v5779 = vpop.f32.mrb[0].mxu0
  %v5780 = vadd.f32 0.0, %v5779
  %v5781 = vpop.f32.mrb[0].mxu0
  %v5782 = vpop.f32.mrb[0].mxu0
  %v5783 = vadd.f32 0.0, %v5782
  %v5784 = vpop.f32.mrb[0].mxu0
  %5785 = vmatprep.mubr.bf16.mxu0 0
  %5786 = vmatmul.mubr.bf16.gmra.mrb[0].mxu0 %v5737
  %v5787 = vpop.f32.mrb[0].mxu0
  %v5788 = vadd.f32 0.0, %v5787
  %v5789 = vpop.f32.mrb[0].mxu0
  %v5790 = vpop.f32.mrb[0].mxu0
  %v5791 = vadd.f32 0.0, %v5790
  %v5792 = vpop.f32.mrb[0].mxu0
  %5793 = vmatprep.mubr.bf16.mxu0 0
  %5794 = vmatmul.mubr.bf16.gmra.mrb[0].mxu0 %v5740
  %v5795 = vpop.f32.mrb[0].mxu0
  %v5796 = vadd.f32 0.0, %v5795
  %v5797 = vpop.f32.mrb[0].mxu0
  %v5798 = vpop.f32.mrb[0].mxu0
  %v5799 = vadd.f32 0.0, %v5798
  %v5800 = vpop.f32.mrb[0].mxu0
  %5801 = vmatprep.mubr.bf16.mxu0 0
  %5802 = vmatmul.mubr.bf16.gmra.mrb[0].mxu0 %v5743
  %v5803 = vpop.f32.mrb[0].mxu0
  %v5804 = vadd.f32 0.0, %v5803
  %v5805 = vpop.f32.mrb[0].mxu0
  %v5806 = vpop.f32.mrb[0].mxu0
  %v5807 = vadd.f32 0.0, %v5806
  %v5808 = vpop.f32.mrb[0].mxu0
  %5809 = vdwg.mxu0
  %v5818 = vunpack.c.l.b16 %v5571
  %v5819 = vunpack.c.l.b16 %v5572
  %v5820 = vunpack.c.l.b16 %v5573
  %v5821 = vunpack.c.l.b16 %v5574
  %v5822 = vunpack.c.l.b16 %v5575
  %v5823 = vunpack.c.l.b16 %v5576
  %v5824 = vunpack.c.l.b16 %v5577
  %v5825 = vunpack.c.l.b16 %v5578
  %v5826 = vpack.c.b16 %v5819, %v5818
  %v5827 = vpack.c.b16 %v5821, %v5820
  %v5828 = vpack.c.b16 %v5823, %v5822
  %v5829 = vpack.c.b16 %v5825, %v5824
  %v5834 = vunpack.c.l.b16 %v5580
  %v5835 = vunpack.c.l.b16 %v5581
  %v5836 = vunpack.c.l.b16 %v5582
  %v5837 = vunpack.c.l.b16 %v5583
  %v5838 = vpack.c.b16 %v5835, %v5834
  %v5839 = vpack.c.b16 %v5837, %v5836
  %v5843 = vsel %vm374, %v5826, 0
  %v5846 = vsel %vm374, %v5827, 0
  %v5849 = vsel %vm374, %v5828, 0
  %v5852 = vsel %vm374, %v5829, 0
  %5854 = vmatprep.subr.bf16.mxu0 0
  %5855 = vmatpush1.bf16.msra.mxu0 %v5838
  %5856 = vmatprep.subr.bf16.mxu0 0
  %5857 = vmatpush1.bf16.msra.mxu0 %v5839
  %5858 = vmatprep.subr.bf16.mxu0 0
  %5859 = vmatpush1.bf16.msra.mxu0 0
  %5860 = vmatprep.subr.bf16.mxu0 0
  %5861 = vmatpush1.bf16.msra.mxu0 0
  %5862 = vmatprep.subr.bf16.mxu0 0
  %5863 = vmatpush1.bf16.msra.mxu0 0
  %5864 = vmatprep.subr.bf16.mxu0 0
  %5865 = vmatpush1.bf16.msra.mxu0 0
  %5866 = vmatprep.subr.bf16.mxu0 0
  %5867 = vmatpush1.bf16.msra.mxu0 0
  %5868 = vmatprep.subr.bf16.mxu0 0
  %5869 = vmatpush1.bf16.msra.mxu0 0
  %5870 = vmatprep.subr.bf16.mxu0 0
  %5871 = vmatpush1.bf16.msra.mxu0 0
  %5872 = vmatprep.subr.bf16.mxu0 0
  %5873 = vmatpush1.bf16.msra.mxu0 0
  %5874 = vmatprep.subr.bf16.mxu0 0
  %5875 = vmatpush1.bf16.msra.mxu0 0
  %5876 = vmatprep.subr.bf16.mxu0 0
  %5877 = vmatpush1.bf16.msra.mxu0 0
  %5878 = vmatprep.subr.bf16.mxu0 0
  %5879 = vmatpush1.bf16.msra.mxu0 0
  %5880 = vmatprep.subr.bf16.mxu0 0
  %5881 = vmatpush1.bf16.msra.mxu0 0
  %5882 = vmatprep.subr.bf16.mxu0 0
  %5883 = vmatpush1.bf16.msra.mxu0 0
  %5884 = vmatprep.subr.bf16.mxu0 0
  %5885 = vmatpush1.bf16.msra.mxu0 0
  %5886 = vmatprep.mubr.bf16.mxu0 0
  %5887 = vmatmul.mubr.bf16.gmra.mrb[0].mxu0 %v5843
  %v5888 = vpop.f32.mrb[0].mxu0
  %v5889 = vadd.f32 %v5780, %v5888
  %v5890 = vpop.f32.mrb[0].mxu0
  %v5891 = vpop.f32.mrb[0].mxu0
  %v5892 = vadd.f32 %v5783, %v5891
  %v5893 = vpop.f32.mrb[0].mxu0
  %5894 = vmatprep.mubr.bf16.mxu0 0
  %5895 = vmatmul.mubr.bf16.gmra.mrb[0].mxu0 %v5846
  %v5896 = vpop.f32.mrb[0].mxu0
  %v5897 = vadd.f32 %v5788, %v5896
  %v5898 = vpop.f32.mrb[0].mxu0
  %v5899 = vpop.f32.mrb[0].mxu0
  %v5900 = vadd.f32 %v5791, %v5899
  %v5901 = vpop.f32.mrb[0].mxu0
  %5902 = vmatprep.mubr.bf16.mxu0 0
  %5903 = vmatmul.mubr.bf16.gmra.mrb[0].mxu0 %v5849
  %v5904 = vpop.f32.mrb[0].mxu0
  %v5905 = vadd.f32 %v5796, %v5904
  %v5906 = vpop.f32.mrb[0].mxu0
  %v5907 = vpop.f32.mrb[0].mxu0
  %v5908 = vadd.f32 %v5799, %v5907
  %v5909 = vpop.f32.mrb[0].mxu0
  %5910 = vmatprep.mubr.bf16.mxu0 0
  %5911 = vmatmul.mubr.bf16.gmra.mrb[0].mxu0 %v5852
  %v5912 = vpop.f32.mrb[0].mxu0
  %v5913 = vadd.f32 %v5804, %v5912
  %v5914 = vpop.f32.mrb[0].mxu0
  %v5915 = vpop.f32.mrb[0].mxu0
  %v5916 = vadd.f32 %v5807, %v5915
  %v5917 = vpop.f32.mrb[0].mxu0
  %5918 = vdwg.mxu0
  %v5919 = vld [vmem:[#allocation2] sm:$0xe]
  %v5920 = vld [vmem:[#allocation2 + $0x8] sm:$0xe]
  %v5921 = vld [vmem:[#allocation2 + $0x10] sm:$0xe]
  %v5922 = vld [vmem:[#allocation2 + $0x18] sm:$0xe]
  %v5923 = vld [vmem:[#allocation2 + $0x20] sm:$0xe]
  %v5924 = vld [vmem:[#allocation2 + $0x28] sm:$0xe]
  %v5925 = vld [vmem:[#allocation2 + $0x30] sm:$0xe]
  %v5926 = vld [vmem:[#allocation2 + $0x38] sm:$0xe]
  %v5943 = vrot.slane %v5919, 5
  %v5944 = vrot.slane %v5943, 4
  %v5945 = vrot.slane %v5584, 5
  %v5946 = vsel %vm587, %v5944, %v5945
  %v5947 = vrot.slane %v5920, 5
  %v5948 = vrot.slane %v5947, 4
  %v5949 = vrot.slane %v5585, 5
  %v5950 = vsel %vm587, %v5948, %v5949
  %v5951 = vrot.slane %v5921, 5
  %v5952 = vrot.slane %v5951, 4
  %v5953 = vrot.slane %v5586, 5
  %v5954 = vsel %vm587, %v5952, %v5953
  %v5955 = vrot.slane %v5922, 5
  %v5956 = vrot.slane %v5955, 4
  %v5957 = vrot.slane %v5587, 5
  %v5958 = vsel %vm587, %v5956, %v5957
  %v5959 = vrot.slane %v5923, 5
  %v5960 = vrot.slane %v5959, 4
  %v5961 = vrot.slane %v5588, 5
  %v5962 = vsel %vm587, %v5960, %v5961
  %v5963 = vrot.slane %v5924, 5
  %v5964 = vrot.slane %v5963, 4
  %v5965 = vrot.slane %v5589, 5
  %v5966 = vsel %vm587, %v5964, %v5965
  %v5967 = vrot.slane %v5925, 5
  %v5968 = vrot.slane %v5967, 4
  %v5969 = vrot.slane %v5590, 5
  %v5970 = vsel %vm587, %v5968, %v5969
  %v5971 = vrot.slane %v5926, 5
  %v5972 = vrot.slane %v5971, 4
  %v5973 = vrot.slane %v5591, 5
  %v5974 = vsel %vm587, %v5972, %v5973
  %s5975 = scalar_lea.vmem %s2, 464
  %v5976 = vld [vmem:[%s5975] sm:$0xf]
  %v5977 = vld [vmem:[%s5975 + $0x4] sm:$0xf]
  %v5978 = vld [vmem:[%s5975 + $0x8] sm:$0xf]
  %v5979 = vld [vmem:[%s5975 + $0xc] sm:$0xf]
  %v5980 = vunpack.c.l.b16 %v5946
  %v5981 = vunpack.c.l.b16 %v5950
  %v5982 = vunpack.c.l.b16 %v5954
  %v5983 = vunpack.c.l.b16 %v5958
  %v5984 = vunpack.c.l.b16 %v5962
  %v5985 = vunpack.c.l.b16 %v5966
  %v5986 = vunpack.c.l.b16 %v5970
  %v5987 = vunpack.c.l.b16 %v5974
  %v5988 = vpack.c.b16 %v5981, %v5980
  %v5989 = vpack.c.b16 %v5983, %v5982
  %v5990 = vpack.c.b16 %v5985, %v5984
  %v5991 = vpack.c.b16 %v5987, %v5986
  %v5996 = vunpack.c.l.b16 %v5976
  %v5997 = vunpack.c.l.b16 %v5977
  %v5998 = vunpack.c.l.b16 %v5978
  %v5999 = vunpack.c.l.b16 %v5979
  %v6000 = vpack.c.b16 %v5997, %v5996
  %v6001 = vpack.c.b16 %v5999, %v5998
  %v6005 = vsel %vm374, %v5988, 0
  %v6008 = vsel %vm374, %v5989, 0
  %v6011 = vsel %vm374, %v5990, 0
  %v6014 = vsel %vm374, %v5991, 0
  %6016 = vmatprep.subr.bf16.mxu0 0
  %6017 = vmatpush1.bf16.msra.mxu0 %v6000
  %6018 = vmatprep.subr.bf16.mxu0 0
  %6019 = vmatpush1.bf16.msra.mxu0 %v6001
  %6020 = vmatprep.subr.bf16.mxu0 0
  %6021 = vmatpush1.bf16.msra.mxu0 0
  %6022 = vmatprep.subr.bf16.mxu0 0
  %6023 = vmatpush1.bf16.msra.mxu0 0
  %6024 = vmatprep.subr.bf16.mxu0 0
  %6025 = vmatpush1.bf16.msra.mxu0 0
  %6026 = vmatprep.subr.bf16.mxu0 0
  %6027 = vmatpush1.bf16.msra.mxu0 0
  %6028 = vmatprep.subr.bf16.mxu0 0
  %6029 = vmatpush1.bf16.msra.mxu0 0
  %6030 = vmatprep.subr.bf16.mxu0 0
  %6031 = vmatpush1.bf16.msra.mxu0 0
  %6032 = vmatprep.subr.bf16.mxu0 0
  %6033 = vmatpush1.bf16.msra.mxu0 0
  %6034 = vmatprep.subr.bf16.mxu0 0
  %6035 = vmatpush1.bf16.msra.mxu0 0
  %6036 = vmatprep.subr.bf16.mxu0 0
  %6037 = vmatpush1.bf16.msra.mxu0 0
  %6038 = vmatprep.subr.bf16.mxu0 0
  %6039 = vmatpush1.bf16.msra.mxu0 0
  %6040 = vmatprep.subr.bf16.mxu0 0
  %6041 = vmatpush1.bf16.msra.mxu0 0
  %6042 = vmatprep.subr.bf16.mxu0 0
  %6043 = vmatpush1.bf16.msra.mxu0 0
  %6044 = vmatprep.subr.bf16.mxu0 0
  %6045 = vmatpush1.bf16.msra.mxu0 0
  %6046 = vmatprep.subr.bf16.mxu0 0
  %6047 = vmatpush1.bf16.msra.mxu0 0
  %6048 = vmatprep.mubr.bf16.mxu0 0
  %6049 = vmatmul.mubr.bf16.gmra.mrb[0].mxu0 %v6005
  %v6050 = vpop.f32.mrb[0].mxu0
  %v6051 = vadd.f32 0.0, %v6050
  %v6052 = vpop.f32.mrb[0].mxu0
  %v6053 = vpop.f32.mrb[0].mxu0
  %v6054 = vadd.f32 0.0, %v6053
  %v6055 = vpop.f32.mrb[0].mxu0
  %6056 = vmatprep.mubr.bf16.mxu0 0
  %6057 = vmatmul.mubr.bf16.gmra.mrb[0].mxu0 %v6008
  %v6058 = vpop.f32.mrb[0].mxu0
  %v6059 = vadd.f32 0.0, %v6058
  %v6060 = vpop.f32.mrb[0].mxu0
  %v6061 = vpop.f32.mrb[0].mxu0
  %v6062 = vadd.f32 0.0, %v6061
  %v6063 = vpop.f32.mrb[0].mxu0
  %6064 = vmatprep.mubr.bf16.mxu0 0
  %6065 = vmatmul.mubr.bf16.gmra.mrb[0].mxu0 %v6011
  %v6066 = vpop.f32.mrb[0].mxu0
  %v6067 = vadd.f32 0.0, %v6066
  %v6068 = vpop.f32.mrb[0].mxu0
  %v6069 = vpop.f32.mrb[0].mxu0
  %v6070 = vadd.f32 0.0, %v6069
  %v6071 = vpop.f32.mrb[0].mxu0
  %6072 = vmatprep.mubr.bf16.mxu0 0
  %6073 = vmatmul.mubr.bf16.gmra.mrb[0].mxu0 %v6014
  %v6074 = vpop.f32.mrb[0].mxu0
  %v6075 = vadd.f32 0.0, %v6074
  %v6076 = vpop.f32.mrb[0].mxu0
  %v6077 = vpop.f32.mrb[0].mxu0
  %v6078 = vadd.f32 0.0, %v6077
  %v6079 = vpop.f32.mrb[0].mxu0
  %6080 = vdwg.mxu0
  %v6081 = vadd.f32 %v5889, %v6051
  %v6082 = vadd.f32 %v5892, %v6054
  %v6083 = vadd.f32 %v5897, %v6059
  %v6084 = vadd.f32 %v5900, %v6062
  %v6085 = vadd.f32 %v5905, %v6067
  %v6086 = vadd.f32 %v5908, %v6070
  %v6087 = vadd.f32 %v5913, %v6075
  %v6088 = vadd.f32 %v5916, %v6078
  %v6089 = vld [vmem:[%s155] sm:$0xf]
  %v6090 = vld [vmem:[%s155 + $0x8] sm:$0xf]
  %v6091 = vld [vmem:[%s155 + $0x10] sm:$0xf]
  %v6092 = vld [vmem:[%s155 + $0x18] sm:$0xf]
  %v6093 = vld [vmem:[%s155 + $0x20] sm:$0xf]
  %v6094 = vld [vmem:[%s155 + $0x28] sm:$0xf]
  %v6095 = vld [vmem:[%s155 + $0x30] sm:$0xf]
  %v6096 = vld [vmem:[%s155 + $0x38] sm:$0xf]
  %s6097 = scalar_lea.vmem %s2, 480
  %v6098 = vld [vmem:[%s6097] sm:$0xf]
  %v6099 = vld [vmem:[%s6097 + $0x4] sm:$0xf]
  %v6100 = vld [vmem:[%s6097 + $0x8] sm:$0xf]
  %v6101 = vld [vmem:[%s6097 + $0xc] sm:$0xf]
  %v6110 = vunpack.c.l.b16 %v6089
  %v6111 = vunpack.c.l.b16 %v6090
  %v6112 = vunpack.c.l.b16 %v6091
  %v6113 = vunpack.c.l.b16 %v6092
  %v6114 = vunpack.c.l.b16 %v6093
  %v6115 = vunpack.c.l.b16 %v6094
  %v6116 = vunpack.c.l.b16 %v6095
  %v6117 = vunpack.c.l.b16 %v6096
  %v6118 = vpack.c.b16 %v6111, %v6110
  %v6119 = vpack.c.b16 %v6113, %v6112
  %v6120 = vpack.c.b16 %v6115, %v6114
  %v6121 = vpack.c.b16 %v6117, %v6116
  %v6126 = vunpack.c.l.b16 %v6098
  %v6127 = vunpack.c.l.b16 %v6099
  %v6128 = vunpack.c.l.b16 %v6100
  %v6129 = vunpack.c.l.b16 %v6101
  %v6130 = vpack.c.b16 %v6127, %v6126
  %v6131 = vpack.c.b16 %v6129, %v6128
  %v6135 = vsel %vm374, %v6118, 0
  %v6138 = vsel %vm374, %v6119, 0
  %v6141 = vsel %vm374, %v6120, 0
  %v6144 = vsel %vm374, %v6121, 0
  %6146 = vmatprep.subr.bf16.mxu0 0
  %6147 = vmatpush1.bf16.msra.mxu0 %v6130
  %6148 = vmatprep.subr.bf16.mxu0 0
  %6149 = vmatpush1.bf16.msra.mxu0 %v6131
  %6150 = vmatprep.subr.bf16.mxu0 0
  %6151 = vmatpush1.bf16.msra.mxu0 0
  %6152 = vmatprep.subr.bf16.mxu0 0
  %6153 = vmatpush1.bf16.msra.mxu0 0
  %6154 = vmatprep.subr.bf16.mxu0 0
  %6155 = vmatpush1.bf16.msra.mxu0 0
  %6156 = vmatprep.subr.bf16.mxu0 0
  %6157 = vmatpush1.bf16.msra.mxu0 0
  %6158 = vmatprep.subr.bf16.mxu0 0
  %6159 = vmatpush1.bf16.msra.mxu0 0
  %6160 = vmatprep.subr.bf16.mxu0 0
  %6161 = vmatpush1.bf16.msra.mxu0 0
  %6162 = vmatprep.subr.bf16.mxu0 0
  %6163 = vmatpush1.bf16.msra.mxu0 0
  %6164 = vmatprep.subr.bf16.mxu0 0
  %6165 = vmatpush1.bf16.msra.mxu0 0
  %6166 = vmatprep.subr.bf16.mxu0 0
  %6167 = vmatpush1.bf16.msra.mxu0 0
  %6168 = vmatprep.subr.bf16.mxu0 0
  %6169 = vmatpush1.bf16.msra.mxu0 0
  %6170 = vmatprep.subr.bf16.mxu0 0
  %6171 = vmatpush1.bf16.msra.mxu0 0
  %6172 = vmatprep.subr.bf16.mxu0 0
  %6173 = vmatpush1.bf16.msra.mxu0 0
  %6174 = vmatprep.subr.bf16.mxu0 0
  %6175 = vmatpush1.bf16.msra.mxu0 0
  %6176 = vmatprep.subr.bf16.mxu0 0
  %6177 = vmatpush1.bf16.msra.mxu0 0
  %6178 = vmatprep.mubr.bf16.mxu0 0
  %6179 = vmatmul.mubr.bf16.gmra.mrb[0].mxu0 %v6135
  %v6180 = vpop.f32.mrb[0].mxu0
  %v6181 = vadd.f32 0.0, %v6180
  %v6182 = vpop.f32.mrb[0].mxu0
  %v6183 = vpop.f32.mrb[0].mxu0
  %v6184 = vadd.f32 0.0, %v6183
  %v6185 = vpop.f32.mrb[0].mxu0
  %6186 = vmatprep.mubr.bf16.mxu0 0
  %6187 = vmatmul.mubr.bf16.gmra.mrb[0].mxu0 %v6138
  %v6188 = vpop.f32.mrb[0].mxu0
  %v6189 = vadd.f32 0.0, %v6188
  %v6190 = vpop.f32.mrb[0].mxu0
  %v6191 = vpop.f32.mrb[0].mxu0
  %v6192 = vadd.f32 0.0, %v6191
  %v6193 = vpop.f32.mrb[0].mxu0
  %6194 = vmatprep.mubr.bf16.mxu0 0
  %6195 = vmatmul.mubr.bf16.gmra.mrb[0].mxu0 %v6141
  %v6196 = vpop.f32.mrb[0].mxu0
  %v6197 = vadd.f32 0.0, %v6196
  %v6198 = vpop.f32.mrb[0].mxu0
  %v6199 = vpop.f32.mrb[0].mxu0
  %v6200 = vadd.f32 0.0, %v6199
  %v6201 = vpop.f32.mrb[0].mxu0
  %6202 = vmatprep.mubr.bf16.mxu0 0
  %6203 = vmatmul.mubr.bf16.gmra.mrb[0].mxu0 %v6144
  %v6204 = vpop.f32.mrb[0].mxu0
  %v6205 = vadd.f32 0.0, %v6204
  %v6206 = vpop.f32.mrb[0].mxu0
  %v6207 = vpop.f32.mrb[0].mxu0
  %v6208 = vadd.f32 0.0, %v6207
  %v6209 = vpop.f32.mrb[0].mxu0
  %6210 = vdwg.mxu0
  %v6211 = vadd.f32 %v6081, %v6181
  %v6212 = vadd.f32 %v6082, %v6184
  %v6213 = vadd.f32 %v6083, %v6189
  %v6214 = vadd.f32 %v6084, %v6192
  %v6215 = vadd.f32 %v6085, %v6197
  %v6216 = vadd.f32 %v6086, %v6200
  %v6217 = vadd.f32 %v6087, %v6205
  %v6218 = vadd.f32 %v6088, %v6208
  %v6219 = vld [vmem:[%s155] sm:$0xf]
  %v6220 = vld [vmem:[%s155 + $0x4] sm:$0x1]
  %v6221 = vld [vmem:[%s155 + $0x8] sm:$0xf]
  %v6222 = vld [vmem:[%s155 + $0xc] sm:$0x1]
  %v6223 = vld [vmem:[%s155 + $0x10] sm:$0xf]
  %v6224 = vld [vmem:[%s155 + $0x14] sm:$0x1]
  %v6225 = vld [vmem:[%s155 + $0x18] sm:$0xf]
  %v6226 = vld [vmem:[%s155 + $0x1c] sm:$0x1]
  %v6227 = vld [vmem:[%s155 + $0x20] sm:$0xf]
  %v6228 = vld [vmem:[%s155 + $0x24] sm:$0x1]
  %v6229 = vld [vmem:[%s155 + $0x28] sm:$0xf]
  %v6230 = vld [vmem:[%s155 + $0x2c] sm:$0x1]
  %v6231 = vld [vmem:[%s155 + $0x30] sm:$0xf]
  %v6232 = vld [vmem:[%s155 + $0x34] sm:$0x1]
  %v6233 = vld [vmem:[%s155 + $0x38] sm:$0xf]
  %v6234 = vld [vmem:[%s155 + $0x3c] sm:$0x1]
  %v6236 = vshrl.u32 %v6219, 16
  %v6238 = vrot.slane %v6236, 4
  %v6239 = vshll.u32 %v6219, 16
  %v6241 = vrot.slane %v6239, 5
  %v6242 = vor.u32 %v6238, %v6241
  %v6243 = vrot.slane %v6242, 4
  %v6245 = vshll.u32 %v6220, 16
  %v6247 = vrot.slane %v6245, 5
  %v6248 = vsel %vm232, %v6243, %v6247
  %v6250 = vshrl.u32 %v6221, 16
  %v6252 = vrot.slane %v6250, 4
  %v6253 = vshll.u32 %v6221, 16
  %v6255 = vrot.slane %v6253, 5
  %v6256 = vor.u32 %v6252, %v6255
  %v6257 = vrot.slane %v6256, 4
  %v6259 = vshll.u32 %v6222, 16
  %v6261 = vrot.slane %v6259, 5
  %v6262 = vsel %vm232, %v6257, %v6261
  %v6264 = vshrl.u32 %v6223, 16
  %v6266 = vrot.slane %v6264, 4
  %v6267 = vshll.u32 %v6223, 16
  %v6269 = vrot.slane %v6267, 5
  %v6270 = vor.u32 %v6266, %v6269
  %v6271 = vrot.slane %v6270, 4
  %v6273 = vshll.u32 %v6224, 16
  %v6275 = vrot.slane %v6273, 5
  %v6276 = vsel %vm232, %v6271, %v6275
  %v6278 = vshrl.u32 %v6225, 16
  %v6280 = vrot.slane %v6278, 4
  %v6281 = vshll.u32 %v6225, 16
  %v6283 = vrot.slane %v6281, 5
  %v6284 = vor.u32 %v6280, %v6283
  %v6285 = vrot.slane %v6284, 4
  %v6287 = vshll.u32 %v6226, 16
  %v6289 = vrot.slane %v6287, 5
  %v6290 = vsel %vm232, %v6285, %v6289
  %v6292 = vshrl.u32 %v6227, 16
  %v6294 = vrot.slane %v6292, 4
  %v6295 = vshll.u32 %v6227, 16
  %v6297 = vrot.slane %v6295, 5
  %v6298 = vor.u32 %v6294, %v6297
  %v6299 = vrot.slane %v6298, 4
  %v6301 = vshll.u32 %v6228, 16
  %v6303 = vrot.slane %v6301, 5
  %v6304 = vsel %vm232, %v6299, %v6303
  %v6306 = vshrl.u32 %v6229, 16
  %v6308 = vrot.slane %v6306, 4
  %v6309 = vshll.u32 %v6229, 16
  %v6311 = vrot.slane %v6309, 5
  %v6312 = vor.u32 %v6308, %v6311
  %v6313 = vrot.slane %v6312, 4
  %v6315 = vshll.u32 %v6230, 16
  %v6317 = vrot.slane %v6315, 5
  %v6318 = vsel %vm232, %v6313, %v6317
  %v6320 = vshrl.u32 %v6231, 16
  %v6322 = vrot.slane %v6320, 4
  %v6323 = vshll.u32 %v6231, 16
  %v6325 = vrot.slane %v6323, 5
  %v6326 = vor.u32 %v6322, %v6325
  %v6327 = vrot.slane %v6326, 4
  %v6329 = vshll.u32 %v6232, 16
  %v6331 = vrot.slane %v6329, 5
  %v6332 = vsel %vm232, %v6327, %v6331
  %v6334 = vshrl.u32 %v6233, 16
  %v6336 = vrot.slane %v6334, 4
  %v6337 = vshll.u32 %v6233, 16
  %v6339 = vrot.slane %v6337, 5
  %v6340 = vor.u32 %v6336, %v6339
  %v6341 = vrot.slane %v6340, 4
  %v6343 = vshll.u32 %v6234, 16
  %v6345 = vrot.slane %v6343, 5
  %v6346 = vsel %vm232, %v6341, %v6345
  %s6347 = scalar_lea.vmem %s2, 496
  %v6348 = vld [vmem:[%s6347] sm:$0xf]
  %v6349 = vld [vmem:[%s6347 + $0x4] sm:$0xf]
  %v6350 = vld [vmem:[%s6347 + $0x8] sm:$0xf]
  %v6351 = vld [vmem:[%s6347 + $0xc] sm:$0xf]
  %v6352 = vunpack.c.l.b16 %v6248
  %v6353 = vunpack.c.l.b16 %v6262
  %v6354 = vunpack.c.l.b16 %v6276
  %v6355 = vunpack.c.l.b16 %v6290
  %v6356 = vunpack.c.l.b16 %v6304
  %v6357 = vunpack.c.l.b16 %v6318
  %v6358 = vunpack.c.l.b16 %v6332
  %v6359 = vunpack.c.l.b16 %v6346
  %v6360 = vpack.c.b16 %v6353, %v6352
  %v6361 = vpack.c.b16 %v6355, %v6354
  %v6362 = vpack.c.b16 %v6357, %v6356
  %v6363 = vpack.c.b16 %v6359, %v6358
  %v6368 = vunpack.c.l.b16 %v6348
  %v6369 = vunpack.c.l.b16 %v6349
  %v6370 = vunpack.c.l.b16 %v6350
  %v6371 = vunpack.c.l.b16 %v6351
  %v6372 = vpack.c.b16 %v6369, %v6368
  %v6373 = vpack.c.b16 %v6371, %v6370
  %v6377 = vsel %vm374, %v6360, 0
  %v6380 = vsel %vm374, %v6361, 0
  %v6383 = vsel %vm374, %v6362, 0
  %v6386 = vsel %vm374, %v6363, 0
  %6388 = vmatprep.subr.bf16.mxu0 0
  %6389 = vmatpush1.bf16.msra.mxu0 %v6372
  %6390 = vmatprep.subr.bf16.mxu0 0
  %6391 = vmatpush1.bf16.msra.mxu0 %v6373
  %6392 = vmatprep.subr.bf16.mxu0 0
  %6393 = vmatpush1.bf16.msra.mxu0 0
  %6394 = vmatprep.subr.bf16.mxu0 0
  %6395 = vmatpush1.bf16.msra.mxu0 0
  %6396 = vmatprep.subr.bf16.mxu0 0
  %6397 = vmatpush1.bf16.msra.mxu0 0
  %6398 = vmatprep.subr.bf16.mxu0 0
  %6399 = vmatpush1.bf16.msra.mxu0 0
  %6400 = vmatprep.subr.bf16.mxu0 0
  %6401 = vmatpush1.bf16.msra.mxu0 0
  %6402 = vmatprep.subr.bf16.mxu0 0
  %6403 = vmatpush1.bf16.msra.mxu0 0
  %6404 = vmatprep.subr.bf16.mxu0 0
  %6405 = vmatpush1.bf16.msra.mxu0 0
  %6406 = vmatprep.subr.bf16.mxu0 0
  %6407 = vmatpush1.bf16.msra.mxu0 0
  %6408 = vmatprep.subr.bf16.mxu0 0
  %6409 = vmatpush1.bf16.msra.mxu0 0
  %6410 = vmatprep.subr.bf16.mxu0 0
  %6411 = vmatpush1.bf16.msra.mxu0 0
  %6412 = vmatprep.subr.bf16.mxu0 0
  %6413 = vmatpush1.bf16.msra.mxu0 0
  %6414 = vmatprep.subr.bf16.mxu0 0
  %6415 = vmatpush1.bf16.msra.mxu0 0
  %6416 = vmatprep.subr.bf16.mxu0 0
  %6417 = vmatpush1.bf16.msra.mxu0 0
  %6418 = vmatprep.subr.bf16.mxu0 0
  %6419 = vmatpush1.bf16.msra.mxu0 0
  %6420 = vmatprep.mubr.bf16.mxu0 0
  %6421 = vmatmul.mubr.bf16.gmra.mrb[0].mxu0 %v6377
  %v6422 = vpop.f32.mrb[0].mxu0
  %v6423 = vadd.f32 0.0, %v6422
  %v6424 = vpop.f32.mrb[0].mxu0
  %v6425 = vpop.f32.mrb[0].mxu0
  %v6426 = vadd.f32 0.0, %v6425
  %v6427 = vpop.f32.mrb[0].mxu0
  %6428 = vmatprep.mubr.bf16.mxu0 0
  %6429 = vmatmul.mubr.bf16.gmra.mrb[0].mxu0 %v6380
  %v6430 = vpop.f32.mrb[0].mxu0
  %v6431 = vadd.f32 0.0, %v6430
  %v6432 = vpop.f32.mrb[0].mxu0
  %v6433 = vpop.f32.mrb[0].mxu0
  %v6434 = vadd.f32 0.0, %v6433
  %v6435 = vpop.f32.mrb[0].mxu0
  %6436 = vmatprep.mubr.bf16.mxu0 0
  %6437 = vmatmul.mubr.bf16.gmra.mrb[0].mxu0 %v6383
  %v6438 = vpop.f32.mrb[0].mxu0
  %v6439 = vadd.f32 0.0, %v6438
  %v6440 = vpop.f32.mrb[0].mxu0
  %v6441 = vpop.f32.mrb[0].mxu0
  %v6442 = vadd.f32 0.0, %v6441
  %v6443 = vpop.f32.mrb[0].mxu0
  %6444 = vmatprep.mubr.bf16.mxu0 0
  %6445 = vmatmul.mubr.bf16.gmra.mrb[0].mxu0 %v6386
  %v6446 = vpop.f32.mrb[0].mxu0
  %v6447 = vadd.f32 0.0, %v6446
  %v6448 = vpop.f32.mrb[0].mxu0
  %v6449 = vpop.f32.mrb[0].mxu0
  %v6450 = vadd.f32 0.0, %v6449
  %v6451 = vpop.f32.mrb[0].mxu0
  %6452 = vdwg.mxu0
  %v6453 = vadd.f32 %v6211, %v6423
  %v6454 = vadd.f32 %v6212, %v6426
  %v6455 = vadd.f32 %v6213, %v6431
  %v6456 = vadd.f32 %v6214, %v6434
  %v6457 = vadd.f32 %v6215, %v6439
  %v6458 = vadd.f32 %v6216, %v6442
  %v6459 = vadd.f32 %v6217, %v6447
  %v6460 = vadd.f32 %v6218, %v6450
  %v6461 = vld [vmem:[%s155] sm:$0xe]
  %v6462 = vld [vmem:[%s155 + $0x8] sm:$0xe]
  %v6463 = vld [vmem:[%s155 + $0x10] sm:$0xe]
  %v6464 = vld [vmem:[%s155 + $0x18] sm:$0xe]
  %v6465 = vld [vmem:[%s155 + $0x20] sm:$0xe]
  %v6466 = vld [vmem:[%s155 + $0x28] sm:$0xe]
  %v6467 = vld [vmem:[%s155 + $0x30] sm:$0xe]
  %v6468 = vld [vmem:[%s155 + $0x38] sm:$0xe]
  %v6485 = vrot.slane %v6461, 5
  %v6486 = vrot.slane %v6485, 4
  %v6487 = vrot.slane %v6220, 5
  %v6488 = vsel %vm587, %v6486, %v6487
  %v6489 = vrot.slane %v6462, 5
  %v6490 = vrot.slane %v6489, 4
  %v6491 = vrot.slane %v6222, 5
  %v6492 = vsel %vm587, %v6490, %v6491
  %v6493 = vrot.slane %v6463, 5
  %v6494 = vrot.slane %v6493, 4
  %v6495 = vrot.slane %v6224, 5
  %v6496 = vsel %vm587, %v6494, %v6495
  %v6497 = vrot.slane %v6464, 5
  %v6498 = vrot.slane %v6497, 4
  %v6499 = vrot.slane %v6226, 5
  %v6500 = vsel %vm587, %v6498, %v6499
  %v6501 = vrot.slane %v6465, 5
  %v6502 = vrot.slane %v6501, 4
  %v6503 = vrot.slane %v6228, 5
  %v6504 = vsel %vm587, %v6502, %v6503
  %v6505 = vrot.slane %v6466, 5
  %v6506 = vrot.slane %v6505, 4
  %v6507 = vrot.slane %v6230, 5
  %v6508 = vsel %vm587, %v6506, %v6507
  %v6509 = vrot.slane %v6467, 5
  %v6510 = vrot.slane %v6509, 4
  %v6511 = vrot.slane %v6232, 5
  %v6512 = vsel %vm587, %v6510, %v6511
  %v6513 = vrot.slane %v6468, 5
  %v6514 = vrot.slane %v6513, 4
  %v6515 = vrot.slane %v6234, 5
  %v6516 = vsel %vm587, %v6514, %v6515
  %s6517 = scalar_lea.vmem %s2, 512
  %v6518 = vld [vmem:[%s6517] sm:$0xf]
  %v6519 = vld [vmem:[%s6517 + $0x4] sm:$0xf]
  %v6520 = vld [vmem:[%s6517 + $0x8] sm:$0xf]
  %v6521 = vld [vmem:[%s6517 + $0xc] sm:$0xf]
  %v6522 = vunpack.c.l.b16 %v6488
  %v6523 = vunpack.c.l.b16 %v6492
  %v6524 = vunpack.c.l.b16 %v6496
  %v6525 = vunpack.c.l.b16 %v6500
  %v6526 = vunpack.c.l.b16 %v6504
  %v6527 = vunpack.c.l.b16 %v6508
  %v6528 = vunpack.c.l.b16 %v6512
  %v6529 = vunpack.c.l.b16 %v6516
  %v6530 = vpack.c.b16 %v6523, %v6522
  %v6531 = vpack.c.b16 %v6525, %v6524
  %v6532 = vpack.c.b16 %v6527, %v6526
  %v6533 = vpack.c.b16 %v6529, %v6528
  %v6538 = vunpack.c.l.b16 %v6518
  %v6539 = vunpack.c.l.b16 %v6519
  %v6540 = vunpack.c.l.b16 %v6520
  %v6541 = vunpack.c.l.b16 %v6521
  %v6542 = vpack.c.b16 %v6539, %v6538
  %v6543 = vpack.c.b16 %v6541, %v6540
  %v6547 = vsel %vm374, %v6530, 0
  %v6550 = vsel %vm374, %v6531, 0
  %v6553 = vsel %vm374, %v6532, 0
  %v6556 = vsel %vm374, %v6533, 0
  %6558 = vmatprep.subr.bf16.mxu0 0
  %6559 = vmatpush1.bf16.msra.mxu0 %v6542
  %6560 = vmatprep.subr.bf16.mxu0 0
  %6561 = vmatpush1.bf16.msra.mxu0 %v6543
  %6562 = vmatprep.subr.bf16.mxu0 0
  %6563 = vmatpush1.bf16.msra.mxu0 0
  %6564 = vmatprep.subr.bf16.mxu0 0
  %6565 = vmatpush1.bf16.msra.mxu0 0
  %6566 = vmatprep.subr.bf16.mxu0 0
  %6567 = vmatpush1.bf16.msra.mxu0 0
  %6568 = vmatprep.subr.bf16.mxu0 0
  %6569 = vmatpush1.bf16.msra.mxu0 0
  %6570 = vmatprep.subr.bf16.mxu0 0
  %6571 = vmatpush1.bf16.msra.mxu0 0
  %6572 = vmatprep.subr.bf16.mxu0 0
  %6573 = vmatpush1.bf16.msra.mxu0 0
  %6574 = vmatprep.subr.bf16.mxu0 0
  %6575 = vmatpush1.bf16.msra.mxu0 0
  %6576 = vmatprep.subr.bf16.mxu0 0
  %6577 = vmatpush1.bf16.msra.mxu0 0
  %6578 = vmatprep.subr.bf16.mxu0 0
  %6579 = vmatpush1.bf16.msra.mxu0 0
  %6580 = vmatprep.subr.bf16.mxu0 0
  %6581 = vmatpush1.bf16.msra.mxu0 0
  %6582 = vmatprep.subr.bf16.mxu0 0
  %6583 = vmatpush1.bf16.msra.mxu0 0
  %6584 = vmatprep.subr.bf16.mxu0 0
  %6585 = vmatpush1.bf16.msra.mxu0 0
  %6586 = vmatprep.subr.bf16.mxu0 0
  %6587 = vmatpush1.bf16.msra.mxu0 0
  %6588 = vmatprep.subr.bf16.mxu0 0
  %6589 = vmatpush1.bf16.msra.mxu0 0
  %6590 = vmatprep.mubr.bf16.mxu0 0
  %6591 = vmatmul.mubr.bf16.gmra.mrb[0].mxu0 %v6547
  %v6592 = vpop.f32.mrb[0].mxu0
  %v6593 = vadd.f32 0.0, %v6592
  %v6594 = vpop.f32.mrb[0].mxu0
  %v6595 = vpop.f32.mrb[0].mxu0
  %v6596 = vadd.f32 0.0, %v6595
  %v6597 = vpop.f32.mrb[0].mxu0
  %6598 = vmatprep.mubr.bf16.mxu0 0
  %6599 = vmatmul.mubr.bf16.gmra.mrb[0].mxu0 %v6550
  %v6600 = vpop.f32.mrb[0].mxu0
  %v6601 = vadd.f32 0.0, %v6600
  %v6602 = vpop.f32.mrb[0].mxu0
  %v6603 = vpop.f32.mrb[0].mxu0
  %v6604 = vadd.f32 0.0, %v6603
  %v6605 = vpop.f32.mrb[0].mxu0
  %6606 = vmatprep.mubr.bf16.mxu0 0
  %6607 = vmatmul.mubr.bf16.gmra.mrb[0].mxu0 %v6553
  %v6608 = vpop.f32.mrb[0].mxu0
  %v6609 = vadd.f32 0.0, %v6608
  %v6610 = vpop.f32.mrb[0].mxu0
  %v6611 = vpop.f32.mrb[0].mxu0
  %v6612 = vadd.f32 0.0, %v6611
  %v6613 = vpop.f32.mrb[0].mxu0
  %6614 = vmatprep.mubr.bf16.mxu0 0
  %6615 = vmatmul.mubr.bf16.gmra.mrb[0].mxu0 %v6556
  %v6616 = vpop.f32.mrb[0].mxu0
  %v6617 = vadd.f32 0.0, %v6616
  %v6618 = vpop.f32.mrb[0].mxu0
  %v6619 = vpop.f32.mrb[0].mxu0
  %v6620 = vadd.f32 0.0, %v6619
  %v6621 = vpop.f32.mrb[0].mxu0
  %6622 = vdwg.mxu0
  %v6623 = vadd.f32 %v6453, %v6593
  %v6624 = vadd.f32 %v6454, %v6596
  %v6625 = vadd.f32 %v6455, %v6601
  %v6626 = vadd.f32 %v6456, %v6604
  %v6627 = vadd.f32 %v6457, %v6609
  %v6628 = vadd.f32 %v6458, %v6612
  %v6629 = vadd.f32 %v6459, %v6617
  %v6630 = vadd.f32 %v6460, %v6620
  %v6631 = vld [vmem:[%s1276] sm:$0xf]
  %v6632 = vld [vmem:[%s1276 + $0x8] sm:$0xf]
  %v6633 = vld [vmem:[%s1276 + $0x10] sm:$0xf]
  %v6634 = vld [vmem:[%s1276 + $0x18] sm:$0xf]
  %v6635 = vld [vmem:[%s1276 + $0x20] sm:$0xf]
  %v6636 = vld [vmem:[%s1276 + $0x28] sm:$0xf]
  %v6637 = vld [vmem:[%s1276 + $0x30] sm:$0xf]
  %v6638 = vld [vmem:[%s1276 + $0x38] sm:$0xf]
  %s6639 = scalar_lea.vmem %s2, 528
  %v6640 = vld [vmem:[%s6639] sm:$0xf]
  %v6641 = vld [vmem:[%s6639 + $0x4] sm:$0xf]
  %v6642 = vld [vmem:[%s6639 + $0x8] sm:$0xf]
  %v6643 = vld [vmem:[%s6639 + $0xc] sm:$0xf]
  %v6652 = vunpack.c.l.b16 %v6631
  %v6653 = vunpack.c.l.b16 %v6632
  %v6654 = vunpack.c.l.b16 %v6633
  %v6655 = vunpack.c.l.b16 %v6634
  %v6656 = vunpack.c.l.b16 %v6635
  %v6657 = vunpack.c.l.b16 %v6636
  %v6658 = vunpack.c.l.b16 %v6637
  %v6659 = vunpack.c.l.b16 %v6638
  %v6660 = vpack.c.b16 %v6653, %v6652
  %v6661 = vpack.c.b16 %v6655, %v6654
  %v6662 = vpack.c.b16 %v6657, %v6656
  %v6663 = vpack.c.b16 %v6659, %v6658
  %v6668 = vunpack.c.l.b16 %v6640
  %v6669 = vunpack.c.l.b16 %v6641
  %v6670 = vunpack.c.l.b16 %v6642
  %v6671 = vunpack.c.l.b16 %v6643
  %v6672 = vpack.c.b16 %v6669, %v6668
  %v6673 = vpack.c.b16 %v6671, %v6670
  %v6677 = vsel %vm374, %v6660, 0
  %v6680 = vsel %vm374, %v6661, 0
  %v6683 = vsel %vm374, %v6662, 0
  %v6686 = vsel %vm374, %v6663, 0
  %6688 = vmatprep.subr.bf16.mxu0 0
  %6689 = vmatpush1.bf16.msra.mxu0 %v6672
  %6690 = vmatprep.subr.bf16.mxu0 0
  %6691 = vmatpush1.bf16.msra.mxu0 %v6673
  %6692 = vmatprep.subr.bf16.mxu0 0
  %6693 = vmatpush1.bf16.msra.mxu0 0
  %6694 = vmatprep.subr.bf16.mxu0 0
  %6695 = vmatpush1.bf16.msra.mxu0 0
  %6696 = vmatprep.subr.bf16.mxu0 0
  %6697 = vmatpush1.bf16.msra.mxu0 0
  %6698 = vmatprep.subr.bf16.mxu0 0
  %6699 = vmatpush1.bf16.msra.mxu0 0
  %6700 = vmatprep.subr.bf16.mxu0 0
  %6701 = vmatpush1.bf16.msra.mxu0 0
  %6702 = vmatprep.subr.bf16.mxu0 0
  %6703 = vmatpush1.bf16.msra.mxu0 0
  %6704 = vmatprep.subr.bf16.mxu0 0
  %6705 = vmatpush1.bf16.msra.mxu0 0
  %6706 = vmatprep.subr.bf16.mxu0 0
  %6707 = vmatpush1.bf16.msra.mxu0 0
  %6708 = vmatprep.subr.bf16.mxu0 0
  %6709 = vmatpush1.bf16.msra.mxu0 0
  %6710 = vmatprep.subr.bf16.mxu0 0
  %6711 = vmatpush1.bf16.msra.mxu0 0
  %6712 = vmatprep.subr.bf16.mxu0 0
  %6713 = vmatpush1.bf16.msra.mxu0 0
  %6714 = vmatprep.subr.bf16.mxu0 0
  %6715 = vmatpush1.bf16.msra.mxu0 0
  %6716 = vmatprep.subr.bf16.mxu0 0
  %6717 = vmatpush1.bf16.msra.mxu0 0
  %6718 = vmatprep.subr.bf16.mxu0 0
  %6719 = vmatpush1.bf16.msra.mxu0 0
  %6720 = vmatprep.mubr.bf16.mxu0 0
  %6721 = vmatmul.mubr.bf16.gmra.mrb[0].mxu0 %v6677
  %v6722 = vpop.f32.mrb[0].mxu0
  %v6723 = vadd.f32 0.0, %v6722
  %v6724 = vpop.f32.mrb[0].mxu0
  %v6725 = vpop.f32.mrb[0].mxu0
  %v6726 = vadd.f32 0.0, %v6725
  %v6727 = vpop.f32.mrb[0].mxu0
  %6728 = vmatprep.mubr.bf16.mxu0 0
  %6729 = vmatmul.mubr.bf16.gmra.mrb[0].mxu0 %v6680
  %v6730 = vpop.f32.mrb[0].mxu0
  %v6731 = vadd.f32 0.0, %v6730
  %v6732 = vpop.f32.mrb[0].mxu0
  %v6733 = vpop.f32.mrb[0].mxu0
  %v6734 = vadd.f32 0.0, %v6733
  %v6735 = vpop.f32.mrb[0].mxu0
  %6736 = vmatprep.mubr.bf16.mxu0 0
  %6737 = vmatmul.mubr.bf16.gmra.mrb[0].mxu0 %v6683
  %v6738 = vpop.f32.mrb[0].mxu0
  %v6739 = vadd.f32 0.0, %v6738
  %v6740 = vpop.f32.mrb[0].mxu0
  %v6741 = vpop.f32.mrb[0].mxu0
  %v6742 = vadd.f32 0.0, %v6741
  %v6743 = vpop.f32.mrb[0].mxu0
  %6744 = vmatprep.mubr.bf16.mxu0 0
  %6745 = vmatmul.mubr.bf16.gmra.mrb[0].mxu0 %v6686
  %v6746 = vpop.f32.mrb[0].mxu0
  %v6747 = vadd.f32 0.0, %v6746
  %v6748 = vpop.f32.mrb[0].mxu0
  %v6749 = vpop.f32.mrb[0].mxu0
  %v6750 = vadd.f32 0.0, %v6749
  %v6751 = vpop.f32.mrb[0].mxu0
  %6752 = vdwg.mxu0
  %v6753 = vadd.f32 %v6623, %v6723
  %v6754 = vadd.f32 %v6624, %v6726
  %v6755 = vadd.f32 %v6625, %v6731
  %v6756 = vadd.f32 %v6626, %v6734
  %v6757 = vadd.f32 %v6627, %v6739
  %v6758 = vadd.f32 %v6628, %v6742
  %v6759 = vadd.f32 %v6629, %v6747
  %v6760 = vadd.f32 %v6630, %v6750
  %v6761 = vld [vmem:[%s1276] sm:$0xf]
  %v6762 = vld [vmem:[%s1276 + $0x4] sm:$0x1]
  %v6763 = vld [vmem:[%s1276 + $0x8] sm:$0xf]
  %v6764 = vld [vmem:[%s1276 + $0xc] sm:$0x1]
  %v6765 = vld [vmem:[%s1276 + $0x10] sm:$0xf]
  %v6766 = vld [vmem:[%s1276 + $0x14] sm:$0x1]
  %v6767 = vld [vmem:[%s1276 + $0x18] sm:$0xf]
  %v6768 = vld [vmem:[%s1276 + $0x1c] sm:$0x1]
  %v6769 = vld [vmem:[%s1276 + $0x20] sm:$0xf]
  %v6770 = vld [vmem:[%s1276 + $0x24] sm:$0x1]
  %v6771 = vld [vmem:[%s1276 + $0x28] sm:$0xf]
  %v6772 = vld [vmem:[%s1276 + $0x2c] sm:$0x1]
  %v6773 = vld [vmem:[%s1276 + $0x30] sm:$0xf]
  %v6774 = vld [vmem:[%s1276 + $0x34] sm:$0x1]
  %v6775 = vld [vmem:[%s1276 + $0x38] sm:$0xf]
  %v6776 = vld [vmem:[%s1276 + $0x3c] sm:$0x1]
  %v6778 = vshrl.u32 %v6761, 16
  %v6780 = vrot.slane %v6778, 4
  %v6781 = vshll.u32 %v6761, 16
  %v6783 = vrot.slane %v6781, 5
  %v6784 = vor.u32 %v6780, %v6783
  %v6785 = vrot.slane %v6784, 4
  %v6787 = vshll.u32 %v6762, 16
  %v6789 = vrot.slane %v6787, 5
  %v6790 = vsel %vm232, %v6785, %v6789
  %v6792 = vshrl.u32 %v6763, 16
  %v6794 = vrot.slane %v6792, 4
  %v6795 = vshll.u32 %v6763, 16
  %v6797 = vrot.slane %v6795, 5
  %v6798 = vor.u32 %v6794, %v6797
  %v6799 = vrot.slane %v6798, 4
  %v6801 = vshll.u32 %v6764, 16
  %v6803 = vrot.slane %v6801, 5
  %v6804 = vsel %vm232, %v6799, %v6803
  %v6806 = vshrl.u32 %v6765, 16
  %v6808 = vrot.slane %v6806, 4
  %v6809 = vshll.u32 %v6765, 16
  %v6811 = vrot.slane %v6809, 5
  %v6812 = vor.u32 %v6808, %v6811
  %v6813 = vrot.slane %v6812, 4
  %v6815 = vshll.u32 %v6766, 16
  %v6817 = vrot.slane %v6815, 5
  %v6818 = vsel %vm232, %v6813, %v6817
  %v6820 = vshrl.u32 %v6767, 16
  %v6822 = vrot.slane %v6820, 4
  %v6823 = vshll.u32 %v6767, 16
  %v6825 = vrot.slane %v6823, 5
  %v6826 = vor.u32 %v6822, %v6825
  %v6827 = vrot.slane %v6826, 4
  %v6829 = vshll.u32 %v6768, 16
  %v6831 = vrot.slane %v6829, 5
  %v6832 = vsel %vm232, %v6827, %v6831
  %v6834 = vshrl.u32 %v6769, 16
  %v6836 = vrot.slane %v6834, 4
  %v6837 = vshll.u32 %v6769, 16
  %v6839 = vrot.slane %v6837, 5
  %v6840 = vor.u32 %v6836, %v6839
  %v6841 = vrot.slane %v6840, 4
  %v6843 = vshll.u32 %v6770, 16
  %v6845 = vrot.slane %v6843, 5
  %v6846 = vsel %vm232, %v6841, %v6845
  %v6848 = vshrl.u32 %v6771, 16
  %v6850 = vrot.slane %v6848, 4
  %v6851 = vshll.u32 %v6771, 16
  %v6853 = vrot.slane %v6851, 5
  %v6854 = vor.u32 %v6850, %v6853
  %v6855 = vrot.slane %v6854, 4
  %v6857 = vshll.u32 %v6772, 16
  %v6859 = vrot.slane %v6857, 5
  %v6860 = vsel %vm232, %v6855, %v6859
  %v6862 = vshrl.u32 %v6773, 16
  %v6864 = vrot.slane %v6862, 4
  %v6865 = vshll.u32 %v6773, 16
  %v6867 = vrot.slane %v6865, 5
  %v6868 = vor.u32 %v6864, %v6867
  %v6869 = vrot.slane %v6868, 4
  %v6871 = vshll.u32 %v6774, 16
  %v6873 = vrot.slane %v6871, 5
  %v6874 = vsel %vm232, %v6869, %v6873
  %v6876 = vshrl.u32 %v6775, 16
  %v6878 = vrot.slane %v6876, 4
  %v6879 = vshll.u32 %v6775, 16
  %v6881 = vrot.slane %v6879, 5
  %v6882 = vor.u32 %v6878, %v6881
  %v6883 = vrot.slane %v6882, 4
  %v6885 = vshll.u32 %v6776, 16
  %v6887 = vrot.slane %v6885, 5
  %v6888 = vsel %vm232, %v6883, %v6887
  %s6889 = scalar_lea.vmem %s2, 544
  %v6890 = vld [vmem:[%s6889] sm:$0xf]
  %v6891 = vld [vmem:[%s6889 + $0x4] sm:$0xf]
  %v6892 = vld [vmem:[%s6889 + $0x8] sm:$0xf]
  %v6893 = vld [vmem:[%s6889 + $0xc] sm:$0xf]
  %v6894 = vunpack.c.l.b16 %v6790
  %v6895 = vunpack.c.l.b16 %v6804
  %v6896 = vunpack.c.l.b16 %v6818
  %v6897 = vunpack.c.l.b16 %v6832
  %v6898 = vunpack.c.l.b16 %v6846
  %v6899 = vunpack.c.l.b16 %v6860
  %v6900 = vunpack.c.l.b16 %v6874
  %v6901 = vunpack.c.l.b16 %v6888
  %v6902 = vpack.c.b16 %v6895, %v6894
  %v6903 = vpack.c.b16 %v6897, %v6896
  %v6904 = vpack.c.b16 %v6899, %v6898
  %v6905 = vpack.c.b16 %v6901, %v6900
  %v6910 = vunpack.c.l.b16 %v6890
  %v6911 = vunpack.c.l.b16 %v6891
  %v6912 = vunpack.c.l.b16 %v6892
  %v6913 = vunpack.c.l.b16 %v6893
  %v6914 = vpack.c.b16 %v6911, %v6910
  %v6915 = vpack.c.b16 %v6913, %v6912
  %v6919 = vsel %vm374, %v6902, 0
  %v6922 = vsel %vm374, %v6903, 0
  %v6925 = vsel %vm374, %v6904, 0
  %v6928 = vsel %vm374, %v6905, 0
  %6930 = vmatprep.subr.bf16.mxu0 0
  %6931 = vmatpush1.bf16.msra.mxu0 %v6914
  %6932 = vmatprep.subr.bf16.mxu0 0
  %6933 = vmatpush1.bf16.msra.mxu0 %v6915
  %6934 = vmatprep.subr.bf16.mxu0 0
  %6935 = vmatpush1.bf16.msra.mxu0 0
  %6936 = vmatprep.subr.bf16.mxu0 0
  %6937 = vmatpush1.bf16.msra.mxu0 0
  %6938 = vmatprep.subr.bf16.mxu0 0
  %6939 = vmatpush1.bf16.msra.mxu0 0
  %6940 = vmatprep.subr.bf16.mxu0 0
  %6941 = vmatpush1.bf16.msra.mxu0 0
  %6942 = vmatprep.subr.bf16.mxu0 0
  %6943 = vmatpush1.bf16.msra.mxu0 0
  %6944 = vmatprep.subr.bf16.mxu0 0
  %6945 = vmatpush1.bf16.msra.mxu0 0
  %6946 = vmatprep.subr.bf16.mxu0 0
  %6947 = vmatpush1.bf16.msra.mxu0 0
  %6948 = vmatprep.subr.bf16.mxu0 0
  %6949 = vmatpush1.bf16.msra.mxu0 0
  %6950 = vmatprep.subr.bf16.mxu0 0
  %6951 = vmatpush1.bf16.msra.mxu0 0
  %6952 = vmatprep.subr.bf16.mxu0 0
  %6953 = vmatpush1.bf16.msra.mxu0 0
  %6954 = vmatprep.subr.bf16.mxu0 0
  %6955 = vmatpush1.bf16.msra.mxu0 0
  %6956 = vmatprep.subr.bf16.mxu0 0
  %6957 = vmatpush1.bf16.msra.mxu0 0
  %6958 = vmatprep.subr.bf16.mxu0 0
  %6959 = vmatpush1.bf16.msra.mxu0 0
  %6960 = vmatprep.subr.bf16.mxu0 0
  %6961 = vmatpush1.bf16.msra.mxu0 0
  %6962 = vmatprep.mubr.bf16.mxu0 0
  %6963 = vmatmul.mubr.bf16.gmra.mrb[0].mxu0 %v6919
  %v6964 = vpop.f32.mrb[0].mxu0
  %v6965 = vadd.f32 0.0, %v6964
  %v6966 = vpop.f32.mrb[0].mxu0
  %v6967 = vpop.f32.mrb[0].mxu0
  %v6968 = vadd.f32 0.0, %v6967
  %v6969 = vpop.f32.mrb[0].mxu0
  %6970 = vmatprep.mubr.bf16.mxu0 0
  %6971 = vmatmul.mubr.bf16.gmra.mrb[0].mxu0 %v6922
  %v6972 = vpop.f32.mrb[0].mxu0
  %v6973 = vadd.f32 0.0, %v6972
  %v6974 = vpop.f32.mrb[0].mxu0
  %v6975 = vpop.f32.mrb[0].mxu0
  %v6976 = vadd.f32 0.0, %v6975
  %v6977 = vpop.f32.mrb[0].mxu0
  %6978 = vmatprep.mubr.bf16.mxu0 0
  %6979 = vmatmul.mubr.bf16.gmra.mrb[0].mxu0 %v6925
  %v6980 = vpop.f32.mrb[0].mxu0
  %v6981 = vadd.f32 0.0, %v6980
  %v6982 = vpop.f32.mrb[0].mxu0
  %v6983 = vpop.f32.mrb[0].mxu0
  %v6984 = vadd.f32 0.0, %v6983
  %v6985 = vpop.f32.mrb[0].mxu0
  %6986 = vmatprep.mubr.bf16.mxu0 0
  %6987 = vmatmul.mubr.bf16.gmra.mrb[0].mxu0 %v6928
  %v6988 = vpop.f32.mrb[0].mxu0
  %v6989 = vadd.f32 0.0, %v6988
  %v6990 = vpop.f32.mrb[0].mxu0
  %v6991 = vpop.f32.mrb[0].mxu0
  %v6992 = vadd.f32 0.0, %v6991
  %v6993 = vpop.f32.mrb[0].mxu0
  %6994 = vdwg.mxu0
  %v6995 = vadd.f32 %v6753, %v6965
  %v6996 = vadd.f32 %v6754, %v6968
  %v6997 = vadd.f32 %v6755, %v6973
  %v6998 = vadd.f32 %v6756, %v6976
  %v6999 = vadd.f32 %v6757, %v6981
  %v7000 = vadd.f32 %v6758, %v6984
  %v7001 = vadd.f32 %v6759, %v6989
  %v7002 = vadd.f32 %v6760, %v6992
  %v7003 = vld [vmem:[%s1276] sm:$0xe]
  %v7004 = vld [vmem:[%s1276 + $0x8] sm:$0xe]
  %v7005 = vld [vmem:[%s1276 + $0x10] sm:$0xe]
  %v7006 = vld [vmem:[%s1276 + $0x18] sm:$0xe]
  %v7007 = vld [vmem:[%s1276 + $0x20] sm:$0xe]
  %v7008 = vld [vmem:[%s1276 + $0x28] sm:$0xe]
  %v7009 = vld [vmem:[%s1276 + $0x30] sm:$0xe]
  %v7010 = vld [vmem:[%s1276 + $0x38] sm:$0xe]
  %v7027 = vrot.slane %v7003, 5
  %v7028 = vrot.slane %v7027, 4
  %v7029 = vrot.slane %v6762, 5
  %v7030 = vsel %vm587, %v7028, %v7029
  %v7031 = vrot.slane %v7004, 5
  %v7032 = vrot.slane %v7031, 4
  %v7033 = vrot.slane %v6764, 5
  %v7034 = vsel %vm587, %v7032, %v7033
  %v7035 = vrot.slane %v7005, 5
  %v7036 = vrot.slane %v7035, 4
  %v7037 = vrot.slane %v6766, 5
  %v7038 = vsel %vm587, %v7036, %v7037
  %v7039 = vrot.slane %v7006, 5
  %v7040 = vrot.slane %v7039, 4
  %v7041 = vrot.slane %v6768, 5
  %v7042 = vsel %vm587, %v7040, %v7041
  %v7043 = vrot.slane %v7007, 5
  %v7044 = vrot.slane %v7043, 4
  %v7045 = vrot.slane %v6770, 5
  %v7046 = vsel %vm587, %v7044, %v7045
  %v7047 = vrot.slane %v7008, 5
  %v7048 = vrot.slane %v7047, 4
  %v7049 = vrot.slane %v6772, 5
  %v7050 = vsel %vm587, %v7048, %v7049
  %v7051 = vrot.slane %v7009, 5
  %v7052 = vrot.slane %v7051, 4
  %v7053 = vrot.slane %v6774, 5
  %v7054 = vsel %vm587, %v7052, %v7053
  %v7055 = vrot.slane %v7010, 5
  %v7056 = vrot.slane %v7055, 4
  %v7057 = vrot.slane %v6776, 5
  %v7058 = vsel %vm587, %v7056, %v7057
  %s7059 = scalar_lea.vmem %s2, 560
  %v7060 = vld [vmem:[%s7059] sm:$0xf]
  %v7061 = vld [vmem:[%s7059 + $0x4] sm:$0xf]
  %v7062 = vld [vmem:[%s7059 + $0x8] sm:$0xf]
  %v7063 = vld [vmem:[%s7059 + $0xc] sm:$0xf]
  %v7064 = vunpack.c.l.b16 %v7030
  %v7065 = vunpack.c.l.b16 %v7034
  %v7066 = vunpack.c.l.b16 %v7038
  %v7067 = vunpack.c.l.b16 %v7042
  %v7068 = vunpack.c.l.b16 %v7046
  %v7069 = vunpack.c.l.b16 %v7050
  %v7070 = vunpack.c.l.b16 %v7054
  %v7071 = vunpack.c.l.b16 %v7058
  %v7072 = vpack.c.b16 %v7065, %v7064
  %v7073 = vpack.c.b16 %v7067, %v7066
  %v7074 = vpack.c.b16 %v7069, %v7068
  %v7075 = vpack.c.b16 %v7071, %v7070
  %v7080 = vunpack.c.l.b16 %v7060
  %v7081 = vunpack.c.l.b16 %v7061
  %v7082 = vunpack.c.l.b16 %v7062
  %v7083 = vunpack.c.l.b16 %v7063
  %v7084 = vpack.c.b16 %v7081, %v7080
  %v7085 = vpack.c.b16 %v7083, %v7082
  %v7089 = vsel %vm374, %v7072, 0
  %v7092 = vsel %vm374, %v7073, 0
  %v7095 = vsel %vm374, %v7074, 0
  %v7098 = vsel %vm374, %v7075, 0
  %7100 = vmatprep.subr.bf16.mxu0 0
  %7101 = vmatpush1.bf16.msra.mxu0 %v7084
  %7102 = vmatprep.subr.bf16.mxu0 0
  %7103 = vmatpush1.bf16.msra.mxu0 %v7085
  %7104 = vmatprep.subr.bf16.mxu0 0
  %7105 = vmatpush1.bf16.msra.mxu0 0
  %7106 = vmatprep.subr.bf16.mxu0 0
  %7107 = vmatpush1.bf16.msra.mxu0 0
  %7108 = vmatprep.subr.bf16.mxu0 0
  %7109 = vmatpush1.bf16.msra.mxu0 0
  %7110 = vmatprep.subr.bf16.mxu0 0
  %7111 = vmatpush1.bf16.msra.mxu0 0
  %7112 = vmatprep.subr.bf16.mxu0 0
  %7113 = vmatpush1.bf16.msra.mxu0 0
  %7114 = vmatprep.subr.bf16.mxu0 0
  %7115 = vmatpush1.bf16.msra.mxu0 0
  %7116 = vmatprep.subr.bf16.mxu0 0
  %7117 = vmatpush1.bf16.msra.mxu0 0
  %7118 = vmatprep.subr.bf16.mxu0 0
  %7119 = vmatpush1.bf16.msra.mxu0 0
  %7120 = vmatprep.subr.bf16.mxu0 0
  %7121 = vmatpush1.bf16.msra.mxu0 0
  %7122 = vmatprep.subr.bf16.mxu0 0
  %7123 = vmatpush1.bf16.msra.mxu0 0
  %7124 = vmatprep.subr.bf16.mxu0 0
  %7125 = vmatpush1.bf16.msra.mxu0 0
  %7126 = vmatprep.subr.bf16.mxu0 0
  %7127 = vmatpush1.bf16.msra.mxu0 0
  %7128 = vmatprep.subr.bf16.mxu0 0
  %7129 = vmatpush1.bf16.msra.mxu0 0
  %7130 = vmatprep.subr.bf16.mxu0 0
  %7131 = vmatpush1.bf16.msra.mxu0 0
  %7132 = vmatprep.mubr.bf16.mxu0 0
  %7133 = vmatmul.mubr.bf16.gmra.mrb[0].mxu0 %v7089
  %v7134 = vpop.f32.mrb[0].mxu0
  %v7135 = vadd.f32 0.0, %v7134
  %v7136 = vpop.f32.mrb[0].mxu0
  %v7137 = vpop.f32.mrb[0].mxu0
  %v7138 = vadd.f32 0.0, %v7137
  %v7139 = vpop.f32.mrb[0].mxu0
  %7140 = vmatprep.mubr.bf16.mxu0 0
  %7141 = vmatmul.mubr.bf16.gmra.mrb[0].mxu0 %v7092
  %v7142 = vpop.f32.mrb[0].mxu0
  %v7143 = vadd.f32 0.0, %v7142
  %v7144 = vpop.f32.mrb[0].mxu0
  %v7145 = vpop.f32.mrb[0].mxu0
  %v7146 = vadd.f32 0.0, %v7145
  %v7147 = vpop.f32.mrb[0].mxu0
  %7148 = vmatprep.mubr.bf16.mxu0 0
  %7149 = vmatmul.mubr.bf16.gmra.mrb[0].mxu0 %v7095
  %v7150 = vpop.f32.mrb[0].mxu0
  %v7151 = vadd.f32 0.0, %v7150
  %v7152 = vpop.f32.mrb[0].mxu0
  %v7153 = vpop.f32.mrb[0].mxu0
  %v7154 = vadd.f32 0.0, %v7153
  %v7155 = vpop.f32.mrb[0].mxu0
  %7156 = vmatprep.mubr.bf16.mxu0 0
  %7157 = vmatmul.mubr.bf16.gmra.mrb[0].mxu0 %v7098
  %v7158 = vpop.f32.mrb[0].mxu0
  %v7159 = vadd.f32 0.0, %v7158
  %v7160 = vpop.f32.mrb[0].mxu0
  %v7161 = vpop.f32.mrb[0].mxu0
  %v7162 = vadd.f32 0.0, %v7161
  %v7163 = vpop.f32.mrb[0].mxu0
  %7164 = vdwg.mxu0
  %v7165 = vadd.f32 %v6995, %v7135
  %v7166 = vadd.f32 %v6996, %v7138
  %v7167 = vadd.f32 %v6997, %v7143
  %v7168 = vadd.f32 %v6998, %v7146
  %v7169 = vadd.f32 %v6999, %v7151
  %v7170 = vadd.f32 %v7000, %v7154
  %v7171 = vadd.f32 %v7001, %v7159
  %v7172 = vadd.f32 %v7002, %v7162
  %s7173 = scalar_lea.vmem %s3, 3
  %v7174 = vld [vmem:[%s7173] sm:$0x1]
  %v7176 = vlaneseq
  %v7177 = vshrl.u32 %v7176, 7
  %v7178 = vsub.s32 0, %v7177
  %v7179 = vrot.slane %v7174, %v7178
  %v7181 = vadd.f32 %v7165, %v7179
  %v7182 = vadd.f32 %v7166, %v7179
  %v7183 = vadd.f32 %v7167, %v7179
  %v7184 = vadd.f32 %v7168, %v7179
  %v7185 = vadd.f32 %v7169, %v7179
  %v7186 = vadd.f32 %v7170, %v7179
  %v7187 = vadd.f32 %v7171, %v7179
  %v7188 = vadd.f32 %v7172, %v7179
  %v7189 = vmax.f32 %v7181, 0.0
  %v7190 = vmax.f32 %v7182, 0.0
  %v7191 = vmax.f32 %v7183, 0.0
  %v7192 = vmax.f32 %v7184, 0.0
  %v7193 = vmax.f32 %v7185, 0.0
  %v7194 = vmax.f32 %v7186, 0.0
  %v7195 = vmax.f32 %v7187, 0.0
  %v7196 = vmax.f32 %v7188, 0.0
  %v7197 = vpack.c.bf16 %v7189, %v7189
  %v7198 = vpack.c.bf16 %v7190, %v7190
  %v7199 = vpack.c.bf16 %v7191, %v7191
  %v7200 = vpack.c.bf16 %v7192, %v7192
  %v7201 = vpack.c.bf16 %v7193, %v7193
  %v7202 = vpack.c.bf16 %v7194, %v7194
  %v7203 = vpack.c.bf16 %v7195, %v7195
  %v7204 = vpack.c.bf16 %v7196, %v7196
  %v7213 = vunpack.c.l.b16 %v7197
  %v7214 = vunpack.c.l.b16 %v7198
  %v7215 = vunpack.c.l.b16 %v7199
  %v7216 = vunpack.c.l.b16 %v7200
  %v7217 = vunpack.c.l.b16 %v7201
  %v7218 = vunpack.c.l.b16 %v7202
  %v7219 = vunpack.c.l.b16 %v7203
  %v7220 = vunpack.c.l.b16 %v7204
  %v7221 = vpack.c.b16 %v7213, %v7213
  %v7222 = vpack.c.b16 %v7214, %v7214
  %v7223 = vpack.c.b16 %v7215, %v7215
  %v7224 = vpack.c.b16 %v7216, %v7216
  %v7225 = vpack.c.b16 %v7217, %v7217
  %v7226 = vpack.c.b16 %v7218, %v7218
  %v7227 = vpack.c.b16 %v7219, %v7219
  %v7228 = vpack.c.b16 %v7220, %v7220
  %v7230 = vshrl.u32 %v7221, 16
  %v7232 = vrot.slane %v7230, 7
  %v7233 = vshll.u32 %v7221, 16
  %v7235 = vor.u32 %v7232, %v7233
  %v7236 = vrot.slane %v7232, 4
  %v7238 = vshrl.u32 %v7222, 16
  %v7240 = vrot.slane %v7238, 7
  %v7241 = vshll.u32 %v7222, 16
  %v7243 = vor.u32 %v7240, %v7241
  %v7244 = vrot.slane %v7240, 4
  %v7246 = vshrl.u32 %v7223, 16
  %v7248 = vrot.slane %v7246, 7
  %v7249 = vshll.u32 %v7223, 16
  %v7251 = vor.u32 %v7248, %v7249
  %v7252 = vrot.slane %v7248, 4
  %v7254 = vshrl.u32 %v7224, 16
  %v7256 = vrot.slane %v7254, 7
  %v7257 = vshll.u32 %v7224, 16
  %v7259 = vor.u32 %v7256, %v7257
  %v7260 = vrot.slane %v7256, 4
  %v7262 = vshrl.u32 %v7225, 16
  %v7264 = vrot.slane %v7262, 7
  %v7265 = vshll.u32 %v7225, 16
  %v7267 = vor.u32 %v7264, %v7265
  %v7268 = vrot.slane %v7264, 4
  %v7270 = vshrl.u32 %v7226, 16
  %v7272 = vrot.slane %v7270, 7
  %v7273 = vshll.u32 %v7226, 16
  %v7275 = vor.u32 %v7272, %v7273
  %v7276 = vrot.slane %v7272, 4
  %v7278 = vshrl.u32 %v7227, 16
  %v7280 = vrot.slane %v7278, 7
  %v7281 = vshll.u32 %v7227, 16
  %v7283 = vor.u32 %v7280, %v7281
  %v7284 = vrot.slane %v7280, 4
  %v7286 = vshrl.u32 %v7228, 16
  %v7288 = vrot.slane %v7286, 7
  %v7289 = vshll.u32 %v7228, 16
  %v7291 = vor.u32 %v7288, %v7289
  %v7292 = vrot.slane %v7288, 4
  %v7309 = vsel %vm158, %v7235, %v6219
  %7310 = vst [vmem:[%s155] sm:$0xf] %v7309
  %v7311 = vld [vmem:[%s155 + $0x4] sm:$0x1]
  %v7312 = vsel %vm164, %v7236, %v7311
  %7313 = vst [vmem:[%s155 + $0x4] sm:$0x1] %v7312
  %v7314 = vld [vmem:[%s155 + $0x8] sm:$0xf]
  %v7315 = vsel %vm158, %v7243, %v7314
  %7316 = vst [vmem:[%s155 + $0x8] sm:$0xf] %v7315
  %v7317 = vld [vmem:[%s155 + $0xc] sm:$0x1]
  %v7318 = vsel %vm164, %v7244, %v7317
  %7319 = vst [vmem:[%s155 + $0xc] sm:$0x1] %v7318
  %v7320 = vld [vmem:[%s155 + $0x10] sm:$0xf]
  %v7321 = vsel %vm158, %v7251, %v7320
  %7322 = vst [vmem:[%s155 + $0x10] sm:$0xf] %v7321
  %v7323 = vld [vmem:[%s155 + $0x14] sm:$0x1]
  %v7324 = vsel %vm164, %v7252, %v7323
  %7325 = vst [vmem:[%s155 + $0x14] sm:$0x1] %v7324
  %v7326 = vld [vmem:[%s155 + $0x18] sm:$0xf]
  %v7327 = vsel %vm158, %v7259, %v7326
  %7328 = vst [vmem:[%s155 + $0x18] sm:$0xf] %v7327
  %v7329 = vld [vmem:[%s155 + $0x1c] sm:$0x1]
  %v7330 = vsel %vm164, %v7260, %v7329
  %7331 = vst [vmem:[%s155 + $0x1c] sm:$0x1] %v7330
  %v7332 = vld [vmem:[%s155 + $0x20] sm:$0xf]
  %v7333 = vsel %vm158, %v7267, %v7332
  %7334 = vst [vmem:[%s155 + $0x20] sm:$0xf] %v7333
  %v7335 = vld [vmem:[%s155 + $0x24] sm:$0x1]
  %v7336 = vsel %vm164, %v7268, %v7335
  %7337 = vst [vmem:[%s155 + $0x24] sm:$0x1] %v7336
  %v7338 = vld [vmem:[%s155 + $0x28] sm:$0xf]
  %v7339 = vsel %vm158, %v7275, %v7338
  %7340 = vst [vmem:[%s155 + $0x28] sm:$0xf] %v7339
  %v7341 = vld [vmem:[%s155 + $0x2c] sm:$0x1]
  %v7342 = vsel %vm164, %v7276, %v7341
  %7343 = vst [vmem:[%s155 + $0x2c] sm:$0x1] %v7342
  %v7344 = vld [vmem:[%s155 + $0x30] sm:$0xf]
  %v7345 = vsel %vm158, %v7283, %v7344
  %7346 = vst [vmem:[%s155 + $0x30] sm:$0xf] %v7345
  %v7347 = vld [vmem:[%s155 + $0x34] sm:$0x1]
  %v7348 = vsel %vm164, %v7284, %v7347
  %7349 = vst [vmem:[%s155 + $0x34] sm:$0x1] %v7348
  %v7350 = vld [vmem:[%s155 + $0x38] sm:$0xf]
  %v7351 = vsel %vm158, %v7291, %v7350
  %7352 = vst [vmem:[%s155 + $0x38] sm:$0xf] %v7351
  %v7353 = vld [vmem:[%s155 + $0x3c] sm:$0x1]
  %v7354 = vsel %vm164, %v7292, %v7353
  %7355 = vst [vmem:[%s155 + $0x3c] sm:$0x1] %v7354
  %v7356 = vld [vmem:[#allocation2] sm:$0xf]
  %v7357 = vld [vmem:[#allocation2 + $0x8] sm:$0xf]
  %v7358 = vld [vmem:[#allocation2 + $0x10] sm:$0xf]
  %v7359 = vld [vmem:[#allocation2 + $0x18] sm:$0xf]
  %v7360 = vld [vmem:[#allocation2 + $0x20] sm:$0xf]
  %v7361 = vld [vmem:[#allocation2 + $0x28] sm:$0xf]
  %v7362 = vld [vmem:[#allocation2 + $0x30] sm:$0xf]
  %v7363 = vld [vmem:[#allocation2 + $0x38] sm:$0xf]
  %s7364 = scalar_lea.vmem %s2, 576
  %v7365 = vld [vmem:[%s7364] sm:$0xf]
  %v7366 = vld [vmem:[%s7364 + $0x4] sm:$0xf]
  %v7367 = vld [vmem:[%s7364 + $0x8] sm:$0xf]
  %v7368 = vld [vmem:[%s7364 + $0xc] sm:$0xf]
  %v7369 = vld [vmem:[#allocation2 + $0x4] sm:$0x1]
  %v7370 = vld [vmem:[#allocation2 + $0xc] sm:$0x1]
  %v7371 = vld [vmem:[#allocation2 + $0x14] sm:$0x1]
  %v7372 = vld [vmem:[#allocation2 + $0x1c] sm:$0x1]
  %v7373 = vld [vmem:[#allocation2 + $0x24] sm:$0x1]
  %v7374 = vld [vmem:[#allocation2 + $0x2c] sm:$0x1]
  %v7375 = vld [vmem:[#allocation2 + $0x34] sm:$0x1]
  %v7376 = vld [vmem:[#allocation2 + $0x3c] sm:$0x1]
  %v7378 = vshrl.u32 %v7356, 16
  %v7380 = vrot.slane %v7378, 4
  %v7381 = vshll.u32 %v7356, 16
  %v7383 = vrot.slane %v7381, 5
  %v7384 = vor.u32 %v7380, %v7383
  %v7385 = vrot.slane %v7384, 4
  %v7387 = vshll.u32 %v7369, 16
  %v7389 = vrot.slane %v7387, 5
  %v7390 = vsel %vm232, %v7385, %v7389
  %v7392 = vshrl.u32 %v7357, 16
  %v7394 = vrot.slane %v7392, 4
  %v7395 = vshll.u32 %v7357, 16
  %v7397 = vrot.slane %v7395, 5
  %v7398 = vor.u32 %v7394, %v7397
  %v7399 = vrot.slane %v7398, 4
  %v7401 = vshll.u32 %v7370, 16
  %v7403 = vrot.slane %v7401, 5
  %v7404 = vsel %vm232, %v7399, %v7403
  %v7406 = vshrl.u32 %v7358, 16
  %v7408 = vrot.slane %v7406, 4
  %v7409 = vshll.u32 %v7358, 16
  %v7411 = vrot.slane %v7409, 5
  %v7412 = vor.u32 %v7408, %v7411
  %v7413 = vrot.slane %v7412, 4
  %v7415 = vshll.u32 %v7371, 16
  %v7417 = vrot.slane %v7415, 5
  %v7418 = vsel %vm232, %v7413, %v7417
  %v7420 = vshrl.u32 %v7359, 16
  %v7422 = vrot.slane %v7420, 4
  %v7423 = vshll.u32 %v7359, 16
  %v7425 = vrot.slane %v7423, 5
  %v7426 = vor.u32 %v7422, %v7425
  %v7427 = vrot.slane %v7426, 4
  %v7429 = vshll.u32 %v7372, 16
  %v7431 = vrot.slane %v7429, 5
  %v7432 = vsel %vm232, %v7427, %v7431
  %v7434 = vshrl.u32 %v7360, 16
  %v7436 = vrot.slane %v7434, 4
  %v7437 = vshll.u32 %v7360, 16
  %v7439 = vrot.slane %v7437, 5
  %v7440 = vor.u32 %v7436, %v7439
  %v7441 = vrot.slane %v7440, 4
  %v7443 = vshll.u32 %v7373, 16
  %v7445 = vrot.slane %v7443, 5
  %v7446 = vsel %vm232, %v7441, %v7445
  %v7448 = vshrl.u32 %v7361, 16
  %v7450 = vrot.slane %v7448, 4
  %v7451 = vshll.u32 %v7361, 16
  %v7453 = vrot.slane %v7451, 5
  %v7454 = vor.u32 %v7450, %v7453
  %v7455 = vrot.slane %v7454, 4
  %v7457 = vshll.u32 %v7374, 16
  %v7459 = vrot.slane %v7457, 5
  %v7460 = vsel %vm232, %v7455, %v7459
  %v7462 = vshrl.u32 %v7362, 16
  %v7464 = vrot.slane %v7462, 4
  %v7465 = vshll.u32 %v7362, 16
  %v7467 = vrot.slane %v7465, 5
  %v7468 = vor.u32 %v7464, %v7467
  %v7469 = vrot.slane %v7468, 4
  %v7471 = vshll.u32 %v7375, 16
  %v7473 = vrot.slane %v7471, 5
  %v7474 = vsel %vm232, %v7469, %v7473
  %v7476 = vshrl.u32 %v7363, 16
  %v7478 = vrot.slane %v7476, 4
  %v7479 = vshll.u32 %v7363, 16
  %v7481 = vrot.slane %v7479, 5
  %v7482 = vor.u32 %v7478, %v7481
  %v7483 = vrot.slane %v7482, 4
  %v7485 = vshll.u32 %v7376, 16
  %v7487 = vrot.slane %v7485, 5
  %v7488 = vsel %vm232, %v7483, %v7487
  %s7489 = scalar_lea.vmem %s2, 592
  %v7490 = vld [vmem:[%s7489] sm:$0xf]
  %v7491 = vld [vmem:[%s7489 + $0x4] sm:$0xf]
  %v7492 = vld [vmem:[%s7489 + $0x8] sm:$0xf]
  %v7493 = vld [vmem:[%s7489 + $0xc] sm:$0xf]
  %v7494 = vunpack.c.l.b16 %v7390
  %v7495 = vunpack.c.l.b16 %v7404
  %v7496 = vunpack.c.l.b16 %v7418
  %v7497 = vunpack.c.l.b16 %v7432
  %v7498 = vunpack.c.l.b16 %v7446
  %v7499 = vunpack.c.l.b16 %v7460
  %v7500 = vunpack.c.l.b16 %v7474
  %v7501 = vunpack.c.l.b16 %v7488
  %v7502 = vpack.c.b16 %v7495, %v7494
  %v7503 = vpack.c.b16 %v7497, %v7496
  %v7504 = vpack.c.b16 %v7499, %v7498
  %v7505 = vpack.c.b16 %v7501, %v7500
  %v7510 = vunpack.c.l.b16 %v7490
  %v7511 = vunpack.c.l.b16 %v7491
  %v7512 = vunpack.c.l.b16 %v7492
  %v7513 = vunpack.c.l.b16 %v7493
  %v7514 = vpack.c.b16 %v7511, %v7510
  %v7515 = vpack.c.b16 %v7513, %v7512
  %v7519 = vsel %vm374, %v7502, 0
  %v7522 = vsel %vm374, %v7503, 0
  %v7525 = vsel %vm374, %v7504, 0
  %v7528 = vsel %vm374, %v7505, 0
  %7530 = vmatprep.subr.bf16.mxu0 0
  %7531 = vmatpush1.bf16.msra.mxu0 %v7514
  %7532 = vmatprep.subr.bf16.mxu0 0
  %7533 = vmatpush1.bf16.msra.mxu0 %v7515
  %7534 = vmatprep.subr.bf16.mxu0 0
  %7535 = vmatpush1.bf16.msra.mxu0 0
  %7536 = vmatprep.subr.bf16.mxu0 0
  %7537 = vmatpush1.bf16.msra.mxu0 0
  %7538 = vmatprep.subr.bf16.mxu0 0
  %7539 = vmatpush1.bf16.msra.mxu0 0
  %7540 = vmatprep.subr.bf16.mxu0 0
  %7541 = vmatpush1.bf16.msra.mxu0 0
  %7542 = vmatprep.subr.bf16.mxu0 0
  %7543 = vmatpush1.bf16.msra.mxu0 0
  %7544 = vmatprep.subr.bf16.mxu0 0
  %7545 = vmatpush1.bf16.msra.mxu0 0
  %7546 = vmatprep.subr.bf16.mxu0 0
  %7547 = vmatpush1.bf16.msra.mxu0 0
  %7548 = vmatprep.subr.bf16.mxu0 0
  %7549 = vmatpush1.bf16.msra.mxu0 0
  %7550 = vmatprep.subr.bf16.mxu0 0
  %7551 = vmatpush1.bf16.msra.mxu0 0
  %7552 = vmatprep.subr.bf16.mxu0 0
  %7553 = vmatpush1.bf16.msra.mxu0 0
  %7554 = vmatprep.subr.bf16.mxu0 0
  %7555 = vmatpush1.bf16.msra.mxu0 0
  %7556 = vmatprep.subr.bf16.mxu0 0
  %7557 = vmatpush1.bf16.msra.mxu0 0
  %7558 = vmatprep.subr.bf16.mxu0 0
  %7559 = vmatpush1.bf16.msra.mxu0 0
  %7560 = vmatprep.subr.bf16.mxu0 0
  %7561 = vmatpush1.bf16.msra.mxu0 0
  %7562 = vmatprep.mubr.bf16.mxu0 0
  %7563 = vmatmul.mubr.bf16.gmra.mrb[0].mxu0 %v7519
  %v7564 = vpop.f32.mrb[0].mxu0
  %v7565 = vadd.f32 0.0, %v7564
  %v7566 = vpop.f32.mrb[0].mxu0
  %v7567 = vpop.f32.mrb[0].mxu0
  %v7568 = vadd.f32 0.0, %v7567
  %v7569 = vpop.f32.mrb[0].mxu0
  %7570 = vmatprep.mubr.bf16.mxu0 0
  %7571 = vmatmul.mubr.bf16.gmra.mrb[0].mxu0 %v7522
  %v7572 = vpop.f32.mrb[0].mxu0
  %v7573 = vadd.f32 0.0, %v7572
  %v7574 = vpop.f32.mrb[0].mxu0
  %v7575 = vpop.f32.mrb[0].mxu0
  %v7576 = vadd.f32 0.0, %v7575
  %v7577 = vpop.f32.mrb[0].mxu0
  %7578 = vmatprep.mubr.bf16.mxu0 0
  %7579 = vmatmul.mubr.bf16.gmra.mrb[0].mxu0 %v7525
  %v7580 = vpop.f32.mrb[0].mxu0
  %v7581 = vadd.f32 0.0, %v7580
  %v7582 = vpop.f32.mrb[0].mxu0
  %v7583 = vpop.f32.mrb[0].mxu0
  %v7584 = vadd.f32 0.0, %v7583
  %v7585 = vpop.f32.mrb[0].mxu0
  %7586 = vmatprep.mubr.bf16.mxu0 0
  %7587 = vmatmul.mubr.bf16.gmra.mrb[0].mxu0 %v7528
  %v7588 = vpop.f32.mrb[0].mxu0
  %v7589 = vadd.f32 0.0, %v7588
  %v7590 = vpop.f32.mrb[0].mxu0
  %v7591 = vpop.f32.mrb[0].mxu0
  %v7592 = vadd.f32 0.0, %v7591
  %v7593 = vpop.f32.mrb[0].mxu0
  %7594 = vdwg.mxu0
  %v7603 = vunpack.c.l.b16 %v7356
  %v7604 = vunpack.c.l.b16 %v7357
  %v7605 = vunpack.c.l.b16 %v7358
  %v7606 = vunpack.c.l.b16 %v7359
  %v7607 = vunpack.c.l.b16 %v7360
  %v7608 = vunpack.c.l.b16 %v7361
  %v7609 = vunpack.c.l.b16 %v7362
  %v7610 = vunpack.c.l.b16 %v7363
  %v7611 = vpack.c.b16 %v7604, %v7603
  %v7612 = vpack.c.b16 %v7606, %v7605
  %v7613 = vpack.c.b16 %v7608, %v7607
  %v7614 = vpack.c.b16 %v7610, %v7609
  %v7619 = vunpack.c.l.b16 %v7365
  %v7620 = vunpack.c.l.b16 %v7366
  %v7621 = vunpack.c.l.b16 %v7367
  %v7622 = vunpack.c.l.b16 %v7368
  %v7623 = vpack.c.b16 %v7620, %v7619
  %v7624 = vpack.c.b16 %v7622, %v7621
  %v7628 = vsel %vm374, %v7611, 0
  %v7631 = vsel %vm374, %v7612, 0
  %v7634 = vsel %vm374, %v7613, 0
  %v7637 = vsel %vm374, %v7614, 0
  %7639 = vmatprep.subr.bf16.mxu0 0
  %7640 = vmatpush1.bf16.msra.mxu0 %v7623
  %7641 = vmatprep.subr.bf16.mxu0 0
  %7642 = vmatpush1.bf16.msra.mxu0 %v7624
  %7643 = vmatprep.subr.bf16.mxu0 0
  %7644 = vmatpush1.bf16.msra.mxu0 0
  %7645 = vmatprep.subr.bf16.mxu0 0
  %7646 = vmatpush1.bf16.msra.mxu0 0
  %7647 = vmatprep.subr.bf16.mxu0 0
  %7648 = vmatpush1.bf16.msra.mxu0 0
  %7649 = vmatprep.subr.bf16.mxu0 0
  %7650 = vmatpush1.bf16.msra.mxu0 0
  %7651 = vmatprep.subr.bf16.mxu0 0
  %7652 = vmatpush1.bf16.msra.mxu0 0
  %7653 = vmatprep.subr.bf16.mxu0 0
  %7654 = vmatpush1.bf16.msra.mxu0 0
  %7655 = vmatprep.subr.bf16.mxu0 0
  %7656 = vmatpush1.bf16.msra.mxu0 0
  %7657 = vmatprep.subr.bf16.mxu0 0
  %7658 = vmatpush1.bf16.msra.mxu0 0
  %7659 = vmatprep.subr.bf16.mxu0 0
  %7660 = vmatpush1.bf16.msra.mxu0 0
  %7661 = vmatprep.subr.bf16.mxu0 0
  %7662 = vmatpush1.bf16.msra.mxu0 0
  %7663 = vmatprep.subr.bf16.mxu0 0
  %7664 = vmatpush1.bf16.msra.mxu0 0
  %7665 = vmatprep.subr.bf16.mxu0 0
  %7666 = vmatpush1.bf16.msra.mxu0 0
  %7667 = vmatprep.subr.bf16.mxu0 0
  %7668 = vmatpush1.bf16.msra.mxu0 0
  %7669 = vmatprep.subr.bf16.mxu0 0
  %7670 = vmatpush1.bf16.msra.mxu0 0
  %7671 = vmatprep.mubr.bf16.mxu0 0
  %7672 = vmatmul.mubr.bf16.gmra.mrb[0].mxu0 %v7628
  %v7673 = vpop.f32.mrb[0].mxu0
  %v7674 = vadd.f32 %v7565, %v7673
  %v7675 = vpop.f32.mrb[0].mxu0
  %v7676 = vpop.f32.mrb[0].mxu0
  %v7677 = vadd.f32 %v7568, %v7676
  %v7678 = vpop.f32.mrb[0].mxu0
  %7679 = vmatprep.mubr.bf16.mxu0 0
  %7680 = vmatmul.mubr.bf16.gmra.mrb[0].mxu0 %v7631
  %v7681 = vpop.f32.mrb[0].mxu0
  %v7682 = vadd.f32 %v7573, %v7681
  %v7683 = vpop.f32.mrb[0].mxu0
  %v7684 = vpop.f32.mrb[0].mxu0
  %v7685 = vadd.f32 %v7576, %v7684
  %v7686 = vpop.f32.mrb[0].mxu0
  %7687 = vmatprep.mubr.bf16.mxu0 0
  %7688 = vmatmul.mubr.bf16.gmra.mrb[0].mxu0 %v7634
  %v7689 = vpop.f32.mrb[0].mxu0
  %v7690 = vadd.f32 %v7581, %v7689
  %v7691 = vpop.f32.mrb[0].mxu0
  %v7692 = vpop.f32.mrb[0].mxu0
  %v7693 = vadd.f32 %v7584, %v7692
  %v7694 = vpop.f32.mrb[0].mxu0
  %7695 = vmatprep.mubr.bf16.mxu0 0
  %7696 = vmatmul.mubr.bf16.gmra.mrb[0].mxu0 %v7637
  %v7697 = vpop.f32.mrb[0].mxu0
  %v7698 = vadd.f32 %v7589, %v7697
  %v7699 = vpop.f32.mrb[0].mxu0
  %v7700 = vpop.f32.mrb[0].mxu0
  %v7701 = vadd.f32 %v7592, %v7700
  %v7702 = vpop.f32.mrb[0].mxu0
  %7703 = vdwg.mxu0
  %v7704 = vld [vmem:[#allocation2] sm:$0xe]
  %v7705 = vld [vmem:[#allocation2 + $0x8] sm:$0xe]
  %v7706 = vld [vmem:[#allocation2 + $0x10] sm:$0xe]
  %v7707 = vld [vmem:[#allocation2 + $0x18] sm:$0xe]
  %v7708 = vld [vmem:[#allocation2 + $0x20] sm:$0xe]
  %v7709 = vld [vmem:[#allocation2 + $0x28] sm:$0xe]
  %v7710 = vld [vmem:[#allocation2 + $0x30] sm:$0xe]
  %v7711 = vld [vmem:[#allocation2 + $0x38] sm:$0xe]
  %v7728 = vrot.slane %v7704, 5
  %v7729 = vrot.slane %v7728, 4
  %v7730 = vrot.slane %v7369, 5
  %v7731 = vsel %vm587, %v7729, %v7730
  %v7732 = vrot.slane %v7705, 5
  %v7733 = vrot.slane %v7732, 4
  %v7734 = vrot.slane %v7370, 5
  %v7735 = vsel %vm587, %v7733, %v7734
  %v7736 = vrot.slane %v7706, 5
  %v7737 = vrot.slane %v7736, 4
  %v7738 = vrot.slane %v7371, 5
  %v7739 = vsel %vm587, %v7737, %v7738
  %v7740 = vrot.slane %v7707, 5
  %v7741 = vrot.slane %v7740, 4
  %v7742 = vrot.slane %v7372, 5
  %v7743 = vsel %vm587, %v7741, %v7742
  %v7744 = vrot.slane %v7708, 5
  %v7745 = vrot.slane %v7744, 4
  %v7746 = vrot.slane %v7373, 5
  %v7747 = vsel %vm587, %v7745, %v7746
  %v7748 = vrot.slane %v7709, 5
  %v7749 = vrot.slane %v7748, 4
  %v7750 = vrot.slane %v7374, 5
  %v7751 = vsel %vm587, %v7749, %v7750
  %v7752 = vrot.slane %v7710, 5
  %v7753 = vrot.slane %v7752, 4
  %v7754 = vrot.slane %v7375, 5
  %v7755 = vsel %vm587, %v7753, %v7754
  %v7756 = vrot.slane %v7711, 5
  %v7757 = vrot.slane %v7756, 4
  %v7758 = vrot.slane %v7376, 5
  %v7759 = vsel %vm587, %v7757, %v7758
  %s7760 = scalar_lea.vmem %s2, 608
  %v7761 = vld [vmem:[%s7760] sm:$0xf]
  %v7762 = vld [vmem:[%s7760 + $0x4] sm:$0xf]
  %v7763 = vld [vmem:[%s7760 + $0x8] sm:$0xf]
  %v7764 = vld [vmem:[%s7760 + $0xc] sm:$0xf]
  %v7765 = vunpack.c.l.b16 %v7731
  %v7766 = vunpack.c.l.b16 %v7735
  %v7767 = vunpack.c.l.b16 %v7739
  %v7768 = vunpack.c.l.b16 %v7743
  %v7769 = vunpack.c.l.b16 %v7747
  %v7770 = vunpack.c.l.b16 %v7751
  %v7771 = vunpack.c.l.b16 %v7755
  %v7772 = vunpack.c.l.b16 %v7759
  %v7773 = vpack.c.b16 %v7766, %v7765
  %v7774 = vpack.c.b16 %v7768, %v7767
  %v7775 = vpack.c.b16 %v7770, %v7769
  %v7776 = vpack.c.b16 %v7772, %v7771
  %v7781 = vunpack.c.l.b16 %v7761
  %v7782 = vunpack.c.l.b16 %v7762
  %v7783 = vunpack.c.l.b16 %v7763
  %v7784 = vunpack.c.l.b16 %v7764
  %v7785 = vpack.c.b16 %v7782, %v7781
  %v7786 = vpack.c.b16 %v7784, %v7783
  %v7790 = vsel %vm374, %v7773, 0
  %v7793 = vsel %vm374, %v7774, 0
  %v7796 = vsel %vm374, %v7775, 0
  %v7799 = vsel %vm374, %v7776, 0
  %7801 = vmatprep.subr.bf16.mxu0 0
  %7802 = vmatpush1.bf16.msra.mxu0 %v7785
  %7803 = vmatprep.subr.bf16.mxu0 0
  %7804 = vmatpush1.bf16.msra.mxu0 %v7786
  %7805 = vmatprep.subr.bf16.mxu0 0
  %7806 = vmatpush1.bf16.msra.mxu0 0
  %7807 = vmatprep.subr.bf16.mxu0 0
  %7808 = vmatpush1.bf16.msra.mxu0 0
  %7809 = vmatprep.subr.bf16.mxu0 0
  %7810 = vmatpush1.bf16.msra.mxu0 0
  %7811 = vmatprep.subr.bf16.mxu0 0
  %7812 = vmatpush1.bf16.msra.mxu0 0
  %7813 = vmatprep.subr.bf16.mxu0 0
  %7814 = vmatpush1.bf16.msra.mxu0 0
  %7815 = vmatprep.subr.bf16.mxu0 0
  %7816 = vmatpush1.bf16.msra.mxu0 0
  %7817 = vmatprep.subr.bf16.mxu0 0
  %7818 = vmatpush1.bf16.msra.mxu0 0
  %7819 = vmatprep.subr.bf16.mxu0 0
  %7820 = vmatpush1.bf16.msra.mxu0 0
  %7821 = vmatprep.subr.bf16.mxu0 0
  %7822 = vmatpush1.bf16.msra.mxu0 0
  %7823 = vmatprep.subr.bf16.mxu0 0
  %7824 = vmatpush1.bf16.msra.mxu0 0
  %7825 = vmatprep.subr.bf16.mxu0 0
  %7826 = vmatpush1.bf16.msra.mxu0 0
  %7827 = vmatprep.subr.bf16.mxu0 0
  %7828 = vmatpush1.bf16.msra.mxu0 0
  %7829 = vmatprep.subr.bf16.mxu0 0
  %7830 = vmatpush1.bf16.msra.mxu0 0
  %7831 = vmatprep.subr.bf16.mxu0 0
  %7832 = vmatpush1.bf16.msra.mxu0 0
  %7833 = vmatprep.mubr.bf16.mxu0 0
  %7834 = vmatmul.mubr.bf16.gmra.mrb[0].mxu0 %v7790
  %v7835 = vpop.f32.mrb[0].mxu0
  %v7836 = vadd.f32 0.0, %v7835
  %v7837 = vpop.f32.mrb[0].mxu0
  %v7838 = vpop.f32.mrb[0].mxu0
  %v7839 = vadd.f32 0.0, %v7838
  %v7840 = vpop.f32.mrb[0].mxu0
  %7841 = vmatprep.mubr.bf16.mxu0 0
  %7842 = vmatmul.mubr.bf16.gmra.mrb[0].mxu0 %v7793
  %v7843 = vpop.f32.mrb[0].mxu0
  %v7844 = vadd.f32 0.0, %v7843
  %v7845 = vpop.f32.mrb[0].mxu0
  %v7846 = vpop.f32.mrb[0].mxu0
  %v7847 = vadd.f32 0.0, %v7846
  %v7848 = vpop.f32.mrb[0].mxu0
  %7849 = vmatprep.mubr.bf16.mxu0 0
  %7850 = vmatmul.mubr.bf16.gmra.mrb[0].mxu0 %v7796
  %v7851 = vpop.f32.mrb[0].mxu0
  %v7852 = vadd.f32 0.0, %v7851
  %v7853 = vpop.f32.mrb[0].mxu0
  %v7854 = vpop.f32.mrb[0].mxu0
  %v7855 = vadd.f32 0.0, %v7854
  %v7856 = vpop.f32.mrb[0].mxu0
  %7857 = vmatprep.mubr.bf16.mxu0 0
  %7858 = vmatmul.mubr.bf16.gmra.mrb[0].mxu0 %v7799
  %v7859 = vpop.f32.mrb[0].mxu0
  %v7860 = vadd.f32 0.0, %v7859
  %v7861 = vpop.f32.mrb[0].mxu0
  %v7862 = vpop.f32.mrb[0].mxu0
  %v7863 = vadd.f32 0.0, %v7862
  %v7864 = vpop.f32.mrb[0].mxu0
  %7865 = vdwg.mxu0
  %v7866 = vadd.f32 %v7674, %v7836
  %v7867 = vadd.f32 %v7677, %v7839
  %v7868 = vadd.f32 %v7682, %v7844
  %v7869 = vadd.f32 %v7685, %v7847
  %v7870 = vadd.f32 %v7690, %v7852
  %v7871 = vadd.f32 %v7693, %v7855
  %v7872 = vadd.f32 %v7698, %v7860
  %v7873 = vadd.f32 %v7701, %v7863
  %v7874 = vld [vmem:[%s155] sm:$0xf]
  %v7875 = vld [vmem:[%s155 + $0x8] sm:$0xf]
  %v7876 = vld [vmem:[%s155 + $0x10] sm:$0xf]
  %v7877 = vld [vmem:[%s155 + $0x18] sm:$0xf]
  %v7878 = vld [vmem:[%s155 + $0x20] sm:$0xf]
  %v7879 = vld [vmem:[%s155 + $0x28] sm:$0xf]
  %v7880 = vld [vmem:[%s155 + $0x30] sm:$0xf]
  %v7881 = vld [vmem:[%s155 + $0x38] sm:$0xf]
  %s7882 = scalar_lea.vmem %s2, 624
  %v7883 = vld [vmem:[%s7882] sm:$0xf]
  %v7884 = vld [vmem:[%s7882 + $0x4] sm:$0xf]
  %v7885 = vld [vmem:[%s7882 + $0x8] sm:$0xf]
  %v7886 = vld [vmem:[%s7882 + $0xc] sm:$0xf]
  %v7895 = vunpack.c.l.b16 %v7874
  %v7896 = vunpack.c.l.b16 %v7875
  %v7897 = vunpack.c.l.b16 %v7876
  %v7898 = vunpack.c.l.b16 %v7877
  %v7899 = vunpack.c.l.b16 %v7878
  %v7900 = vunpack.c.l.b16 %v7879
  %v7901 = vunpack.c.l.b16 %v7880
  %v7902 = vunpack.c.l.b16 %v7881
  %v7903 = vpack.c.b16 %v7896, %v7895
  %v7904 = vpack.c.b16 %v7898, %v7897
  %v7905 = vpack.c.b16 %v7900, %v7899
  %v7906 = vpack.c.b16 %v7902, %v7901
  %v7911 = vunpack.c.l.b16 %v7883
  %v7912 = vunpack.c.l.b16 %v7884
  %v7913 = vunpack.c.l.b16 %v7885
  %v7914 = vunpack.c.l.b16 %v7886
  %v7915 = vpack.c.b16 %v7912, %v7911
  %v7916 = vpack.c.b16 %v7914, %v7913
  %v7920 = vsel %vm374, %v7903, 0
  %v7923 = vsel %vm374, %v7904, 0
  %v7926 = vsel %vm374, %v7905, 0
  %v7929 = vsel %vm374, %v7906, 0
  %7931 = vmatprep.subr.bf16.mxu0 0
  %7932 = vmatpush1.bf16.msra.mxu0 %v7915
  %7933 = vmatprep.subr.bf16.mxu0 0
  %7934 = vmatpush1.bf16.msra.mxu0 %v7916
  %7935 = vmatprep.subr.bf16.mxu0 0
  %7936 = vmatpush1.bf16.msra.mxu0 0
  %7937 = vmatprep.subr.bf16.mxu0 0
  %7938 = vmatpush1.bf16.msra.mxu0 0
  %7939 = vmatprep.subr.bf16.mxu0 0
  %7940 = vmatpush1.bf16.msra.mxu0 0
  %7941 = vmatprep.subr.bf16.mxu0 0
  %7942 = vmatpush1.bf16.msra.mxu0 0
  %7943 = vmatprep.subr.bf16.mxu0 0
  %7944 = vmatpush1.bf16.msra.mxu0 0
  %7945 = vmatprep.subr.bf16.mxu0 0
  %7946 = vmatpush1.bf16.msra.mxu0 0
  %7947 = vmatprep.subr.bf16.mxu0 0
  %7948 = vmatpush1.bf16.msra.mxu0 0
  %7949 = vmatprep.subr.bf16.mxu0 0
  %7950 = vmatpush1.bf16.msra.mxu0 0
  %7951 = vmatprep.subr.bf16.mxu0 0
  %7952 = vmatpush1.bf16.msra.mxu0 0
  %7953 = vmatprep.subr.bf16.mxu0 0
  %7954 = vmatpush1.bf16.msra.mxu0 0
  %7955 = vmatprep.subr.bf16.mxu0 0
  %7956 = vmatpush1.bf16.msra.mxu0 0
  %7957 = vmatprep.subr.bf16.mxu0 0
  %7958 = vmatpush1.bf16.msra.mxu0 0
  %7959 = vmatprep.subr.bf16.mxu0 0
  %7960 = vmatpush1.bf16.msra.mxu0 0
  %7961 = vmatprep.subr.bf16.mxu0 0
  %7962 = vmatpush1.bf16.msra.mxu0 0
  %7963 = vmatprep.mubr.bf16.mxu0 0
  %7964 = vmatmul.mubr.bf16.gmra.mrb[0].mxu0 %v7920
  %v7965 = vpop.f32.mrb[0].mxu0
  %v7966 = vadd.f32 0.0, %v7965
  %v7967 = vpop.f32.mrb[0].mxu0
  %v7968 = vpop.f32.mrb[0].mxu0
  %v7969 = vadd.f32 0.0, %v7968
  %v7970 = vpop.f32.mrb[0].mxu0
  %7971 = vmatprep.mubr.bf16.mxu0 0
  %7972 = vmatmul.mubr.bf16.gmra.mrb[0].mxu0 %v7923
  %v7973 = vpop.f32.mrb[0].mxu0
  %v7974 = vadd.f32 0.0, %v7973
  %v7975 = vpop.f32.mrb[0].mxu0
  %v7976 = vpop.f32.mrb[0].mxu0
  %v7977 = vadd.f32 0.0, %v7976
  %v7978 = vpop.f32.mrb[0].mxu0
  %7979 = vmatprep.mubr.bf16.mxu0 0
  %7980 = vmatmul.mubr.bf16.gmra.mrb[0].mxu0 %v7926
  %v7981 = vpop.f32.mrb[0].mxu0
  %v7982 = vadd.f32 0.0, %v7981
  %v7983 = vpop.f32.mrb[0].mxu0
  %v7984 = vpop.f32.mrb[0].mxu0
  %v7985 = vadd.f32 0.0, %v7984
  %v7986 = vpop.f32.mrb[0].mxu0
  %7987 = vmatprep.mubr.bf16.mxu0 0
  %7988 = vmatmul.mubr.bf16.gmra.mrb[0].mxu0 %v7929
  %v7989 = vpop.f32.mrb[0].mxu0
  %v7990 = vadd.f32 0.0, %v7989
  %v7991 = vpop.f32.mrb[0].mxu0
  %v7992 = vpop.f32.mrb[0].mxu0
  %v7993 = vadd.f32 0.0, %v7992
  %v7994 = vpop.f32.mrb[0].mxu0
  %7995 = vdwg.mxu0
  %v7996 = vadd.f32 %v7866, %v7966
  %v7997 = vadd.f32 %v7867, %v7969
  %v7998 = vadd.f32 %v7868, %v7974
  %v7999 = vadd.f32 %v7869, %v7977
  %v8000 = vadd.f32 %v7870, %v7982
  %v8001 = vadd.f32 %v7871, %v7985
  %v8002 = vadd.f32 %v7872, %v7990
  %v8003 = vadd.f32 %v7873, %v7993
  %v8004 = vld [vmem:[%s155] sm:$0xf]
  %v8005 = vld [vmem:[%s155 + $0x4] sm:$0x1]
  %v8006 = vld [vmem:[%s155 + $0x8] sm:$0xf]
  %v8007 = vld [vmem:[%s155 + $0xc] sm:$0x1]
  %v8008 = vld [vmem:[%s155 + $0x10] sm:$0xf]
  %v8009 = vld [vmem:[%s155 + $0x14] sm:$0x1]
  %v8010 = vld [vmem:[%s155 + $0x18] sm:$0xf]
  %v8011 = vld [vmem:[%s155 + $0x1c] sm:$0x1]
  %v8012 = vld [vmem:[%s155 + $0x20] sm:$0xf]
  %v8013 = vld [vmem:[%s155 + $0x24] sm:$0x1]
  %v8014 = vld [vmem:[%s155 + $0x28] sm:$0xf]
  %v8015 = vld [vmem:[%s155 + $0x2c] sm:$0x1]
  %v8016 = vld [vmem:[%s155 + $0x30] sm:$0xf]
  %v8017 = vld [vmem:[%s155 + $0x34] sm:$0x1]
  %v8018 = vld [vmem:[%s155 + $0x38] sm:$0xf]
  %v8019 = vld [vmem:[%s155 + $0x3c] sm:$0x1]
  %v8021 = vshrl.u32 %v8004, 16
  %v8023 = vrot.slane %v8021, 4
  %v8024 = vshll.u32 %v8004, 16
  %v8026 = vrot.slane %v8024, 5
  %v8027 = vor.u32 %v8023, %v8026
  %v8028 = vrot.slane %v8027, 4
  %v8030 = vshll.u32 %v8005, 16
  %v8032 = vrot.slane %v8030, 5
  %v8033 = vsel %vm232, %v8028, %v8032
  %v8035 = vshrl.u32 %v8006, 16
  %v8037 = vrot.slane %v8035, 4
  %v8038 = vshll.u32 %v8006, 16
  %v8040 = vrot.slane %v8038, 5
  %v8041 = vor.u32 %v8037, %v8040
  %v8042 = vrot.slane %v8041, 4
  %v8044 = vshll.u32 %v8007, 16
  %v8046 = vrot.slane %v8044, 5
  %v8047 = vsel %vm232, %v8042, %v8046
  %v8049 = vshrl.u32 %v8008, 16
  %v8051 = vrot.slane %v8049, 4
  %v8052 = vshll.u32 %v8008, 16
  %v8054 = vrot.slane %v8052, 5
  %v8055 = vor.u32 %v8051, %v8054
  %v8056 = vrot.slane %v8055, 4
  %v8058 = vshll.u32 %v8009, 16
  %v8060 = vrot.slane %v8058, 5
  %v8061 = vsel %vm232, %v8056, %v8060
  %v8063 = vshrl.u32 %v8010, 16
  %v8065 = vrot.slane %v8063, 4
  %v8066 = vshll.u32 %v8010, 16
  %v8068 = vrot.slane %v8066, 5
  %v8069 = vor.u32 %v8065, %v8068
  %v8070 = vrot.slane %v8069, 4
  %v8072 = vshll.u32 %v8011, 16
  %v8074 = vrot.slane %v8072, 5
  %v8075 = vsel %vm232, %v8070, %v8074
  %v8077 = vshrl.u32 %v8012, 16
  %v8079 = vrot.slane %v8077, 4
  %v8080 = vshll.u32 %v8012, 16
  %v8082 = vrot.slane %v8080, 5
  %v8083 = vor.u32 %v8079, %v8082
  %v8084 = vrot.slane %v8083, 4
  %v8086 = vshll.u32 %v8013, 16
  %v8088 = vrot.slane %v8086, 5
  %v8089 = vsel %vm232, %v8084, %v8088
  %v8091 = vshrl.u32 %v8014, 16
  %v8093 = vrot.slane %v8091, 4
  %v8094 = vshll.u32 %v8014, 16
  %v8096 = vrot.slane %v8094, 5
  %v8097 = vor.u32 %v8093, %v8096
  %v8098 = vrot.slane %v8097, 4
  %v8100 = vshll.u32 %v8015, 16
  %v8102 = vrot.slane %v8100, 5
  %v8103 = vsel %vm232, %v8098, %v8102
  %v8105 = vshrl.u32 %v8016, 16
  %v8107 = vrot.slane %v8105, 4
  %v8108 = vshll.u32 %v8016, 16
  %v8110 = vrot.slane %v8108, 5
  %v8111 = vor.u32 %v8107, %v8110
  %v8112 = vrot.slane %v8111, 4
  %v8114 = vshll.u32 %v8017, 16
  %v8116 = vrot.slane %v8114, 5
  %v8117 = vsel %vm232, %v8112, %v8116
  %v8119 = vshrl.u32 %v8018, 16
  %v8121 = vrot.slane %v8119, 4
  %v8122 = vshll.u32 %v8018, 16
  %v8124 = vrot.slane %v8122, 5
  %v8125 = vor.u32 %v8121, %v8124
  %v8126 = vrot.slane %v8125, 4
  %v8128 = vshll.u32 %v8019, 16
  %v8130 = vrot.slane %v8128, 5
  %v8131 = vsel %vm232, %v8126, %v8130
  %s8132 = scalar_lea.vmem %s2, 640
  %v8133 = vld [vmem:[%s8132] sm:$0xf]
  %v8134 = vld [vmem:[%s8132 + $0x4] sm:$0xf]
  %v8135 = vld [vmem:[%s8132 + $0x8] sm:$0xf]
  %v8136 = vld [vmem:[%s8132 + $0xc] sm:$0xf]
  %v8137 = vunpack.c.l.b16 %v8033
  %v8138 = vunpack.c.l.b16 %v8047
  %v8139 = vunpack.c.l.b16 %v8061
  %v8140 = vunpack.c.l.b16 %v8075
  %v8141 = vunpack.c.l.b16 %v8089
  %v8142 = vunpack.c.l.b16 %v8103
  %v8143 = vunpack.c.l.b16 %v8117
  %v8144 = vunpack.c.l.b16 %v8131
  %v8145 = vpack.c.b16 %v8138, %v8137
  %v8146 = vpack.c.b16 %v8140, %v8139
  %v8147 = vpack.c.b16 %v8142, %v8141
  %v8148 = vpack.c.b16 %v8144, %v8143
  %v8153 = vunpack.c.l.b16 %v8133
  %v8154 = vunpack.c.l.b16 %v8134
  %v8155 = vunpack.c.l.b16 %v8135
  %v8156 = vunpack.c.l.b16 %v8136
  %v8157 = vpack.c.b16 %v8154, %v8153
  %v8158 = vpack.c.b16 %v8156, %v8155
  %v8162 = vsel %vm374, %v8145, 0
  %v8165 = vsel %vm374, %v8146, 0
  %v8168 = vsel %vm374, %v8147, 0
  %v8171 = vsel %vm374, %v8148, 0
  %8173 = vmatprep.subr.bf16.mxu0 0
  %8174 = vmatpush1.bf16.msra.mxu0 %v8157
  %8175 = vmatprep.subr.bf16.mxu0 0
  %8176 = vmatpush1.bf16.msra.mxu0 %v8158
  %8177 = vmatprep.subr.bf16.mxu0 0
  %8178 = vmatpush1.bf16.msra.mxu0 0
  %8179 = vmatprep.subr.bf16.mxu0 0
  %8180 = vmatpush1.bf16.msra.mxu0 0
  %8181 = vmatprep.subr.bf16.mxu0 0
  %8182 = vmatpush1.bf16.msra.mxu0 0
  %8183 = vmatprep.subr.bf16.mxu0 0
  %8184 = vmatpush1.bf16.msra.mxu0 0
  %8185 = vmatprep.subr.bf16.mxu0 0
  %8186 = vmatpush1.bf16.msra.mxu0 0
  %8187 = vmatprep.subr.bf16.mxu0 0
  %8188 = vmatpush1.bf16.msra.mxu0 0
  %8189 = vmatprep.subr.bf16.mxu0 0
  %8190 = vmatpush1.bf16.msra.mxu0 0
  %8191 = vmatprep.subr.bf16.mxu0 0
  %8192 = vmatpush1.bf16.msra.mxu0 0
  %8193 = vmatprep.subr.bf16.mxu0 0
  %8194 = vmatpush1.bf16.msra.mxu0 0
  %8195 = vmatprep.subr.bf16.mxu0 0
  %8196 = vmatpush1.bf16.msra.mxu0 0
  %8197 = vmatprep.subr.bf16.mxu0 0
  %8198 = vmatpush1.bf16.msra.mxu0 0
  %8199 = vmatprep.subr.bf16.mxu0 0
  %8200 = vmatpush1.bf16.msra.mxu0 0
  %8201 = vmatprep.subr.bf16.mxu0 0
  %8202 = vmatpush1.bf16.msra.mxu0 0
  %8203 = vmatprep.subr.bf16.mxu0 0
  %8204 = vmatpush1.bf16.msra.mxu0 0
  %8205 = vmatprep.mubr.bf16.mxu0 0
  %8206 = vmatmul.mubr.bf16.gmra.mrb[0].mxu0 %v8162
  %v8207 = vpop.f32.mrb[0].mxu0
  %v8208 = vadd.f32 0.0, %v8207
  %v8209 = vpop.f32.mrb[0].mxu0
  %v8210 = vpop.f32.mrb[0].mxu0
  %v8211 = vadd.f32 0.0, %v8210
  %v8212 = vpop.f32.mrb[0].mxu0
  %8213 = vmatprep.mubr.bf16.mxu0 0
  %8214 = vmatmul.mubr.bf16.gmra.mrb[0].mxu0 %v8165
  %v8215 = vpop.f32.mrb[0].mxu0
  %v8216 = vadd.f32 0.0, %v8215
  %v8217 = vpop.f32.mrb[0].mxu0
  %v8218 = vpop.f32.mrb[0].mxu0
  %v8219 = vadd.f32 0.0, %v8218
  %v8220 = vpop.f32.mrb[0].mxu0
  %8221 = vmatprep.mubr.bf16.mxu0 0
  %8222 = vmatmul.mubr.bf16.gmra.mrb[0].mxu0 %v8168
  %v8223 = vpop.f32.mrb[0].mxu0
  %v8224 = vadd.f32 0.0, %v8223
  %v8225 = vpop.f32.mrb[0].mxu0
  %v8226 = vpop.f32.mrb[0].mxu0
  %v8227 = vadd.f32 0.0, %v8226
  %v8228 = vpop.f32.mrb[0].mxu0
  %8229 = vmatprep.mubr.bf16.mxu0 0
  %8230 = vmatmul.mubr.bf16.gmra.mrb[0].mxu0 %v8171
  %v8231 = vpop.f32.mrb[0].mxu0
  %v8232 = vadd.f32 0.0, %v8231
  %v8233 = vpop.f32.mrb[0].mxu0
  %v8234 = vpop.f32.mrb[0].mxu0
  %v8235 = vadd.f32 0.0, %v8234
  %v8236 = vpop.f32.mrb[0].mxu0
  %8237 = vdwg.mxu0
  %v8238 = vadd.f32 %v7996, %v8208
  %v8239 = vadd.f32 %v7997, %v8211
  %v8240 = vadd.f32 %v7998, %v8216
  %v8241 = vadd.f32 %v7999, %v8219
  %v8242 = vadd.f32 %v8000, %v8224
  %v8243 = vadd.f32 %v8001, %v8227
  %v8244 = vadd.f32 %v8002, %v8232
  %v8245 = vadd.f32 %v8003, %v8235
  %v8246 = vld [vmem:[%s155] sm:$0xe]
  %v8247 = vld [vmem:[%s155 + $0x8] sm:$0xe]
  %v8248 = vld [vmem:[%s155 + $0x10] sm:$0xe]
  %v8249 = vld [vmem:[%s155 + $0x18] sm:$0xe]
  %v8250 = vld [vmem:[%s155 + $0x20] sm:$0xe]
  %v8251 = vld [vmem:[%s155 + $0x28] sm:$0xe]
  %v8252 = vld [vmem:[%s155 + $0x30] sm:$0xe]
  %v8253 = vld [vmem:[%s155 + $0x38] sm:$0xe]
  %v8270 = vrot.slane %v8246, 5
  %v8271 = vrot.slane %v8270, 4
  %v8272 = vrot.slane %v8005, 5
  %v8273 = vsel %vm587, %v8271, %v8272
  %v8274 = vrot.slane %v8247, 5
  %v8275 = vrot.slane %v8274, 4
  %v8276 = vrot.slane %v8007, 5
  %v8277 = vsel %vm587, %v8275, %v8276
  %v8278 = vrot.slane %v8248, 5
  %v8279 = vrot.slane %v8278, 4
  %v8280 = vrot.slane %v8009, 5
  %v8281 = vsel %vm587, %v8279, %v8280
  %v8282 = vrot.slane %v8249, 5
  %v8283 = vrot.slane %v8282, 4
  %v8284 = vrot.slane %v8011, 5
  %v8285 = vsel %vm587, %v8283, %v8284
  %v8286 = vrot.slane %v8250, 5
  %v8287 = vrot.slane %v8286, 4
  %v8288 = vrot.slane %v8013, 5
  %v8289 = vsel %vm587, %v8287, %v8288
  %v8290 = vrot.slane %v8251, 5
  %v8291 = vrot.slane %v8290, 4
  %v8292 = vrot.slane %v8015, 5
  %v8293 = vsel %vm587, %v8291, %v8292
  %v8294 = vrot.slane %v8252, 5
  %v8295 = vrot.slane %v8294, 4
  %v8296 = vrot.slane %v8017, 5
  %v8297 = vsel %vm587, %v8295, %v8296
  %v8298 = vrot.slane %v8253, 5
  %v8299 = vrot.slane %v8298, 4
  %v8300 = vrot.slane %v8019, 5
  %v8301 = vsel %vm587, %v8299, %v8300
  %s8302 = scalar_lea.vmem %s2, 656
  %v8303 = vld [vmem:[%s8302] sm:$0xf]
  %v8304 = vld [vmem:[%s8302 + $0x4] sm:$0xf]
  %v8305 = vld [vmem:[%s8302 + $0x8] sm:$0xf]
  %v8306 = vld [vmem:[%s8302 + $0xc] sm:$0xf]
  %v8307 = vunpack.c.l.b16 %v8273
  %v8308 = vunpack.c.l.b16 %v8277
  %v8309 = vunpack.c.l.b16 %v8281
  %v8310 = vunpack.c.l.b16 %v8285
  %v8311 = vunpack.c.l.b16 %v8289
  %v8312 = vunpack.c.l.b16 %v8293
  %v8313 = vunpack.c.l.b16 %v8297
  %v8314 = vunpack.c.l.b16 %v8301
  %v8315 = vpack.c.b16 %v8308, %v8307
  %v8316 = vpack.c.b16 %v8310, %v8309
  %v8317 = vpack.c.b16 %v8312, %v8311
  %v8318 = vpack.c.b16 %v8314, %v8313
  %v8323 = vunpack.c.l.b16 %v8303
  %v8324 = vunpack.c.l.b16 %v8304
  %v8325 = vunpack.c.l.b16 %v8305
  %v8326 = vunpack.c.l.b16 %v8306
  %v8327 = vpack.c.b16 %v8324, %v8323
  %v8328 = vpack.c.b16 %v8326, %v8325
  %v8332 = vsel %vm374, %v8315, 0
  %v8335 = vsel %vm374, %v8316, 0
  %v8338 = vsel %vm374, %v8317, 0
  %v8341 = vsel %vm374, %v8318, 0
  %8343 = vmatprep.subr.bf16.mxu0 0
  %8344 = vmatpush1.bf16.msra.mxu0 %v8327
  %8345 = vmatprep.subr.bf16.mxu0 0
  %8346 = vmatpush1.bf16.msra.mxu0 %v8328
  %8347 = vmatprep.subr.bf16.mxu0 0
  %8348 = vmatpush1.bf16.msra.mxu0 0
  %8349 = vmatprep.subr.bf16.mxu0 0
  %8350 = vmatpush1.bf16.msra.mxu0 0
  %8351 = vmatprep.subr.bf16.mxu0 0
  %8352 = vmatpush1.bf16.msra.mxu0 0
  %8353 = vmatprep.subr.bf16.mxu0 0
  %8354 = vmatpush1.bf16.msra.mxu0 0
  %8355 = vmatprep.subr.bf16.mxu0 0
  %8356 = vmatpush1.bf16.msra.mxu0 0
  %8357 = vmatprep.subr.bf16.mxu0 0
  %8358 = vmatpush1.bf16.msra.mxu0 0
  %8359 = vmatprep.subr.bf16.mxu0 0
  %8360 = vmatpush1.bf16.msra.mxu0 0
  %8361 = vmatprep.subr.bf16.mxu0 0
  %8362 = vmatpush1.bf16.msra.mxu0 0
  %8363 = vmatprep.subr.bf16.mxu0 0
  %8364 = vmatpush1.bf16.msra.mxu0 0
  %8365 = vmatprep.subr.bf16.mxu0 0
  %8366 = vmatpush1.bf16.msra.mxu0 0
  %8367 = vmatprep.subr.bf16.mxu0 0
  %8368 = vmatpush1.bf16.msra.mxu0 0
  %8369 = vmatprep.subr.bf16.mxu0 0
  %8370 = vmatpush1.bf16.msra.mxu0 0
  %8371 = vmatprep.subr.bf16.mxu0 0
  %8372 = vmatpush1.bf16.msra.mxu0 0
  %8373 = vmatprep.subr.bf16.mxu0 0
  %8374 = vmatpush1.bf16.msra.mxu0 0
  %8375 = vmatprep.mubr.bf16.mxu0 0
  %8376 = vmatmul.mubr.bf16.gmra.mrb[0].mxu0 %v8332
  %v8377 = vpop.f32.mrb[0].mxu0
  %v8378 = vadd.f32 0.0, %v8377
  %v8379 = vpop.f32.mrb[0].mxu0
  %v8380 = vpop.f32.mrb[0].mxu0
  %v8381 = vadd.f32 0.0, %v8380
  %v8382 = vpop.f32.mrb[0].mxu0
  %8383 = vmatprep.mubr.bf16.mxu0 0
  %8384 = vmatmul.mubr.bf16.gmra.mrb[0].mxu0 %v8335
  %v8385 = vpop.f32.mrb[0].mxu0
  %v8386 = vadd.f32 0.0, %v8385
  %v8387 = vpop.f32.mrb[0].mxu0
  %v8388 = vpop.f32.mrb[0].mxu0
  %v8389 = vadd.f32 0.0, %v8388
  %v8390 = vpop.f32.mrb[0].mxu0
  %8391 = vmatprep.mubr.bf16.mxu0 0
  %8392 = vmatmul.mubr.bf16.gmra.mrb[0].mxu0 %v8338
  %v8393 = vpop.f32.mrb[0].mxu0
  %v8394 = vadd.f32 0.0, %v8393
  %v8395 = vpop.f32.mrb[0].mxu0
  %v8396 = vpop.f32.mrb[0].mxu0
  %v8397 = vadd.f32 0.0, %v8396
  %v8398 = vpop.f32.mrb[0].mxu0
  %8399 = vmatprep.mubr.bf16.mxu0 0
  %8400 = vmatmul.mubr.bf16.gmra.mrb[0].mxu0 %v8341
  %v8401 = vpop.f32.mrb[0].mxu0
  %v8402 = vadd.f32 0.0, %v8401
  %v8403 = vpop.f32.mrb[0].mxu0
  %v8404 = vpop.f32.mrb[0].mxu0
  %v8405 = vadd.f32 0.0, %v8404
  %v8406 = vpop.f32.mrb[0].mxu0
  %8407 = vdwg.mxu0
  %v8408 = vadd.f32 %v8238, %v8378
  %v8409 = vadd.f32 %v8239, %v8381
  %v8410 = vadd.f32 %v8240, %v8386
  %v8411 = vadd.f32 %v8241, %v8389
  %v8412 = vadd.f32 %v8242, %v8394
  %v8413 = vadd.f32 %v8243, %v8397
  %v8414 = vadd.f32 %v8244, %v8402
  %v8415 = vadd.f32 %v8245, %v8405
  %v8416 = vld [vmem:[%s1276] sm:$0xf]
  %v8417 = vld [vmem:[%s1276 + $0x8] sm:$0xf]
  %v8418 = vld [vmem:[%s1276 + $0x10] sm:$0xf]
  %v8419 = vld [vmem:[%s1276 + $0x18] sm:$0xf]
  %v8420 = vld [vmem:[%s1276 + $0x20] sm:$0xf]
  %v8421 = vld [vmem:[%s1276 + $0x28] sm:$0xf]
  %v8422 = vld [vmem:[%s1276 + $0x30] sm:$0xf]
  %v8423 = vld [vmem:[%s1276 + $0x38] sm:$0xf]
  %s8424 = scalar_lea.vmem %s2, 672
  %v8425 = vld [vmem:[%s8424] sm:$0xf]
  %v8426 = vld [vmem:[%s8424 + $0x4] sm:$0xf]
  %v8427 = vld [vmem:[%s8424 + $0x8] sm:$0xf]
  %v8428 = vld [vmem:[%s8424 + $0xc] sm:$0xf]
  %v8437 = vunpack.c.l.b16 %v8416
  %v8438 = vunpack.c.l.b16 %v8417
  %v8439 = vunpack.c.l.b16 %v8418
  %v8440 = vunpack.c.l.b16 %v8419
  %v8441 = vunpack.c.l.b16 %v8420
  %v8442 = vunpack.c.l.b16 %v8421
  %v8443 = vunpack.c.l.b16 %v8422
  %v8444 = vunpack.c.l.b16 %v8423
  %v8445 = vpack.c.b16 %v8438, %v8437
  %v8446 = vpack.c.b16 %v8440, %v8439
  %v8447 = vpack.c.b16 %v8442, %v8441
  %v8448 = vpack.c.b16 %v8444, %v8443
  %v8453 = vunpack.c.l.b16 %v8425
  %v8454 = vunpack.c.l.b16 %v8426
  %v8455 = vunpack.c.l.b16 %v8427
  %v8456 = vunpack.c.l.b16 %v8428
  %v8457 = vpack.c.b16 %v8454, %v8453
  %v8458 = vpack.c.b16 %v8456, %v8455
  %v8462 = vsel %vm374, %v8445, 0
  %v8465 = vsel %vm374, %v8446, 0
  %v8468 = vsel %vm374, %v8447, 0
  %v8471 = vsel %vm374, %v8448, 0
  %8473 = vmatprep.subr.bf16.mxu0 0
  %8474 = vmatpush1.bf16.msra.mxu0 %v8457
  %8475 = vmatprep.subr.bf16.mxu0 0
  %8476 = vmatpush1.bf16.msra.mxu0 %v8458
  %8477 = vmatprep.subr.bf16.mxu0 0
  %8478 = vmatpush1.bf16.msra.mxu0 0
  %8479 = vmatprep.subr.bf16.mxu0 0
  %8480 = vmatpush1.bf16.msra.mxu0 0
  %8481 = vmatprep.subr.bf16.mxu0 0
  %8482 = vmatpush1.bf16.msra.mxu0 0
  %8483 = vmatprep.subr.bf16.mxu0 0
  %8484 = vmatpush1.bf16.msra.mxu0 0
  %8485 = vmatprep.subr.bf16.mxu0 0
  %8486 = vmatpush1.bf16.msra.mxu0 0
  %8487 = vmatprep.subr.bf16.mxu0 0
  %8488 = vmatpush1.bf16.msra.mxu0 0
  %8489 = vmatprep.subr.bf16.mxu0 0
  %8490 = vmatpush1.bf16.msra.mxu0 0
  %8491 = vmatprep.subr.bf16.mxu0 0
  %8492 = vmatpush1.bf16.msra.mxu0 0
  %8493 = vmatprep.subr.bf16.mxu0 0
  %8494 = vmatpush1.bf16.msra.mxu0 0
  %8495 = vmatprep.subr.bf16.mxu0 0
  %8496 = vmatpush1.bf16.msra.mxu0 0
  %8497 = vmatprep.subr.bf16.mxu0 0
  %8498 = vmatpush1.bf16.msra.mxu0 0
  %8499 = vmatprep.subr.bf16.mxu0 0
  %8500 = vmatpush1.bf16.msra.mxu0 0
  %8501 = vmatprep.subr.bf16.mxu0 0
  %8502 = vmatpush1.bf16.msra.mxu0 0
  %8503 = vmatprep.subr.bf16.mxu0 0
  %8504 = vmatpush1.bf16.msra.mxu0 0
  %8505 = vmatprep.mubr.bf16.mxu0 0
  %8506 = vmatmul.mubr.bf16.gmra.mrb[0].mxu0 %v8462
  %v8507 = vpop.f32.mrb[0].mxu0
  %v8508 = vadd.f32 0.0, %v8507
  %v8509 = vpop.f32.mrb[0].mxu0
  %v8510 = vpop.f32.mrb[0].mxu0
  %v8511 = vadd.f32 0.0, %v8510
  %v8512 = vpop.f32.mrb[0].mxu0
  %8513 = vmatprep.mubr.bf16.mxu0 0
  %8514 = vmatmul.mubr.bf16.gmra.mrb[0].mxu0 %v8465
  %v8515 = vpop.f32.mrb[0].mxu0
  %v8516 = vadd.f32 0.0, %v8515
  %v8517 = vpop.f32.mrb[0].mxu0
  %v8518 = vpop.f32.mrb[0].mxu0
  %v8519 = vadd.f32 0.0, %v8518
  %v8520 = vpop.f32.mrb[0].mxu0
  %8521 = vmatprep.mubr.bf16.mxu0 0
  %8522 = vmatmul.mubr.bf16.gmra.mrb[0].mxu0 %v8468
  %v8523 = vpop.f32.mrb[0].mxu0
  %v8524 = vadd.f32 0.0, %v8523
  %v8525 = vpop.f32.mrb[0].mxu0
  %v8526 = vpop.f32.mrb[0].mxu0
  %v8527 = vadd.f32 0.0, %v8526
  %v8528 = vpop.f32.mrb[0].mxu0
  %8529 = vmatprep.mubr.bf16.mxu0 0
  %8530 = vmatmul.mubr.bf16.gmra.mrb[0].mxu0 %v8471
  %v8531 = vpop.f32.mrb[0].mxu0
  %v8532 = vadd.f32 0.0, %v8531
  %v8533 = vpop.f32.mrb[0].mxu0
  %v8534 = vpop.f32.mrb[0].mxu0
  %v8535 = vadd.f32 0.0, %v8534
  %v8536 = vpop.f32.mrb[0].mxu0
  %8537 = vdwg.mxu0
  %v8538 = vadd.f32 %v8408, %v8508
  %v8539 = vadd.f32 %v8409, %v8511
  %v8540 = vadd.f32 %v8410, %v8516
  %v8541 = vadd.f32 %v8411, %v8519
  %v8542 = vadd.f32 %v8412, %v8524
  %v8543 = vadd.f32 %v8413, %v8527
  %v8544 = vadd.f32 %v8414, %v8532
  %v8545 = vadd.f32 %v8415, %v8535
  %v8546 = vld [vmem:[%s1276] sm:$0xf]
  %v8547 = vld [vmem:[%s1276 + $0x4] sm:$0x1]
  %v8548 = vld [vmem:[%s1276 + $0x8] sm:$0xf]
  %v8549 = vld [vmem:[%s1276 + $0xc] sm:$0x1]
  %v8550 = vld [vmem:[%s1276 + $0x10] sm:$0xf]
  %v8551 = vld [vmem:[%s1276 + $0x14] sm:$0x1]
  %v8552 = vld [vmem:[%s1276 + $0x18] sm:$0xf]
  %v8553 = vld [vmem:[%s1276 + $0x1c] sm:$0x1]
  %v8554 = vld [vmem:[%s1276 + $0x20] sm:$0xf]
  %v8555 = vld [vmem:[%s1276 + $0x24] sm:$0x1]
  %v8556 = vld [vmem:[%s1276 + $0x28] sm:$0xf]
  %v8557 = vld [vmem:[%s1276 + $0x2c] sm:$0x1]
  %v8558 = vld [vmem:[%s1276 + $0x30] sm:$0xf]
  %v8559 = vld [vmem:[%s1276 + $0x34] sm:$0x1]
  %v8560 = vld [vmem:[%s1276 + $0x38] sm:$0xf]
  %v8561 = vld [vmem:[%s1276 + $0x3c] sm:$0x1]
  %v8563 = vshrl.u32 %v8546, 16
  %v8565 = vrot.slane %v8563, 4
  %v8566 = vshll.u32 %v8546, 16
  %v8568 = vrot.slane %v8566, 5
  %v8569 = vor.u32 %v8565, %v8568
  %v8570 = vrot.slane %v8569, 4
  %v8572 = vshll.u32 %v8547, 16
  %v8574 = vrot.slane %v8572, 5
  %v8575 = vsel %vm232, %v8570, %v8574
  %v8577 = vshrl.u32 %v8548, 16
  %v8579 = vrot.slane %v8577, 4
  %v8580 = vshll.u32 %v8548, 16
  %v8582 = vrot.slane %v8580, 5
  %v8583 = vor.u32 %v8579, %v8582
  %v8584 = vrot.slane %v8583, 4
  %v8586 = vshll.u32 %v8549, 16
  %v8588 = vrot.slane %v8586, 5
  %v8589 = vsel %vm232, %v8584, %v8588
  %v8591 = vshrl.u32 %v8550, 16
  %v8593 = vrot.slane %v8591, 4
  %v8594 = vshll.u32 %v8550, 16
  %v8596 = vrot.slane %v8594, 5
  %v8597 = vor.u32 %v8593, %v8596
  %v8598 = vrot.slane %v8597, 4
  %v8600 = vshll.u32 %v8551, 16
  %v8602 = vrot.slane %v8600, 5
  %v8603 = vsel %vm232, %v8598, %v8602
  %v8605 = vshrl.u32 %v8552, 16
  %v8607 = vrot.slane %v8605, 4
  %v8608 = vshll.u32 %v8552, 16
  %v8610 = vrot.slane %v8608, 5
  %v8611 = vor.u32 %v8607, %v8610
  %v8612 = vrot.slane %v8611, 4
  %v8614 = vshll.u32 %v8553, 16
  %v8616 = vrot.slane %v8614, 5
  %v8617 = vsel %vm232, %v8612, %v8616
  %v8619 = vshrl.u32 %v8554, 16
  %v8621 = vrot.slane %v8619, 4
  %v8622 = vshll.u32 %v8554, 16
  %v8624 = vrot.slane %v8622, 5
  %v8625 = vor.u32 %v8621, %v8624
  %v8626 = vrot.slane %v8625, 4
  %v8628 = vshll.u32 %v8555, 16
  %v8630 = vrot.slane %v8628, 5
  %v8631 = vsel %vm232, %v8626, %v8630
  %v8633 = vshrl.u32 %v8556, 16
  %v8635 = vrot.slane %v8633, 4
  %v8636 = vshll.u32 %v8556, 16
  %v8638 = vrot.slane %v8636, 5
  %v8639 = vor.u32 %v8635, %v8638
  %v8640 = vrot.slane %v8639, 4
  %v8642 = vshll.u32 %v8557, 16
  %v8644 = vrot.slane %v8642, 5
  %v8645 = vsel %vm232, %v8640, %v8644
  %v8647 = vshrl.u32 %v8558, 16
  %v8649 = vrot.slane %v8647, 4
  %v8650 = vshll.u32 %v8558, 16
  %v8652 = vrot.slane %v8650, 5
  %v8653 = vor.u32 %v8649, %v8652
  %v8654 = vrot.slane %v8653, 4
  %v8656 = vshll.u32 %v8559, 16
  %v8658 = vrot.slane %v8656, 5
  %v8659 = vsel %vm232, %v8654, %v8658
  %v8661 = vshrl.u32 %v8560, 16
  %v8663 = vrot.slane %v8661, 4
  %v8664 = vshll.u32 %v8560, 16
  %v8666 = vrot.slane %v8664, 5
  %v8667 = vor.u32 %v8663, %v8666
  %v8668 = vrot.slane %v8667, 4
  %v8670 = vshll.u32 %v8561, 16
  %v8672 = vrot.slane %v8670, 5
  %v8673 = vsel %vm232, %v8668, %v8672
  %s8674 = scalar_lea.vmem %s2, 688
  %v8675 = vld [vmem:[%s8674] sm:$0xf]
  %v8676 = vld [vmem:[%s8674 + $0x4] sm:$0xf]
  %v8677 = vld [vmem:[%s8674 + $0x8] sm:$0xf]
  %v8678 = vld [vmem:[%s8674 + $0xc] sm:$0xf]
  %v8679 = vunpack.c.l.b16 %v8575
  %v8680 = vunpack.c.l.b16 %v8589
  %v8681 = vunpack.c.l.b16 %v8603
  %v8682 = vunpack.c.l.b16 %v8617
  %v8683 = vunpack.c.l.b16 %v8631
  %v8684 = vunpack.c.l.b16 %v8645
  %v8685 = vunpack.c.l.b16 %v8659
  %v8686 = vunpack.c.l.b16 %v8673
  %v8687 = vpack.c.b16 %v8680, %v8679
  %v8688 = vpack.c.b16 %v8682, %v8681
  %v8689 = vpack.c.b16 %v8684, %v8683
  %v8690 = vpack.c.b16 %v8686, %v8685
  %v8695 = vunpack.c.l.b16 %v8675
  %v8696 = vunpack.c.l.b16 %v8676
  %v8697 = vunpack.c.l.b16 %v8677
  %v8698 = vunpack.c.l.b16 %v8678
  %v8699 = vpack.c.b16 %v8696, %v8695
  %v8700 = vpack.c.b16 %v8698, %v8697
  %v8704 = vsel %vm374, %v8687, 0
  %v8707 = vsel %vm374, %v8688, 0
  %v8710 = vsel %vm374, %v8689, 0
  %v8713 = vsel %vm374, %v8690, 0
  %8715 = vmatprep.subr.bf16.mxu0 0
  %8716 = vmatpush1.bf16.msra.mxu0 %v8699
  %8717 = vmatprep.subr.bf16.mxu0 0
  %8718 = vmatpush1.bf16.msra.mxu0 %v8700
  %8719 = vmatprep.subr.bf16.mxu0 0
  %8720 = vmatpush1.bf16.msra.mxu0 0
  %8721 = vmatprep.subr.bf16.mxu0 0
  %8722 = vmatpush1.bf16.msra.mxu0 0
  %8723 = vmatprep.subr.bf16.mxu0 0
  %8724 = vmatpush1.bf16.msra.mxu0 0
  %8725 = vmatprep.subr.bf16.mxu0 0
  %8726 = vmatpush1.bf16.msra.mxu0 0
  %8727 = vmatprep.subr.bf16.mxu0 0
  %8728 = vmatpush1.bf16.msra.mxu0 0
  %8729 = vmatprep.subr.bf16.mxu0 0
  %8730 = vmatpush1.bf16.msra.mxu0 0
  %8731 = vmatprep.subr.bf16.mxu0 0
  %8732 = vmatpush1.bf16.msra.mxu0 0
  %8733 = vmatprep.subr.bf16.mxu0 0
  %8734 = vmatpush1.bf16.msra.mxu0 0
  %8735 = vmatprep.subr.bf16.mxu0 0
  %8736 = vmatpush1.bf16.msra.mxu0 0
  %8737 = vmatprep.subr.bf16.mxu0 0
  %8738 = vmatpush1.bf16.msra.mxu0 0
  %8739 = vmatprep.subr.bf16.mxu0 0
  %8740 = vmatpush1.bf16.msra.mxu0 0
  %8741 = vmatprep.subr.bf16.mxu0 0
  %8742 = vmatpush1.bf16.msra.mxu0 0
  %8743 = vmatprep.subr.bf16.mxu0 0
  %8744 = vmatpush1.bf16.msra.mxu0 0
  %8745 = vmatprep.subr.bf16.mxu0 0
  %8746 = vmatpush1.bf16.msra.mxu0 0
  %8747 = vmatprep.mubr.bf16.mxu0 0
  %8748 = vmatmul.mubr.bf16.gmra.mrb[0].mxu0 %v8704
  %v8749 = vpop.f32.mrb[0].mxu0
  %v8750 = vadd.f32 0.0, %v8749
  %v8751 = vpop.f32.mrb[0].mxu0
  %v8752 = vpop.f32.mrb[0].mxu0
  %v8753 = vadd.f32 0.0, %v8752
  %v8754 = vpop.f32.mrb[0].mxu0
  %8755 = vmatprep.mubr.bf16.mxu0 0
  %8756 = vmatmul.mubr.bf16.gmra.mrb[0].mxu0 %v8707
  %v8757 = vpop.f32.mrb[0].mxu0
  %v8758 = vadd.f32 0.0, %v8757
  %v8759 = vpop.f32.mrb[0].mxu0
  %v8760 = vpop.f32.mrb[0].mxu0
  %v8761 = vadd.f32 0.0, %v8760
  %v8762 = vpop.f32.mrb[0].mxu0
  %8763 = vmatprep.mubr.bf16.mxu0 0
  %8764 = vmatmul.mubr.bf16.gmra.mrb[0].mxu0 %v8710
  %v8765 = vpop.f32.mrb[0].mxu0
  %v8766 = vadd.f32 0.0, %v8765
  %v8767 = vpop.f32.mrb[0].mxu0
  %v8768 = vpop.f32.mrb[0].mxu0
  %v8769 = vadd.f32 0.0, %v8768
  %v8770 = vpop.f32.mrb[0].mxu0
  %8771 = vmatprep.mubr.bf16.mxu0 0
  %8772 = vmatmul.mubr.bf16.gmra.mrb[0].mxu0 %v8713
  %v8773 = vpop.f32.mrb[0].mxu0
  %v8774 = vadd.f32 0.0, %v8773
  %v8775 = vpop.f32.mrb[0].mxu0
  %v8776 = vpop.f32.mrb[0].mxu0
  %v8777 = vadd.f32 0.0, %v8776
  %v8778 = vpop.f32.mrb[0].mxu0
  %8779 = vdwg.mxu0
  %v8780 = vadd.f32 %v8538, %v8750
  %v8781 = vadd.f32 %v8539, %v8753
  %v8782 = vadd.f32 %v8540, %v8758
  %v8783 = vadd.f32 %v8541, %v8761
  %v8784 = vadd.f32 %v8542, %v8766
  %v8785 = vadd.f32 %v8543, %v8769
  %v8786 = vadd.f32 %v8544, %v8774
  %v8787 = vadd.f32 %v8545, %v8777
  %v8788 = vld [vmem:[%s1276] sm:$0xe]
  %v8789 = vld [vmem:[%s1276 + $0x8] sm:$0xe]
  %v8790 = vld [vmem:[%s1276 + $0x10] sm:$0xe]
  %v8791 = vld [vmem:[%s1276 + $0x18] sm:$0xe]
  %v8792 = vld [vmem:[%s1276 + $0x20] sm:$0xe]
  %v8793 = vld [vmem:[%s1276 + $0x28] sm:$0xe]
  %v8794 = vld [vmem:[%s1276 + $0x30] sm:$0xe]
  %v8795 = vld [vmem:[%s1276 + $0x38] sm:$0xe]
  %v8812 = vrot.slane %v8788, 5
  %v8813 = vrot.slane %v8812, 4
  %v8814 = vrot.slane %v8547, 5
  %v8815 = vsel %vm587, %v8813, %v8814
  %v8816 = vrot.slane %v8789, 5
  %v8817 = vrot.slane %v8816, 4
  %v8818 = vrot.slane %v8549, 5
  %v8819 = vsel %vm587, %v8817, %v8818
  %v8820 = vrot.slane %v8790, 5
  %v8821 = vrot.slane %v8820, 4
  %v8822 = vrot.slane %v8551, 5
  %v8823 = vsel %vm587, %v8821, %v8822
  %v8824 = vrot.slane %v8791, 5
  %v8825 = vrot.slane %v8824, 4
  %v8826 = vrot.slane %v8553, 5
  %v8827 = vsel %vm587, %v8825, %v8826
  %v8828 = vrot.slane %v8792, 5
  %v8829 = vrot.slane %v8828, 4
  %v8830 = vrot.slane %v8555, 5
  %v8831 = vsel %vm587, %v8829, %v8830
  %v8832 = vrot.slane %v8793, 5
  %v8833 = vrot.slane %v8832, 4
  %v8834 = vrot.slane %v8557, 5
  %v8835 = vsel %vm587, %v8833, %v8834
  %v8836 = vrot.slane %v8794, 5
  %v8837 = vrot.slane %v8836, 4
  %v8838 = vrot.slane %v8559, 5
  %v8839 = vsel %vm587, %v8837, %v8838
  %v8840 = vrot.slane %v8795, 5
  %v8841 = vrot.slane %v8840, 4
  %v8842 = vrot.slane %v8561, 5
  %v8843 = vsel %vm587, %v8841, %v8842
  %s8844 = scalar_lea.vmem %s2, 704
  %v8845 = vld [vmem:[%s8844] sm:$0xf]
  %v8846 = vld [vmem:[%s8844 + $0x4] sm:$0xf]
  %v8847 = vld [vmem:[%s8844 + $0x8] sm:$0xf]
  %v8848 = vld [vmem:[%s8844 + $0xc] sm:$0xf]
  %v8849 = vunpack.c.l.b16 %v8815
  %v8850 = vunpack.c.l.b16 %v8819
  %v8851 = vunpack.c.l.b16 %v8823
  %v8852 = vunpack.c.l.b16 %v8827
  %v8853 = vunpack.c.l.b16 %v8831
  %v8854 = vunpack.c.l.b16 %v8835
  %v8855 = vunpack.c.l.b16 %v8839
  %v8856 = vunpack.c.l.b16 %v8843
  %v8857 = vpack.c.b16 %v8850, %v8849
  %v8858 = vpack.c.b16 %v8852, %v8851
  %v8859 = vpack.c.b16 %v8854, %v8853
  %v8860 = vpack.c.b16 %v8856, %v8855
  %v8865 = vunpack.c.l.b16 %v8845
  %v8866 = vunpack.c.l.b16 %v8846
  %v8867 = vunpack.c.l.b16 %v8847
  %v8868 = vunpack.c.l.b16 %v8848
  %v8869 = vpack.c.b16 %v8866, %v8865
  %v8870 = vpack.c.b16 %v8868, %v8867
  %v8874 = vsel %vm374, %v8857, 0
  %v8877 = vsel %vm374, %v8858, 0
  %v8880 = vsel %vm374, %v8859, 0
  %v8883 = vsel %vm374, %v8860, 0
  %8885 = vmatprep.subr.bf16.mxu0 0
  %8886 = vmatpush1.bf16.msra.mxu0 %v8869
  %8887 = vmatprep.subr.bf16.mxu0 0
  %8888 = vmatpush1.bf16.msra.mxu0 %v8870
  %8889 = vmatprep.subr.bf16.mxu0 0
  %8890 = vmatpush1.bf16.msra.mxu0 0
  %8891 = vmatprep.subr.bf16.mxu0 0
  %8892 = vmatpush1.bf16.msra.mxu0 0
  %8893 = vmatprep.subr.bf16.mxu0 0
  %8894 = vmatpush1.bf16.msra.mxu0 0
  %8895 = vmatprep.subr.bf16.mxu0 0
  %8896 = vmatpush1.bf16.msra.mxu0 0
  %8897 = vmatprep.subr.bf16.mxu0 0
  %8898 = vmatpush1.bf16.msra.mxu0 0
  %8899 = vmatprep.subr.bf16.mxu0 0
  %8900 = vmatpush1.bf16.msra.mxu0 0
  %8901 = vmatprep.subr.bf16.mxu0 0
  %8902 = vmatpush1.bf16.msra.mxu0 0
  %8903 = vmatprep.subr.bf16.mxu0 0
  %8904 = vmatpush1.bf16.msra.mxu0 0
  %8905 = vmatprep.subr.bf16.mxu0 0
  %8906 = vmatpush1.bf16.msra.mxu0 0
  %8907 = vmatprep.subr.bf16.mxu0 0
  %8908 = vmatpush1.bf16.msra.mxu0 0
  %8909 = vmatprep.subr.bf16.mxu0 0
  %8910 = vmatpush1.bf16.msra.mxu0 0
  %8911 = vmatprep.subr.bf16.mxu0 0
  %8912 = vmatpush1.bf16.msra.mxu0 0
  %8913 = vmatprep.subr.bf16.mxu0 0
  %8914 = vmatpush1.bf16.msra.mxu0 0
  %8915 = vmatprep.subr.bf16.mxu0 0
  %8916 = vmatpush1.bf16.msra.mxu0 0
  %8917 = vmatprep.mubr.bf16.mxu0 0
  %8918 = vmatmul.mubr.bf16.gmra.mrb[0].mxu0 %v8874
  %v8919 = vpop.f32.mrb[0].mxu0
  %v8920 = vadd.f32 0.0, %v8919
  %v8921 = vpop.f32.mrb[0].mxu0
  %v8922 = vpop.f32.mrb[0].mxu0
  %v8923 = vadd.f32 0.0, %v8922
  %v8924 = vpop.f32.mrb[0].mxu0
  %8925 = vmatprep.mubr.bf16.mxu0 0
  %8926 = vmatmul.mubr.bf16.gmra.mrb[0].mxu0 %v8877
  %v8927 = vpop.f32.mrb[0].mxu0
  %v8928 = vadd.f32 0.0, %v8927
  %v8929 = vpop.f32.mrb[0].mxu0
  %v8930 = vpop.f32.mrb[0].mxu0
  %v8931 = vadd.f32 0.0, %v8930
  %v8932 = vpop.f32.mrb[0].mxu0
  %8933 = vmatprep.mubr.bf16.mxu0 0
  %8934 = vmatmul.mubr.bf16.gmra.mrb[0].mxu0 %v8880
  %v8935 = vpop.f32.mrb[0].mxu0
  %v8936 = vadd.f32 0.0, %v8935
  %v8937 = vpop.f32.mrb[0].mxu0
  %v8938 = vpop.f32.mrb[0].mxu0
  %v8939 = vadd.f32 0.0, %v8938
  %v8940 = vpop.f32.mrb[0].mxu0
  %8941 = vmatprep.mubr.bf16.mxu0 0
  %8942 = vmatmul.mubr.bf16.gmra.mrb[0].mxu0 %v8883
  %v8943 = vpop.f32.mrb[0].mxu0
  %v8944 = vadd.f32 0.0, %v8943
  %v8945 = vpop.f32.mrb[0].mxu0
  %v8946 = vpop.f32.mrb[0].mxu0
  %v8947 = vadd.f32 0.0, %v8946
  %v8948 = vpop.f32.mrb[0].mxu0
  %8949 = vdwg.mxu0
  %v8950 = vadd.f32 %v8780, %v8920
  %v8951 = vadd.f32 %v8781, %v8923
  %v8952 = vadd.f32 %v8782, %v8928
  %v8953 = vadd.f32 %v8783, %v8931
  %v8954 = vadd.f32 %v8784, %v8936
  %v8955 = vadd.f32 %v8785, %v8939
  %v8956 = vadd.f32 %v8786, %v8944
  %v8957 = vadd.f32 %v8787, %v8947
  %s8958 = scalar_lea.vmem %s3, 4
  %v8959 = vld [vmem:[%s8958] sm:$0x1]
  %v8961 = vlaneseq
  %v8962 = vshrl.u32 %v8961, 7
  %v8963 = vsub.s32 0, %v8962
  %v8964 = vrot.slane %v8959, %v8963
  %v8966 = vadd.f32 %v8950, %v8964
  %v8967 = vadd.f32 %v8951, %v8964
  %v8968 = vadd.f32 %v8952, %v8964
  %v8969 = vadd.f32 %v8953, %v8964
  %v8970 = vadd.f32 %v8954, %v8964
  %v8971 = vadd.f32 %v8955, %v8964
  %v8972 = vadd.f32 %v8956, %v8964
  %v8973 = vadd.f32 %v8957, %v8964
  %v8974 = vmax.f32 %v8966, 0.0
  %v8975 = vmax.f32 %v8967, 0.0
  %v8976 = vmax.f32 %v8968, 0.0
  %v8977 = vmax.f32 %v8969, 0.0
  %v8978 = vmax.f32 %v8970, 0.0
  %v8979 = vmax.f32 %v8971, 0.0
  %v8980 = vmax.f32 %v8972, 0.0
  %v8981 = vmax.f32 %v8973, 0.0
  %v8982 = vpack.c.bf16 %v8974, %v8974
  %v8983 = vpack.c.bf16 %v8975, %v8975
  %v8984 = vpack.c.bf16 %v8976, %v8976
  %v8985 = vpack.c.bf16 %v8977, %v8977
  %v8986 = vpack.c.bf16 %v8978, %v8978
  %v8987 = vpack.c.bf16 %v8979, %v8979
  %v8988 = vpack.c.bf16 %v8980, %v8980
  %v8989 = vpack.c.bf16 %v8981, %v8981
  %v8998 = vunpack.c.l.b16 %v8982
  %v8999 = vunpack.c.l.b16 %v8983
  %v9000 = vunpack.c.l.b16 %v8984
  %v9001 = vunpack.c.l.b16 %v8985
  %v9002 = vunpack.c.l.b16 %v8986
  %v9003 = vunpack.c.l.b16 %v8987
  %v9004 = vunpack.c.l.b16 %v8988
  %v9005 = vunpack.c.l.b16 %v8989
  %v9006 = vpack.c.b16 %v8998, %v8998
  %v9007 = vpack.c.b16 %v8999, %v8999
  %v9008 = vpack.c.b16 %v9000, %v9000
  %v9009 = vpack.c.b16 %v9001, %v9001
  %v9010 = vpack.c.b16 %v9002, %v9002
  %v9011 = vpack.c.b16 %v9003, %v9003
  %v9012 = vpack.c.b16 %v9004, %v9004
  %v9013 = vpack.c.b16 %v9005, %v9005
  %v9015 = vshrl.u32 %v9006, 16
  %v9017 = vrot.slane %v9015, 7
  %v9018 = vshll.u32 %v9006, 16
  %v9020 = vor.u32 %v9017, %v9018
  %v9021 = vrot.slane %v9017, 4
  %v9023 = vshrl.u32 %v9007, 16
  %v9025 = vrot.slane %v9023, 7
  %v9026 = vshll.u32 %v9007, 16
  %v9028 = vor.u32 %v9025, %v9026
  %v9029 = vrot.slane %v9025, 4
  %v9031 = vshrl.u32 %v9008, 16
  %v9033 = vrot.slane %v9031, 7
  %v9034 = vshll.u32 %v9008, 16
  %v9036 = vor.u32 %v9033, %v9034
  %v9037 = vrot.slane %v9033, 4
  %v9039 = vshrl.u32 %v9009, 16
  %v9041 = vrot.slane %v9039, 7
  %v9042 = vshll.u32 %v9009, 16
  %v9044 = vor.u32 %v9041, %v9042
  %v9045 = vrot.slane %v9041, 4
  %v9047 = vshrl.u32 %v9010, 16
  %v9049 = vrot.slane %v9047, 7
  %v9050 = vshll.u32 %v9010, 16
  %v9052 = vor.u32 %v9049, %v9050
  %v9053 = vrot.slane %v9049, 4
  %v9055 = vshrl.u32 %v9011, 16
  %v9057 = vrot.slane %v9055, 7
  %v9058 = vshll.u32 %v9011, 16
  %v9060 = vor.u32 %v9057, %v9058
  %v9061 = vrot.slane %v9057, 4
  %v9063 = vshrl.u32 %v9012, 16
  %v9065 = vrot.slane %v9063, 7
  %v9066 = vshll.u32 %v9012, 16
  %v9068 = vor.u32 %v9065, %v9066
  %v9069 = vrot.slane %v9065, 4
  %v9071 = vshrl.u32 %v9013, 16
  %v9073 = vrot.slane %v9071, 7
  %v9074 = vshll.u32 %v9013, 16
  %v9076 = vor.u32 %v9073, %v9074
  %v9077 = vrot.slane %v9073, 4
  %v9094 = vsel %vm158, %v9020, %v8004
  %9095 = vst [vmem:[%s155] sm:$0xf] %v9094
  %v9096 = vld [vmem:[%s155 + $0x4] sm:$0x1]
  %v9097 = vsel %vm164, %v9021, %v9096
  %9098 = vst [vmem:[%s155 + $0x4] sm:$0x1] %v9097
  %v9099 = vld [vmem:[%s155 + $0x8] sm:$0xf]
  %v9100 = vsel %vm158, %v9028, %v9099
  %9101 = vst [vmem:[%s155 + $0x8] sm:$0xf] %v9100
  %v9102 = vld [vmem:[%s155 + $0xc] sm:$0x1]
  %v9103 = vsel %vm164, %v9029, %v9102
  %9104 = vst [vmem:[%s155 + $0xc] sm:$0x1] %v9103
  %v9105 = vld [vmem:[%s155 + $0x10] sm:$0xf]
  %v9106 = vsel %vm158, %v9036, %v9105
  %9107 = vst [vmem:[%s155 + $0x10] sm:$0xf] %v9106
  %v9108 = vld [vmem:[%s155 + $0x14] sm:$0x1]
  %v9109 = vsel %vm164, %v9037, %v9108
  %9110 = vst [vmem:[%s155 + $0x14] sm:$0x1] %v9109
  %v9111 = vld [vmem:[%s155 + $0x18] sm:$0xf]
  %v9112 = vsel %vm158, %v9044, %v9111
  %9113 = vst [vmem:[%s155 + $0x18] sm:$0xf] %v9112
  %v9114 = vld [vmem:[%s155 + $0x1c] sm:$0x1]
  %v9115 = vsel %vm164, %v9045, %v9114
  %9116 = vst [vmem:[%s155 + $0x1c] sm:$0x1] %v9115
  %v9117 = vld [vmem:[%s155 + $0x20] sm:$0xf]
  %v9118 = vsel %vm158, %v9052, %v9117
  %9119 = vst [vmem:[%s155 + $0x20] sm:$0xf] %v9118
  %v9120 = vld [vmem:[%s155 + $0x24] sm:$0x1]
  %v9121 = vsel %vm164, %v9053, %v9120
  %9122 = vst [vmem:[%s155 + $0x24] sm:$0x1] %v9121
  %v9123 = vld [vmem:[%s155 + $0x28] sm:$0xf]
  %v9124 = vsel %vm158, %v9060, %v9123
  %9125 = vst [vmem:[%s155 + $0x28] sm:$0xf] %v9124
  %v9126 = vld [vmem:[%s155 + $0x2c] sm:$0x1]
  %v9127 = vsel %vm164, %v9061, %v9126
  %9128 = vst [vmem:[%s155 + $0x2c] sm:$0x1] %v9127
  %v9129 = vld [vmem:[%s155 + $0x30] sm:$0xf]
  %v9130 = vsel %vm158, %v9068, %v9129
  %9131 = vst [vmem:[%s155 + $0x30] sm:$0xf] %v9130
  %v9132 = vld [vmem:[%s155 + $0x34] sm:$0x1]
  %v9133 = vsel %vm164, %v9069, %v9132
  %9134 = vst [vmem:[%s155 + $0x34] sm:$0x1] %v9133
  %v9135 = vld [vmem:[%s155 + $0x38] sm:$0xf]
  %v9136 = vsel %vm158, %v9076, %v9135
  %9137 = vst [vmem:[%s155 + $0x38] sm:$0xf] %v9136
  %v9138 = vld [vmem:[%s155 + $0x3c] sm:$0x1]
  %v9139 = vsel %vm164, %v9077, %v9138
  %9140 = vst [vmem:[%s155 + $0x3c] sm:$0x1] %v9139
  %v9141 = vld [vmem:[#allocation2] sm:$0xf]
  %v9142 = vld [vmem:[#allocation2 + $0x8] sm:$0xf]
  %v9143 = vld [vmem:[#allocation2 + $0x10] sm:$0xf]
  %v9144 = vld [vmem:[#allocation2 + $0x18] sm:$0xf]
  %v9145 = vld [vmem:[#allocation2 + $0x20] sm:$0xf]
  %v9146 = vld [vmem:[#allocation2 + $0x28] sm:$0xf]
  %v9147 = vld [vmem:[#allocation2 + $0x30] sm:$0xf]
  %v9148 = vld [vmem:[#allocation2 + $0x38] sm:$0xf]
  %s9149 = scalar_lea.vmem %s2, 720
  %v9150 = vld [vmem:[%s9149] sm:$0xf]
  %v9151 = vld [vmem:[%s9149 + $0x4] sm:$0xf]
  %v9152 = vld [vmem:[%s9149 + $0x8] sm:$0xf]
  %v9153 = vld [vmem:[%s9149 + $0xc] sm:$0xf]
  %v9154 = vld [vmem:[#allocation2 + $0x4] sm:$0x1]
  %v9155 = vld [vmem:[#allocation2 + $0xc] sm:$0x1]
  %v9156 = vld [vmem:[#allocation2 + $0x14] sm:$0x1]
  %v9157 = vld [vmem:[#allocation2 + $0x1c] sm:$0x1]
  %v9158 = vld [vmem:[#allocation2 + $0x24] sm:$0x1]
  %v9159 = vld [vmem:[#allocation2 + $0x2c] sm:$0x1]
  %v9160 = vld [vmem:[#allocation2 + $0x34] sm:$0x1]
  %v9161 = vld [vmem:[#allocation2 + $0x3c] sm:$0x1]
  %v9163 = vshrl.u32 %v9141, 16
  %v9165 = vrot.slane %v9163, 4
  %v9166 = vshll.u32 %v9141, 16
  %v9168 = vrot.slane %v9166, 5
  %v9169 = vor.u32 %v9165, %v9168
  %v9170 = vrot.slane %v9169, 4
  %v9172 = vshll.u32 %v9154, 16
  %v9174 = vrot.slane %v9172, 5
  %v9175 = vsel %vm232, %v9170, %v9174
  %v9177 = vshrl.u32 %v9142, 16
  %v9179 = vrot.slane %v9177, 4
  %v9180 = vshll.u32 %v9142, 16
  %v9182 = vrot.slane %v9180, 5
  %v9183 = vor.u32 %v9179, %v9182
  %v9184 = vrot.slane %v9183, 4
  %v9186 = vshll.u32 %v9155, 16
  %v9188 = vrot.slane %v9186, 5
  %v9189 = vsel %vm232, %v9184, %v9188
  %v9191 = vshrl.u32 %v9143, 16
  %v9193 = vrot.slane %v9191, 4
  %v9194 = vshll.u32 %v9143, 16
  %v9196 = vrot.slane %v9194, 5
  %v9197 = vor.u32 %v9193, %v9196
  %v9198 = vrot.slane %v9197, 4
  %v9200 = vshll.u32 %v9156, 16
  %v9202 = vrot.slane %v9200, 5
  %v9203 = vsel %vm232, %v9198, %v9202
  %v9205 = vshrl.u32 %v9144, 16
  %v9207 = vrot.slane %v9205, 4
  %v9208 = vshll.u32 %v9144, 16
  %v9210 = vrot.slane %v9208, 5
  %v9211 = vor.u32 %v9207, %v9210
  %v9212 = vrot.slane %v9211, 4
  %v9214 = vshll.u32 %v9157, 16
  %v9216 = vrot.slane %v9214, 5
  %v9217 = vsel %vm232, %v9212, %v9216
  %v9219 = vshrl.u32 %v9145, 16
  %v9221 = vrot.slane %v9219, 4
  %v9222 = vshll.u32 %v9145, 16
  %v9224 = vrot.slane %v9222, 5
  %v9225 = vor.u32 %v9221, %v9224
  %v9226 = vrot.slane %v9225, 4
  %v9228 = vshll.u32 %v9158, 16
  %v9230 = vrot.slane %v9228, 5
  %v9231 = vsel %vm232, %v9226, %v9230
  %v9233 = vshrl.u32 %v9146, 16
  %v9235 = vrot.slane %v9233, 4
  %v9236 = vshll.u32 %v9146, 16
  %v9238 = vrot.slane %v9236, 5
  %v9239 = vor.u32 %v9235, %v9238
  %v9240 = vrot.slane %v9239, 4
  %v9242 = vshll.u32 %v9159, 16
  %v9244 = vrot.slane %v9242, 5
  %v9245 = vsel %vm232, %v9240, %v9244
  %v9247 = vshrl.u32 %v9147, 16
  %v9249 = vrot.slane %v9247, 4
  %v9250 = vshll.u32 %v9147, 16
  %v9252 = vrot.slane %v9250, 5
  %v9253 = vor.u32 %v9249, %v9252
  %v9254 = vrot.slane %v9253, 4
  %v9256 = vshll.u32 %v9160, 16
  %v9258 = vrot.slane %v9256, 5
  %v9259 = vsel %vm232, %v9254, %v9258
  %v9261 = vshrl.u32 %v9148, 16
  %v9263 = vrot.slane %v9261, 4
  %v9264 = vshll.u32 %v9148, 16
  %v9266 = vrot.slane %v9264, 5
  %v9267 = vor.u32 %v9263, %v9266
  %v9268 = vrot.slane %v9267, 4
  %v9270 = vshll.u32 %v9161, 16
  %v9272 = vrot.slane %v9270, 5
  %v9273 = vsel %vm232, %v9268, %v9272
  %s9274 = scalar_lea.vmem %s2, 736
  %v9275 = vld [vmem:[%s9274] sm:$0xf]
  %v9276 = vld [vmem:[%s9274 + $0x4] sm:$0xf]
  %v9277 = vld [vmem:[%s9274 + $0x8] sm:$0xf]
  %v9278 = vld [vmem:[%s9274 + $0xc] sm:$0xf]
  %v9279 = vunpack.c.l.b16 %v9175
  %v9280 = vunpack.c.l.b16 %v9189
  %v9281 = vunpack.c.l.b16 %v9203
  %v9282 = vunpack.c.l.b16 %v9217
  %v9283 = vunpack.c.l.b16 %v9231
  %v9284 = vunpack.c.l.b16 %v9245
  %v9285 = vunpack.c.l.b16 %v9259
  %v9286 = vunpack.c.l.b16 %v9273
  %v9287 = vpack.c.b16 %v9280, %v9279
  %v9288 = vpack.c.b16 %v9282, %v9281
  %v9289 = vpack.c.b16 %v9284, %v9283
  %v9290 = vpack.c.b16 %v9286, %v9285
  %v9295 = vunpack.c.l.b16 %v9275
  %v9296 = vunpack.c.l.b16 %v9276
  %v9297 = vunpack.c.l.b16 %v9277
  %v9298 = vunpack.c.l.b16 %v9278
  %v9299 = vpack.c.b16 %v9296, %v9295
  %v9300 = vpack.c.b16 %v9298, %v9297
  %v9304 = vsel %vm374, %v9287, 0
  %v9307 = vsel %vm374, %v9288, 0
  %v9310 = vsel %vm374, %v9289, 0
  %v9313 = vsel %vm374, %v9290, 0
  %9315 = vmatprep.subr.bf16.mxu0 0
  %9316 = vmatpush1.bf16.msra.mxu0 %v9299
  %9317 = vmatprep.subr.bf16.mxu0 0
  %9318 = vmatpush1.bf16.msra.mxu0 %v9300
  %9319 = vmatprep.subr.bf16.mxu0 0
  %9320 = vmatpush1.bf16.msra.mxu0 0
  %9321 = vmatprep.subr.bf16.mxu0 0
  %9322 = vmatpush1.bf16.msra.mxu0 0
  %9323 = vmatprep.subr.bf16.mxu0 0
  %9324 = vmatpush1.bf16.msra.mxu0 0
  %9325 = vmatprep.subr.bf16.mxu0 0
  %9326 = vmatpush1.bf16.msra.mxu0 0
  %9327 = vmatprep.subr.bf16.mxu0 0
  %9328 = vmatpush1.bf16.msra.mxu0 0
  %9329 = vmatprep.subr.bf16.mxu0 0
  %9330 = vmatpush1.bf16.msra.mxu0 0
  %9331 = vmatprep.subr.bf16.mxu0 0
  %9332 = vmatpush1.bf16.msra.mxu0 0
  %9333 = vmatprep.subr.bf16.mxu0 0
  %9334 = vmatpush1.bf16.msra.mxu0 0
  %9335 = vmatprep.subr.bf16.mxu0 0
  %9336 = vmatpush1.bf16.msra.mxu0 0
  %9337 = vmatprep.subr.bf16.mxu0 0
  %9338 = vmatpush1.bf16.msra.mxu0 0
  %9339 = vmatprep.subr.bf16.mxu0 0
  %9340 = vmatpush1.bf16.msra.mxu0 0
  %9341 = vmatprep.subr.bf16.mxu0 0
  %9342 = vmatpush1.bf16.msra.mxu0 0
  %9343 = vmatprep.subr.bf16.mxu0 0
  %9344 = vmatpush1.bf16.msra.mxu0 0
  %9345 = vmatprep.subr.bf16.mxu0 0
  %9346 = vmatpush1.bf16.msra.mxu0 0
  %9347 = vmatprep.mubr.bf16.mxu0 0
  %9348 = vmatmul.mubr.bf16.gmra.mrb[0].mxu0 %v9304
  %v9349 = vpop.f32.mrb[0].mxu0
  %v9350 = vadd.f32 0.0, %v9349
  %v9351 = vpop.f32.mrb[0].mxu0
  %v9352 = vpop.f32.mrb[0].mxu0
  %v9353 = vadd.f32 0.0, %v9352
  %v9354 = vpop.f32.mrb[0].mxu0
  %9355 = vmatprep.mubr.bf16.mxu0 0
  %9356 = vmatmul.mubr.bf16.gmra.mrb[0].mxu0 %v9307
  %v9357 = vpop.f32.mrb[0].mxu0
  %v9358 = vadd.f32 0.0, %v9357
  %v9359 = vpop.f32.mrb[0].mxu0
  %v9360 = vpop.f32.mrb[0].mxu0
  %v9361 = vadd.f32 0.0, %v9360
  %v9362 = vpop.f32.mrb[0].mxu0
  %9363 = vmatprep.mubr.bf16.mxu0 0
  %9364 = vmatmul.mubr.bf16.gmra.mrb[0].mxu0 %v9310
  %v9365 = vpop.f32.mrb[0].mxu0
  %v9366 = vadd.f32 0.0, %v9365
  %v9367 = vpop.f32.mrb[0].mxu0
  %v9368 = vpop.f32.mrb[0].mxu0
  %v9369 = vadd.f32 0.0, %v9368
  %v9370 = vpop.f32.mrb[0].mxu0
  %9371 = vmatprep.mubr.bf16.mxu0 0
  %9372 = vmatmul.mubr.bf16.gmra.mrb[0].mxu0 %v9313
  %v9373 = vpop.f32.mrb[0].mxu0
  %v9374 = vadd.f32 0.0, %v9373
  %v9375 = vpop.f32.mrb[0].mxu0
  %v9376 = vpop.f32.mrb[0].mxu0
  %v9377 = vadd.f32 0.0, %v9376
  %v9378 = vpop.f32.mrb[0].mxu0
  %9379 = vdwg.mxu0
  %v9388 = vunpack.c.l.b16 %v9141
  %v9389 = vunpack.c.l.b16 %v9142
  %v9390 = vunpack.c.l.b16 %v9143
  %v9391 = vunpack.c.l.b16 %v9144
  %v9392 = vunpack.c.l.b16 %v9145
  %v9393 = vunpack.c.l.b16 %v9146
  %v9394 = vunpack.c.l.b16 %v9147
  %v9395 = vunpack.c.l.b16 %v9148
  %v9396 = vpack.c.b16 %v9389, %v9388
  %v9397 = vpack.c.b16 %v9391, %v9390
  %v9398 = vpack.c.b16 %v9393, %v9392
  %v9399 = vpack.c.b16 %v9395, %v9394
  %v9404 = vunpack.c.l.b16 %v9150
  %v9405 = vunpack.c.l.b16 %v9151
  %v9406 = vunpack.c.l.b16 %v9152
  %v9407 = vunpack.c.l.b16 %v9153
  %v9408 = vpack.c.b16 %v9405, %v9404
  %v9409 = vpack.c.b16 %v9407, %v9406
  %v9413 = vsel %vm374, %v9396, 0
  %v9416 = vsel %vm374, %v9397, 0
  %v9419 = vsel %vm374, %v9398, 0
  %v9422 = vsel %vm374, %v9399, 0
  %9424 = vmatprep.subr.bf16.mxu0 0
  %9425 = vmatpush1.bf16.msra.mxu0 %v9408
  %9426 = vmatprep.subr.bf16.mxu0 0
  %9427 = vmatpush1.bf16.msra.mxu0 %v9409
  %9428 = vmatprep.subr.bf16.mxu0 0
  %9429 = vmatpush1.bf16.msra.mxu0 0
  %9430 = vmatprep.subr.bf16.mxu0 0
  %9431 = vmatpush1.bf16.msra.mxu0 0
  %9432 = vmatprep.subr.bf16.mxu0 0
  %9433 = vmatpush1.bf16.msra.mxu0 0
  %9434 = vmatprep.subr.bf16.mxu0 0
  %9435 = vmatpush1.bf16.msra.mxu0 0
  %9436 = vmatprep.subr.bf16.mxu0 0
  %9437 = vmatpush1.bf16.msra.mxu0 0
  %9438 = vmatprep.subr.bf16.mxu0 0
  %9439 = vmatpush1.bf16.msra.mxu0 0
  %9440 = vmatprep.subr.bf16.mxu0 0
  %9441 = vmatpush1.bf16.msra.mxu0 0
  %9442 = vmatprep.subr.bf16.mxu0 0
  %9443 = vmatpush1.bf16.msra.mxu0 0
  %9444 = vmatprep.subr.bf16.mxu0 0
  %9445 = vmatpush1.bf16.msra.mxu0 0
  %9446 = vmatprep.subr.bf16.mxu0 0
  %9447 = vmatpush1.bf16.msra.mxu0 0
  %9448 = vmatprep.subr.bf16.mxu0 0
  %9449 = vmatpush1.bf16.msra.mxu0 0
  %9450 = vmatprep.subr.bf16.mxu0 0
  %9451 = vmatpush1.bf16.msra.mxu0 0
  %9452 = vmatprep.subr.bf16.mxu0 0
  %9453 = vmatpush1.bf16.msra.mxu0 0
  %9454 = vmatprep.subr.bf16.mxu0 0
  %9455 = vmatpush1.bf16.msra.mxu0 0
  %9456 = vmatprep.mubr.bf16.mxu0 0
  %9457 = vmatmul.mubr.bf16.gmra.mrb[0].mxu0 %v9413
  %v9458 = vpop.f32.mrb[0].mxu0
  %v9459 = vadd.f32 %v9350, %v9458
  %v9460 = vpop.f32.mrb[0].mxu0
  %v9461 = vpop.f32.mrb[0].mxu0
  %v9462 = vadd.f32 %v9353, %v9461
  %v9463 = vpop.f32.mrb[0].mxu0
  %9464 = vmatprep.mubr.bf16.mxu0 0
  %9465 = vmatmul.mubr.bf16.gmra.mrb[0].mxu0 %v9416
  %v9466 = vpop.f32.mrb[0].mxu0
  %v9467 = vadd.f32 %v9358, %v9466
  %v9468 = vpop.f32.mrb[0].mxu0
  %v9469 = vpop.f32.mrb[0].mxu0
  %v9470 = vadd.f32 %v9361, %v9469
  %v9471 = vpop.f32.mrb[0].mxu0
  %9472 = vmatprep.mubr.bf16.mxu0 0
  %9473 = vmatmul.mubr.bf16.gmra.mrb[0].mxu0 %v9419
  %v9474 = vpop.f32.mrb[0].mxu0
  %v9475 = vadd.f32 %v9366, %v9474
  %v9476 = vpop.f32.mrb[0].mxu0
  %v9477 = vpop.f32.mrb[0].mxu0
  %v9478 = vadd.f32 %v9369, %v9477
  %v9479 = vpop.f32.mrb[0].mxu0
  %9480 = vmatprep.mubr.bf16.mxu0 0
  %9481 = vmatmul.mubr.bf16.gmra.mrb[0].mxu0 %v9422
  %v9482 = vpop.f32.mrb[0].mxu0
  %v9483 = vadd.f32 %v9374, %v9482
  %v9484 = vpop.f32.mrb[0].mxu0
  %v9485 = vpop.f32.mrb[0].mxu0
  %v9486 = vadd.f32 %v9377, %v9485
  %v9487 = vpop.f32.mrb[0].mxu0
  %9488 = vdwg.mxu0
  %v9489 = vld [vmem:[#allocation2] sm:$0xe]
  %v9490 = vld [vmem:[#allocation2 + $0x8] sm:$0xe]
  %v9491 = vld [vmem:[#allocation2 + $0x10] sm:$0xe]
  %v9492 = vld [vmem:[#allocation2 + $0x18] sm:$0xe]
  %v9493 = vld [vmem:[#allocation2 + $0x20] sm:$0xe]
  %v9494 = vld [vmem:[#allocation2 + $0x28] sm:$0xe]
  %v9495 = vld [vmem:[#allocation2 + $0x30] sm:$0xe]
  %v9496 = vld [vmem:[#allocation2 + $0x38] sm:$0xe]
  %v9513 = vrot.slane %v9489, 5
  %v9514 = vrot.slane %v9513, 4
  %v9515 = vrot.slane %v9154, 5
  %v9516 = vsel %vm587, %v9514, %v9515
  %v9517 = vrot.slane %v9490, 5
  %v9518 = vrot.slane %v9517, 4
  %v9519 = vrot.slane %v9155, 5
  %v9520 = vsel %vm587, %v9518, %v9519
  %v9521 = vrot.slane %v9491, 5
  %v9522 = vrot.slane %v9521, 4
  %v9523 = vrot.slane %v9156, 5
  %v9524 = vsel %vm587, %v9522, %v9523
  %v9525 = vrot.slane %v9492, 5
  %v9526 = vrot.slane %v9525, 4
  %v9527 = vrot.slane %v9157, 5
  %v9528 = vsel %vm587, %v9526, %v9527
  %v9529 = vrot.slane %v9493, 5
  %v9530 = vrot.slane %v9529, 4
  %v9531 = vrot.slane %v9158, 5
  %v9532 = vsel %vm587, %v9530, %v9531
  %v9533 = vrot.slane %v9494, 5
  %v9534 = vrot.slane %v9533, 4
  %v9535 = vrot.slane %v9159, 5
  %v9536 = vsel %vm587, %v9534, %v9535
  %v9537 = vrot.slane %v9495, 5
  %v9538 = vrot.slane %v9537, 4
  %v9539 = vrot.slane %v9160, 5
  %v9540 = vsel %vm587, %v9538, %v9539
  %v9541 = vrot.slane %v9496, 5
  %v9542 = vrot.slane %v9541, 4
  %v9543 = vrot.slane %v9161, 5
  %v9544 = vsel %vm587, %v9542, %v9543
  %s9545 = scalar_lea.vmem %s2, 752
  %v9546 = vld [vmem:[%s9545] sm:$0xf]
  %v9547 = vld [vmem:[%s9545 + $0x4] sm:$0xf]
  %v9548 = vld [vmem:[%s9545 + $0x8] sm:$0xf]
  %v9549 = vld [vmem:[%s9545 + $0xc] sm:$0xf]
  %v9550 = vunpack.c.l.b16 %v9516
  %v9551 = vunpack.c.l.b16 %v9520
  %v9552 = vunpack.c.l.b16 %v9524
  %v9553 = vunpack.c.l.b16 %v9528
  %v9554 = vunpack.c.l.b16 %v9532
  %v9555 = vunpack.c.l.b16 %v9536
  %v9556 = vunpack.c.l.b16 %v9540
  %v9557 = vunpack.c.l.b16 %v9544
  %v9558 = vpack.c.b16 %v9551, %v9550
  %v9559 = vpack.c.b16 %v9553, %v9552
  %v9560 = vpack.c.b16 %v9555, %v9554
  %v9561 = vpack.c.b16 %v9557, %v9556
  %v9566 = vunpack.c.l.b16 %v9546
  %v9567 = vunpack.c.l.b16 %v9547
  %v9568 = vunpack.c.l.b16 %v9548
  %v9569 = vunpack.c.l.b16 %v9549
  %v9570 = vpack.c.b16 %v9567, %v9566
  %v9571 = vpack.c.b16 %v9569, %v9568
  %v9575 = vsel %vm374, %v9558, 0
  %v9578 = vsel %vm374, %v9559, 0
  %v9581 = vsel %vm374, %v9560, 0
  %v9584 = vsel %vm374, %v9561, 0
  %9586 = vmatprep.subr.bf16.mxu0 0
  %9587 = vmatpush1.bf16.msra.mxu0 %v9570
  %9588 = vmatprep.subr.bf16.mxu0 0
  %9589 = vmatpush1.bf16.msra.mxu0 %v9571
  %9590 = vmatprep.subr.bf16.mxu0 0
  %9591 = vmatpush1.bf16.msra.mxu0 0
  %9592 = vmatprep.subr.bf16.mxu0 0
  %9593 = vmatpush1.bf16.msra.mxu0 0
  %9594 = vmatprep.subr.bf16.mxu0 0
  %9595 = vmatpush1.bf16.msra.mxu0 0
  %9596 = vmatprep.subr.bf16.mxu0 0
  %9597 = vmatpush1.bf16.msra.mxu0 0
  %9598 = vmatprep.subr.bf16.mxu0 0
  %9599 = vmatpush1.bf16.msra.mxu0 0
  %9600 = vmatprep.subr.bf16.mxu0 0
  %9601 = vmatpush1.bf16.msra.mxu0 0
  %9602 = vmatprep.subr.bf16.mxu0 0
  %9603 = vmatpush1.bf16.msra.mxu0 0
  %9604 = vmatprep.subr.bf16.mxu0 0
  %9605 = vmatpush1.bf16.msra.mxu0 0
  %9606 = vmatprep.subr.bf16.mxu0 0
  %9607 = vmatpush1.bf16.msra.mxu0 0
  %9608 = vmatprep.subr.bf16.mxu0 0
  %9609 = vmatpush1.bf16.msra.mxu0 0
  %9610 = vmatprep.subr.bf16.mxu0 0
  %9611 = vmatpush1.bf16.msra.mxu0 0
  %9612 = vmatprep.subr.bf16.mxu0 0
  %9613 = vmatpush1.bf16.msra.mxu0 0
  %9614 = vmatprep.subr.bf16.mxu0 0
  %9615 = vmatpush1.bf16.msra.mxu0 0
  %9616 = vmatprep.subr.bf16.mxu0 0
  %9617 = vmatpush1.bf16.msra.mxu0 0
  %9618 = vmatprep.mubr.bf16.mxu0 0
  %9619 = vmatmul.mubr.bf16.gmra.mrb[0].mxu0 %v9575
  %v9620 = vpop.f32.mrb[0].mxu0
  %v9621 = vadd.f32 0.0, %v9620
  %v9622 = vpop.f32.mrb[0].mxu0
  %v9623 = vpop.f32.mrb[0].mxu0
  %v9624 = vadd.f32 0.0, %v9623
  %v9625 = vpop.f32.mrb[0].mxu0
  %9626 = vmatprep.mubr.bf16.mxu0 0
  %9627 = vmatmul.mubr.bf16.gmra.mrb[0].mxu0 %v9578
  %v9628 = vpop.f32.mrb[0].mxu0
  %v9629 = vadd.f32 0.0, %v9628
  %v9630 = vpop.f32.mrb[0].mxu0
  %v9631 = vpop.f32.mrb[0].mxu0
  %v9632 = vadd.f32 0.0, %v9631
  %v9633 = vpop.f32.mrb[0].mxu0
  %9634 = vmatprep.mubr.bf16.mxu0 0
  %9635 = vmatmul.mubr.bf16.gmra.mrb[0].mxu0 %v9581
  %v9636 = vpop.f32.mrb[0].mxu0
  %v9637 = vadd.f32 0.0, %v9636
  %v9638 = vpop.f32.mrb[0].mxu0
  %v9639 = vpop.f32.mrb[0].mxu0
  %v9640 = vadd.f32 0.0, %v9639
  %v9641 = vpop.f32.mrb[0].mxu0
  %9642 = vmatprep.mubr.bf16.mxu0 0
  %9643 = vmatmul.mubr.bf16.gmra.mrb[0].mxu0 %v9584
  %v9644 = vpop.f32.mrb[0].mxu0
  %v9645 = vadd.f32 0.0, %v9644
  %v9646 = vpop.f32.mrb[0].mxu0
  %v9647 = vpop.f32.mrb[0].mxu0
  %v9648 = vadd.f32 0.0, %v9647
  %v9649 = vpop.f32.mrb[0].mxu0
  %9650 = vdwg.mxu0
  %v9651 = vadd.f32 %v9459, %v9621
  %v9652 = vadd.f32 %v9462, %v9624
  %v9653 = vadd.f32 %v9467, %v9629
  %v9654 = vadd.f32 %v9470, %v9632
  %v9655 = vadd.f32 %v9475, %v9637
  %v9656 = vadd.f32 %v9478, %v9640
  %v9657 = vadd.f32 %v9483, %v9645
  %v9658 = vadd.f32 %v9486, %v9648
  %v9659 = vld [vmem:[%s155] sm:$0xf]
  %v9660 = vld [vmem:[%s155 + $0x8] sm:$0xf]
  %v9661 = vld [vmem:[%s155 + $0x10] sm:$0xf]
  %v9662 = vld [vmem:[%s155 + $0x18] sm:$0xf]
  %v9663 = vld [vmem:[%s155 + $0x20] sm:$0xf]
  %v9664 = vld [vmem:[%s155 + $0x28] sm:$0xf]
  %v9665 = vld [vmem:[%s155 + $0x30] sm:$0xf]
  %v9666 = vld [vmem:[%s155 + $0x38] sm:$0xf]
  %s9667 = scalar_lea.vmem %s2, 768
  %v9668 = vld [vmem:[%s9667] sm:$0xf]
  %v9669 = vld [vmem:[%s9667 + $0x4] sm:$0xf]
  %v9670 = vld [vmem:[%s9667 + $0x8] sm:$0xf]
  %v9671 = vld [vmem:[%s9667 + $0xc] sm:$0xf]
  %v9680 = vunpack.c.l.b16 %v9659
  %v9681 = vunpack.c.l.b16 %v9660
  %v9682 = vunpack.c.l.b16 %v9661
  %v9683 = vunpack.c.l.b16 %v9662
  %v9684 = vunpack.c.l.b16 %v9663
  %v9685 = vunpack.c.l.b16 %v9664
  %v9686 = vunpack.c.l.b16 %v9665
  %v9687 = vunpack.c.l.b16 %v9666
  %v9688 = vpack.c.b16 %v9681, %v9680
  %v9689 = vpack.c.b16 %v9683, %v9682
  %v9690 = vpack.c.b16 %v9685, %v9684
  %v9691 = vpack.c.b16 %v9687, %v9686
  %v9696 = vunpack.c.l.b16 %v9668
  %v9697 = vunpack.c.l.b16 %v9669
  %v9698 = vunpack.c.l.b16 %v9670
  %v9699 = vunpack.c.l.b16 %v9671
  %v9700 = vpack.c.b16 %v9697, %v9696
  %v9701 = vpack.c.b16 %v9699, %v9698
  %v9705 = vsel %vm374, %v9688, 0
  %v9708 = vsel %vm374, %v9689, 0
  %v9711 = vsel %vm374, %v9690, 0
  %v9714 = vsel %vm374, %v9691, 0
  %9716 = vmatprep.subr.bf16.mxu0 0
  %9717 = vmatpush1.bf16.msra.mxu0 %v9700
  %9718 = vmatprep.subr.bf16.mxu0 0
  %9719 = vmatpush1.bf16.msra.mxu0 %v9701
  %9720 = vmatprep.subr.bf16.mxu0 0
  %9721 = vmatpush1.bf16.msra.mxu0 0
  %9722 = vmatprep.subr.bf16.mxu0 0
  %9723 = vmatpush1.bf16.msra.mxu0 0
  %9724 = vmatprep.subr.bf16.mxu0 0
  %9725 = vmatpush1.bf16.msra.mxu0 0
  %9726 = vmatprep.subr.bf16.mxu0 0
  %9727 = vmatpush1.bf16.msra.mxu0 0
  %9728 = vmatprep.subr.bf16.mxu0 0
  %9729 = vmatpush1.bf16.msra.mxu0 0
  %9730 = vmatprep.subr.bf16.mxu0 0
  %9731 = vmatpush1.bf16.msra.mxu0 0
  %9732 = vmatprep.subr.bf16.mxu0 0
  %9733 = vmatpush1.bf16.msra.mxu0 0
  %9734 = vmatprep.subr.bf16.mxu0 0
  %9735 = vmatpush1.bf16.msra.mxu0 0
  %9736 = vmatprep.subr.bf16.mxu0 0
  %9737 = vmatpush1.bf16.msra.mxu0 0
  %9738 = vmatprep.subr.bf16.mxu0 0
  %9739 = vmatpush1.bf16.msra.mxu0 0
  %9740 = vmatprep.subr.bf16.mxu0 0
  %9741 = vmatpush1.bf16.msra.mxu0 0
  %9742 = vmatprep.subr.bf16.mxu0 0
  %9743 = vmatpush1.bf16.msra.mxu0 0
  %9744 = vmatprep.subr.bf16.mxu0 0
  %9745 = vmatpush1.bf16.msra.mxu0 0
  %9746 = vmatprep.subr.bf16.mxu0 0
  %9747 = vmatpush1.bf16.msra.mxu0 0
  %9748 = vmatprep.mubr.bf16.mxu0 0
  %9749 = vmatmul.mubr.bf16.gmra.mrb[0].mxu0 %v9705
  %v9750 = vpop.f32.mrb[0].mxu0
  %v9751 = vadd.f32 0.0, %v9750
  %v9752 = vpop.f32.mrb[0].mxu0
  %v9753 = vpop.f32.mrb[0].mxu0
  %v9754 = vadd.f32 0.0, %v9753
  %v9755 = vpop.f32.mrb[0].mxu0
  %9756 = vmatprep.mubr.bf16.mxu0 0
  %9757 = vmatmul.mubr.bf16.gmra.mrb[0].mxu0 %v9708
  %v9758 = vpop.f32.mrb[0].mxu0
  %v9759 = vadd.f32 0.0, %v9758
  %v9760 = vpop.f32.mrb[0].mxu0
  %v9761 = vpop.f32.mrb[0].mxu0
  %v9762 = vadd.f32 0.0, %v9761
  %v9763 = vpop.f32.mrb[0].mxu0
  %9764 = vmatprep.mubr.bf16.mxu0 0
  %9765 = vmatmul.mubr.bf16.gmra.mrb[0].mxu0 %v9711
  %v9766 = vpop.f32.mrb[0].mxu0
  %v9767 = vadd.f32 0.0, %v9766
  %v9768 = vpop.f32.mrb[0].mxu0
  %v9769 = vpop.f32.mrb[0].mxu0
  %v9770 = vadd.f32 0.0, %v9769
  %v9771 = vpop.f32.mrb[0].mxu0
  %9772 = vmatprep.mubr.bf16.mxu0 0
  %9773 = vmatmul.mubr.bf16.gmra.mrb[0].mxu0 %v9714
  %v9774 = vpop.f32.mrb[0].mxu0
  %v9775 = vadd.f32 0.0, %v9774
  %v9776 = vpop.f32.mrb[0].mxu0
  %v9777 = vpop.f32.mrb[0].mxu0
  %v9778 = vadd.f32 0.0, %v9777
  %v9779 = vpop.f32.mrb[0].mxu0
  %9780 = vdwg.mxu0
  %v9781 = vadd.f32 %v9651, %v9751
  %v9782 = vadd.f32 %v9652, %v9754
  %v9783 = vadd.f32 %v9653, %v9759
  %v9784 = vadd.f32 %v9654, %v9762
  %v9785 = vadd.f32 %v9655, %v9767
  %v9786 = vadd.f32 %v9656, %v9770
  %v9787 = vadd.f32 %v9657, %v9775
  %v9788 = vadd.f32 %v9658, %v9778
  %v9789 = vld [vmem:[%s155] sm:$0xf]
  %v9790 = vld [vmem:[%s155 + $0x4] sm:$0x1]
  %v9791 = vld [vmem:[%s155 + $0x8] sm:$0xf]
  %v9792 = vld [vmem:[%s155 + $0xc] sm:$0x1]
  %v9793 = vld [vmem:[%s155 + $0x10] sm:$0xf]
  %v9794 = vld [vmem:[%s155 + $0x14] sm:$0x1]
  %v9795 = vld [vmem:[%s155 + $0x18] sm:$0xf]
  %v9796 = vld [vmem:[%s155 + $0x1c] sm:$0x1]
  %v9797 = vld [vmem:[%s155 + $0x20] sm:$0xf]
  %v9798 = vld [vmem:[%s155 + $0x24] sm:$0x1]
  %v9799 = vld [vmem:[%s155 + $0x28] sm:$0xf]
  %v9800 = vld [vmem:[%s155 + $0x2c] sm:$0x1]
  %v9801 = vld [vmem:[%s155 + $0x30] sm:$0xf]
  %v9802 = vld [vmem:[%s155 + $0x34] sm:$0x1]
  %v9803 = vld [vmem:[%s155 + $0x38] sm:$0xf]
  %v9804 = vld [vmem:[%s155 + $0x3c] sm:$0x1]
  %v9806 = vshrl.u32 %v9789, 16
  %v9808 = vrot.slane %v9806, 4
  %v9809 = vshll.u32 %v9789, 16
  %v9811 = vrot.slane %v9809, 5
  %v9812 = vor.u32 %v9808, %v9811
  %v9813 = vrot.slane %v9812, 4
  %v9815 = vshll.u32 %v9790, 16
  %v9817 = vrot.slane %v9815, 5
  %v9818 = vsel %vm232, %v9813, %v9817
  %v9820 = vshrl.u32 %v9791, 16
  %v9822 = vrot.slane %v9820, 4
  %v9823 = vshll.u32 %v9791, 16
  %v9825 = vrot.slane %v9823, 5
  %v9826 = vor.u32 %v9822, %v9825
  %v9827 = vrot.slane %v9826, 4
  %v9829 = vshll.u32 %v9792, 16
  %v9831 = vrot.slane %v9829, 5
  %v9832 = vsel %vm232, %v9827, %v9831
  %v9834 = vshrl.u32 %v9793, 16
  %v9836 = vrot.slane %v9834, 4
  %v9837 = vshll.u32 %v9793, 16
  %v9839 = vrot.slane %v9837, 5
  %v9840 = vor.u32 %v9836, %v9839
  %v9841 = vrot.slane %v9840, 4
  %v9843 = vshll.u32 %v9794, 16
  %v9845 = vrot.slane %v9843, 5
  %v9846 = vsel %vm232, %v9841, %v9845
  %v9848 = vshrl.u32 %v9795, 16
  %v9850 = vrot.slane %v9848, 4
  %v9851 = vshll.u32 %v9795, 16
  %v9853 = vrot.slane %v9851, 5
  %v9854 = vor.u32 %v9850, %v9853
  %v9855 = vrot.slane %v9854, 4
  %v9857 = vshll.u32 %v9796, 16
  %v9859 = vrot.slane %v9857, 5
  %v9860 = vsel %vm232, %v9855, %v9859
  %v9862 = vshrl.u32 %v9797, 16
  %v9864 = vrot.slane %v9862, 4
  %v9865 = vshll.u32 %v9797, 16
  %v9867 = vrot.slane %v9865, 5
  %v9868 = vor.u32 %v9864, %v9867
  %v9869 = vrot.slane %v9868, 4
  %v9871 = vshll.u32 %v9798, 16
  %v9873 = vrot.slane %v9871, 5
  %v9874 = vsel %vm232, %v9869, %v9873
  %v9876 = vshrl.u32 %v9799, 16
  %v9878 = vrot.slane %v9876, 4
  %v9879 = vshll.u32 %v9799, 16
  %v9881 = vrot.slane %v9879, 5
  %v9882 = vor.u32 %v9878, %v9881
  %v9883 = vrot.slane %v9882, 4
  %v9885 = vshll.u32 %v9800, 16
  %v9887 = vrot.slane %v9885, 5
  %v9888 = vsel %vm232, %v9883, %v9887
  %v9890 = vshrl.u32 %v9801, 16
  %v9892 = vrot.slane %v9890, 4
  %v9893 = vshll.u32 %v9801, 16
  %v9895 = vrot.slane %v9893, 5
  %v9896 = vor.u32 %v9892, %v9895
  %v9897 = vrot.slane %v9896, 4
  %v9899 = vshll.u32 %v9802, 16
  %v9901 = vrot.slane %v9899, 5
  %v9902 = vsel %vm232, %v9897, %v9901
  %v9904 = vshrl.u32 %v9803, 16
  %v9906 = vrot.slane %v9904, 4
  %v9907 = vshll.u32 %v9803, 16
  %v9909 = vrot.slane %v9907, 5
  %v9910 = vor.u32 %v9906, %v9909
  %v9911 = vrot.slane %v9910, 4
  %v9913 = vshll.u32 %v9804, 16
  %v9915 = vrot.slane %v9913, 5
  %v9916 = vsel %vm232, %v9911, %v9915
  %s9917 = scalar_lea.vmem %s2, 784
  %v9918 = vld [vmem:[%s9917] sm:$0xf]
  %v9919 = vld [vmem:[%s9917 + $0x4] sm:$0xf]
  %v9920 = vld [vmem:[%s9917 + $0x8] sm:$0xf]
  %v9921 = vld [vmem:[%s9917 + $0xc] sm:$0xf]
  %v9922 = vunpack.c.l.b16 %v9818
  %v9923 = vunpack.c.l.b16 %v9832
  %v9924 = vunpack.c.l.b16 %v9846
  %v9925 = vunpack.c.l.b16 %v9860
  %v9926 = vunpack.c.l.b16 %v9874
  %v9927 = vunpack.c.l.b16 %v9888
  %v9928 = vunpack.c.l.b16 %v9902
  %v9929 = vunpack.c.l.b16 %v9916
  %v9930 = vpack.c.b16 %v9923, %v9922
  %v9931 = vpack.c.b16 %v9925, %v9924
  %v9932 = vpack.c.b16 %v9927, %v9926
  %v9933 = vpack.c.b16 %v9929, %v9928
  %v9938 = vunpack.c.l.b16 %v9918
  %v9939 = vunpack.c.l.b16 %v9919
  %v9940 = vunpack.c.l.b16 %v9920
  %v9941 = vunpack.c.l.b16 %v9921
  %v9942 = vpack.c.b16 %v9939, %v9938
  %v9943 = vpack.c.b16 %v9941, %v9940
  %v9947 = vsel %vm374, %v9930, 0
  %v9950 = vsel %vm374, %v9931, 0
  %v9953 = vsel %vm374, %v9932, 0
  %v9956 = vsel %vm374, %v9933, 0
  %9958 = vmatprep.subr.bf16.mxu0 0
  %9959 = vmatpush1.bf16.msra.mxu0 %v9942
  %9960 = vmatprep.subr.bf16.mxu0 0
  %9961 = vmatpush1.bf16.msra.mxu0 %v9943
  %9962 = vmatprep.subr.bf16.mxu0 0
  %9963 = vmatpush1.bf16.msra.mxu0 0
  %9964 = vmatprep.subr.bf16.mxu0 0
  %9965 = vmatpush1.bf16.msra.mxu0 0
  %9966 = vmatprep.subr.bf16.mxu0 0
  %9967 = vmatpush1.bf16.msra.mxu0 0
  %9968 = vmatprep.subr.bf16.mxu0 0
  %9969 = vmatpush1.bf16.msra.mxu0 0
  %9970 = vmatprep.subr.bf16.mxu0 0
  %9971 = vmatpush1.bf16.msra.mxu0 0
  %9972 = vmatprep.subr.bf16.mxu0 0
  %9973 = vmatpush1.bf16.msra.mxu0 0
  %9974 = vmatprep.subr.bf16.mxu0 0
  %9975 = vmatpush1.bf16.msra.mxu0 0
  %9976 = vmatprep.subr.bf16.mxu0 0
  %9977 = vmatpush1.bf16.msra.mxu0 0
  %9978 = vmatprep.subr.bf16.mxu0 0
  %9979 = vmatpush1.bf16.msra.mxu0 0
  %9980 = vmatprep.subr.bf16.mxu0 0
  %9981 = vmatpush1.bf16.msra.mxu0 0
  %9982 = vmatprep.subr.bf16.mxu0 0
  %9983 = vmatpush1.bf16.msra.mxu0 0
  %9984 = vmatprep.subr.bf16.mxu0 0
  %9985 = vmatpush1.bf16.msra.mxu0 0
  %9986 = vmatprep.subr.bf16.mxu0 0
  %9987 = vmatpush1.bf16.msra.mxu0 0
  %9988 = vmatprep.subr.bf16.mxu0 0
  %9989 = vmatpush1.bf16.msra.mxu0 0
  %9990 = vmatprep.mubr.bf16.mxu0 0
  %9991 = vmatmul.mubr.bf16.gmra.mrb[0].mxu0 %v9947
  %v9992 = vpop.f32.mrb[0].mxu0
  %v9993 = vadd.f32 0.0, %v9992
  %v9994 = vpop.f32.mrb[0].mxu0
  %v9995 = vpop.f32.mrb[0].mxu0
  %v9996 = vadd.f32 0.0, %v9995
  %v9997 = vpop.f32.mrb[0].mxu0
  %9998 = vmatprep.mubr.bf16.mxu0 0
  %9999 = vmatmul.mubr.bf16.gmra.mrb[0].mxu0 %v9950
  %v10000 = vpop.f32.mrb[0].mxu0
  %v10001 = vadd.f32 0.0, %v10000
  %v10002 = vpop.f32.mrb[0].mxu0
  %v10003 = vpop.f32.mrb[0].mxu0
  %v10004 = vadd.f32 0.0, %v10003
  %v10005 = vpop.f32.mrb[0].mxu0
  %10006 = vmatprep.mubr.bf16.mxu0 0
  %10007 = vmatmul.mubr.bf16.gmra.mrb[0].mxu0 %v9953
  %v10008 = vpop.f32.mrb[0].mxu0
  %v10009 = vadd.f32 0.0, %v10008
  %v10010 = vpop.f32.mrb[0].mxu0
  %v10011 = vpop.f32.mrb[0].mxu0
  %v10012 = vadd.f32 0.0, %v10011
  %v10013 = vpop.f32.mrb[0].mxu0
  %10014 = vmatprep.mubr.bf16.mxu0 0
  %10015 = vmatmul.mubr.bf16.gmra.mrb[0].mxu0 %v9956
  %v10016 = vpop.f32.mrb[0].mxu0
  %v10017 = vadd.f32 0.0, %v10016
  %v10018 = vpop.f32.mrb[0].mxu0
  %v10019 = vpop.f32.mrb[0].mxu0
  %v10020 = vadd.f32 0.0, %v10019
  %v10021 = vpop.f32.mrb[0].mxu0
  %10022 = vdwg.mxu0
  %v10023 = vadd.f32 %v9781, %v9993
  %v10024 = vadd.f32 %v9782, %v9996
  %v10025 = vadd.f32 %v9783, %v10001
  %v10026 = vadd.f32 %v9784, %v10004
  %v10027 = vadd.f32 %v9785, %v10009
  %v10028 = vadd.f32 %v9786, %v10012
  %v10029 = vadd.f32 %v9787, %v10017
  %v10030 = vadd.f32 %v9788, %v10020
  %v10031 = vld [vmem:[%s155] sm:$0xe]
  %v10032 = vld [vmem:[%s155 + $0x8] sm:$0xe]
  %v10033 = vld [vmem:[%s155 + $0x10] sm:$0xe]
  %v10034 = vld [vmem:[%s155 + $0x18] sm:$0xe]
  %v10035 = vld [vmem:[%s155 + $0x20] sm:$0xe]
  %v10036 = vld [vmem:[%s155 + $0x28] sm:$0xe]
  %v10037 = vld [vmem:[%s155 + $0x30] sm:$0xe]
  %v10038 = vld [vmem:[%s155 + $0x38] sm:$0xe]
  %v10055 = vrot.slane %v10031, 5
  %v10056 = vrot.slane %v10055, 4
  %v10057 = vrot.slane %v9790, 5
  %v10058 = vsel %vm587, %v10056, %v10057
  %v10059 = vrot.slane %v10032, 5
  %v10060 = vrot.slane %v10059, 4
  %v10061 = vrot.slane %v9792, 5
  %v10062 = vsel %vm587, %v10060, %v10061
  %v10063 = vrot.slane %v10033, 5
  %v10064 = vrot.slane %v10063, 4
  %v10065 = vrot.slane %v9794, 5
  %v10066 = vsel %vm587, %v10064, %v10065
  %v10067 = vrot.slane %v10034, 5
  %v10068 = vrot.slane %v10067, 4
  %v10069 = vrot.slane %v9796, 5
  %v10070 = vsel %vm587, %v10068, %v10069
  %v10071 = vrot.slane %v10035, 5
  %v10072 = vrot.slane %v10071, 4
  %v10073 = vrot.slane %v9798, 5
  %v10074 = vsel %vm587, %v10072, %v10073
  %v10075 = vrot.slane %v10036, 5
  %v10076 = vrot.slane %v10075, 4
  %v10077 = vrot.slane %v9800, 5
  %v10078 = vsel %vm587, %v10076, %v10077
  %v10079 = vrot.slane %v10037, 5
  %v10080 = vrot.slane %v10079, 4
  %v10081 = vrot.slane %v9802, 5
  %v10082 = vsel %vm587, %v10080, %v10081
  %v10083 = vrot.slane %v10038, 5
  %v10084 = vrot.slane %v10083, 4
  %v10085 = vrot.slane %v9804, 5
  %v10086 = vsel %vm587, %v10084, %v10085
  %s10087 = scalar_lea.vmem %s2, 800
  %v10088 = vld [vmem:[%s10087] sm:$0xf]
  %v10089 = vld [vmem:[%s10087 + $0x4] sm:$0xf]
  %v10090 = vld [vmem:[%s10087 + $0x8] sm:$0xf]
  %v10091 = vld [vmem:[%s10087 + $0xc] sm:$0xf]
  %v10092 = vunpack.c.l.b16 %v10058
  %v10093 = vunpack.c.l.b16 %v10062
  %v10094 = vunpack.c.l.b16 %v10066
  %v10095 = vunpack.c.l.b16 %v10070
  %v10096 = vunpack.c.l.b16 %v10074
  %v10097 = vunpack.c.l.b16 %v10078
  %v10098 = vunpack.c.l.b16 %v10082
  %v10099 = vunpack.c.l.b16 %v10086
  %v10100 = vpack.c.b16 %v10093, %v10092
  %v10101 = vpack.c.b16 %v10095, %v10094
  %v10102 = vpack.c.b16 %v10097, %v10096
  %v10103 = vpack.c.b16 %v10099, %v10098
  %v10108 = vunpack.c.l.b16 %v10088
  %v10109 = vunpack.c.l.b16 %v10089
  %v10110 = vunpack.c.l.b16 %v10090
  %v10111 = vunpack.c.l.b16 %v10091
  %v10112 = vpack.c.b16 %v10109, %v10108
  %v10113 = vpack.c.b16 %v10111, %v10110
  %v10117 = vsel %vm374, %v10100, 0
  %v10120 = vsel %vm374, %v10101, 0
  %v10123 = vsel %vm374, %v10102, 0
  %v10126 = vsel %vm374, %v10103, 0
  %10128 = vmatprep.subr.bf16.mxu0 0
  %10129 = vmatpush1.bf16.msra.mxu0 %v10112
  %10130 = vmatprep.subr.bf16.mxu0 0
  %10131 = vmatpush1.bf16.msra.mxu0 %v10113
  %10132 = vmatprep.subr.bf16.mxu0 0
  %10133 = vmatpush1.bf16.msra.mxu0 0
  %10134 = vmatprep.subr.bf16.mxu0 0
  %10135 = vmatpush1.bf16.msra.mxu0 0
  %10136 = vmatprep.subr.bf16.mxu0 0
  %10137 = vmatpush1.bf16.msra.mxu0 0
  %10138 = vmatprep.subr.bf16.mxu0 0
  %10139 = vmatpush1.bf16.msra.mxu0 0
  %10140 = vmatprep.subr.bf16.mxu0 0
  %10141 = vmatpush1.bf16.msra.mxu0 0
  %10142 = vmatprep.subr.bf16.mxu0 0
  %10143 = vmatpush1.bf16.msra.mxu0 0
  %10144 = vmatprep.subr.bf16.mxu0 0
  %10145 = vmatpush1.bf16.msra.mxu0 0
  %10146 = vmatprep.subr.bf16.mxu0 0
  %10147 = vmatpush1.bf16.msra.mxu0 0
  %10148 = vmatprep.subr.bf16.mxu0 0
  %10149 = vmatpush1.bf16.msra.mxu0 0
  %10150 = vmatprep.subr.bf16.mxu0 0
  %10151 = vmatpush1.bf16.msra.mxu0 0
  %10152 = vmatprep.subr.bf16.mxu0 0
  %10153 = vmatpush1.bf16.msra.mxu0 0
  %10154 = vmatprep.subr.bf16.mxu0 0
  %10155 = vmatpush1.bf16.msra.mxu0 0
  %10156 = vmatprep.subr.bf16.mxu0 0
  %10157 = vmatpush1.bf16.msra.mxu0 0
  %10158 = vmatprep.subr.bf16.mxu0 0
  %10159 = vmatpush1.bf16.msra.mxu0 0
  %10160 = vmatprep.mubr.bf16.mxu0 0
  %10161 = vmatmul.mubr.bf16.gmra.mrb[0].mxu0 %v10117
  %v10162 = vpop.f32.mrb[0].mxu0
  %v10163 = vadd.f32 0.0, %v10162
  %v10164 = vpop.f32.mrb[0].mxu0
  %v10165 = vpop.f32.mrb[0].mxu0
  %v10166 = vadd.f32 0.0, %v10165
  %v10167 = vpop.f32.mrb[0].mxu0
  %10168 = vmatprep.mubr.bf16.mxu0 0
  %10169 = vmatmul.mubr.bf16.gmra.mrb[0].mxu0 %v10120
  %v10170 = vpop.f32.mrb[0].mxu0
  %v10171 = vadd.f32 0.0, %v10170
  %v10172 = vpop.f32.mrb[0].mxu0
  %v10173 = vpop.f32.mrb[0].mxu0
  %v10174 = vadd.f32 0.0, %v10173
  %v10175 = vpop.f32.mrb[0].mxu0
  %10176 = vmatprep.mubr.bf16.mxu0 0
  %10177 = vmatmul.mubr.bf16.gmra.mrb[0].mxu0 %v10123
  %v10178 = vpop.f32.mrb[0].mxu0
  %v10179 = vadd.f32 0.0, %v10178
  %v10180 = vpop.f32.mrb[0].mxu0
  %v10181 = vpop.f32.mrb[0].mxu0
  %v10182 = vadd.f32 0.0, %v10181
  %v10183 = vpop.f32.mrb[0].mxu0
  %10184 = vmatprep.mubr.bf16.mxu0 0
  %10185 = vmatmul.mubr.bf16.gmra.mrb[0].mxu0 %v10126
  %v10186 = vpop.f32.mrb[0].mxu0
  %v10187 = vadd.f32 0.0, %v10186
  %v10188 = vpop.f32.mrb[0].mxu0
  %v10189 = vpop.f32.mrb[0].mxu0
  %v10190 = vadd.f32 0.0, %v10189
  %v10191 = vpop.f32.mrb[0].mxu0
  %10192 = vdwg.mxu0
  %v10193 = vadd.f32 %v10023, %v10163
  %v10194 = vadd.f32 %v10024, %v10166
  %v10195 = vadd.f32 %v10025, %v10171
  %v10196 = vadd.f32 %v10026, %v10174
  %v10197 = vadd.f32 %v10027, %v10179
  %v10198 = vadd.f32 %v10028, %v10182
  %v10199 = vadd.f32 %v10029, %v10187
  %v10200 = vadd.f32 %v10030, %v10190
  %v10201 = vld [vmem:[%s1276] sm:$0xf]
  %v10202 = vld [vmem:[%s1276 + $0x8] sm:$0xf]
  %v10203 = vld [vmem:[%s1276 + $0x10] sm:$0xf]
  %v10204 = vld [vmem:[%s1276 + $0x18] sm:$0xf]
  %v10205 = vld [vmem:[%s1276 + $0x20] sm:$0xf]
  %v10206 = vld [vmem:[%s1276 + $0x28] sm:$0xf]
  %v10207 = vld [vmem:[%s1276 + $0x30] sm:$0xf]
  %v10208 = vld [vmem:[%s1276 + $0x38] sm:$0xf]
  %s10209 = scalar_lea.vmem %s2, 816
  %v10210 = vld [vmem:[%s10209] sm:$0xf]
  %v10211 = vld [vmem:[%s10209 + $0x4] sm:$0xf]
  %v10212 = vld [vmem:[%s10209 + $0x8] sm:$0xf]
  %v10213 = vld [vmem:[%s10209 + $0xc] sm:$0xf]
  %v10222 = vunpack.c.l.b16 %v10201
  %v10223 = vunpack.c.l.b16 %v10202
  %v10224 = vunpack.c.l.b16 %v10203
  %v10225 = vunpack.c.l.b16 %v10204
  %v10226 = vunpack.c.l.b16 %v10205
  %v10227 = vunpack.c.l.b16 %v10206
  %v10228 = vunpack.c.l.b16 %v10207
  %v10229 = vunpack.c.l.b16 %v10208
  %v10230 = vpack.c.b16 %v10223, %v10222
  %v10231 = vpack.c.b16 %v10225, %v10224
  %v10232 = vpack.c.b16 %v10227, %v10226
  %v10233 = vpack.c.b16 %v10229, %v10228
  %v10238 = vunpack.c.l.b16 %v10210
  %v10239 = vunpack.c.l.b16 %v10211
  %v10240 = vunpack.c.l.b16 %v10212
  %v10241 = vunpack.c.l.b16 %v10213
  %v10242 = vpack.c.b16 %v10239, %v10238
  %v10243 = vpack.c.b16 %v10241, %v10240
  %v10247 = vsel %vm374, %v10230, 0
  %v10250 = vsel %vm374, %v10231, 0
  %v10253 = vsel %vm374, %v10232, 0
  %v10256 = vsel %vm374, %v10233, 0
  %10258 = vmatprep.subr.bf16.mxu0 0
  %10259 = vmatpush1.bf16.msra.mxu0 %v10242
  %10260 = vmatprep.subr.bf16.mxu0 0
  %10261 = vmatpush1.bf16.msra.mxu0 %v10243
  %10262 = vmatprep.subr.bf16.mxu0 0
  %10263 = vmatpush1.bf16.msra.mxu0 0
  %10264 = vmatprep.subr.bf16.mxu0 0
  %10265 = vmatpush1.bf16.msra.mxu0 0
  %10266 = vmatprep.subr.bf16.mxu0 0
  %10267 = vmatpush1.bf16.msra.mxu0 0
  %10268 = vmatprep.subr.bf16.mxu0 0
  %10269 = vmatpush1.bf16.msra.mxu0 0
  %10270 = vmatprep.subr.bf16.mxu0 0
  %10271 = vmatpush1.bf16.msra.mxu0 0
  %10272 = vmatprep.subr.bf16.mxu0 0
  %10273 = vmatpush1.bf16.msra.mxu0 0
  %10274 = vmatprep.subr.bf16.mxu0 0
  %10275 = vmatpush1.bf16.msra.mxu0 0
  %10276 = vmatprep.subr.bf16.mxu0 0
  %10277 = vmatpush1.bf16.msra.mxu0 0
  %10278 = vmatprep.subr.bf16.mxu0 0
  %10279 = vmatpush1.bf16.msra.mxu0 0
  %10280 = vmatprep.subr.bf16.mxu0 0
  %10281 = vmatpush1.bf16.msra.mxu0 0
  %10282 = vmatprep.subr.bf16.mxu0 0
  %10283 = vmatpush1.bf16.msra.mxu0 0
  %10284 = vmatprep.subr.bf16.mxu0 0
  %10285 = vmatpush1.bf16.msra.mxu0 0
  %10286 = vmatprep.subr.bf16.mxu0 0
  %10287 = vmatpush1.bf16.msra.mxu0 0
  %10288 = vmatprep.subr.bf16.mxu0 0
  %10289 = vmatpush1.bf16.msra.mxu0 0
  %10290 = vmatprep.mubr.bf16.mxu0 0
  %10291 = vmatmul.mubr.bf16.gmra.mrb[0].mxu0 %v10247
  %v10292 = vpop.f32.mrb[0].mxu0
  %v10293 = vadd.f32 0.0, %v10292
  %v10294 = vpop.f32.mrb[0].mxu0
  %v10295 = vpop.f32.mrb[0].mxu0
  %v10296 = vadd.f32 0.0, %v10295
  %v10297 = vpop.f32.mrb[0].mxu0
  %10298 = vmatprep.mubr.bf16.mxu0 0
  %10299 = vmatmul.mubr.bf16.gmra.mrb[0].mxu0 %v10250
  %v10300 = vpop.f32.mrb[0].mxu0
  %v10301 = vadd.f32 0.0, %v10300
  %v10302 = vpop.f32.mrb[0].mxu0
  %v10303 = vpop.f32.mrb[0].mxu0
  %v10304 = vadd.f32 0.0, %v10303
  %v10305 = vpop.f32.mrb[0].mxu0
  %10306 = vmatprep.mubr.bf16.mxu0 0
  %10307 = vmatmul.mubr.bf16.gmra.mrb[0].mxu0 %v10253
  %v10308 = vpop.f32.mrb[0].mxu0
  %v10309 = vadd.f32 0.0, %v10308
  %v10310 = vpop.f32.mrb[0].mxu0
  %v10311 = vpop.f32.mrb[0].mxu0
  %v10312 = vadd.f32 0.0, %v10311
  %v10313 = vpop.f32.mrb[0].mxu0
  %10314 = vmatprep.mubr.bf16.mxu0 0
  %10315 = vmatmul.mubr.bf16.gmra.mrb[0].mxu0 %v10256
  %v10316 = vpop.f32.mrb[0].mxu0
  %v10317 = vadd.f32 0.0, %v10316
  %v10318 = vpop.f32.mrb[0].mxu0
  %v10319 = vpop.f32.mrb[0].mxu0
  %v10320 = vadd.f32 0.0, %v10319
  %v10321 = vpop.f32.mrb[0].mxu0
  %10322 = vdwg.mxu0
  %v10323 = vadd.f32 %v10193, %v10293
  %v10324 = vadd.f32 %v10194, %v10296
  %v10325 = vadd.f32 %v10195, %v10301
  %v10326 = vadd.f32 %v10196, %v10304
  %v10327 = vadd.f32 %v10197, %v10309
  %v10328 = vadd.f32 %v10198, %v10312
  %v10329 = vadd.f32 %v10199, %v10317
  %v10330 = vadd.f32 %v10200, %v10320
  %v10331 = vld [vmem:[%s1276] sm:$0xf]
  %v10332 = vld [vmem:[%s1276 + $0x4] sm:$0x1]
  %v10333 = vld [vmem:[%s1276 + $0x8] sm:$0xf]
  %v10334 = vld [vmem:[%s1276 + $0xc] sm:$0x1]
  %v10335 = vld [vmem:[%s1276 + $0x10] sm:$0xf]
  %v10336 = vld [vmem:[%s1276 + $0x14] sm:$0x1]
  %v10337 = vld [vmem:[%s1276 + $0x18] sm:$0xf]
  %v10338 = vld [vmem:[%s1276 + $0x1c] sm:$0x1]
  %v10339 = vld [vmem:[%s1276 + $0x20] sm:$0xf]
  %v10340 = vld [vmem:[%s1276 + $0x24] sm:$0x1]
  %v10341 = vld [vmem:[%s1276 + $0x28] sm:$0xf]
  %v10342 = vld [vmem:[%s1276 + $0x2c] sm:$0x1]
  %v10343 = vld [vmem:[%s1276 + $0x30] sm:$0xf]
  %v10344 = vld [vmem:[%s1276 + $0x34] sm:$0x1]
  %v10345 = vld [vmem:[%s1276 + $0x38] sm:$0xf]
  %v10346 = vld [vmem:[%s1276 + $0x3c] sm:$0x1]
  %v10348 = vshrl.u32 %v10331, 16
  %v10350 = vrot.slane %v10348, 4
  %v10351 = vshll.u32 %v10331, 16
  %v10353 = vrot.slane %v10351, 5
  %v10354 = vor.u32 %v10350, %v10353
  %v10355 = vrot.slane %v10354, 4
  %v10357 = vshll.u32 %v10332, 16
  %v10359 = vrot.slane %v10357, 5
  %v10360 = vsel %vm232, %v10355, %v10359
  %v10362 = vshrl.u32 %v10333, 16
  %v10364 = vrot.slane %v10362, 4
  %v10365 = vshll.u32 %v10333, 16
  %v10367 = vrot.slane %v10365, 5
  %v10368 = vor.u32 %v10364, %v10367
  %v10369 = vrot.slane %v10368, 4
  %v10371 = vshll.u32 %v10334, 16
  %v10373 = vrot.slane %v10371, 5
  %v10374 = vsel %vm232, %v10369, %v10373
  %v10376 = vshrl.u32 %v10335, 16
  %v10378 = vrot.slane %v10376, 4
  %v10379 = vshll.u32 %v10335, 16
  %v10381 = vrot.slane %v10379, 5
  %v10382 = vor.u32 %v10378, %v10381
  %v10383 = vrot.slane %v10382, 4
  %v10385 = vshll.u32 %v10336, 16
  %v10387 = vrot.slane %v10385, 5
  %v10388 = vsel %vm232, %v10383, %v10387
  %v10390 = vshrl.u32 %v10337, 16
  %v10392 = vrot.slane %v10390, 4
  %v10393 = vshll.u32 %v10337, 16
  %v10395 = vrot.slane %v10393, 5
  %v10396 = vor.u32 %v10392, %v10395
  %v10397 = vrot.slane %v10396, 4
  %v10399 = vshll.u32 %v10338, 16
  %v10401 = vrot.slane %v10399, 5
  %v10402 = vsel %vm232, %v10397, %v10401
  %v10404 = vshrl.u32 %v10339, 16
  %v10406 = vrot.slane %v10404, 4
  %v10407 = vshll.u32 %v10339, 16
  %v10409 = vrot.slane %v10407, 5
  %v10410 = vor.u32 %v10406, %v10409
  %v10411 = vrot.slane %v10410, 4
  %v10413 = vshll.u32 %v10340, 16
  %v10415 = vrot.slane %v10413, 5
  %v10416 = vsel %vm232, %v10411, %v10415
  %v10418 = vshrl.u32 %v10341, 16
  %v10420 = vrot.slane %v10418, 4
  %v10421 = vshll.u32 %v10341, 16
  %v10423 = vrot.slane %v10421, 5
  %v10424 = vor.u32 %v10420, %v10423
  %v10425 = vrot.slane %v10424, 4
  %v10427 = vshll.u32 %v10342, 16
  %v10429 = vrot.slane %v10427, 5
  %v10430 = vsel %vm232, %v10425, %v10429
  %v10432 = vshrl.u32 %v10343, 16
  %v10434 = vrot.slane %v10432, 4
  %v10435 = vshll.u32 %v10343, 16
  %v10437 = vrot.slane %v10435, 5
  %v10438 = vor.u32 %v10434, %v10437
  %v10439 = vrot.slane %v10438, 4
  %v10441 = vshll.u32 %v10344, 16
  %v10443 = vrot.slane %v10441, 5
  %v10444 = vsel %vm232, %v10439, %v10443
  %v10446 = vshrl.u32 %v10345, 16
  %v10448 = vrot.slane %v10446, 4
  %v10449 = vshll.u32 %v10345, 16
  %v10451 = vrot.slane %v10449, 5
  %v10452 = vor.u32 %v10448, %v10451
  %v10453 = vrot.slane %v10452, 4
  %v10455 = vshll.u32 %v10346, 16
  %v10457 = vrot.slane %v10455, 5
  %v10458 = vsel %vm232, %v10453, %v10457
  %s10459 = scalar_lea.vmem %s2, 832
  %v10460 = vld [vmem:[%s10459] sm:$0xf]
  %v10461 = vld [vmem:[%s10459 + $0x4] sm:$0xf]
  %v10462 = vld [vmem:[%s10459 + $0x8] sm:$0xf]
  %v10463 = vld [vmem:[%s10459 + $0xc] sm:$0xf]
  %v10464 = vunpack.c.l.b16 %v10360
  %v10465 = vunpack.c.l.b16 %v10374
  %v10466 = vunpack.c.l.b16 %v10388
  %v10467 = vunpack.c.l.b16 %v10402
  %v10468 = vunpack.c.l.b16 %v10416
  %v10469 = vunpack.c.l.b16 %v10430
  %v10470 = vunpack.c.l.b16 %v10444
  %v10471 = vunpack.c.l.b16 %v10458
  %v10472 = vpack.c.b16 %v10465, %v10464
  %v10473 = vpack.c.b16 %v10467, %v10466
  %v10474 = vpack.c.b16 %v10469, %v10468
  %v10475 = vpack.c.b16 %v10471, %v10470
  %v10480 = vunpack.c.l.b16 %v10460
  %v10481 = vunpack.c.l.b16 %v10461
  %v10482 = vunpack.c.l.b16 %v10462
  %v10483 = vunpack.c.l.b16 %v10463
  %v10484 = vpack.c.b16 %v10481, %v10480
  %v10485 = vpack.c.b16 %v10483, %v10482
  %v10489 = vsel %vm374, %v10472, 0
  %v10492 = vsel %vm374, %v10473, 0
  %v10495 = vsel %vm374, %v10474, 0
  %v10498 = vsel %vm374, %v10475, 0
  %10500 = vmatprep.subr.bf16.mxu0 0
  %10501 = vmatpush1.bf16.msra.mxu0 %v10484
  %10502 = vmatprep.subr.bf16.mxu0 0
  %10503 = vmatpush1.bf16.msra.mxu0 %v10485
  %10504 = vmatprep.subr.bf16.mxu0 0
  %10505 = vmatpush1.bf16.msra.mxu0 0
  %10506 = vmatprep.subr.bf16.mxu0 0
  %10507 = vmatpush1.bf16.msra.mxu0 0
  %10508 = vmatprep.subr.bf16.mxu0 0
  %10509 = vmatpush1.bf16.msra.mxu0 0
  %10510 = vmatprep.subr.bf16.mxu0 0
  %10511 = vmatpush1.bf16.msra.mxu0 0
  %10512 = vmatprep.subr.bf16.mxu0 0
  %10513 = vmatpush1.bf16.msra.mxu0 0
  %10514 = vmatprep.subr.bf16.mxu0 0
  %10515 = vmatpush1.bf16.msra.mxu0 0
  %10516 = vmatprep.subr.bf16.mxu0 0
  %10517 = vmatpush1.bf16.msra.mxu0 0
  %10518 = vmatprep.subr.bf16.mxu0 0
  %10519 = vmatpush1.bf16.msra.mxu0 0
  %10520 = vmatprep.subr.bf16.mxu0 0
  %10521 = vmatpush1.bf16.msra.mxu0 0
  %10522 = vmatprep.subr.bf16.mxu0 0
  %10523 = vmatpush1.bf16.msra.mxu0 0
  %10524 = vmatprep.subr.bf16.mxu0 0
  %10525 = vmatpush1.bf16.msra.mxu0 0
  %10526 = vmatprep.subr.bf16.mxu0 0
  %10527 = vmatpush1.bf16.msra.mxu0 0
  %10528 = vmatprep.subr.bf16.mxu0 0
  %10529 = vmatpush1.bf16.msra.mxu0 0
  %10530 = vmatprep.subr.bf16.mxu0 0
  %10531 = vmatpush1.bf16.msra.mxu0 0
  %10532 = vmatprep.mubr.bf16.mxu0 0
  %10533 = vmatmul.mubr.bf16.gmra.mrb[0].mxu0 %v10489
  %v10534 = vpop.f32.mrb[0].mxu0
  %v10535 = vadd.f32 0.0, %v10534
  %v10536 = vpop.f32.mrb[0].mxu0
  %v10537 = vpop.f32.mrb[0].mxu0
  %v10538 = vadd.f32 0.0, %v10537
  %v10539 = vpop.f32.mrb[0].mxu0
  %10540 = vmatprep.mubr.bf16.mxu0 0
  %10541 = vmatmul.mubr.bf16.gmra.mrb[0].mxu0 %v10492
  %v10542 = vpop.f32.mrb[0].mxu0
  %v10543 = vadd.f32 0.0, %v10542
  %v10544 = vpop.f32.mrb[0].mxu0
  %v10545 = vpop.f32.mrb[0].mxu0
  %v10546 = vadd.f32 0.0, %v10545
  %v10547 = vpop.f32.mrb[0].mxu0
  %10548 = vmatprep.mubr.bf16.mxu0 0
  %10549 = vmatmul.mubr.bf16.gmra.mrb[0].mxu0 %v10495
  %v10550 = vpop.f32.mrb[0].mxu0
  %v10551 = vadd.f32 0.0, %v10550
  %v10552 = vpop.f32.mrb[0].mxu0
  %v10553 = vpop.f32.mrb[0].mxu0
  %v10554 = vadd.f32 0.0, %v10553
  %v10555 = vpop.f32.mrb[0].mxu0
  %10556 = vmatprep.mubr.bf16.mxu0 0
  %10557 = vmatmul.mubr.bf16.gmra.mrb[0].mxu0 %v10498
  %v10558 = vpop.f32.mrb[0].mxu0
  %v10559 = vadd.f32 0.0, %v10558
  %v10560 = vpop.f32.mrb[0].mxu0
  %v10561 = vpop.f32.mrb[0].mxu0
  %v10562 = vadd.f32 0.0, %v10561
  %v10563 = vpop.f32.mrb[0].mxu0
  %10564 = vdwg.mxu0
  %v10565 = vadd.f32 %v10323, %v10535
  %v10566 = vadd.f32 %v10324, %v10538
  %v10567 = vadd.f32 %v10325, %v10543
  %v10568 = vadd.f32 %v10326, %v10546
  %v10569 = vadd.f32 %v10327, %v10551
  %v10570 = vadd.f32 %v10328, %v10554
  %v10571 = vadd.f32 %v10329, %v10559
  %v10572 = vadd.f32 %v10330, %v10562
  %v10573 = vld [vmem:[%s1276] sm:$0xe]
  %v10574 = vld [vmem:[%s1276 + $0x8] sm:$0xe]
  %v10575 = vld [vmem:[%s1276 + $0x10] sm:$0xe]
  %v10576 = vld [vmem:[%s1276 + $0x18] sm:$0xe]
  %v10577 = vld [vmem:[%s1276 + $0x20] sm:$0xe]
  %v10578 = vld [vmem:[%s1276 + $0x28] sm:$0xe]
  %v10579 = vld [vmem:[%s1276 + $0x30] sm:$0xe]
  %v10580 = vld [vmem:[%s1276 + $0x38] sm:$0xe]
  %v10597 = vrot.slane %v10573, 5
  %v10598 = vrot.slane %v10597, 4
  %v10599 = vrot.slane %v10332, 5
  %v10600 = vsel %vm587, %v10598, %v10599
  %v10601 = vrot.slane %v10574, 5
  %v10602 = vrot.slane %v10601, 4
  %v10603 = vrot.slane %v10334, 5
  %v10604 = vsel %vm587, %v10602, %v10603
  %v10605 = vrot.slane %v10575, 5
  %v10606 = vrot.slane %v10605, 4
  %v10607 = vrot.slane %v10336, 5
  %v10608 = vsel %vm587, %v10606, %v10607
  %v10609 = vrot.slane %v10576, 5
  %v10610 = vrot.slane %v10609, 4
  %v10611 = vrot.slane %v10338, 5
  %v10612 = vsel %vm587, %v10610, %v10611
  %v10613 = vrot.slane %v10577, 5
  %v10614 = vrot.slane %v10613, 4
  %v10615 = vrot.slane %v10340, 5
  %v10616 = vsel %vm587, %v10614, %v10615
  %v10617 = vrot.slane %v10578, 5
  %v10618 = vrot.slane %v10617, 4
  %v10619 = vrot.slane %v10342, 5
  %v10620 = vsel %vm587, %v10618, %v10619
  %v10621 = vrot.slane %v10579, 5
  %v10622 = vrot.slane %v10621, 4
  %v10623 = vrot.slane %v10344, 5
  %v10624 = vsel %vm587, %v10622, %v10623
  %v10625 = vrot.slane %v10580, 5
  %v10626 = vrot.slane %v10625, 4
  %v10627 = vrot.slane %v10346, 5
  %v10628 = vsel %vm587, %v10626, %v10627
  %s10629 = scalar_lea.vmem %s2, 848
  %v10630 = vld [vmem:[%s10629] sm:$0xf]
  %v10631 = vld [vmem:[%s10629 + $0x4] sm:$0xf]
  %v10632 = vld [vmem:[%s10629 + $0x8] sm:$0xf]
  %v10633 = vld [vmem:[%s10629 + $0xc] sm:$0xf]
  %v10634 = vunpack.c.l.b16 %v10600
  %v10635 = vunpack.c.l.b16 %v10604
  %v10636 = vunpack.c.l.b16 %v10608
  %v10637 = vunpack.c.l.b16 %v10612
  %v10638 = vunpack.c.l.b16 %v10616
  %v10639 = vunpack.c.l.b16 %v10620
  %v10640 = vunpack.c.l.b16 %v10624
  %v10641 = vunpack.c.l.b16 %v10628
  %v10642 = vpack.c.b16 %v10635, %v10634
  %v10643 = vpack.c.b16 %v10637, %v10636
  %v10644 = vpack.c.b16 %v10639, %v10638
  %v10645 = vpack.c.b16 %v10641, %v10640
  %v10650 = vunpack.c.l.b16 %v10630
  %v10651 = vunpack.c.l.b16 %v10631
  %v10652 = vunpack.c.l.b16 %v10632
  %v10653 = vunpack.c.l.b16 %v10633
  %v10654 = vpack.c.b16 %v10651, %v10650
  %v10655 = vpack.c.b16 %v10653, %v10652
  %v10659 = vsel %vm374, %v10642, 0
  %v10662 = vsel %vm374, %v10643, 0
  %v10665 = vsel %vm374, %v10644, 0
  %v10668 = vsel %vm374, %v10645, 0
  %10670 = vmatprep.subr.bf16.mxu0 0
  %10671 = vmatpush1.bf16.msra.mxu0 %v10654
  %10672 = vmatprep.subr.bf16.mxu0 0
  %10673 = vmatpush1.bf16.msra.mxu0 %v10655
  %10674 = vmatprep.subr.bf16.mxu0 0
  %10675 = vmatpush1.bf16.msra.mxu0 0
  %10676 = vmatprep.subr.bf16.mxu0 0
  %10677 = vmatpush1.bf16.msra.mxu0 0
  %10678 = vmatprep.subr.bf16.mxu0 0
  %10679 = vmatpush1.bf16.msra.mxu0 0
  %10680 = vmatprep.subr.bf16.mxu0 0
  %10681 = vmatpush1.bf16.msra.mxu0 0
  %10682 = vmatprep.subr.bf16.mxu0 0
  %10683 = vmatpush1.bf16.msra.mxu0 0
  %10684 = vmatprep.subr.bf16.mxu0 0
  %10685 = vmatpush1.bf16.msra.mxu0 0
  %10686 = vmatprep.subr.bf16.mxu0 0
  %10687 = vmatpush1.bf16.msra.mxu0 0
  %10688 = vmatprep.subr.bf16.mxu0 0
  %10689 = vmatpush1.bf16.msra.mxu0 0
  %10690 = vmatprep.subr.bf16.mxu0 0
  %10691 = vmatpush1.bf16.msra.mxu0 0
  %10692 = vmatprep.subr.bf16.mxu0 0
  %10693 = vmatpush1.bf16.msra.mxu0 0
  %10694 = vmatprep.subr.bf16.mxu0 0
  %10695 = vmatpush1.bf16.msra.mxu0 0
  %10696 = vmatprep.subr.bf16.mxu0 0
  %10697 = vmatpush1.bf16.msra.mxu0 0
  %10698 = vmatprep.subr.bf16.mxu0 0
  %10699 = vmatpush1.bf16.msra.mxu0 0
  %10700 = vmatprep.subr.bf16.mxu0 0
  %10701 = vmatpush1.bf16.msra.mxu0 0
  %10702 = vmatprep.mubr.bf16.mxu0 0
  %10703 = vmatmul.mubr.bf16.gmra.mrb[0].mxu0 %v10659
  %v10704 = vpop.f32.mrb[0].mxu0
  %v10705 = vadd.f32 0.0, %v10704
  %v10706 = vpop.f32.mrb[0].mxu0
  %v10707 = vpop.f32.mrb[0].mxu0
  %v10708 = vadd.f32 0.0, %v10707
  %v10709 = vpop.f32.mrb[0].mxu0
  %10710 = vmatprep.mubr.bf16.mxu0 0
  %10711 = vmatmul.mubr.bf16.gmra.mrb[0].mxu0 %v10662
  %v10712 = vpop.f32.mrb[0].mxu0
  %v10713 = vadd.f32 0.0, %v10712
  %v10714 = vpop.f32.mrb[0].mxu0
  %v10715 = vpop.f32.mrb[0].mxu0
  %v10716 = vadd.f32 0.0, %v10715
  %v10717 = vpop.f32.mrb[0].mxu0
  %10718 = vmatprep.mubr.bf16.mxu0 0
  %10719 = vmatmul.mubr.bf16.gmra.mrb[0].mxu0 %v10665
  %v10720 = vpop.f32.mrb[0].mxu0
  %v10721 = vadd.f32 0.0, %v10720
  %v10722 = vpop.f32.mrb[0].mxu0
  %v10723 = vpop.f32.mrb[0].mxu0
  %v10724 = vadd.f32 0.0, %v10723
  %v10725 = vpop.f32.mrb[0].mxu0
  %10726 = vmatprep.mubr.bf16.mxu0 0
  %10727 = vmatmul.mubr.bf16.gmra.mrb[0].mxu0 %v10668
  %v10728 = vpop.f32.mrb[0].mxu0
  %v10729 = vadd.f32 0.0, %v10728
  %v10730 = vpop.f32.mrb[0].mxu0
  %v10731 = vpop.f32.mrb[0].mxu0
  %v10732 = vadd.f32 0.0, %v10731
  %v10733 = vpop.f32.mrb[0].mxu0
  %10734 = vdwg.mxu0
  %v10735 = vadd.f32 %v10565, %v10705
  %v10736 = vadd.f32 %v10566, %v10708
  %v10737 = vadd.f32 %v10567, %v10713
  %v10738 = vadd.f32 %v10568, %v10716
  %v10739 = vadd.f32 %v10569, %v10721
  %v10740 = vadd.f32 %v10570, %v10724
  %v10741 = vadd.f32 %v10571, %v10729
  %v10742 = vadd.f32 %v10572, %v10732
  %s10743 = scalar_lea.vmem %s3, 5
  %v10744 = vld [vmem:[%s10743] sm:$0x1]
  %v10746 = vlaneseq
  %v10747 = vshrl.u32 %v10746, 7
  %v10748 = vsub.s32 0, %v10747
  %v10749 = vrot.slane %v10744, %v10748
  %v10751 = vadd.f32 %v10735, %v10749
  %v10752 = vadd.f32 %v10736, %v10749
  %v10753 = vadd.f32 %v10737, %v10749
  %v10754 = vadd.f32 %v10738, %v10749
  %v10755 = vadd.f32 %v10739, %v10749
  %v10756 = vadd.f32 %v10740, %v10749
  %v10757 = vadd.f32 %v10741, %v10749
  %v10758 = vadd.f32 %v10742, %v10749
  %v10759 = vpack.c.bf16 %v10752, %v10751
  %v10760 = vpack.c.bf16 %v10754, %v10753
  %v10761 = vpack.c.bf16 %v10756, %v10755
  %v10762 = vpack.c.bf16 %v10758, %v10757
  %v10763 = vld [vmem:[%s1] sm:$0xf]
  %v10764 = vld [vmem:[%s4] sm:$0xf]
  %v10765 = vld [vmem:[%s4 + $0x4] sm:$0xf]
  %v10766 = vld [vmem:[%s4 + $0x8] sm:$0xf]
  %v10767 = vld [vmem:[%s4 + $0xc] sm:$0xf]
  %v10768 = vld [vmem:[%s5] sm:$0x1]
  %v10770 = vlaneseq
  %v10771 = vshrl.u32 %v10770, 7
  %v10772 = vsub.s32 0, %v10771
  %v10773 = vrot.slane %v10768, %v10772
  %v10779 = vunpack.c.l.b16 %v10764
  %v10780 = vunpack.c.l.b16 %v10765
  %v10781 = vunpack.c.l.b16 %v10766
  %v10782 = vunpack.c.l.b16 %v10767
  %v10783 = vpack.c.b16 %v10780, %v10779
  %v10784 = vpack.c.b16 %v10782, %v10781
  %v10788 = vsel %vm374, %v10763, 0
  %10790 = vmatprep.subr.bf16.mxu0 0
  %10791 = vmatpush1.bf16.msra.mxu0 %v10783
  %10792 = vmatprep.subr.bf16.mxu0 0
  %10793 = vmatpush1.bf16.msra.mxu0 %v10784
  %10794 = vmatprep.subr.bf16.mxu0 0
  %10795 = vmatpush1.bf16.msra.mxu0 0
  %10796 = vmatprep.subr.bf16.mxu0 0
  %10797 = vmatpush1.bf16.msra.mxu0 0
  %10798 = vmatprep.subr.bf16.mxu0 0
  %10799 = vmatpush1.bf16.msra.mxu0 0
  %10800 = vmatprep.subr.bf16.mxu0 0
  %10801 = vmatpush1.bf16.msra.mxu0 0
  %10802 = vmatprep.subr.bf16.mxu0 0
  %10803 = vmatpush1.bf16.msra.mxu0 0
  %10804 = vmatprep.subr.bf16.mxu0 0
  %10805 = vmatpush1.bf16.msra.mxu0 0
  %10806 = vmatprep.subr.bf16.mxu0 0
  %10807 = vmatpush1.bf16.msra.mxu0 0
  %10808 = vmatprep.subr.bf16.mxu0 0
  %10809 = vmatpush1.bf16.msra.mxu0 0
  %10810 = vmatprep.subr.bf16.mxu0 0
  %10811 = vmatpush1.bf16.msra.mxu0 0
  %10812 = vmatprep.subr.bf16.mxu0 0
  %10813 = vmatpush1.bf16.msra.mxu0 0
  %10814 = vmatprep.subr.bf16.mxu0 0
  %10815 = vmatpush1.bf16.msra.mxu0 0
  %10816 = vmatprep.subr.bf16.mxu0 0
  %10817 = vmatpush1.bf16.msra.mxu0 0
  %10818 = vmatprep.subr.bf16.mxu0 0
  %10819 = vmatpush1.bf16.msra.mxu0 0
  %10820 = vmatprep.subr.bf16.mxu0 0
  %10821 = vmatpush1.bf16.msra.mxu0 0
  %10822 = vmatprep.mubr.bf16.mxu0 0
  %10823 = vmatmul.mubr.bf16.gmra.mrb[0].mxu0 %v10788
  %v10824 = vpop.f32.mrb[0].mxu0
  %v10825 = vadd.f32 %v10773, %v10824
  %v10826 = vpop.f32.mrb[0].mxu0
  %v10827 = vpop.f32.mrb[0].mxu0
  %v10828 = vpop.f32.mrb[0].mxu0
  %10829 = vdwg.mxu0
  %v10830 = vmax.f32 %v10825, 0.0
  %v10831 = vpack.c.bf16 %v10830, %v10830
  %s10832 = scalar_lea.vmem %s4, 16
  %v10833 = vld [vmem:[%s10832] sm:$0xf]
  %v10834 = vld [vmem:[%s10832 + $0x4] sm:$0xf]
  %v10835 = vld [vmem:[%s10832 + $0x8] sm:$0xf]
  %v10836 = vld [vmem:[%s10832 + $0xc] sm:$0xf]
  %s10837 = scalar_lea.vmem %s5, 1
  %v10838 = vld [vmem:[%s10837] sm:$0x1]
  %v10840 = vlaneseq
  %v10841 = vshrl.u32 %v10840, 7
  %v10842 = vsub.s32 0, %v10841
  %v10843 = vrot.slane %v10838, %v10842
  %v10849 = vunpack.c.l.b16 %v10833
  %v10850 = vunpack.c.l.b16 %v10834
  %v10851 = vunpack.c.l.b16 %v10835
  %v10852 = vunpack.c.l.b16 %v10836
  %v10853 = vpack.c.b16 %v10850, %v10849
  %v10854 = vpack.c.b16 %v10852, %v10851
  %v10858 = vsel %vm374, %v10831, 0
  %10860 = vmatprep.subr.bf16.mxu0 0
  %10861 = vmatpush1.bf16.msra.mxu0 %v10853
  %10862 = vmatprep.subr.bf16.mxu0 0
  %10863 = vmatpush1.bf16.msra.mxu0 %v10854
  %10864 = vmatprep.subr.bf16.mxu0 0
  %10865 = vmatpush1.bf16.msra.mxu0 0
  %10866 = vmatprep.subr.bf16.mxu0 0
  %10867 = vmatpush1.bf16.msra.mxu0 0
  %10868 = vmatprep.subr.bf16.mxu0 0
  %10869 = vmatpush1.bf16.msra.mxu0 0
  %10870 = vmatprep.subr.bf16.mxu0 0
  %10871 = vmatpush1.bf16.msra.mxu0 0
  %10872 = vmatprep.subr.bf16.mxu0 0
  %10873 = vmatpush1.bf16.msra.mxu0 0
  %10874 = vmatprep.subr.bf16.mxu0 0
  %10875 = vmatpush1.bf16.msra.mxu0 0
  %10876 = vmatprep.subr.bf16.mxu0 0
  %10877 = vmatpush1.bf16.msra.mxu0 0
  %10878 = vmatprep.subr.bf16.mxu0 0
  %10879 = vmatpush1.bf16.msra.mxu0 0
  %10880 = vmatprep.subr.bf16.mxu0 0
  %10881 = vmatpush1.bf16.msra.mxu0 0
  %10882 = vmatprep.subr.bf16.mxu0 0
  %10883 = vmatpush1.bf16.msra.mxu0 0
  %10884 = vmatprep.subr.bf16.mxu0 0
  %10885 = vmatpush1.bf16.msra.mxu0 0
  %10886 = vmatprep.subr.bf16.mxu0 0
  %10887 = vmatpush1.bf16.msra.mxu0 0
  %10888 = vmatprep.subr.bf16.mxu0 0
  %10889 = vmatpush1.bf16.msra.mxu0 0
  %10890 = vmatprep.subr.bf16.mxu0 0
  %10891 = vmatpush1.bf16.msra.mxu0 0
  %10892 = vmatprep.mubr.bf16.mxu0 0
  %10893 = vmatmul.mubr.bf16.gmra.mrb[0].mxu0 %v10858
  %v10894 = vpop.f32.mrb[0].mxu0
  %v10895 = vadd.f32 %v10843, %v10894
  %v10896 = vpop.f32.mrb[0].mxu0
  %v10897 = vpop.f32.mrb[0].mxu0
  %v10898 = vpop.f32.mrb[0].mxu0
  %10899 = vdwg.mxu0
  %v10900 = vmax.f32 %v10895, 0.0
  %v10901 = vpack.c.bf16 %v10900, %v10900
  %s10902 = scalar_lea.vmem %s4, 32
  %v10903 = vld [vmem:[%s10902] sm:$0xf]
  %v10904 = vld [vmem:[%s10902 + $0x4] sm:$0xf]
  %v10905 = vld [vmem:[%s10902 + $0x8] sm:$0xf]
  %v10906 = vld [vmem:[%s10902 + $0xc] sm:$0xf]
  %s10907 = scalar_lea.vmem %s5, 2
  %v10908 = vld [vmem:[%s10907] sm:$0x1]
  %v10910 = vlaneseq
  %v10911 = vshrl.u32 %v10910, 7
  %v10912 = vsub.s32 0, %v10911
  %v10913 = vrot.slane %v10908, %v10912
  %v10919 = vunpack.c.l.b16 %v10903
  %v10920 = vunpack.c.l.b16 %v10904
  %v10921 = vunpack.c.l.b16 %v10905
  %v10922 = vunpack.c.l.b16 %v10906
  %v10923 = vpack.c.b16 %v10920, %v10919
  %v10924 = vpack.c.b16 %v10922, %v10921
  %v10928 = vsel %vm374, %v10901, 0
  %10930 = vmatprep.subr.bf16.mxu0 0
  %10931 = vmatpush1.bf16.msra.mxu0 %v10923
  %10932 = vmatprep.subr.bf16.mxu0 0
  %10933 = vmatpush1.bf16.msra.mxu0 %v10924
  %10934 = vmatprep.subr.bf16.mxu0 0
  %10935 = vmatpush1.bf16.msra.mxu0 0
  %10936 = vmatprep.subr.bf16.mxu0 0
  %10937 = vmatpush1.bf16.msra.mxu0 0
  %10938 = vmatprep.subr.bf16.mxu0 0
  %10939 = vmatpush1.bf16.msra.mxu0 0
  %10940 = vmatprep.subr.bf16.mxu0 0
  %10941 = vmatpush1.bf16.msra.mxu0 0
  %10942 = vmatprep.subr.bf16.mxu0 0
  %10943 = vmatpush1.bf16.msra.mxu0 0
  %10944 = vmatprep.subr.bf16.mxu0 0
  %10945 = vmatpush1.bf16.msra.mxu0 0
  %10946 = vmatprep.subr.bf16.mxu0 0
  %10947 = vmatpush1.bf16.msra.mxu0 0
  %10948 = vmatprep.subr.bf16.mxu0 0
  %10949 = vmatpush1.bf16.msra.mxu0 0
  %10950 = vmatprep.subr.bf16.mxu0 0
  %10951 = vmatpush1.bf16.msra.mxu0 0
  %10952 = vmatprep.subr.bf16.mxu0 0
  %10953 = vmatpush1.bf16.msra.mxu0 0
  %10954 = vmatprep.subr.bf16.mxu0 0
  %10955 = vmatpush1.bf16.msra.mxu0 0
  %10956 = vmatprep.subr.bf16.mxu0 0
  %10957 = vmatpush1.bf16.msra.mxu0 0
  %10958 = vmatprep.subr.bf16.mxu0 0
  %10959 = vmatpush1.bf16.msra.mxu0 0
  %10960 = vmatprep.subr.bf16.mxu0 0
  %10961 = vmatpush1.bf16.msra.mxu0 0
  %10962 = vmatprep.mubr.bf16.mxu0 0
  %10963 = vmatmul.mubr.bf16.gmra.mrb[0].mxu0 %v10928
  %v10964 = vpop.f32.mrb[0].mxu0
  %v10965 = vadd.f32 %v10913, %v10964
  %v10966 = vpop.f32.mrb[0].mxu0
  %v10967 = vpop.f32.mrb[0].mxu0
  %v10968 = vpop.f32.mrb[0].mxu0
  %10969 = vdwg.mxu0
  %v10970 = vmax.f32 %v10965, 0.0
  %v10971 = vpack.c.bf16 %v10970, %v10970
  %s10972 = scalar_lea.vmem %s4, 48
  %v10973 = vld [vmem:[%s10972] sm:$0xf]
  %v10974 = vld [vmem:[%s10972 + $0x4] sm:$0xf]
  %v10975 = vld [vmem:[%s10972 + $0x8] sm:$0xf]
  %v10976 = vld [vmem:[%s10972 + $0xc] sm:$0xf]
  %s10977 = scalar_lea.vmem %s5, 3
  %v10978 = vld [vmem:[%s10977] sm:$0x1]
  %v10980 = vlaneseq
  %v10981 = vshrl.u32 %v10980, 7
  %v10982 = vsub.s32 0, %v10981
  %v10983 = vrot.slane %v10978, %v10982
  %v10989 = vunpack.c.l.b16 %v10973
  %v10990 = vunpack.c.l.b16 %v10974
  %v10991 = vunpack.c.l.b16 %v10975
  %v10992 = vunpack.c.l.b16 %v10976
  %v10993 = vpack.c.b16 %v10990, %v10989
  %v10994 = vpack.c.b16 %v10992, %v10991
  %v10998 = vsel %vm374, %v10971, 0
  %11000 = vmatprep.subr.bf16.mxu0 0
  %11001 = vmatpush1.bf16.msra.mxu0 %v10993
  %11002 = vmatprep.subr.bf16.mxu0 0
  %11003 = vmatpush1.bf16.msra.mxu0 %v10994
  %11004 = vmatprep.subr.bf16.mxu0 0
  %11005 = vmatpush1.bf16.msra.mxu0 0
  %11006 = vmatprep.subr.bf16.mxu0 0
  %11007 = vmatpush1.bf16.msra.mxu0 0
  %11008 = vmatprep.subr.bf16.mxu0 0
  %11009 = vmatpush1.bf16.msra.mxu0 0
  %11010 = vmatprep.subr.bf16.mxu0 0
  %11011 = vmatpush1.bf16.msra.mxu0 0
  %11012 = vmatprep.subr.bf16.mxu0 0
  %11013 = vmatpush1.bf16.msra.mxu0 0
  %11014 = vmatprep.subr.bf16.mxu0 0
  %11015 = vmatpush1.bf16.msra.mxu0 0
  %11016 = vmatprep.subr.bf16.mxu0 0
  %11017 = vmatpush1.bf16.msra.mxu0 0
  %11018 = vmatprep.subr.bf16.mxu0 0
  %11019 = vmatpush1.bf16.msra.mxu0 0
  %11020 = vmatprep.subr.bf16.mxu0 0
  %11021 = vmatpush1.bf16.msra.mxu0 0
  %11022 = vmatprep.subr.bf16.mxu0 0
  %11023 = vmatpush1.bf16.msra.mxu0 0
  %11024 = vmatprep.subr.bf16.mxu0 0
  %11025 = vmatpush1.bf16.msra.mxu0 0
  %11026 = vmatprep.subr.bf16.mxu0 0
  %11027 = vmatpush1.bf16.msra.mxu0 0
  %11028 = vmatprep.subr.bf16.mxu0 0
  %11029 = vmatpush1.bf16.msra.mxu0 0
  %11030 = vmatprep.subr.bf16.mxu0 0
  %11031 = vmatpush1.bf16.msra.mxu0 0
  %11032 = vmatprep.mubr.bf16.mxu0 0
  %11033 = vmatmul.mubr.bf16.gmra.mrb[0].mxu0 %v10998
  %v11034 = vpop.f32.mrb[0].mxu0
  %v11035 = vadd.f32 %v10983, %v11034
  %v11036 = vpop.f32.mrb[0].mxu0
  %v11037 = vpop.f32.mrb[0].mxu0
  %v11038 = vpop.f32.mrb[0].mxu0
  %11039 = vdwg.mxu0
  %v11040 = vmax.f32 %v11035, 0.0
  %v11041 = vpack.c.bf16 %v11040, %v11040
  %s11042 = scalar_lea.vmem %s4, 64
  %v11043 = vld [vmem:[%s11042] sm:$0xf]
  %v11044 = vld [vmem:[%s11042 + $0x4] sm:$0xf]
  %v11045 = vld [vmem:[%s11042 + $0x8] sm:$0xf]
  %v11046 = vld [vmem:[%s11042 + $0xc] sm:$0xf]
  %s11047 = scalar_lea.vmem %s5, 4
  %v11048 = vld [vmem:[%s11047] sm:$0x1]
  %v11050 = vlaneseq
  %v11051 = vshrl.u32 %v11050, 7
  %v11052 = vsub.s32 0, %v11051
  %v11053 = vrot.slane %v11048, %v11052
  %v11059 = vunpack.c.l.b16 %v11043
  %v11060 = vunpack.c.l.b16 %v11044
  %v11061 = vunpack.c.l.b16 %v11045
  %v11062 = vunpack.c.l.b16 %v11046
  %v11063 = vpack.c.b16 %v11060, %v11059
  %v11064 = vpack.c.b16 %v11062, %v11061
  %v11068 = vsel %vm374, %v11041, 0
  %11070 = vmatprep.subr.bf16.mxu0 0
  %11071 = vmatpush1.bf16.msra.mxu0 %v11063
  %11072 = vmatprep.subr.bf16.mxu0 0
  %11073 = vmatpush1.bf16.msra.mxu0 %v11064
  %11074 = vmatprep.subr.bf16.mxu0 0
  %11075 = vmatpush1.bf16.msra.mxu0 0
  %11076 = vmatprep.subr.bf16.mxu0 0
  %11077 = vmatpush1.bf16.msra.mxu0 0
  %11078 = vmatprep.subr.bf16.mxu0 0
  %11079 = vmatpush1.bf16.msra.mxu0 0
  %11080 = vmatprep.subr.bf16.mxu0 0
  %11081 = vmatpush1.bf16.msra.mxu0 0
  %11082 = vmatprep.subr.bf16.mxu0 0
  %11083 = vmatpush1.bf16.msra.mxu0 0
  %11084 = vmatprep.subr.bf16.mxu0 0
  %11085 = vmatpush1.bf16.msra.mxu0 0
  %11086 = vmatprep.subr.bf16.mxu0 0
  %11087 = vmatpush1.bf16.msra.mxu0 0
  %11088 = vmatprep.subr.bf16.mxu0 0
  %11089 = vmatpush1.bf16.msra.mxu0 0
  %11090 = vmatprep.subr.bf16.mxu0 0
  %11091 = vmatpush1.bf16.msra.mxu0 0
  %11092 = vmatprep.subr.bf16.mxu0 0
  %11093 = vmatpush1.bf16.msra.mxu0 0
  %11094 = vmatprep.subr.bf16.mxu0 0
  %11095 = vmatpush1.bf16.msra.mxu0 0
  %11096 = vmatprep.subr.bf16.mxu0 0
  %11097 = vmatpush1.bf16.msra.mxu0 0
  %11098 = vmatprep.subr.bf16.mxu0 0
  %11099 = vmatpush1.bf16.msra.mxu0 0
  %11100 = vmatprep.subr.bf16.mxu0 0
  %11101 = vmatpush1.bf16.msra.mxu0 0
  %11102 = vmatprep.mubr.bf16.mxu0 0
  %11103 = vmatmul.mubr.bf16.gmra.mrb[0].mxu0 %v11068
  %v11104 = vpop.f32.mrb[0].mxu0
  %v11105 = vadd.f32 %v11053, %v11104
  %v11106 = vpop.f32.mrb[0].mxu0
  %v11107 = vpop.f32.mrb[0].mxu0
  %v11108 = vpop.f32.mrb[0].mxu0
  %11109 = vdwg.mxu0
  %v11110 = vmax.f32 %v11105, 0.0
  %v11111 = vpack.c.bf16 %v11110, %v11110
  %s11112 = scalar_lea.vmem %s4, 80
  %v11113 = vld [vmem:[%s11112] sm:$0xf]
  %v11114 = vld [vmem:[%s11112 + $0x4] sm:$0xf]
  %v11115 = vld [vmem:[%s11112 + $0x8] sm:$0xf]
  %v11116 = vld [vmem:[%s11112 + $0xc] sm:$0xf]
  %s11117 = scalar_lea.vmem %s5, 5
  %v11118 = vld [vmem:[%s11117] sm:$0x1]
  %v11120 = vlaneseq
  %v11121 = vshrl.u32 %v11120, 7
  %v11122 = vsub.s32 0, %v11121
  %v11123 = vrot.slane %v11118, %v11122
  %v11129 = vunpack.c.l.b16 %v11113
  %v11130 = vunpack.c.l.b16 %v11114
  %v11131 = vunpack.c.l.b16 %v11115
  %v11132 = vunpack.c.l.b16 %v11116
  %v11133 = vpack.c.b16 %v11130, %v11129
  %v11134 = vpack.c.b16 %v11132, %v11131
  %v11138 = vsel %vm374, %v11111, 0
  %11140 = vmatprep.subr.bf16.mxu0 0
  %11141 = vmatpush1.bf16.msra.mxu0 %v11133
  %11142 = vmatprep.subr.bf16.mxu0 0
  %11143 = vmatpush1.bf16.msra.mxu0 %v11134
  %11144 = vmatprep.subr.bf16.mxu0 0
  %11145 = vmatpush1.bf16.msra.mxu0 0
  %11146 = vmatprep.subr.bf16.mxu0 0
  %11147 = vmatpush1.bf16.msra.mxu0 0
  %11148 = vmatprep.subr.bf16.mxu0 0
  %11149 = vmatpush1.bf16.msra.mxu0 0
  %11150 = vmatprep.subr.bf16.mxu0 0
  %11151 = vmatpush1.bf16.msra.mxu0 0
  %11152 = vmatprep.subr.bf16.mxu0 0
  %11153 = vmatpush1.bf16.msra.mxu0 0
  %11154 = vmatprep.subr.bf16.mxu0 0
  %11155 = vmatpush1.bf16.msra.mxu0 0
  %11156 = vmatprep.subr.bf16.mxu0 0
  %11157 = vmatpush1.bf16.msra.mxu0 0
  %11158 = vmatprep.subr.bf16.mxu0 0
  %11159 = vmatpush1.bf16.msra.mxu0 0
  %11160 = vmatprep.subr.bf16.mxu0 0
  %11161 = vmatpush1.bf16.msra.mxu0 0
  %11162 = vmatprep.subr.bf16.mxu0 0
  %11163 = vmatpush1.bf16.msra.mxu0 0
  %11164 = vmatprep.subr.bf16.mxu0 0
  %11165 = vmatpush1.bf16.msra.mxu0 0
  %11166 = vmatprep.subr.bf16.mxu0 0
  %11167 = vmatpush1.bf16.msra.mxu0 0
  %11168 = vmatprep.subr.bf16.mxu0 0
  %11169 = vmatpush1.bf16.msra.mxu0 0
  %11170 = vmatprep.subr.bf16.mxu0 0
  %11171 = vmatpush1.bf16.msra.mxu0 0
  %11172 = vmatprep.mubr.bf16.mxu0 0
  %11173 = vmatmul.mubr.bf16.gmra.mrb[0].mxu0 %v11138
  %v11174 = vpop.f32.mrb[0].mxu0
  %v11175 = vadd.f32 %v11123, %v11174
  %v11176 = vpop.f32.mrb[0].mxu0
  %v11177 = vpop.f32.mrb[0].mxu0
  %v11178 = vpop.f32.mrb[0].mxu0
  %11179 = vdwg.mxu0
  %v11180 = vmax.f32 %v11175, 0.0
  %v11181 = vpack.c.bf16 %v11180, %v11180
  %s11182 = scalar_lea.vmem %s4, 96
  %v11183 = vld [vmem:[%s11182] sm:$0xf]
  %v11184 = vld [vmem:[%s11182 + $0x4] sm:$0xf]
  %v11185 = vld [vmem:[%s11182 + $0x8] sm:$0xf]
  %v11186 = vld [vmem:[%s11182 + $0xc] sm:$0xf]
  %s11187 = scalar_lea.vmem %s5, 6
  %v11188 = vld [vmem:[%s11187] sm:$0x1]
  %v11190 = vlaneseq
  %v11191 = vshrl.u32 %v11190, 7
  %v11192 = vsub.s32 0, %v11191
  %v11193 = vrot.slane %v11188, %v11192
  %v11199 = vunpack.c.l.b16 %v11183
  %v11200 = vunpack.c.l.b16 %v11184
  %v11201 = vunpack.c.l.b16 %v11185
  %v11202 = vunpack.c.l.b16 %v11186
  %v11203 = vpack.c.b16 %v11200, %v11199
  %v11204 = vpack.c.b16 %v11202, %v11201
  %v11208 = vsel %vm374, %v11181, 0
  %11210 = vmatprep.subr.bf16.mxu0 0
  %11211 = vmatpush1.bf16.msra.mxu0 %v11203
  %11212 = vmatprep.subr.bf16.mxu0 0
  %11213 = vmatpush1.bf16.msra.mxu0 %v11204
  %11214 = vmatprep.subr.bf16.mxu0 0
  %11215 = vmatpush1.bf16.msra.mxu0 0
  %11216 = vmatprep.subr.bf16.mxu0 0
  %11217 = vmatpush1.bf16.msra.mxu0 0
  %11218 = vmatprep.subr.bf16.mxu0 0
  %11219 = vmatpush1.bf16.msra.mxu0 0
  %11220 = vmatprep.subr.bf16.mxu0 0
  %11221 = vmatpush1.bf16.msra.mxu0 0
  %11222 = vmatprep.subr.bf16.mxu0 0
  %11223 = vmatpush1.bf16.msra.mxu0 0
  %11224 = vmatprep.subr.bf16.mxu0 0
  %11225 = vmatpush1.bf16.msra.mxu0 0
  %11226 = vmatprep.subr.bf16.mxu0 0
  %11227 = vmatpush1.bf16.msra.mxu0 0
  %11228 = vmatprep.subr.bf16.mxu0 0
  %11229 = vmatpush1.bf16.msra.mxu0 0
  %11230 = vmatprep.subr.bf16.mxu0 0
  %11231 = vmatpush1.bf16.msra.mxu0 0
  %11232 = vmatprep.subr.bf16.mxu0 0
  %11233 = vmatpush1.bf16.msra.mxu0 0
  %11234 = vmatprep.subr.bf16.mxu0 0
  %11235 = vmatpush1.bf16.msra.mxu0 0
  %11236 = vmatprep.subr.bf16.mxu0 0
  %11237 = vmatpush1.bf16.msra.mxu0 0
  %11238 = vmatprep.subr.bf16.mxu0 0
  %11239 = vmatpush1.bf16.msra.mxu0 0
  %11240 = vmatprep.subr.bf16.mxu0 0
  %11241 = vmatpush1.bf16.msra.mxu0 0
  %11242 = vmatprep.mubr.bf16.mxu0 0
  %11243 = vmatmul.mubr.bf16.gmra.mrb[0].mxu0 %v11208
  %v11244 = vpop.f32.mrb[0].mxu0
  %v11245 = vadd.f32 %v11193, %v11244
  %v11246 = vpop.f32.mrb[0].mxu0
  %v11247 = vpop.f32.mrb[0].mxu0
  %v11248 = vpop.f32.mrb[0].mxu0
  %11249 = vdwg.mxu0
  %v11250 = vmax.f32 %v11245, 0.0
  %v11251 = vpack.c.bf16 %v11250, %v11250
  %s11252 = scalar_lea.vmem %s4, 112
  %v11253 = vld [vmem:[%s11252] sm:$0xf]
  %v11254 = vld [vmem:[%s11252 + $0x4] sm:$0xf]
  %v11255 = vld [vmem:[%s11252 + $0x8] sm:$0xf]
  %v11256 = vld [vmem:[%s11252 + $0xc] sm:$0xf]
  %s11257 = scalar_lea.vmem %s5, 7
  %v11258 = vld [vmem:[%s11257] sm:$0x1]
  %v11260 = vlaneseq
  %v11261 = vshrl.u32 %v11260, 7
  %v11262 = vsub.s32 0, %v11261
  %v11263 = vrot.slane %v11258, %v11262
  %v11269 = vunpack.c.l.b16 %v11253
  %v11270 = vunpack.c.l.b16 %v11254
  %v11271 = vunpack.c.l.b16 %v11255
  %v11272 = vunpack.c.l.b16 %v11256
  %v11273 = vpack.c.b16 %v11270, %v11269
  %v11274 = vpack.c.b16 %v11272, %v11271
  %v11278 = vsel %vm374, %v11251, 0
  %11280 = vmatprep.subr.bf16.mxu0 0
  %11281 = vmatpush1.bf16.msra.mxu0 %v11273
  %11282 = vmatprep.subr.bf16.mxu0 0
  %11283 = vmatpush1.bf16.msra.mxu0 %v11274
  %11284 = vmatprep.subr.bf16.mxu0 0
  %11285 = vmatpush1.bf16.msra.mxu0 0
  %11286 = vmatprep.subr.bf16.mxu0 0
  %11287 = vmatpush1.bf16.msra.mxu0 0
  %11288 = vmatprep.subr.bf16.mxu0 0
  %11289 = vmatpush1.bf16.msra.mxu0 0
  %11290 = vmatprep.subr.bf16.mxu0 0
  %11291 = vmatpush1.bf16.msra.mxu0 0
  %11292 = vmatprep.subr.bf16.mxu0 0
  %11293 = vmatpush1.bf16.msra.mxu0 0
  %11294 = vmatprep.subr.bf16.mxu0 0
  %11295 = vmatpush1.bf16.msra.mxu0 0
  %11296 = vmatprep.subr.bf16.mxu0 0
  %11297 = vmatpush1.bf16.msra.mxu0 0
  %11298 = vmatprep.subr.bf16.mxu0 0
  %11299 = vmatpush1.bf16.msra.mxu0 0
  %11300 = vmatprep.subr.bf16.mxu0 0
  %11301 = vmatpush1.bf16.msra.mxu0 0
  %11302 = vmatprep.subr.bf16.mxu0 0
  %11303 = vmatpush1.bf16.msra.mxu0 0
  %11304 = vmatprep.subr.bf16.mxu0 0
  %11305 = vmatpush1.bf16.msra.mxu0 0
  %11306 = vmatprep.subr.bf16.mxu0 0
  %11307 = vmatpush1.bf16.msra.mxu0 0
  %11308 = vmatprep.subr.bf16.mxu0 0
  %11309 = vmatpush1.bf16.msra.mxu0 0
  %11310 = vmatprep.subr.bf16.mxu0 0
  %11311 = vmatpush1.bf16.msra.mxu0 0
  %11312 = vmatprep.mubr.bf16.mxu0 0
  %11313 = vmatmul.mubr.bf16.gmra.mrb[0].mxu0 %v11278
  %v11314 = vpop.f32.mrb[0].mxu0
  %v11315 = vadd.f32 %v11263, %v11314
  %v11316 = vpop.f32.mrb[0].mxu0
  %v11317 = vpop.f32.mrb[0].mxu0
  %v11318 = vpop.f32.mrb[0].mxu0
  %11319 = vdwg.mxu0
  %v11320 = vpack.c.bf16 %v11315, %v11315
  %v11321 = vunpack.c.l.bf16 %v10759
  %v11322 = vunpack.c.h.bf16 %v10759
  %v11323 = vunpack.c.l.bf16 %v10760
  %v11324 = vunpack.c.h.bf16 %v10760
  %v11325 = vunpack.c.l.bf16 %v10761
  %v11326 = vunpack.c.h.bf16 %v10761
  %v11327 = vunpack.c.l.bf16 %v10762
  %v11328 = vunpack.c.h.bf16 %v10762
  %v11329 = vld [vmem:[%s6] sm:$0xf]
  %v11330 = vld [vmem:[%s6 + $0x4] sm:$0xf]
  %v11331 = vld [vmem:[%s6 + $0x8] sm:$0xf]
  %v11332 = vld [vmem:[%s6 + $0xc] sm:$0xf]
  %v11333 = vld [vmem:[%s6 + $0x10] sm:$0xf]
  %v11334 = vld [vmem:[%s6 + $0x14] sm:$0xf]
  %v11335 = vld [vmem:[%s6 + $0x18] sm:$0xf]
  %v11336 = vld [vmem:[%s6 + $0x1c] sm:$0xf]
  %v11337 = vunpack.c.l.bf16 %v11329
  %v11338 = vunpack.c.l.bf16 %v11330
  %v11339 = vunpack.c.l.bf16 %v11331
  %v11340 = vunpack.c.l.bf16 %v11332
  %v11341 = vunpack.c.l.bf16 %v11333
  %v11342 = vunpack.c.l.bf16 %v11334
  %v11343 = vunpack.c.l.bf16 %v11335
  %v11344 = vunpack.c.l.bf16 %v11336
  %v11345 = vmul.f32 %v11321, %v11337
  %v11346 = vmul.f32 %v11322, %v11338
  %v11347 = vmul.f32 %v11323, %v11339
  %v11348 = vmul.f32 %v11324, %v11340
  %v11349 = vmul.f32 %v11325, %v11341
  %v11350 = vmul.f32 %v11326, %v11342
  %v11351 = vmul.f32 %v11327, %v11343
  %v11352 = vmul.f32 %v11328, %v11344
  %v11353 = vsel %vm374, %v11345, 0.0
  %v11354 = vsel %vm374, %v11346, 0.0
  %v11355 = vadd.f32 %v11353, %v11354
  %v11356 = vsel %vm374, %v11347, 0.0
  %v11357 = vadd.f32 %v11355, %v11356
  %v11358 = vsel %vm374, %v11348, 0.0
  %v11359 = vadd.f32 %v11357, %v11358
  %v11360 = vsel %vm374, %v11349, 0.0
  %v11361 = vadd.f32 %v11359, %v11360
  %v11362 = vsel %vm374, %v11350, 0.0
  %v11363 = vadd.f32 %v11361, %v11362
  %v11364 = vsel %vm374, %v11351, 0.0
  %v11365 = vadd.f32 %v11363, %v11364
  %v11366 = vsel %vm374, %v11352, 0.0
  %v11367 = vadd.f32 %v11365, %v11366
  %v11368 = vrot.slane %v11367, 4
  %v11369 = vadd.f32 %v11367, %v11368
  %v11370 = vrot.slane %v11369, 2
  %v11371 = vadd.f32 %v11369, %v11370
  %v11372 = vrot.slane %v11371, 1
  %v11373 = vadd.f32 %v11371, %v11372
  %v11374 = vld [vmem:[%s7] sm:$0xf]
  %v11375 = vld [vmem:[%s7 + $0x4] sm:$0xf]
  %v11376 = vld [vmem:[%s7 + $0x8] sm:$0xf]
  %v11377 = vld [vmem:[%s7 + $0xc] sm:$0xf]
  %v11382 = vunpack.c.l.b16 %v11374
  %v11383 = vunpack.c.l.b16 %v11375
  %v11384 = vunpack.c.l.b16 %v11376
  %v11385 = vunpack.c.l.b16 %v11377
  %v11386 = vpack.c.b16 %v11383, %v11382
  %v11387 = vpack.c.b16 %v11385, %v11384
  %v11391 = vsel %vm374, %v11320, 0
  %11393 = vmatprep.subr.bf16.mxu0 0
  %11394 = vmatpush1.bf16.msra.mxu0 %v11386
  %11395 = vmatprep.subr.bf16.mxu0 0
  %11396 = vmatpush1.bf16.msra.mxu0 %v11387
  %11397 = vmatprep.subr.bf16.mxu0 0
  %11398 = vmatpush1.bf16.msra.mxu0 0
  %11399 = vmatprep.subr.bf16.mxu0 0
  %11400 = vmatpush1.bf16.msra.mxu0 0
  %11401 = vmatprep.subr.bf16.mxu0 0
  %11402 = vmatpush1.bf16.msra.mxu0 0
  %11403 = vmatprep.subr.bf16.mxu0 0
  %11404 = vmatpush1.bf16.msra.mxu0 0
  %11405 = vmatprep.subr.bf16.mxu0 0
  %11406 = vmatpush1.bf16.msra.mxu0 0
  %11407 = vmatprep.subr.bf16.mxu0 0
  %11408 = vmatpush1.bf16.msra.mxu0 0
  %11409 = vmatprep.subr.bf16.mxu0 0
  %11410 = vmatpush1.bf16.msra.mxu0 0
  %11411 = vmatprep.subr.bf16.mxu0 0
  %11412 = vmatpush1.bf16.msra.mxu0 0
  %11413 = vmatprep.subr.bf16.mxu0 0
  %11414 = vmatpush1.bf16.msra.mxu0 0
  %11415 = vmatprep.subr.bf16.mxu0 0
  %11416 = vmatpush1.bf16.msra.mxu0 0
  %11417 = vmatprep.subr.bf16.mxu0 0
  %11418 = vmatpush1.bf16.msra.mxu0 0
  %11419 = vmatprep.subr.bf16.mxu0 0
  %11420 = vmatpush1.bf16.msra.mxu0 0
  %11421 = vmatprep.subr.bf16.mxu0 0
  %11422 = vmatpush1.bf16.msra.mxu0 0
  %11423 = vmatprep.subr.bf16.mxu0 0
  %11424 = vmatpush1.bf16.msra.mxu0 0
  %11425 = vmatprep.mubr.bf16.mxu0 0
  %11426 = vmatmul.mubr.bf16.gmra.mrb[0].mxu0 %v11391
  %v11427 = vpop.f32.mrb[0].mxu0
  %v11428 = vadd.f32 0.0, %v11427
  %v11429 = vpop.f32.mrb[0].mxu0
  %v11430 = vpop.f32.mrb[0].mxu0
  %v11431 = vpop.f32.mrb[0].mxu0
  %11432 = vdwg.mxu0
  %v11433 = vadd.f32 %v11373, %v11428
  %v11434 = vld [vmem:[%s8] sm:$0x1]
  %v11436 = vlaneseq
  %v11437 = vshrl.u32 %v11436, 7
  %v11438 = vsub.s32 0, %v11437
  %v11439 = vrot.slane %v11434, %v11438
  %v11441 = vadd.f32 %v11433, %v11439
  %v11442 = vmax.f32 %v11441, 0.0
  %v11443 = vpack.c.bf16 %v11442, %v11442
  %v11444 = vld [vmem:[%s9] sm:$0xf]
  %v11445 = vld [vmem:[%s9 + $0x4] sm:$0xf]
  %v11446 = vld [vmem:[%s9 + $0x8] sm:$0xf]
  %v11447 = vld [vmem:[%s9 + $0xc] sm:$0xf]
  %v11448 = vld [vmem:[%s10] sm:$0x1]
  %v11450 = vlaneseq
  %v11451 = vshrl.u32 %v11450, 7
  %v11452 = vsub.s32 0, %v11451
  %v11453 = vrot.slane %v11448, %v11452
  %v11459 = vunpack.c.l.b16 %v11444
  %v11460 = vunpack.c.l.b16 %v11445
  %v11461 = vunpack.c.l.b16 %v11446
  %v11462 = vunpack.c.l.b16 %v11447
  %v11463 = vpack.c.b16 %v11460, %v11459
  %v11464 = vpack.c.b16 %v11462, %v11461
  %v11468 = vsel %vm374, %v11443, 0
  %11470 = vmatprep.subr.bf16.mxu0 0
  %11471 = vmatpush1.bf16.msra.mxu0 %v11463
  %11472 = vmatprep.subr.bf16.mxu0 0
  %11473 = vmatpush1.bf16.msra.mxu0 %v11464
  %11474 = vmatprep.subr.bf16.mxu0 0
  %11475 = vmatpush1.bf16.msra.mxu0 0
  %11476 = vmatprep.subr.bf16.mxu0 0
  %11477 = vmatpush1.bf16.msra.mxu0 0
  %11478 = vmatprep.subr.bf16.mxu0 0
  %11479 = vmatpush1.bf16.msra.mxu0 0
  %11480 = vmatprep.subr.bf16.mxu0 0
  %11481 = vmatpush1.bf16.msra.mxu0 0
  %11482 = vmatprep.subr.bf16.mxu0 0
  %11483 = vmatpush1.bf16.msra.mxu0 0
  %11484 = vmatprep.subr.bf16.mxu0 0
  %11485 = vmatpush1.bf16.msra.mxu0 0
  %11486 = vmatprep.subr.bf16.mxu0 0
  %11487 = vmatpush1.bf16.msra.mxu0 0
  %11488 = vmatprep.subr.bf16.mxu0 0
  %11489 = vmatpush1.bf16.msra.mxu0 0
  %11490 = vmatprep.subr.bf16.mxu0 0
  %11491 = vmatpush1.bf16.msra.mxu0 0
  %11492 = vmatprep.subr.bf16.mxu0 0
  %11493 = vmatpush1.bf16.msra.mxu0 0
  %11494 = vmatprep.subr.bf16.mxu0 0
  %11495 = vmatpush1.bf16.msra.mxu0 0
  %11496 = vmatprep.subr.bf16.mxu0 0
  %11497 = vmatpush1.bf16.msra.mxu0 0
  %11498 = vmatprep.subr.bf16.mxu0 0
  %11499 = vmatpush1.bf16.msra.mxu0 0
  %11500 = vmatprep.subr.bf16.mxu0 0
  %11501 = vmatpush1.bf16.msra.mxu0 0
  %11502 = vmatprep.mubr.bf16.mxu0 0
  %11503 = vmatmul.mubr.bf16.gmra.mrb[0].mxu0 %v11468
  %v11504 = vpop.f32.mrb[0].mxu0
  %v11505 = vadd.f32 %v11453, %v11504
  %v11506 = vpop.f32.mrb[0].mxu0
  %v11507 = vpop.f32.mrb[0].mxu0
  %v11508 = vpop.f32.mrb[0].mxu0
  %11509 = vdwg.mxu0
  %v11510 = vmax.f32 %v11505, 0.0
  %v11511 = vpack.c.bf16 %v11510, %v11510
  %s11512 = scalar_lea.vmem %s9, 16
  %v11513 = vld [vmem:[%s11512] sm:$0xf]
  %v11514 = vld [vmem:[%s11512 + $0x4] sm:$0xf]
  %v11515 = vld [vmem:[%s11512 + $0x8] sm:$0xf]
  %v11516 = vld [vmem:[%s11512 + $0xc] sm:$0xf]
  %s11517 = scalar_lea.vmem %s10, 1
  %v11518 = vld [vmem:[%s11517] sm:$0x1]
  %v11520 = vlaneseq
  %v11521 = vshrl.u32 %v11520, 7
  %v11522 = vsub.s32 0, %v11521
  %v11523 = vrot.slane %v11518, %v11522
  %v11529 = vunpack.c.l.b16 %v11513
  %v11530 = vunpack.c.l.b16 %v11514
  %v11531 = vunpack.c.l.b16 %v11515
  %v11532 = vunpack.c.l.b16 %v11516
  %v11533 = vpack.c.b16 %v11530, %v11529
  %v11534 = vpack.c.b16 %v11532, %v11531
  %v11538 = vsel %vm374, %v11511, 0
  %11540 = vmatprep.subr.bf16.mxu0 0
  %11541 = vmatpush1.bf16.msra.mxu0 %v11533
  %11542 = vmatprep.subr.bf16.mxu0 0
  %11543 = vmatpush1.bf16.msra.mxu0 %v11534
  %11544 = vmatprep.subr.bf16.mxu0 0
  %11545 = vmatpush1.bf16.msra.mxu0 0
  %11546 = vmatprep.subr.bf16.mxu0 0
  %11547 = vmatpush1.bf16.msra.mxu0 0
  %11548 = vmatprep.subr.bf16.mxu0 0
  %11549 = vmatpush1.bf16.msra.mxu0 0
  %11550 = vmatprep.subr.bf16.mxu0 0
  %11551 = vmatpush1.bf16.msra.mxu0 0
  %11552 = vmatprep.subr.bf16.mxu0 0
  %11553 = vmatpush1.bf16.msra.mxu0 0
  %11554 = vmatprep.subr.bf16.mxu0 0
  %11555 = vmatpush1.bf16.msra.mxu0 0
  %11556 = vmatprep.subr.bf16.mxu0 0
  %11557 = vmatpush1.bf16.msra.mxu0 0
  %11558 = vmatprep.subr.bf16.mxu0 0
  %11559 = vmatpush1.bf16.msra.mxu0 0
  %11560 = vmatprep.subr.bf16.mxu0 0
  %11561 = vmatpush1.bf16.msra.mxu0 0
  %11562 = vmatprep.subr.bf16.mxu0 0
  %11563 = vmatpush1.bf16.msra.mxu0 0
  %11564 = vmatprep.subr.bf16.mxu0 0
  %11565 = vmatpush1.bf16.msra.mxu0 0
  %11566 = vmatprep.subr.bf16.mxu0 0
  %11567 = vmatpush1.bf16.msra.mxu0 0
  %11568 = vmatprep.subr.bf16.mxu0 0
  %11569 = vmatpush1.bf16.msra.mxu0 0
  %11570 = vmatprep.subr.bf16.mxu0 0
  %11571 = vmatpush1.bf16.msra.mxu0 0
  %11572 = vmatprep.mubr.bf16.mxu0 0
  %11573 = vmatmul.mubr.bf16.gmra.mrb[0].mxu0 %v11538
  %v11574 = vpop.f32.mrb[0].mxu0
  %v11575 = vadd.f32 %v11523, %v11574
  %v11576 = vpop.f32.mrb[0].mxu0
  %v11577 = vpop.f32.mrb[0].mxu0
  %v11578 = vpop.f32.mrb[0].mxu0
  %11579 = vdwg.mxu0
  %v11580 = vmax.f32 %v11575, 0.0
  %v11581 = vpack.c.bf16 %v11580, %v11580
  %s11582 = scalar_lea.vmem %s9, 32
  %v11583 = vld [vmem:[%s11582] sm:$0xf]
  %v11584 = vld [vmem:[%s11582 + $0x4] sm:$0xf]
  %v11585 = vld [vmem:[%s11582 + $0x8] sm:$0xf]
  %v11586 = vld [vmem:[%s11582 + $0xc] sm:$0xf]
  %s11587 = scalar_lea.vmem %s10, 2
  %v11588 = vld [vmem:[%s11587] sm:$0x1]
  %v11590 = vlaneseq
  %v11591 = vshrl.u32 %v11590, 7
  %v11592 = vsub.s32 0, %v11591
  %v11593 = vrot.slane %v11588, %v11592
  %v11599 = vunpack.c.l.b16 %v11583
  %v11600 = vunpack.c.l.b16 %v11584
  %v11601 = vunpack.c.l.b16 %v11585
  %v11602 = vunpack.c.l.b16 %v11586
  %v11603 = vpack.c.b16 %v11600, %v11599
  %v11604 = vpack.c.b16 %v11602, %v11601
  %v11608 = vsel %vm374, %v11581, 0
  %11610 = vmatprep.subr.bf16.mxu0 0
  %11611 = vmatpush1.bf16.msra.mxu0 %v11603
  %11612 = vmatprep.subr.bf16.mxu0 0
  %11613 = vmatpush1.bf16.msra.mxu0 %v11604
  %11614 = vmatprep.subr.bf16.mxu0 0
  %11615 = vmatpush1.bf16.msra.mxu0 0
  %11616 = vmatprep.subr.bf16.mxu0 0
  %11617 = vmatpush1.bf16.msra.mxu0 0
  %11618 = vmatprep.subr.bf16.mxu0 0
  %11619 = vmatpush1.bf16.msra.mxu0 0
  %11620 = vmatprep.subr.bf16.mxu0 0
  %11621 = vmatpush1.bf16.msra.mxu0 0
  %11622 = vmatprep.subr.bf16.mxu0 0
  %11623 = vmatpush1.bf16.msra.mxu0 0
  %11624 = vmatprep.subr.bf16.mxu0 0
  %11625 = vmatpush1.bf16.msra.mxu0 0
  %11626 = vmatprep.subr.bf16.mxu0 0
  %11627 = vmatpush1.bf16.msra.mxu0 0
  %11628 = vmatprep.subr.bf16.mxu0 0
  %11629 = vmatpush1.bf16.msra.mxu0 0
  %11630 = vmatprep.subr.bf16.mxu0 0
  %11631 = vmatpush1.bf16.msra.mxu0 0
  %11632 = vmatprep.subr.bf16.mxu0 0
  %11633 = vmatpush1.bf16.msra.mxu0 0
  %11634 = vmatprep.subr.bf16.mxu0 0
  %11635 = vmatpush1.bf16.msra.mxu0 0
  %11636 = vmatprep.subr.bf16.mxu0 0
  %11637 = vmatpush1.bf16.msra.mxu0 0
  %11638 = vmatprep.subr.bf16.mxu0 0
  %11639 = vmatpush1.bf16.msra.mxu0 0
  %11640 = vmatprep.subr.bf16.mxu0 0
  %11641 = vmatpush1.bf16.msra.mxu0 0
  %11642 = vmatprep.mubr.bf16.mxu0 0
  %11643 = vmatmul.mubr.bf16.gmra.mrb[0].mxu0 %v11608
  %v11644 = vpop.f32.mrb[0].mxu0
  %v11645 = vadd.f32 %v11593, %v11644
  %v11646 = vpop.f32.mrb[0].mxu0
  %v11647 = vpop.f32.mrb[0].mxu0
  %v11648 = vpop.f32.mrb[0].mxu0
  %11649 = vdwg.mxu0
  %v11650 = vmax.f32 %v11645, 0.0
  %v11651 = vpack.c.bf16 %v11650, %v11650
  %v11652 = vld [vmem:[%s11] sm:$0xf]
  %v11653 = vld [vmem:[%s11 + $0x4] sm:$0xf]
  %v11654 = vld [vmem:[%s11 + $0x8] sm:$0xf]
  %v11655 = vld [vmem:[%s11 + $0xc] sm:$0xf]
  %v11656 = vld [vmem:[%s12] sm:$0x1]
  %v11658 = vlaneseq
  %v11659 = vshrl.u32 %v11658, 7
  %v11660 = vsub.s32 0, %v11659
  %v11661 = vrot.slane %v11656, %v11660
  %v11667 = vunpack.c.l.b16 %v11652
  %v11668 = vunpack.c.l.b16 %v11653
  %v11669 = vunpack.c.l.b16 %v11654
  %v11670 = vunpack.c.l.b16 %v11655
  %v11671 = vpack.c.b16 %v11668, %v11667
  %v11672 = vpack.c.b16 %v11670, %v11669
  %v11676 = vsel %vm374, %v11651, 0
  %11678 = vmatprep.subr.bf16.mxu0 0
  %11679 = vmatpush1.bf16.msra.mxu0 %v11671
  %11680 = vmatprep.subr.bf16.mxu0 0
  %11681 = vmatpush1.bf16.msra.mxu0 %v11672
  %11682 = vmatprep.subr.bf16.mxu0 0
  %11683 = vmatpush1.bf16.msra.mxu0 0
  %11684 = vmatprep.subr.bf16.mxu0 0
  %11685 = vmatpush1.bf16.msra.mxu0 0
  %11686 = vmatprep.subr.bf16.mxu0 0
  %11687 = vmatpush1.bf16.msra.mxu0 0
  %11688 = vmatprep.subr.bf16.mxu0 0
  %11689 = vmatpush1.bf16.msra.mxu0 0
  %11690 = vmatprep.subr.bf16.mxu0 0
  %11691 = vmatpush1.bf16.msra.mxu0 0
  %11692 = vmatprep.subr.bf16.mxu0 0
  %11693 = vmatpush1.bf16.msra.mxu0 0
  %11694 = vmatprep.subr.bf16.mxu0 0
  %11695 = vmatpush1.bf16.msra.mxu0 0
  %11696 = vmatprep.subr.bf16.mxu0 0
  %11697 = vmatpush1.bf16.msra.mxu0 0
  %11698 = vmatprep.subr.bf16.mxu0 0
  %11699 = vmatpush1.bf16.msra.mxu0 0
  %11700 = vmatprep.subr.bf16.mxu0 0
  %11701 = vmatpush1.bf16.msra.mxu0 0
  %11702 = vmatprep.subr.bf16.mxu0 0
  %11703 = vmatpush1.bf16.msra.mxu0 0
  %11704 = vmatprep.subr.bf16.mxu0 0
  %11705 = vmatpush1.bf16.msra.mxu0 0
  %11706 = vmatprep.subr.bf16.mxu0 0
  %11707 = vmatpush1.bf16.msra.mxu0 0
  %11708 = vmatprep.subr.bf16.mxu0 0
  %11709 = vmatpush1.bf16.msra.mxu0 0
  %11710 = vmatprep.mubr.bf16.mxu0 0
  %11711 = vmatmul.mubr.bf16.gmra.mrb[0].mxu0 %v11676
  %v11712 = vpop.f32.mrb[0].mxu0
  %v11713 = vadd.f32 %v11661, %v11712
  %v11714 = vpop.f32.mrb[0].mxu0
  %v11715 = vpop.f32.mrb[0].mxu0
  %v11716 = vpop.f32.mrb[0].mxu0
  %11717 = vdwg.mxu0
  %vm11718 = vcmask 23552
  %11719 = vst.msk [vmem:[%s13] sm:$0xff] %vm11718, %v11713
  // Predicated region
  $region54: #{deeponet_conv_forward.1} parent=0 // pred_check
    _
  $region55: #{deeponet_conv_forward.1} parent=0 // pred_check_branch
    %11721 = sbr.rel (0) target = $region57
  $region56: #{deeponet_conv_forward.1} parent=0 // pred_region
    _
  $region57: #{deeponet_conv_forward.1} parent=0 // pred_fallthru
    _
  // Predicated region
  $region58: #{deeponet_conv_forward.1} parent=0 // pred_check
    _
  $region59: #{deeponet_conv_forward.1} parent=0 // pred_check_branch
    %11723 = sbr.rel (0) target = $region61
  $region60: #{deeponet_conv_forward.1} parent=0 // pred_region
    _
  $region61: #{deeponet_conv_forward.1} parent=0 // pred_fallthru
    _

</llo_original>
